<compile_context>
chip_gen: v6e
topology: v6e:2x2x1
jax: 0.10.0
libtpu: 0.0.40
codegen_flags: <defaults>
</compile_context>

<pallas_src>
import functools
import numpy as np
import jax
import jax.numpy as jnp
from jax.experimental import pallas as pl
from jax.experimental.pallas import tpu as pltpu

NUM_CLASSES = 7
CPAD = 8                         # classes padded 7 -> 8 (sublane friendly)
_VMEM_LIMIT = 32 * 1024 * 1024   # explicit scoped-VMEM limit for every pallas_call


# ------------------------------- Pallas kernels -------------------------------

def _conv1x1_kernel(x_ref, w_ref, b_ref, o_ref, *, relu):
    """Channel-major 1x1 conv tile: o[0] = relu?(w @ x[0] + b).

    w: (Cout, Cin) bf16, x: (1, Cin, tm) bf16, b: (Cout, 1) f32 -> o: (1, Cout, tm) bf16.
    Flattened spatial (tm) rides the 128-lane dim; f32 accumulation on the MXU.
    """
    acc = jnp.dot(w_ref[...], x_ref[0].astype(jnp.bfloat16),
                  preferred_element_type=jnp.float32)
    acc = acc + b_ref[...]
    if relu:
        acc = jnp.maximum(acc, 0.0)
    o_ref[0] = acc.astype(o_ref.dtype)


def _fcn_head_kernel(sc1_ref, sc2_ref, sc3_ref,
                     uh2_ref, uw2t_ref, uh4_ref, uw4t_ref, uh8_ref, uw8t_ref,
                     o_ref):
    """Fused FCN decode head for one batch element / one tile of TH output rows.

    Per (padded) class channel c the chain
        upsample_2x(scores1) -> + scores2 -> upsample_4x -> + scores3 -> upsample_8x
    is evaluated with every bilinear ConvTranspose2d applied separably as
    Uh @ X @ Uw^T.  All intermediates live in VMEM; the 8x stage only uses the TH rows
    of Uh8 owned by this grid step, so the store is a lane-dense (TH, W) slab written
    straight into the channel-major (NCHW) result.
    """
    f32 = jnp.float32
    bf16 = jnp.bfloat16
    for c in range(CPAD):                          # static unroll over class channels
        # upsample_2x(scores1(s3)): /32 -> /16
        a = jnp.dot(uh2_ref[...], sc3_ref[0, c], preferred_element_type=f32)
        a = jnp.dot(a.astype(bf16), uw2t_ref[...], preferred_element_type=f32)
        # + scores2(s2); upsample_4x (a 2x spatial step, as in the reference): /16 -> /8
        a = a + sc2_ref[0, c].astype(f32)
        a = jnp.dot(uh4_ref[...], a.astype(bf16), preferred_element_type=f32)
        a = jnp.dot(a.astype(bf16), uw4t_ref[...], preferred_element_type=f32)
        # + scores3(s1); upsample_8x: /8 -> full resolution (this step's TH-row tile)
        a = a + sc1_ref[0, c].astype(f32)
        a = jnp.dot(uh8_ref[...], a.astype(bf16), preferred_element_type=f32)
        a = jnp.dot(a.astype(bf16), uw8t_ref[...], preferred_element_type=f32)
        o_ref[0, c] = a.astype(o_ref.dtype)


# ------------------------------- host wrappers --------------------------------

def conv1x1_cm(x, w, b, *, relu, tile=2048):
    """nn.Conv2d(Cin, Cout, 1) on a channel-major activation: (B, Cin, M) -> (B, Cout, M)."""
    B, Cin, M = x.shape
    Cout = w.shape[0]
    tm = M if M <= tile else tile               # tile is a multiple of 128; ragged tail is masked
    kernel = functools.partial(_conv1x1_kernel, relu=relu)
    return pl.pallas_call(
        kernel,
        out_shape=jax.ShapeDtypeStruct((B, Cout, M), jnp.bfloat16),
        grid=(B, pl.cdiv(M, tm)),
        in_specs=[
            pl.BlockSpec((1, Cin, tm), lambda n, m: (n, 0, m)),
            pl.BlockSpec((Cout, Cin), lambda n, m: (0, 0)),
            pl.BlockSpec((Cout, 1), lambda n, m: (0, 0)),
        ],
        out_specs=pl.BlockSpec((1, Cout, tm), lambda n, m: (n, 0, m)),
        compiler_params=pltpu.CompilerParams(
            dimension_semantics=("parallel", "parallel"),
            vmem_limit_bytes=_VMEM_LIMIT),
    )(x, w, b.reshape(Cout, 1))


def _bilinear_matrix(in_size, k, s, p):
    """1-D linear operator of ConvTranspose1d(stride=s, pad=p) with the separable bilinear
    kernel produced by bilinear_kernel() in the reference (values are exact in bf16)."""
    out_size = (in_size - 1) * s - 2 * p + k
    factor = (k + 1) // 2
    center = factor - 1 if k % 2 == 1 else factor - 0.5
    U = np.zeros((out_size, in_size), dtype=np.float32)
    for o in range(out_size):
        for i in range(in_size):
            t = o + p - i * s
            if 0 <= t < k:
                U[o, i] = 1.0 - abs(t - center) / factor
    return U


def _bilinear_operators(H, W):
    """Separable (row, col^T) factors for upsample_2x / _4x / _8x, as bf16 constants."""
    h1, w1 = H // 8, W // 8
    h2, w2 = H // 16, W // 16
    h3, w3 = H // 32, W // 32
    to = lambda a: jnp.asarray(a, dtype=jnp.bfloat16)
    uh2 = to(_bilinear_matrix(h3, 4, 2, 1))          # (h2, h3)
    uw2t = to(_bilinear_matrix(w3, 4, 2, 1).T)       # (w3, w2)
    uh4 = to(_bilinear_matrix(h2, 4, 2, 1))          # (h1, h2)
    uw4t = to(_bilinear_matrix(w2, 4, 2, 1).T)       # (w2, w1)
    uh8 = to(_bilinear_matrix(h1, 16, 8, 4))         # (H,  h1)
    uw8t = to(_bilinear_matrix(w1, 16, 8, 4).T)      # (w1, W)
    return uh2, uw2t, uh4, uw4t, uh8, uw8t


def fcn_head(sc1, sc2, sc3, H, W, *, tile_h=128):
    """Fused scores-sum + bilinear-upsample head.  sc*: (B, 8, h, w) bf16, channel-major."""
    B = sc1.shape[0]
    h1, w1 = sc1.shape[2:]
    h2, w2 = sc2.shape[2:]
    h3, w3 = sc3.shape[2:]
    uh2, uw2t, uh4, uw4t, uh8, uw8t = _bilinear_operators(H, W)
    TH = H if H <= tile_h else tile_h                # multiple of 8 (or the full dim)
    return pl.pallas_call(
        _fcn_head_kernel,
        out_shape=jax.ShapeDtypeStruct((B, CPAD, H, W), jnp.float32),
        grid=(B, pl.cdiv(H, TH)),
        in_specs=[
            pl.BlockSpec((1, CPAD, h1, w1), lambda n, t: (n, 0, 0, 0)),
            pl.BlockSpec((1, CPAD, h2, w2), lambda n, t: (n, 0, 0, 0)),
            pl.BlockSpec((1, CPAD, h3, w3), lambda n, t: (n, 0, 0, 0)),
            pl.BlockSpec((h2, h3), lambda n, t: (0, 0)),
            pl.BlockSpec((w3, w2), lambda n, t: (0, 0)),
            pl.BlockSpec((h1, h2), lambda n, t: (0, 0)),
            pl.BlockSpec((w2, w1), lambda n, t: (0, 0)),
            pl.BlockSpec((TH, h1), lambda n, t: (t, 0)),
            pl.BlockSpec((w1, W), lambda n, t: (0, 0)),
        ],
        out_specs=pl.BlockSpec((1, CPAD, TH, W), lambda n, t: (n, 0, t, 0)),
        compiler_params=pltpu.CompilerParams(
            dimension_semantics=("parallel", "parallel"),
            vmem_limit_bytes=_VMEM_LIMIT),
    )(sc1, sc2, sc3, uh2, uw2t, uh4, uw4t, uh8, uw8t)


# ----------------------------------- model ------------------------------------

def init_params(key):
    def dense(k, cin, cout):
        kw, kb = jax.random.split(k)
        w = jax.random.normal(kw, (cout, cin), jnp.float32) * (1.0 / np.sqrt(cin))
        b = jax.random.normal(kb, (cout,), jnp.float32) * 0.01
        return w.astype(jnp.bfloat16), b

    def scores(k, cin):
        w, b = dense(k, cin, NUM_CLASSES)                          # (7, cin)
        wp = jnp.zeros((CPAD, cin), jnp.bfloat16).at[:NUM_CLASSES].set(w)
        bp = jnp.zeros((CPAD,), jnp.float32).at[:NUM_CLASSES].set(b)
        return wp, bp

    keys = jax.random.split(key, 6)
    p = {}
    p["stage1_w"], p["stage1_b"] = dense(keys[0], 3, 128)
    p["stage2_w"], p["stage2_b"] = dense(keys[1], 128, 256)
    p["stage3_w"], p["stage3_b"] = dense(keys[2], 256, 512)
    p["scores1_w"], p["scores1_b"] = scores(keys[3], 512)
    p["scores2_w"], p["scores2_b"] = scores(keys[4], 256)
    p["scores3_w"], p["scores3_b"] = scores(keys[5], 128)
    return p


def _avg_pool_nchw(x, s):
    B, C, H, W = x.shape
    return x.reshape(B, C, H // s, s, W // s, s).mean(axis=(3, 5))


def _stage(x, w, b, pool):
    # TODO(synk): the pretrained ResNet34 stages cannot be reproduced without a checkpoint;
    # stand-in = stride-matched average pool + 1x1 conv + ReLU with the same channel/stride
    # signature (the tiny pool stays an XLA op; fusing it into the conv kernel is possible
    # but saves only one small HBM round-trip).
    h = _avg_pool_nchw(x.astype(jnp.float32), pool).astype(jnp.bfloat16)
    B, C, H, W = h.shape
    y = conv1x1_cm(h.reshape(B, C, H * W), w, b, relu=True)
    return y.reshape(B, w.shape[0], H, W)


def fcn_forward(params, x):
    B, _, H, W = x.shape
    assert H % 32 == 0 and W % 32 == 0, "spatial dims must be multiples of 32"

    s1 = _stage(x, params["stage1_w"], params["stage1_b"], 8)      # (B, 128, H/8,  W/8)
    s2 = _stage(s1, params["stage2_w"], params["stage2_b"], 2)     # (B, 256, H/16, W/16)
    s3 = _stage(s2, params["stage3_w"], params["stage3_b"], 2)     # (B, 512, H/32, W/32)

    def scores(s, w, b):
        Bn, C, h, ww = s.shape
        y = conv1x1_cm(s.reshape(Bn, C, h * ww), w, b, relu=False)
        return y.reshape(Bn, CPAD, h, ww)

    sc3 = scores(s3, params["scores1_w"], params["scores1_b"])     # /32, 8 ch
    sc2 = scores(s2, params["scores2_w"], params["scores2_b"])     # /16, 8 ch
    sc1 = scores(s1, params["scores3_w"], params["scores3_b"])     # /8,  8 ch

    out = fcn_head(sc1, sc2, sc3, H, W)                            # (B, 8, H, W), NCHW f32
    return out[:, :NUM_CLASSES]                                    # drop the single pad channel


if __name__ == "__main__":
    key = jax.random.PRNGKey(0)
    pkey, xkey = jax.random.split(key)
    params = init_params(pkey)
    x = jax.random.normal(xkey, (2, 3, 64, 64), jnp.float32)       # NCHW, small

    fwd = jax.jit(fcn_forward)
    out = fwd(params, x)
    jax.block_until_ready(out)
    assert out.shape == (2, NUM_CLASSES, 64, 64), out.shape
    assert bool(jnp.all(jnp.isfinite(out)))
    print("KERNEL_OK")
</pallas_src>

<mosaic_0001>
module attributes {stable_mosaic.version = 11 : i64} {
  func.func @_conv1x1_kernel(%arg0: i32, %arg1: i32, %arg2: memref<1x3x64xbf16, #tpu.memory_space<vmem>>, %arg3: memref<128x3xbf16, #tpu.memory_space<vmem>>, %arg4: memref<128x1xf32, #tpu.memory_space<vmem>>, %arg5: memref<1x128x64xbf16, #tpu.memory_space<vmem>>) attributes {dimension_semantics = [#tpu.dimension_semantics<parallel>, #tpu.dimension_semantics<parallel>], iteration_bounds = array<i64: 2, 1>, scalar_prefetch = 0 : i64, scratch_operands = 0 : i64, tpu.core_type = #tpu.core_type<tc>, window_params = [{transform_indices = @transform_0, window_bounds = array<i64: 1, 3, 64>}, {pipeline_mode = #tpu.pipeline_mode<synchronous>, transform_indices = @transform_1, window_bounds = array<i64: 128, 3>}, {pipeline_mode = #tpu.pipeline_mode<synchronous>, transform_indices = @transform_2, window_bounds = array<i64: 128, 1>}, {transform_indices = @transform_3, window_bounds = array<i64: 1, 128, 64>}]} {
    %c0 = arith.constant 0 : index
    %c0_0 = arith.constant 0 : index
    %0 = vector.load %arg3[%c0, %c0_0] : memref<128x3xbf16, #tpu.memory_space<vmem>>, vector<128x3xbf16>
    %c0_1 = arith.constant 0 : index
    %c0_2 = arith.constant 0 : index
    %c0_3 = arith.constant 0 : index
    %1 = vector.load %arg2[%c0_1, %c0_2, %c0_3] : memref<1x3x64xbf16, #tpu.memory_space<vmem>>, vector<1x3x64xbf16>
    %2 = vector.shape_cast %1 : vector<1x3x64xbf16> to vector<3x64xbf16>
    %cst = arith.constant dense<0.000000e+00> : vector<128x64xf32>
    %3 = tpu.matmul %0, %2, %cst {dimension_numbers = #tpu.dot_dimension_numbers<[1], [0], [0], [1], [0, 0, 1, 1], [], []>} : vector<128x3xbf16>, vector<3x64xbf16>, vector<128x64xf32> -> vector<128x64xf32>
    %c0_4 = arith.constant 0 : index
    %c0_5 = arith.constant 0 : index
    %4 = vector.load %arg4[%c0_4, %c0_5] : memref<128x1xf32, #tpu.memory_space<vmem>>, vector<128x1xf32>
    %5 = vector.broadcast %4 : vector<128x1xf32> to vector<128x64xf32>
    %6 = arith.addf %3, %5 : vector<128x64xf32>
    %cst_6 = arith.constant 0.000000e+00 : f32
    %7 = vector.broadcast %cst_6 : f32 to vector<128x64xf32>
    %8 = arith.maximumf %6, %7 : vector<128x64xf32>
    %9 = arith.truncf %8 : vector<128x64xf32> to vector<128x64xbf16>
    %c0_7 = arith.constant 0 : index
    %c0_8 = arith.constant 0 : index
    %c0_9 = arith.constant 0 : index
    %10 = vector.load %arg5[%c0_7, %c0_8, %c0_9] : memref<1x128x64xbf16, #tpu.memory_space<vmem>>, vector<1x128x64xbf16>
    %11 = vector.shape_cast %10 : vector<1x128x64xbf16> to vector<128x64xbf16>
    %12 = vector.shape_cast %9 : vector<128x64xbf16> to vector<1x128x64xbf16>
    tpu.vector_store %arg5[%c0_7, %c0_8, %c0_9], %12 {strides = array<i32>} : memref<1x128x64xbf16, #tpu.memory_space<vmem>>, vector<1x128x64xbf16>,
    return
  }
  func.func @transform_0(%arg0: i32, %arg1: i32) -> (i32, i32, i32) {
    %c0_i32 = arith.constant 0 : i32
    %c0_i32_0 = arith.constant 0 : i32
    return %arg0, %c0_i32, %arg1 : i32, i32, i32
  }
  func.func @transform_1(%arg0: i32, %arg1: i32) -> (i32, i32) {
    %c0_i32 = arith.constant 0 : i32
    %c0_i32_0 = arith.constant 0 : i32
    %c0_i32_1 = arith.constant 0 : i32
    return %c0_i32, %c0_i32_0 : i32, i32
  }
  func.func @transform_2(%arg0: i32, %arg1: i32) -> (i32, i32) {
    %c0_i32 = arith.constant 0 : i32
    %c0_i32_0 = arith.constant 0 : i32
    %c0_i32_1 = arith.constant 0 : i32
    return %c0_i32, %c0_i32_0 : i32, i32
  }
  func.func @transform_3(%arg0: i32, %arg1: i32) -> (i32, i32, i32) {
    %c0_i32 = arith.constant 0 : i32
    %c0_i32_0 = arith.constant 0 : i32
    return %arg0, %c0_i32, %arg1 : i32, i32, i32
  }
}

module attributes {stable_mosaic.version = 11 : i64} {
  func.func @_conv1x1_kernel(%arg0: i32, %arg1: i32, %arg2: memref<1x128x16xbf16, #tpu.memory_space<vmem>>, %arg3: memref<256x128xbf16, #tpu.memory_space<vmem>>, %arg4: memref<256x1xf32, #tpu.memory_space<vmem>>, %arg5: memref<1x256x16xbf16, #tpu.memory_space<vmem>>) attributes {dimension_semantics = [#tpu.dimension_semantics<parallel>, #tpu.dimension_semantics<parallel>], iteration_bounds = array<i64: 2, 1>, scalar_prefetch = 0 : i64, scratch_operands = 0 : i64, tpu.core_type = #tpu.core_type<tc>, window_params = [{transform_indices = @transform_0, window_bounds = array<i64: 1, 128, 16>}, {pipeline_mode = #tpu.pipeline_mode<synchronous>, transform_indices = @transform_1, window_bounds = array<i64: 256, 128>}, {pipeline_mode = #tpu.pipeline_mode<synchronous>, transform_indices = @transform_2, window_bounds = array<i64: 256, 1>}, {transform_indices = @transform_3, window_bounds = array<i64: 1, 256, 16>}]} {
    %c0 = arith.constant 0 : index
    %c0_0 = arith.constant 0 : index
    %0 = vector.load %arg3[%c0, %c0_0] : memref<256x128xbf16, #tpu.memory_space<vmem>>, vector<256x128xbf16>
    %c0_1 = arith.constant 0 : index
    %c0_2 = arith.constant 0 : index
    %c0_3 = arith.constant 0 : index
    %1 = vector.load %arg2[%c0_1, %c0_2, %c0_3] : memref<1x128x16xbf16, #tpu.memory_space<vmem>>, vector<1x128x16xbf16>
    %2 = vector.shape_cast %1 : vector<1x128x16xbf16> to vector<128x16xbf16>
    %cst = arith.constant dense<0.000000e+00> : vector<256x16xf32>
    %3 = tpu.matmul %0, %2, %cst {dimension_numbers = #tpu.dot_dimension_numbers<[1], [0], [0], [1], [0, 0, 1, 1], [], []>} : vector<256x128xbf16>, vector<128x16xbf16>, vector<256x16xf32> -> vector<256x16xf32>
    %c0_4 = arith.constant 0 : index
    %c0_5 = arith.constant 0 : index
    %4 = vector.load %arg4[%c0_4, %c0_5] : memref<256x1xf32, #tpu.memory_space<vmem>>, vector<256x1xf32>
    %5 = vector.broadcast %4 : vector<256x1xf32> to vector<256x16xf32>
    %6 = arith.addf %3, %5 : vector<256x16xf32>
    %cst_6 = arith.constant 0.000000e+00 : f32
    %7 = vector.broadcast %cst_6 : f32 to vector<256x16xf32>
    %8 = arith.maximumf %6, %7 : vector<256x16xf32>
    %9 = arith.truncf %8 : vector<256x16xf32> to vector<256x16xbf16>
    %c0_7 = arith.constant 0 : index
    %c0_8 = arith.constant 0 : index
    %c0_9 = arith.constant 0 : index
    %10 = vector.load %arg5[%c0_7, %c0_8, %c0_9] : memref<1x256x16xbf16, #tpu.memory_space<vmem>>, vector<1x256x16xbf16>
    %11 = vector.shape_cast %10 : vector<1x256x16xbf16> to vector<256x16xbf16>
    %12 = vector.shape_cast %9 : vector<256x16xbf16> to vector<1x256x16xbf16>
    tpu.vector_store %arg5[%c0_7, %c0_8, %c0_9], %12 {strides = array<i32>} : memref<1x256x16xbf16, #tpu.memory_space<vmem>>, vector<1x256x16xbf16>,
    return
  }
  func.func @transform_0(%arg0: i32, %arg1: i32) -> (i32, i32, i32) {
    %c0_i32 = arith.constant 0 : i32
    %c0_i32_0 = arith.constant 0 : i32
    return %arg0, %c0_i32, %arg1 : i32, i32, i32
  }
  func.func @transform_1(%arg0: i32, %arg1: i32) -> (i32, i32) {
    %c0_i32 = arith.constant 0 : i32
    %c0_i32_0 = arith.constant 0 : i32
    %c0_i32_1 = arith.constant 0 : i32
    return %c0_i32, %c0_i32_0 : i32, i32
  }
  func.func @transform_2(%arg0: i32, %arg1: i32) -> (i32, i32) {
    %c0_i32 = arith.constant 0 : i32
    %c0_i32_0 = arith.constant 0 : i32
    %c0_i32_1 = arith.constant 0 : i32
    return %c0_i32, %c0_i32_0 : i32, i32
  }
  func.func @transform_3(%arg0: i32, %arg1: i32) -> (i32, i32, i32) {
    %c0_i32 = arith.constant 0 : i32
    %c0_i32_0 = arith.constant 0 : i32
    return %arg0, %c0_i32, %arg1 : i32, i32, i32
  }
}

module attributes {stable_mosaic.version = 11 : i64} {
  func.func @_conv1x1_kernel(%arg0: i32, %arg1: i32, %arg2: memref<1x512x4xbf16, #tpu.memory_space<vmem>>, %arg3: memref<8x512xbf16, #tpu.memory_space<vmem>>, %arg4: memref<8x1xf32, #tpu.memory_space<vmem>>, %arg5: memref<1x8x4xbf16, #tpu.memory_space<vmem>>) attributes {dimension_semantics = [#tpu.dimension_semantics<parallel>, #tpu.dimension_semantics<parallel>], iteration_bounds = array<i64: 2, 1>, scalar_prefetch = 0 : i64, scratch_operands = 0 : i64, tpu.core_type = #tpu.core_type<tc>, window_params = [{transform_indices = @transform_0, window_bounds = array<i64: 1, 512, 4>}, {pipeline_mode = #tpu.pipeline_mode<synchronous>, transform_indices = @transform_1, window_bounds = array<i64: 8, 512>}, {pipeline_mode = #tpu.pipeline_mode<synchronous>, transform_indices = @transform_2, window_bounds = array<i64: 8, 1>}, {transform_indices = @transform_3, window_bounds = array<i64: 1, 8, 4>}]} {
    %c0 = arith.constant 0 : index
    %c0_0 = arith.constant 0 : index
    %0 = vector.load %arg3[%c0, %c0_0] : memref<8x512xbf16, #tpu.memory_space<vmem>>, vector<8x512xbf16>
    %c0_1 = arith.constant 0 : index
    %c0_2 = arith.constant 0 : index
    %c0_3 = arith.constant 0 : index
    %1 = vector.load %arg2[%c0_1, %c0_2, %c0_3] : memref<1x512x4xbf16, #tpu.memory_space<vmem>>, vector<1x512x4xbf16>
    %2 = vector.shape_cast %1 : vector<1x512x4xbf16> to vector<512x4xbf16>
    %cst = arith.constant dense<0.000000e+00> : vector<8x4xf32>
    %3 = tpu.matmul %0, %2, %cst {dimension_numbers = #tpu.dot_dimension_numbers<[1], [0], [0], [1], [0, 0, 1, 1], [], []>} : vector<8x512xbf16>, vector<512x4xbf16>, vector<8x4xf32> -> vector<8x4xf32>
    %c0_4 = arith.constant 0 : index
    %c0_5 = arith.constant 0 : index
    %4 = vector.load %arg4[%c0_4, %c0_5] : memref<8x1xf32, #tpu.memory_space<vmem>>, vector<8x1xf32>
    %5 = vector.broadcast %4 : vector<8x1xf32> to vector<8x4xf32>
    %6 = arith.addf %3, %5 : vector<8x4xf32>
    %7 = arith.truncf %6 : vector<8x4xf32> to vector<8x4xbf16>
    %c0_6 = arith.constant 0 : index
    %c0_7 = arith.constant 0 : index
    %c0_8 = arith.constant 0 : index
    %8 = vector.load %arg5[%c0_6, %c0_7, %c0_8] : memref<1x8x4xbf16, #tpu.memory_space<vmem>>, vector<1x8x4xbf16>
    %9 = vector.shape_cast %8 : vector<1x8x4xbf16> to vector<8x4xbf16>
    %10 = vector.shape_cast %7 : vector<8x4xbf16> to vector<1x8x4xbf16>
    tpu.vector_store %arg5[%c0_6, %c0_7, %c0_8], %10 {strides = array<i32>} : memref<1x8x4xbf16, #tpu.memory_space<vmem>>, vector<1x8x4xbf16>,
    return
  }
  func.func @transform_0(%arg0: i32, %arg1: i32) -> (i32, i32, i32) {
    %c0_i32 = arith.constant 0 : i32
    %c0_i32_0 = arith.constant 0 : i32
    return %arg0, %c0_i32, %arg1 : i32, i32, i32
  }
  func.func @transform_1(%arg0: i32, %arg1: i32) -> (i32, i32) {
    %c0_i32 = arith.constant 0 : i32
    %c0_i32_0 = arith.constant 0 : i32
    %c0_i32_1 = arith.constant 0 : i32
    return %c0_i32, %c0_i32_0 : i32, i32
  }
  func.func @transform_2(%arg0: i32, %arg1: i32) -> (i32, i32) {
    %c0_i32 = arith.constant 0 : i32
    %c0_i32_0 = arith.constant 0 : i32
    %c0_i32_1 = arith.constant 0 : i32
    return %c0_i32, %c0_i32_0 : i32, i32
  }
  func.func @transform_3(%arg0: i32, %arg1: i32) -> (i32, i32, i32) {
    %c0_i32 = arith.constant 0 : i32
    %c0_i32_0 = arith.constant 0 : i32
    return %arg0, %c0_i32, %arg1 : i32, i32, i32
  }
}

module attributes {stable_mosaic.version = 11 : i64} {
  func.func @_conv1x1_kernel(%arg0: i32, %arg1: i32, %arg2: memref<1x256x4xbf16, #tpu.memory_space<vmem>>, %arg3: memref<512x256xbf16, #tpu.memory_space<vmem>>, %arg4: memref<512x1xf32, #tpu.memory_space<vmem>>, %arg5: memref<1x512x4xbf16, #tpu.memory_space<vmem>>) attributes {dimension_semantics = [#tpu.dimension_semantics<parallel>, #tpu.dimension_semantics<parallel>], iteration_bounds = array<i64: 2, 1>, scalar_prefetch = 0 : i64, scratch_operands = 0 : i64, tpu.core_type = #tpu.core_type<tc>, window_params = [{transform_indices = @transform_0, window_bounds = array<i64: 1, 256, 4>}, {pipeline_mode = #tpu.pipeline_mode<synchronous>, transform_indices = @transform_1, window_bounds = array<i64: 512, 256>}, {pipeline_mode = #tpu.pipeline_mode<synchronous>, transform_indices = @transform_2, window_bounds = array<i64: 512, 1>}, {transform_indices = @transform_3, window_bounds = array<i64: 1, 512, 4>}]} {
    %c0 = arith.constant 0 : index
    %c0_0 = arith.constant 0 : index
    %0 = vector.load %arg3[%c0, %c0_0] : memref<512x256xbf16, #tpu.memory_space<vmem>>, vector<512x256xbf16>
    %c0_1 = arith.constant 0 : index
    %c0_2 = arith.constant 0 : index
    %c0_3 = arith.constant 0 : index
    %1 = vector.load %arg2[%c0_1, %c0_2, %c0_3] : memref<1x256x4xbf16, #tpu.memory_space<vmem>>, vector<1x256x4xbf16>
    %2 = vector.shape_cast %1 : vector<1x256x4xbf16> to vector<256x4xbf16>
    %cst = arith.constant dense<0.000000e+00> : vector<512x4xf32>
    %3 = tpu.matmul %0, %2, %cst {dimension_numbers = #tpu.dot_dimension_numbers<[1], [0], [0], [1], [0, 0, 1, 1], [], []>} : vector<512x256xbf16>, vector<256x4xbf16>, vector<512x4xf32> -> vector<512x4xf32>
    %c0_4 = arith.constant 0 : index
    %c0_5 = arith.constant 0 : index
    %4 = vector.load %arg4[%c0_4, %c0_5] : memref<512x1xf32, #tpu.memory_space<vmem>>, vector<512x1xf32>
    %5 = vector.broadcast %4 : vector<512x1xf32> to vector<512x4xf32>
    %6 = arith.addf %3, %5 : vector<512x4xf32>
    %cst_6 = arith.constant 0.000000e+00 : f32
    %7 = vector.broadcast %cst_6 : f32 to vector<512x4xf32>
    %8 = arith.maximumf %6, %7 : vector<512x4xf32>
    %9 = arith.truncf %8 : vector<512x4xf32> to vector<512x4xbf16>
    %c0_7 = arith.constant 0 : index
    %c0_8 = arith.constant 0 : index
    %c0_9 = arith.constant 0 : index
    %10 = vector.load %arg5[%c0_7, %c0_8, %c0_9] : memref<1x512x4xbf16, #tpu.memory_space<vmem>>, vector<1x512x4xbf16>
    %11 = vector.shape_cast %10 : vector<1x512x4xbf16> to vector<512x4xbf16>
    %12 = vector.shape_cast %9 : vector<512x4xbf16> to vector<1x512x4xbf16>
    tpu.vector_store %arg5[%c0_7, %c0_8, %c0_9], %12 {strides = array<i32>} : memref<1x512x4xbf16, #tpu.memory_space<vmem>>, vector<1x512x4xbf16>,
    return
  }
  func.func @transform_0(%arg0: i32, %arg1: i32) -> (i32, i32, i32) {
    %c0_i32 = arith.constant 0 : i32
    %c0_i32_0 = arith.constant 0 : i32
    return %arg0, %c0_i32, %arg1 : i32, i32, i32
  }
  func.func @transform_1(%arg0: i32, %arg1: i32) -> (i32, i32) {
    %c0_i32 = arith.constant 0 : i32
    %c0_i32_0 = arith.constant 0 : i32
    %c0_i32_1 = arith.constant 0 : i32
    return %c0_i32, %c0_i32_0 : i32, i32
  }
  func.func @transform_2(%arg0: i32, %arg1: i32) -> (i32, i32) {
    %c0_i32 = arith.constant 0 : i32
    %c0_i32_0 = arith.constant 0 : i32
    %c0_i32_1 = arith.constant 0 : i32
    return %c0_i32, %c0_i32_0 : i32, i32
  }
  func.func @transform_3(%arg0: i32, %arg1: i32) -> (i32, i32, i32) {
    %c0_i32 = arith.constant 0 : i32
    %c0_i32_0 = arith.constant 0 : i32
    return %arg0, %c0_i32, %arg1 : i32, i32, i32
  }
}

module attributes {stable_mosaic.version = 11 : i64} {
  func.func @_conv1x1_kernel(%arg0: i32, %arg1: i32, %arg2: memref<1x256x16xbf16, #tpu.memory_space<vmem>>, %arg3: memref<8x256xbf16, #tpu.memory_space<vmem>>, %arg4: memref<8x1xf32, #tpu.memory_space<vmem>>, %arg5: memref<1x8x16xbf16, #tpu.memory_space<vmem>>) attributes {dimension_semantics = [#tpu.dimension_semantics<parallel>, #tpu.dimension_semantics<parallel>], iteration_bounds = array<i64: 2, 1>, scalar_prefetch = 0 : i64, scratch_operands = 0 : i64, tpu.core_type = #tpu.core_type<tc>, window_params = [{transform_indices = @transform_0, window_bounds = array<i64: 1, 256, 16>}, {pipeline_mode = #tpu.pipeline_mode<synchronous>, transform_indices = @transform_1, window_bounds = array<i64: 8, 256>}, {pipeline_mode = #tpu.pipeline_mode<synchronous>, transform_indices = @transform_2, window_bounds = array<i64: 8, 1>}, {transform_indices = @transform_3, window_bounds = array<i64: 1, 8, 16>}]} {
    %c0 = arith.constant 0 : index
    %c0_0 = arith.constant 0 : index
    %0 = vector.load %arg3[%c0, %c0_0] : memref<8x256xbf16, #tpu.memory_space<vmem>>, vector<8x256xbf16>
    %c0_1 = arith.constant 0 : index
    %c0_2 = arith.constant 0 : index
    %c0_3 = arith.constant 0 : index
    %1 = vector.load %arg2[%c0_1, %c0_2, %c0_3] : memref<1x256x16xbf16, #tpu.memory_space<vmem>>, vector<1x256x16xbf16>
    %2 = vector.shape_cast %1 : vector<1x256x16xbf16> to vector<256x16xbf16>
    %cst = arith.constant dense<0.000000e+00> : vector<8x16xf32>
    %3 = tpu.matmul %0, %2, %cst {dimension_numbers = #tpu.dot_dimension_numbers<[1], [0], [0], [1], [0, 0, 1, 1], [], []>} : vector<8x256xbf16>, vector<256x16xbf16>, vector<8x16xf32> -> vector<8x16xf32>
    %c0_4 = arith.constant 0 : index
    %c0_5 = arith.constant 0 : index
    %4 = vector.load %arg4[%c0_4, %c0_5] : memref<8x1xf32, #tpu.memory_space<vmem>>, vector<8x1xf32>
    %5 = vector.broadcast %4 : vector<8x1xf32> to vector<8x16xf32>
    %6 = arith.addf %3, %5 : vector<8x16xf32>
    %7 = arith.truncf %6 : vector<8x16xf32> to vector<8x16xbf16>
    %c0_6 = arith.constant 0 : index
    %c0_7 = arith.constant 0 : index
    %c0_8 = arith.constant 0 : index
    %8 = vector.load %arg5[%c0_6, %c0_7, %c0_8] : memref<1x8x16xbf16, #tpu.memory_space<vmem>>, vector<1x8x16xbf16>
    %9 = vector.shape_cast %8 : vector<1x8x16xbf16> to vector<8x16xbf16>
    %10 = vector.shape_cast %7 : vector<8x16xbf16> to vector<1x8x16xbf16>
    tpu.vector_store %arg5[%c0_6, %c0_7, %c0_8], %10 {strides = array<i32>} : memref<1x8x16xbf16, #tpu.memory_space<vmem>>, vector<1x8x16xbf16>,
    return
  }
  func.func @transform_0(%arg0: i32, %arg1: i32) -> (i32, i32, i32) {
    %c0_i32 = arith.constant 0 : i32
    %c0_i32_0 = arith.constant 0 : i32
    return %arg0, %c0_i32, %arg1 : i32, i32, i32
  }
  func.func @transform_1(%arg0: i32, %arg1: i32) -> (i32, i32) {
    %c0_i32 = arith.constant 0 : i32
    %c0_i32_0 = arith.constant 0 : i32
    %c0_i32_1 = arith.constant 0 : i32
    return %c0_i32, %c0_i32_0 : i32, i32
  }
  func.func @transform_2(%arg0: i32, %arg1: i32) -> (i32, i32) {
    %c0_i32 = arith.constant 0 : i32
    %c0_i32_0 = arith.constant 0 : i32
    %c0_i32_1 = arith.constant 0 : i32
    return %c0_i32, %c0_i32_0 : i32, i32
  }
  func.func @transform_3(%arg0: i32, %arg1: i32) -> (i32, i32, i32) {
    %c0_i32 = arith.constant 0 : i32
    %c0_i32_0 = arith.constant 0 : i32
    return %arg0, %c0_i32, %arg1 : i32, i32, i32
  }
}

module attributes {stable_mosaic.version = 11 : i64} {
  func.func @_conv1x1_kernel(%arg0: i32, %arg1: i32, %arg2: memref<1x128x64xbf16, #tpu.memory_space<vmem>>, %arg3: memref<8x128xbf16, #tpu.memory_space<vmem>>, %arg4: memref<8x1xf32, #tpu.memory_space<vmem>>, %arg5: memref<1x8x64xbf16, #tpu.memory_space<vmem>>) attributes {dimension_semantics = [#tpu.dimension_semantics<parallel>, #tpu.dimension_semantics<parallel>], iteration_bounds = array<i64: 2, 1>, scalar_prefetch = 0 : i64, scratch_operands = 0 : i64, tpu.core_type = #tpu.core_type<tc>, window_params = [{transform_indices = @transform_0, window_bounds = array<i64: 1, 128, 64>}, {pipeline_mode = #tpu.pipeline_mode<synchronous>, transform_indices = @transform_1, window_bounds = array<i64: 8, 128>}, {pipeline_mode = #tpu.pipeline_mode<synchronous>, transform_indices = @transform_2, window_bounds = array<i64: 8, 1>}, {transform_indices = @transform_3, window_bounds = array<i64: 1, 8, 64>}]} {
    %c0 = arith.constant 0 : index
    %c0_0 = arith.constant 0 : index
    %0 = vector.load %arg3[%c0, %c0_0] : memref<8x128xbf16, #tpu.memory_space<vmem>>, vector<8x128xbf16>
    %c0_1 = arith.constant 0 : index
    %c0_2 = arith.constant 0 : index
    %c0_3 = arith.constant 0 : index
    %1 = vector.load %arg2[%c0_1, %c0_2, %c0_3] : memref<1x128x64xbf16, #tpu.memory_space<vmem>>, vector<1x128x64xbf16>
    %2 = vector.shape_cast %1 : vector<1x128x64xbf16> to vector<128x64xbf16>
    %cst = arith.constant dense<0.000000e+00> : vector<8x64xf32>
    %3 = tpu.matmul %0, %2, %cst {dimension_numbers = #tpu.dot_dimension_numbers<[1], [0], [0], [1], [0, 0, 1, 1], [], []>} : vector<8x128xbf16>, vector<128x64xbf16>, vector<8x64xf32> -> vector<8x64xf32>
    %c0_4 = arith.constant 0 : index
    %c0_5 = arith.constant 0 : index
    %4 = vector.load %arg4[%c0_4, %c0_5] : memref<8x1xf32, #tpu.memory_space<vmem>>, vector<8x1xf32>
    %5 = vector.broadcast %4 : vector<8x1xf32> to vector<8x64xf32>
    %6 = arith.addf %3, %5 : vector<8x64xf32>
    %7 = arith.truncf %6 : vector<8x64xf32> to vector<8x64xbf16>
    %c0_6 = arith.constant 0 : index
    %c0_7 = arith.constant 0 : index
    %c0_8 = arith.constant 0 : index
    %8 = vector.load %arg5[%c0_6, %c0_7, %c0_8] : memref<1x8x64xbf16, #tpu.memory_space<vmem>>, vector<1x8x64xbf16>
    %9 = vector.shape_cast %8 : vector<1x8x64xbf16> to vector<8x64xbf16>
    %10 = vector.shape_cast %7 : vector<8x64xbf16> to vector<1x8x64xbf16>
    tpu.vector_store %arg5[%c0_6, %c0_7, %c0_8], %10 {strides = array<i32>} : memref<1x8x64xbf16, #tpu.memory_space<vmem>>, vector<1x8x64xbf16>,
    return
  }
  func.func @transform_0(%arg0: i32, %arg1: i32) -> (i32, i32, i32) {
    %c0_i32 = arith.constant 0 : i32
    %c0_i32_0 = arith.constant 0 : i32
    return %arg0, %c0_i32, %arg1 : i32, i32, i32
  }
  func.func @transform_1(%arg0: i32, %arg1: i32) -> (i32, i32) {
    %c0_i32 = arith.constant 0 : i32
    %c0_i32_0 = arith.constant 0 : i32
    %c0_i32_1 = arith.constant 0 : i32
    return %c0_i32, %c0_i32_0 : i32, i32
  }
  func.func @transform_2(%arg0: i32, %arg1: i32) -> (i32, i32) {
    %c0_i32 = arith.constant 0 : i32
    %c0_i32_0 = arith.constant 0 : i32
    %c0_i32_1 = arith.constant 0 : i32
    return %c0_i32, %c0_i32_0 : i32, i32
  }
  func.func @transform_3(%arg0: i32, %arg1: i32) -> (i32, i32, i32) {
    %c0_i32 = arith.constant 0 : i32
    %c0_i32_0 = arith.constant 0 : i32
    return %arg0, %c0_i32, %arg1 : i32, i32, i32
  }
}

module attributes {stable_mosaic.version = 11 : i64} {
  func.func @_fcn_head_kernel(%arg0: i32, %arg1: i32, %arg2: memref<1x8x8x8xbf16, #tpu.memory_space<vmem>>, %arg3: memref<1x8x4x4xbf16, #tpu.memory_space<vmem>>, %arg4: memref<1x8x2x2xbf16, #tpu.memory_space<vmem>>, %arg5: memref<4x2xbf16, #tpu.memory_space<vmem>>, %arg6: memref<2x4xbf16, #tpu.memory_space<vmem>>, %arg7: memref<8x4xbf16, #tpu.memory_space<vmem>>, %arg8: memref<4x8xbf16, #tpu.memory_space<vmem>>, %arg9: memref<64x8xbf16, #tpu.memory_space<vmem>>, %arg10: memref<8x64xbf16, #tpu.memory_space<vmem>>, %arg11: memref<1x8x64x64xf32, #tpu.memory_space<vmem>>) attributes {dimension_semantics = [#tpu.dimension_semantics<parallel>, #tpu.dimension_semantics<parallel>], iteration_bounds = array<i64: 2, 1>, scalar_prefetch = 0 : i64, scratch_operands = 0 : i64, tpu.core_type = #tpu.core_type<tc>, window_params = [{transform_indices = @transform_0, window_bounds = array<i64: 1, 8, 8, 8>}, {transform_indices = @transform_1, window_bounds = array<i64: 1, 8, 4, 4>}, {transform_indices = @transform_2, window_bounds = array<i64: 1, 8, 2, 2>}, {pipeline_mode = #tpu.pipeline_mode<synchronous>, transform_indices = @transform_3, window_bounds = array<i64: 4, 2>}, {pipeline_mode = #tpu.pipeline_mode<synchronous>, transform_indices = @transform_4, window_bounds = array<i64: 2, 4>}, {pipeline_mode = #tpu.pipeline_mode<synchronous>, transform_indices = @transform_5, window_bounds = array<i64: 8, 4>}, {pipeline_mode = #tpu.pipeline_mode<synchronous>, transform_indices = @transform_6, window_bounds = array<i64: 4, 8>}, {transform_indices = @transform_7, window_bounds = array<i64: 64, 8>}, {pipeline_mode = #tpu.pipeline_mode<synchronous>, transform_indices = @transform_8, window_bounds = array<i64: 8, 64>}, {transform_indices = @transform_9, window_bounds = array<i64: 1, 8, 64, 64>}]} {
    %c0 = arith.constant 0 : index
    %c0_0 = arith.constant 0 : index
    %0 = vector.load %arg5[%c0, %c0_0] : memref<4x2xbf16, #tpu.memory_space<vmem>>, vector<4x2xbf16>
    %c0_1 = arith.constant 0 : index
    %c0_2 = arith.constant 0 : index
    %c0_3 = arith.constant 0 : index
    %c0_4 = arith.constant 0 : index
    %1 = vector.load %arg4[%c0_1, %c0_2, %c0_3, %c0_4] : memref<1x8x2x2xbf16, #tpu.memory_space<vmem>>, vector<1x1x2x2xbf16>
    %2 = vector.shape_cast %1 : vector<1x1x2x2xbf16> to vector<2x2xbf16>
    %cst = arith.constant dense<0.000000e+00> : vector<4x2xf32>
    %3 = tpu.matmul %0, %2, %cst {dimension_numbers = #tpu.dot_dimension_numbers<[1], [0], [0], [1], [0, 0, 1, 1], [], []>} : vector<4x2xbf16>, vector<2x2xbf16>, vector<4x2xf32> -> vector<4x2xf32>
    %4 = arith.truncf %3 : vector<4x2xf32> to vector<4x2xbf16>
    %c0_5 = arith.constant 0 : index
    %c0_6 = arith.constant 0 : index
    %5 = vector.load %arg6[%c0_5, %c0_6] : memref<2x4xbf16, #tpu.memory_space<vmem>>, vector<2x4xbf16>
    %cst_7 = arith.constant dense<0.000000e+00> : vector<4x4xf32>
    %6 = tpu.matmul %4, %5, %cst_7 {dimension_numbers = #tpu.dot_dimension_numbers<[1], [0], [0], [1], [0, 0, 1, 1], [], []>} : vector<4x2xbf16>, vector<2x4xbf16>, vector<4x4xf32> -> vector<4x4xf32>
    %c0_8 = arith.constant 0 : index
    %c0_9 = arith.constant 0 : index
    %c0_10 = arith.constant 0 : index
    %c0_11 = arith.constant 0 : index
    %7 = vector.load %arg3[%c0_8, %c0_9, %c0_10, %c0_11] : memref<1x8x4x4xbf16, #tpu.memory_space<vmem>>, vector<1x1x4x4xbf16>
    %8 = vector.shape_cast %7 : vector<1x1x4x4xbf16> to vector<4x4xbf16>
    %9 = arith.extf %8 : vector<4x4xbf16> to vector<4x4xf32>
    %10 = arith.addf %6, %9 : vector<4x4xf32>
    %c0_12 = arith.constant 0 : index
    %c0_13 = arith.constant 0 : index
    %11 = vector.load %arg7[%c0_12, %c0_13] : memref<8x4xbf16, #tpu.memory_space<vmem>>, vector<8x4xbf16>
    %12 = arith.truncf %10 : vector<4x4xf32> to vector<4x4xbf16>
    %cst_14 = arith.constant dense<0.000000e+00> : vector<8x4xf32>
    %13 = tpu.matmul %11, %12, %cst_14 {dimension_numbers = #tpu.dot_dimension_numbers<[1], [0], [0], [1], [0, 0, 1, 1], [], []>} : vector<8x4xbf16>, vector<4x4xbf16>, vector<8x4xf32> -> vector<8x4xf32>
    %14 = arith.truncf %13 : vector<8x4xf32> to vector<8x4xbf16>
    %c0_15 = arith.constant 0 : index
    %c0_16 = arith.constant 0 : index
    %15 = vector.load %arg8[%c0_15, %c0_16] : memref<4x8xbf16, #tpu.memory_space<vmem>>, vector<4x8xbf16>
    %cst_17 = arith.constant dense<0.000000e+00> : vector<8x8xf32>
    %16 = tpu.matmul %14, %15, %cst_17 {dimension_numbers = #tpu.dot_dimension_numbers<[1], [0], [0], [1], [0, 0, 1, 1], [], []>} : vector<8x4xbf16>, vector<4x8xbf16>, vector<8x8xf32> -> vector<8x8xf32>
    %c0_18 = arith.constant 0 : index
    %c0_19 = arith.constant 0 : index
    %c0_20 = arith.constant 0 : index
    %c0_21 = arith.constant 0 : index
    %17 = vector.load %arg2[%c0_18, %c0_19, %c0_20, %c0_21] : memref<1x8x8x8xbf16, #tpu.memory_space<vmem>>, vector<1x1x8x8xbf16>
    %18 = vector.shape_cast %17 : vector<1x1x8x8xbf16> to vector<8x8xbf16>
    %19 = arith.extf %18 : vector<8x8xbf16> to vector<8x8xf32>
    %20 = arith.addf %16, %19 : vector<8x8xf32>
    %c0_22 = arith.constant 0 : index
    %c0_23 = arith.constant 0 : index
    %21 = vector.load %arg9[%c0_22, %c0_23] : memref<64x8xbf16, #tpu.memory_space<vmem>>, vector<64x8xbf16>
    %22 = arith.truncf %20 : vector<8x8xf32> to vector<8x8xbf16>
    %cst_24 = arith.constant dense<0.000000e+00> : vector<64x8xf32>
    %23 = tpu.matmul %21, %22, %cst_24 {dimension_numbers = #tpu.dot_dimension_numbers<[1], [0], [0], [1], [0, 0, 1, 1], [], []>} : vector<64x8xbf16>, vector<8x8xbf16>, vector<64x8xf32> -> vector<64x8xf32>
    %24 = arith.truncf %23 : vector<64x8xf32> to vector<64x8xbf16>
    %c0_25 = arith.constant 0 : index
    %c0_26 = arith.constant 0 : index
    %25 = vector.load %arg10[%c0_25, %c0_26] : memref<8x64xbf16, #tpu.memory_space<vmem>>, vector<8x64xbf16>
    %cst_27 = arith.constant dense<0.000000e+00> : vector<64x64xf32>
    %26 = tpu.matmul %24, %25, %cst_27 {dimension_numbers = #tpu.dot_dimension_numbers<[1], [0], [0], [1], [0, 0, 1, 1], [], []>} : vector<64x8xbf16>, vector<8x64xbf16>, vector<64x64xf32> -> vector<64x64xf32>
    %c0_28 = arith.constant 0 : index
    %c0_29 = arith.constant 0 : index
    %c0_30 = arith.constant 0 : index
    %c0_31 = arith.constant 0 : index
    %27 = vector.load %arg11[%c0_28, %c0_29, %c0_30, %c0_31] : memref<1x8x64x64xf32, #tpu.memory_space<vmem>>, vector<1x1x64x64xf32>
    %28 = vector.shape_cast %27 : vector<1x1x64x64xf32> to vector<64x64xf32>
    %29 = vector.shape_cast %26 : vector<64x64xf32> to vector<1x1x64x64xf32>
    tpu.vector_store %arg11[%c0_28, %c0_29, %c0_30, %c0_31], %29 {strides = array<i32>} : memref<1x8x64x64xf32, #tpu.memory_space<vmem>>, vector<1x1x64x64xf32>,
    %c0_32 = arith.constant 0 : index
    %c0_33 = arith.constant 0 : index
    %30 = vector.load %arg5[%c0_32, %c0_33] : memref<4x2xbf16, #tpu.memory_space<vmem>>, vector<4x2xbf16>
    %c0_34 = arith.constant 0 : index
    %c1 = arith.constant 1 : index
    %c0_35 = arith.constant 0 : index
    %c0_36 = arith.constant 0 : index
    %31 = vector.load %arg4[%c0_34, %c1, %c0_35, %c0_36] : memref<1x8x2x2xbf16, #tpu.memory_space<vmem>>, vector<1x1x2x2xbf16>
    %32 = vector.shape_cast %31 : vector<1x1x2x2xbf16> to vector<2x2xbf16>
    %cst_37 = arith.constant dense<0.000000e+00> : vector<4x2xf32>
    %33 = tpu.matmul %30, %32, %cst_37 {dimension_numbers = #tpu.dot_dimension_numbers<[1], [0], [0], [1], [0, 0, 1, 1], [], []>} : vector<4x2xbf16>, vector<2x2xbf16>, vector<4x2xf32> -> vector<4x2xf32>
    %34 = arith.truncf %33 : vector<4x2xf32> to vector<4x2xbf16>
    %c0_38 = arith.constant 0 : index
    %c0_39 = arith.constant 0 : index
    %35 = vector.load %arg6[%c0_38, %c0_39] : memref<2x4xbf16, #tpu.memory_space<vmem>>, vector<2x4xbf16>
    %cst_40 = arith.constant dense<0.000000e+00> : vector<4x4xf32>
    %36 = tpu.matmul %34, %35, %cst_40 {dimension_numbers = #tpu.dot_dimension_numbers<[1], [0], [0], [1], [0, 0, 1, 1], [], []>} : vector<4x2xbf16>, vector<2x4xbf16>, vector<4x4xf32> -> vector<4x4xf32>
    %c0_41 = arith.constant 0 : index
    %c1_42 = arith.constant 1 : index
    %c0_43 = arith.constant 0 : index
    %c0_44 = arith.constant 0 : index
    %37 = vector.load %arg3[%c0_41, %c1_42, %c0_43, %c0_44] : memref<1x8x4x4xbf16, #tpu.memory_space<vmem>>, vector<1x1x4x4xbf16>
    %38 = vector.shape_cast %37 : vector<1x1x4x4xbf16> to vector<4x4xbf16>
    %39 = arith.extf %38 : vector<4x4xbf16> to vector<4x4xf32>
    %40 = arith.addf %36, %39 : vector<4x4xf32>
    %c0_45 = arith.constant 0 : index
    %c0_46 = arith.constant 0 : index
    %41 = vector.load %arg7[%c0_45, %c0_46] : memref<8x4xbf16, #tpu.memory_space<vmem>>, vector<8x4xbf16>
    %42 = arith.truncf %40 : vector<4x4xf32> to vector<4x4xbf16>
    %cst_47 = arith.constant dense<0.000000e+00> : vector<8x4xf32>
    %43 = tpu.matmul %41, %42, %cst_47 {dimension_numbers = #tpu.dot_dimension_numbers<[1], [0], [0], [1], [0, 0, 1, 1], [], []>} : vector<8x4xbf16>, vector<4x4xbf16>, vector<8x4xf32> -> vector<8x4xf32>
    %44 = arith.truncf %43 : vector<8x4xf32> to vector<8x4xbf16>
    %c0_48 = arith.constant 0 : index
    %c0_49 = arith.constant 0 : index
    %45 = vector.load %arg8[%c0_48, %c0_49] : memref<4x8xbf16, #tpu.memory_space<vmem>>, vector<4x8xbf16>
    %cst_50 = arith.constant dense<0.000000e+00> : vector<8x8xf32>
    %46 = tpu.matmul %44, %45, %cst_50 {dimension_numbers = #tpu.dot_dimension_numbers<[1], [0], [0], [1], [0, 0, 1, 1], [], []>} : vector<8x4xbf16>, vector<4x8xbf16>, vector<8x8xf32> -> vector<8x8xf32>
    %c0_51 = arith.constant 0 : index
    %c1_52 = arith.constant 1 : index
    %c0_53 = arith.constant 0 : index
    %c0_54 = arith.constant 0 : index
    %47 = vector.load %arg2[%c0_51, %c1_52, %c0_53, %c0_54] : memref<1x8x8x8xbf16, #tpu.memory_space<vmem>>, vector<1x1x8x8xbf16>
    %48 = vector.shape_cast %47 : vector<1x1x8x8xbf16> to vector<8x8xbf16>
    %49 = arith.extf %48 : vector<8x8xbf16> to vector<8x8xf32>
    %50 = arith.addf %46, %49 : vector<8x8xf32>
    %c0_55 = arith.constant 0 : index
    %c0_56 = arith.constant 0 : index
    %51 = vector.load %arg9[%c0_55, %c0_56] : memref<64x8xbf16, #tpu.memory_space<vmem>>, vector<64x8xbf16>
    %52 = arith.truncf %50 : vector<8x8xf32> to vector<8x8xbf16>
    %cst_57 = arith.constant dense<0.000000e+00> : vector<64x8xf32>
    %53 = tpu.matmul %51, %52, %cst_57 {dimension_numbers = #tpu.dot_dimension_numbers<[1], [0], [0], [1], [0, 0, 1, 1], [], []>} : vector<64x8xbf16>, vector<8x8xbf16>, vector<64x8xf32> -> vector<64x8xf32>
    %54 = arith.truncf %53 : vector<64x8xf32> to vector<64x8xbf16>
    %c0_58 = arith.constant 0 : index
    %c0_59 = arith.constant 0 : index
    %55 = vector.load %arg10[%c0_58, %c0_59] : memref<8x64xbf16, #tpu.memory_space<vmem>>, vector<8x64xbf16>
    %cst_60 = arith.constant dense<0.000000e+00> : vector<64x64xf32>
    %56 = tpu.matmul %54, %55, %cst_60 {dimension_numbers = #tpu.dot_dimension_numbers<[1], [0], [0], [1], [0, 0, 1, 1], [], []>} : vector<64x8xbf16>, vector<8x64xbf16>, vector<64x64xf32> -> vector<64x64xf32>
    %c0_61 = arith.constant 0 : index
    %c1_62 = arith.constant 1 : index
    %c0_63 = arith.constant 0 : index
    %c0_64 = arith.constant 0 : index
    %57 = vector.load %arg11[%c0_61, %c1_62, %c0_63, %c0_64] : memref<1x8x64x64xf32, #tpu.memory_space<vmem>>, vector<1x1x64x64xf32>
    %58 = vector.shape_cast %57 : vector<1x1x64x64xf32> to vector<64x64xf32>
    %59 = vector.shape_cast %56 : vector<64x64xf32> to vector<1x1x64x64xf32>
    tpu.vector_store %arg11[%c0_61, %c1_62, %c0_63, %c0_64], %59 {strides = array<i32>} : memref<1x8x64x64xf32, #tpu.memory_space<vmem>>, vector<1x1x64x64xf32>,
    %c0_65 = arith.constant 0 : index
    %c0_66 = arith.constant 0 : index
    %60 = vector.load %arg5[%c0_65, %c0_66] : memref<4x2xbf16, #tpu.memory_space<vmem>>, vector<4x2xbf16>
    %c0_67 = arith.constant 0 : index
    %c2 = arith.constant 2 : index
    %c0_68 = arith.constant 0 : index
    %c0_69 = arith.constant 0 : index
    %61 = vector.load %arg4[%c0_67, %c2, %c0_68, %c0_69] : memref<1x8x2x2xbf16, #tpu.memory_space<vmem>>, vector<1x1x2x2xbf16>
    %62 = vector.shape_cast %61 : vector<1x1x2x2xbf16> to vector<2x2xbf16>
    %cst_70 = arith.constant dense<0.000000e+00> : vector<4x2xf32>
    %63 = tpu.matmul %60, %62, %cst_70 {dimension_numbers = #tpu.dot_dimension_numbers<[1], [0], [0], [1], [0, 0, 1, 1], [], []>} : vector<4x2xbf16>, vector<2x2xbf16>, vector<4x2xf32> -> vector<4x2xf32>
    %64 = arith.truncf %63 : vector<4x2xf32> to vector<4x2xbf16>
    %c0_71 = arith.constant 0 : index
    %c0_72 = arith.constant 0 : index
    %65 = vector.load %arg6[%c0_71, %c0_72] : memref<2x4xbf16, #tpu.memory_space<vmem>>, vector<2x4xbf16>
    %cst_73 = arith.constant dense<0.000000e+00> : vector<4x4xf32>
    %66 = tpu.matmul %64, %65, %cst_73 {dimension_numbers = #tpu.dot_dimension_numbers<[1], [0], [0], [1], [0, 0, 1, 1], [], []>} : vector<4x2xbf16>, vector<2x4xbf16>, vector<4x4xf32> -> vector<4x4xf32>
    %c0_74 = arith.constant 0 : index
    %c2_75 = arith.constant 2 : index
    %c0_76 = arith.constant 0 : index
    %c0_77 = arith.constant 0 : index
    %67 = vector.load %arg3[%c0_74, %c2_75, %c0_76, %c0_77] : memref<1x8x4x4xbf16, #tpu.memory_space<vmem>>, vector<1x1x4x4xbf16>
    %68 = vector.shape_cast %67 : vector<1x1x4x4xbf16> to vector<4x4xbf16>
    %69 = arith.extf %68 : vector<4x4xbf16> to vector<4x4xf32>
    %70 = arith.addf %66, %69 : vector<4x4xf32>
    %c0_78 = arith.constant 0 : index
    %c0_79 = arith.constant 0 : index
    %71 = vector.load %arg7[%c0_78, %c0_79] : memref<8x4xbf16, #tpu.memory_space<vmem>>, vector<8x4xbf16>
    %72 = arith.truncf %70 : vector<4x4xf32> to vector<4x4xbf16>
    %cst_80 = arith.constant dense<0.000000e+00> : vector<8x4xf32>
    %73 = tpu.matmul %71, %72, %cst_80 {dimension_numbers = #tpu.dot_dimension_numbers<[1], [0], [0], [1], [0, 0, 1, 1], [], []>} : vector<8x4xbf16>, vector<4x4xbf16>, vector<8x4xf32> -> vector<8x4xf32>
    %74 = arith.truncf %73 : vector<8x4xf32> to vector<8x4xbf16>
    %c0_81 = arith.constant 0 : index
    %c0_82 = arith.constant 0 : index
    %75 = vector.load %arg8[%c0_81, %c0_82] : memref<4x8xbf16, #tpu.memory_space<vmem>>, vector<4x8xbf16>
    %cst_83 = arith.constant dense<0.000000e+00> : vector<8x8xf32>
    %76 = tpu.matmul %74, %75, %cst_83 {dimension_numbers = #tpu.dot_dimension_numbers<[1], [0], [0], [1], [0, 0, 1, 1], [], []>} : vector<8x4xbf16>, vector<4x8xbf16>, vector<8x8xf32> -> vector<8x8xf32>
    %c0_84 = arith.constant 0 : index
    %c2_85 = arith.constant 2 : index
    %c0_86 = arith.constant 0 : index
    %c0_87 = arith.constant 0 : index
    %77 = vector.load %arg2[%c0_84, %c2_85, %c0_86, %c0_87] : memref<1x8x8x8xbf16, #tpu.memory_space<vmem>>, vector<1x1x8x8xbf16>
    %78 = vector.shape_cast %77 : vector<1x1x8x8xbf16> to vector<8x8xbf16>
    %79 = arith.extf %78 : vector<8x8xbf16> to vector<8x8xf32>
    %80 = arith.addf %76, %79 : vector<8x8xf32>
    %c0_88 = arith.constant 0 : index
    %c0_89 = arith.constant 0 : index
    %81 = vector.load %arg9[%c0_88, %c0_89] : memref<64x8xbf16, #tpu.memory_space<vmem>>, vector<64x8xbf16>
    %82 = arith.truncf %80 : vector<8x8xf32> to vector<8x8xbf16>
    %cst_90 = arith.constant dense<0.000000e+00> : vector<64x8xf32>
    %83 = tpu.matmul %81, %82, %cst_90 {dimension_numbers = #tpu.dot_dimension_numbers<[1], [0], [0], [1], [0, 0, 1, 1], [], []>} : vector<64x8xbf16>, vector<8x8xbf16>, vector<64x8xf32> -> vector<64x8xf32>
    %84 = arith.truncf %83 : vector<64x8xf32> to vector<64x8xbf16>
    %c0_91 = arith.constant 0 : index
    %c0_92 = arith.constant 0 : index
    %85 = vector.load %arg10[%c0_91, %c0_92] : memref<8x64xbf16, #tpu.memory_space<vmem>>, vector<8x64xbf16>
    %cst_93 = arith.constant dense<0.000000e+00> : vector<64x64xf32>
    %86 = tpu.matmul %84, %85, %cst_93 {dimension_numbers = #tpu.dot_dimension_numbers<[1], [0], [0], [1], [0, 0, 1, 1], [], []>} : vector<64x8xbf16>, vector<8x64xbf16>, vector<64x64xf32> -> vector<64x64xf32>
    %c0_94 = arith.constant 0 : index
    %c2_95 = arith.constant 2 : index
    %c0_96 = arith.constant 0 : index
    %c0_97 = arith.constant 0 : index
    %87 = vector.load %arg11[%c0_94, %c2_95, %c0_96, %c0_97] : memref<1x8x64x64xf32, #tpu.memory_space<vmem>>, vector<1x1x64x64xf32>
    %88 = vector.shape_cast %87 : vector<1x1x64x64xf32> to vector<64x64xf32>
    %89 = vector.shape_cast %86 : vector<64x64xf32> to vector<1x1x64x64xf32>
    tpu.vector_store %arg11[%c0_94, %c2_95, %c0_96, %c0_97], %89 {strides = array<i32>} : memref<1x8x64x64xf32, #tpu.memory_space<vmem>>, vector<1x1x64x64xf32>,
    %c0_98 = arith.constant 0 : index
    %c0_99 = arith.constant 0 : index
    %90 = vector.load %arg5[%c0_98, %c0_99] : memref<4x2xbf16, #tpu.memory_space<vmem>>, vector<4x2xbf16>
    %c0_100 = arith.constant 0 : index
    %c3 = arith.constant 3 : index
    %c0_101 = arith.constant 0 : index
    %c0_102 = arith.constant 0 : index
    %91 = vector.load %arg4[%c0_100, %c3, %c0_101, %c0_102] : memref<1x8x2x2xbf16, #tpu.memory_space<vmem>>, vector<1x1x2x2xbf16>
    %92 = vector.shape_cast %91 : vector<1x1x2x2xbf16> to vector<2x2xbf16>
    %cst_103 = arith.constant dense<0.000000e+00> : vector<4x2xf32>
    %93 = tpu.matmul %90, %92, %cst_103 {dimension_numbers = #tpu.dot_dimension_numbers<[1], [0], [0], [1], [0, 0, 1, 1], [], []>} : vector<4x2xbf16>, vector<2x2xbf16>, vector<4x2xf32> -> vector<4x2xf32>
    %94 = arith.truncf %93 : vector<4x2xf32> to vector<4x2xbf16>
    %c0_104 = arith.constant 0 : index
    %c0_105 = arith.constant 0 : index
    %95 = vector.load %arg6[%c0_104, %c0_105] : memref<2x4xbf16, #tpu.memory_space<vmem>>, vector<2x4xbf16>
    %cst_106 = arith.constant dense<0.000000e+00> : vector<4x4xf32>
    %96 = tpu.matmul %94, %95, %cst_106 {dimension_numbers = #tpu.dot_dimension_numbers<[1], [0], [0], [1], [0, 0, 1, 1], [], []>} : vector<4x2xbf16>, vector<2x4xbf16>, vector<4x4xf32> -> vector<4x4xf32>
    %c0_107 = arith.constant 0 : index
    %c3_108 = arith.constant 3 : index
    %c0_109 = arith.constant 0 : index
    %c0_110 = arith.constant 0 : index
    %97 = vector.load %arg3[%c0_107, %c3_108, %c0_109, %c0_110] : memref<1x8x4x4xbf16, #tpu.memory_space<vmem>>, vector<1x1x4x4xbf16>
    %98 = vector.shape_cast %97 : vector<1x1x4x4xbf16> to vector<4x4xbf16>
    %99 = arith.extf %98 : vector<4x4xbf16> to vector<4x4xf32>
    %100 = arith.addf %96, %99 : vector<4x4xf32>
    %c0_111 = arith.constant 0 : index
    %c0_112 = arith.constant 0 : index
    %101 = vector.load %arg7[%c0_111, %c0_112] : memref<8x4xbf16, #tpu.memory_space<vmem>>, vector<8x4xbf16>
    %102 = arith.truncf %100 : vector<4x4xf32> to vector<4x4xbf16>
    %cst_113 = arith.constant dense<0.000000e+00> : vector<8x4xf32>
    %103 = tpu.matmul %101, %102, %cst_113 {dimension_numbers = #tpu.dot_dimension_numbers<[1], [0], [0], [1], [0, 0, 1, 1], [], []>} : vector<8x4xbf16>, vector<4x4xbf16>, vector<8x4xf32> -> vector<8x4xf32>
    %104 = arith.truncf %103 : vector<8x4xf32> to vector<8x4xbf16>
    %c0_114 = arith.constant 0 : index
    %c0_115 = arith.constant 0 : index
    %105 = vector.load %arg8[%c0_114, %c0_115] : memref<4x8xbf16, #tpu.memory_space<vmem>>, vector<4x8xbf16>
    %cst_116 = arith.constant dense<0.000000e+00> : vector<8x8xf32>
    %106 = tpu.matmul %104, %105, %cst_116 {dimension_numbers = #tpu.dot_dimension_numbers<[1], [0], [0], [1], [0, 0, 1, 1], [], []>} : vector<8x4xbf16>, vector<4x8xbf16>, vector<8x8xf32> -> vector<8x8xf32>
    %c0_117 = arith.constant 0 : index
    %c3_118 = arith.constant 3 : index
    %c0_119 = arith.constant 0 : index
    %c0_120 = arith.constant 0 : index
    %107 = vector.load %arg2[%c0_117, %c3_118, %c0_119, %c0_120] : memref<1x8x8x8xbf16, #tpu.memory_space<vmem>>, vector<1x1x8x8xbf16>
    %108 = vector.shape_cast %107 : vector<1x1x8x8xbf16> to vector<8x8xbf16>
    %109 = arith.extf %108 : vector<8x8xbf16> to vector<8x8xf32>
    %110 = arith.addf %106, %109 : vector<8x8xf32>
    %c0_121 = arith.constant 0 : index
    %c0_122 = arith.constant 0 : index
    %111 = vector.load %arg9[%c0_121, %c0_122] : memref<64x8xbf16, #tpu.memory_space<vmem>>, vector<64x8xbf16>
    %112 = arith.truncf %110 : vector<8x8xf32> to vector<8x8xbf16>
    %cst_123 = arith.constant dense<0.000000e+00> : vector<64x8xf32>
    %113 = tpu.matmul %111, %112, %cst_123 {dimension_numbers = #tpu.dot_dimension_numbers<[1], [0], [0], [1], [0, 0, 1, 1], [], []>} : vector<64x8xbf16>, vector<8x8xbf16>, vector<64x8xf32> -> vector<64x8xf32>
    %114 = arith.truncf %113 : vector<64x8xf32> to vector<64x8xbf16>
    %c0_124 = arith.constant 0 : index
    %c0_125 = arith.constant 0 : index
    %115 = vector.load %arg10[%c0_124, %c0_125] : memref<8x64xbf16, #tpu.memory_space<vmem>>, vector<8x64xbf16>
    %cst_126 = arith.constant dense<0.000000e+00> : vector<64x64xf32>
    %116 = tpu.matmul %114, %115, %cst_126 {dimension_numbers = #tpu.dot_dimension_numbers<[1], [0], [0], [1], [0, 0, 1, 1], [], []>} : vector<64x8xbf16>, vector<8x64xbf16>, vector<64x64xf32> -> vector<64x64xf32>
    %c0_127 = arith.constant 0 : index
    %c3_128 = arith.constant 3 : index
    %c0_129 = arith.constant 0 : index
    %c0_130 = arith.constant 0 : index
    %117 = vector.load %arg11[%c0_127, %c3_128, %c0_129, %c0_130] : memref<1x8x64x64xf32, #tpu.memory_space<vmem>>, vector<1x1x64x64xf32>
    %118 = vector.shape_cast %117 : vector<1x1x64x64xf32> to vector<64x64xf32>
    %119 = vector.shape_cast %116 : vector<64x64xf32> to vector<1x1x64x64xf32>
    tpu.vector_store %arg11[%c0_127, %c3_128, %c0_129, %c0_130], %119 {strides = array<i32>} : memref<1x8x64x64xf32, #tpu.memory_space<vmem>>, vector<1x1x64x64xf32>,
    %c0_131 = arith.constant 0 : index
    %c0_132 = arith.constant 0 : index
    %120 = vector.load %arg5[%c0_131, %c0_132] : memref<4x2xbf16, #tpu.memory_space<vmem>>, vector<4x2xbf16>
    %c0_133 = arith.constant 0 : index
    %c4 = arith.constant 4 : index
    %c0_134 = arith.constant 0 : index
    %c0_135 = arith.constant 0 : index
    %121 = vector.load %arg4[%c0_133, %c4, %c0_134, %c0_135] : memref<1x8x2x2xbf16, #tpu.memory_space<vmem>>, vector<1x1x2x2xbf16>
    %122 = vector.shape_cast %121 : vector<1x1x2x2xbf16> to vector<2x2xbf16>
    %cst_136 = arith.constant dense<0.000000e+00> : vector<4x2xf32>
    %123 = tpu.matmul %120, %122, %cst_136 {dimension_numbers = #tpu.dot_dimension_numbers<[1], [0], [0], [1], [0, 0, 1, 1], [], []>} : vector<4x2xbf16>, vector<2x2xbf16>, vector<4x2xf32> -> vector<4x2xf32>
    %124 = arith.truncf %123 : vector<4x2xf32> to vector<4x2xbf16>
    %c0_137 = arith.constant 0 : index
    %c0_138 = arith.constant 0 : index
    %125 = vector.load %arg6[%c0_137, %c0_138] : memref<2x4xbf16, #tpu.memory_space<vmem>>, vector<2x4xbf16>
    %cst_139 = arith.constant dense<0.000000e+00> : vector<4x4xf32>
    %126 = tpu.matmul %124, %125, %cst_139 {dimension_numbers = #tpu.dot_dimension_numbers<[1], [0], [0], [1], [0, 0, 1, 1], [], []>} : vector<4x2xbf16>, vector<2x4xbf16>, vector<4x4xf32> -> vector<4x4xf32>
    %c0_140 = arith.constant 0 : index
    %c4_141 = arith.constant 4 : index
    %c0_142 = arith.constant 0 : index
    %c0_143 = arith.constant 0 : index
    %127 = vector.load %arg3[%c0_140, %c4_141, %c0_142, %c0_143] : memref<1x8x4x4xbf16, #tpu.memory_space<vmem>>, vector<1x1x4x4xbf16>
    %128 = vector.shape_cast %127 : vector<1x1x4x4xbf16> to vector<4x4xbf16>
    %129 = arith.extf %128 : vector<4x4xbf16> to vector<4x4xf32>
    %130 = arith.addf %126, %129 : vector<4x4xf32>
    %c0_144 = arith.constant 0 : index
    %c0_145 = arith.constant 0 : index
    %131 = vector.load %arg7[%c0_144, %c0_145] : memref<8x4xbf16, #tpu.memory_space<vmem>>, vector<8x4xbf16>
    %132 = arith.truncf %130 : vector<4x4xf32> to vector<4x4xbf16>
    %cst_146 = arith.constant dense<0.000000e+00> : vector<8x4xf32>
    %133 = tpu.matmul %131, %132, %cst_146 {dimension_numbers = #tpu.dot_dimension_numbers<[1], [0], [0], [1], [0, 0, 1, 1], [], []>} : vector<8x4xbf16>, vector<4x4xbf16>, vector<8x4xf32> -> vector<8x4xf32>
    %134 = arith.truncf %133 : vector<8x4xf32> to vector<8x4xbf16>
    %c0_147 = arith.constant 0 : index
    %c0_148 = arith.constant 0 : index
    %135 = vector.load %arg8[%c0_147, %c0_148] : memref<4x8xbf16, #tpu.memory_space<vmem>>, vector<4x8xbf16>
    %cst_149 = arith.constant dense<0.000000e+00> : vector<8x8xf32>
    %136 = tpu.matmul %134, %135, %cst_149 {dimension_numbers = #tpu.dot_dimension_numbers<[1], [0], [0], [1], [0, 0, 1, 1], [], []>} : vector<8x4xbf16>, vector<4x8xbf16>, vector<8x8xf32> -> vector<8x8xf32>
    %c0_150 = arith.constant 0 : index
    %c4_151 = arith.constant 4 : index
    %c0_152 = arith.constant 0 : index
    %c0_153 = arith.constant 0 : index
    %137 = vector.load %arg2[%c0_150, %c4_151, %c0_152, %c0_153] : memref<1x8x8x8xbf16, #tpu.memory_space<vmem>>, vector<1x1x8x8xbf16>
    %138 = vector.shape_cast %137 : vector<1x1x8x8xbf16> to vector<8x8xbf16>
    %139 = arith.extf %138 : vector<8x8xbf16> to vector<8x8xf32>
    %140 = arith.addf %136, %139 : vector<8x8xf32>
    %c0_154 = arith.constant 0 : index
    %c0_155 = arith.constant 0 : index
    %141 = vector.load %arg9[%c0_154, %c0_155] : memref<64x8xbf16, #tpu.memory_space<vmem>>, vector<64x8xbf16>
    %142 = arith.truncf %140 : vector<8x8xf32> to vector<8x8xbf16>
    %cst_156 = arith.constant dense<0.000000e+00> : vector<64x8xf32>
    %143 = tpu.matmul %141, %142, %cst_156 {dimension_numbers = #tpu.dot_dimension_numbers<[1], [0], [0], [1], [0, 0, 1, 1], [], []>} : vector<64x8xbf16>, vector<8x8xbf16>, vector<64x8xf32> -> vector<64x8xf32>
    %144 = arith.truncf %143 : vector<64x8xf32> to vector<64x8xbf16>
    %c0_157 = arith.constant 0 : index
    %c0_158 = arith.constant 0 : index
    %145 = vector.load %arg10[%c0_157, %c0_158] : memref<8x64xbf16, #tpu.memory_space<vmem>>, vector<8x64xbf16>
    %cst_159 = arith.constant dense<0.000000e+00> : vector<64x64xf32>
    %146 = tpu.matmul %144, %145, %cst_159 {dimension_numbers = #tpu.dot_dimension_numbers<[1], [0], [0], [1], [0, 0, 1, 1], [], []>} : vector<64x8xbf16>, vector<8x64xbf16>, vector<64x64xf32> -> vector<64x64xf32>
    %c0_160 = arith.constant 0 : index
    %c4_161 = arith.constant 4 : index
    %c0_162 = arith.constant 0 : index
    %c0_163 = arith.constant 0 : index
    %147 = vector.load %arg11[%c0_160, %c4_161, %c0_162, %c0_163] : memref<1x8x64x64xf32, #tpu.memory_space<vmem>>, vector<1x1x64x64xf32>
    %148 = vector.shape_cast %147 : vector<1x1x64x64xf32> to vector<64x64xf32>
    %149 = vector.shape_cast %146 : vector<64x64xf32> to vector<1x1x64x64xf32>
    tpu.vector_store %arg11[%c0_160, %c4_161, %c0_162, %c0_163], %149 {strides = array<i32>} : memref<1x8x64x64xf32, #tpu.memory_space<vmem>>, vector<1x1x64x64xf32>,
    %c0_164 = arith.constant 0 : index
    %c0_165 = arith.constant 0 : index
    %150 = vector.load %arg5[%c0_164, %c0_165] : memref<4x2xbf16, #tpu.memory_space<vmem>>, vector<4x2xbf16>
    %c0_166 = arith.constant 0 : index
    %c5 = arith.constant 5 : index
    %c0_167 = arith.constant 0 : index
    %c0_168 = arith.constant 0 : index
    %151 = vector.load %arg4[%c0_166, %c5, %c0_167, %c0_168] : memref<1x8x2x2xbf16, #tpu.memory_space<vmem>>, vector<1x1x2x2xbf16>
    %152 = vector.shape_cast %151 : vector<1x1x2x2xbf16> to vector<2x2xbf16>
    %cst_169 = arith.constant dense<0.000000e+00> : vector<4x2xf32>
    %153 = tpu.matmul %150, %152, %cst_169 {dimension_numbers = #tpu.dot_dimension_numbers<[1], [0], [0], [1], [0, 0, 1, 1], [], []>} : vector<4x2xbf16>, vector<2x2xbf16>, vector<4x2xf32> -> vector<4x2xf32>
    %154 = arith.truncf %153 : vector<4x2xf32> to vector<4x2xbf16>
    %c0_170 = arith.constant 0 : index
    %c0_171 = arith.constant 0 : index
    %155 = vector.load %arg6[%c0_170, %c0_171] : memref<2x4xbf16, #tpu.memory_space<vmem>>, vector<2x4xbf16>
    %cst_172 = arith.constant dense<0.000000e+00> : vector<4x4xf32>
    %156 = tpu.matmul %154, %155, %cst_172 {dimension_numbers = #tpu.dot_dimension_numbers<[1], [0], [0], [1], [0, 0, 1, 1], [], []>} : vector<4x2xbf16>, vector<2x4xbf16>, vector<4x4xf32> -> vector<4x4xf32>
    %c0_173 = arith.constant 0 : index
    %c5_174 = arith.constant 5 : index
    %c0_175 = arith.constant 0 : index
    %c0_176 = arith.constant 0 : index
    %157 = vector.load %arg3[%c0_173, %c5_174, %c0_175, %c0_176] : memref<1x8x4x4xbf16, #tpu.memory_space<vmem>>, vector<1x1x4x4xbf16>
    %158 = vector.shape_cast %157 : vector<1x1x4x4xbf16> to vector<4x4xbf16>
    %159 = arith.extf %158 : vector<4x4xbf16> to vector<4x4xf32>
    %160 = arith.addf %156, %159 : vector<4x4xf32>
    %c0_177 = arith.constant 0 : index
    %c0_178 = arith.constant 0 : index
    %161 = vector.load %arg7[%c0_177, %c0_178] : memref<8x4xbf16, #tpu.memory_space<vmem>>, vector<8x4xbf16>
    %162 = arith.truncf %160 : vector<4x4xf32> to vector<4x4xbf16>
    %cst_179 = arith.constant dense<0.000000e+00> : vector<8x4xf32>
    %163 = tpu.matmul %161, %162, %cst_179 {dimension_numbers = #tpu.dot_dimension_numbers<[1], [0], [0], [1], [0, 0, 1, 1], [], []>} : vector<8x4xbf16>, vector<4x4xbf16>, vector<8x4xf32> -> vector<8x4xf32>
    %164 = arith.truncf %163 : vector<8x4xf32> to vector<8x4xbf16>
    %c0_180 = arith.constant 0 : index
    %c0_181 = arith.constant 0 : index
    %165 = vector.load %arg8[%c0_180, %c0_181] : memref<4x8xbf16, #tpu.memory_space<vmem>>, vector<4x8xbf16>
    %cst_182 = arith.constant dense<0.000000e+00> : vector<8x8xf32>
    %166 = tpu.matmul %164, %165, %cst_182 {dimension_numbers = #tpu.dot_dimension_numbers<[1], [0], [0], [1], [0, 0, 1, 1], [], []>} : vector<8x4xbf16>, vector<4x8xbf16>, vector<8x8xf32> -> vector<8x8xf32>
    %c0_183 = arith.constant 0 : index
    %c5_184 = arith.constant 5 : index
    %c0_185 = arith.constant 0 : index
    %c0_186 = arith.constant 0 : index
    %167 = vector.load %arg2[%c0_183, %c5_184, %c0_185, %c0_186] : memref<1x8x8x8xbf16, #tpu.memory_space<vmem>>, vector<1x1x8x8xbf16>
    %168 = vector.shape_cast %167 : vector<1x1x8x8xbf16> to vector<8x8xbf16>
    %169 = arith.extf %168 : vector<8x8xbf16> to vector<8x8xf32>
    %170 = arith.addf %166, %169 : vector<8x8xf32>
    %c0_187 = arith.constant 0 : index
    %c0_188 = arith.constant 0 : index
    %171 = vector.load %arg9[%c0_187, %c0_188] : memref<64x8xbf16, #tpu.memory_space<vmem>>, vector<64x8xbf16>
    %172 = arith.truncf %170 : vector<8x8xf32> to vector<8x8xbf16>
    %cst_189 = arith.constant dense<0.000000e+00> : vector<64x8xf32>
    %173 = tpu.matmul %171, %172, %cst_189 {dimension_numbers = #tpu.dot_dimension_numbers<[1], [0], [0], [1], [0, 0, 1, 1], [], []>} : vector<64x8xbf16>, vector<8x8xbf16>, vector<64x8xf32> -> vector<64x8xf32>
    %174 = arith.truncf %173 : vector<64x8xf32> to vector<64x8xbf16>
    %c0_190 = arith.constant 0 : index
    %c0_191 = arith.constant 0 : index
    %175 = vector.load %arg10[%c0_190, %c0_191] : memref<8x64xbf16, #tpu.memory_space<vmem>>, vector<8x64xbf16>
    %cst_192 = arith.constant dense<0.000000e+00> : vector<64x64xf32>
    %176 = tpu.matmul %174, %175, %cst_192 {dimension_numbers = #tpu.dot_dimension_numbers<[1], [0], [0], [1], [0, 0, 1, 1], [], []>} : vector<64x8xbf16>, vector<8x64xbf16>, vector<64x64xf32> -> vector<64x64xf32>
    %c0_193 = arith.constant 0 : index
    %c5_194 = arith.constant 5 : index
    %c0_195 = arith.constant 0 : index
    %c0_196 = arith.constant 0 : index
    %177 = vector.load %arg11[%c0_193, %c5_194, %c0_195, %c0_196] : memref<1x8x64x64xf32, #tpu.memory_space<vmem>>, vector<1x1x64x64xf32>
    %178 = vector.shape_cast %177 : vector<1x1x64x64xf32> to vector<64x64xf32>
    %179 = vector.shape_cast %176 : vector<64x64xf32> to vector<1x1x64x64xf32>
    tpu.vector_store %arg11[%c0_193, %c5_194, %c0_195, %c0_196], %179 {strides = array<i32>} : memref<1x8x64x64xf32, #tpu.memory_space<vmem>>, vector<1x1x64x64xf32>,
    %c0_197 = arith.constant 0 : index
    %c0_198 = arith.constant 0 : index
    %180 = vector.load %arg5[%c0_197, %c0_198] : memref<4x2xbf16, #tpu.memory_space<vmem>>, vector<4x2xbf16>
    %c0_199 = arith.constant 0 : index
    %c6 = arith.constant 6 : index
    %c0_200 = arith.constant 0 : index
    %c0_201 = arith.constant 0 : index
    %181 = vector.load %arg4[%c0_199, %c6, %c0_200, %c0_201] : memref<1x8x2x2xbf16, #tpu.memory_space<vmem>>, vector<1x1x2x2xbf16>
    %182 = vector.shape_cast %181 : vector<1x1x2x2xbf16> to vector<2x2xbf16>
    %cst_202 = arith.constant dense<0.000000e+00> : vector<4x2xf32>
    %183 = tpu.matmul %180, %182, %cst_202 {dimension_numbers = #tpu.dot_dimension_numbers<[1], [0], [0], [1], [0, 0, 1, 1], [], []>} : vector<4x2xbf16>, vector<2x2xbf16>, vector<4x2xf32> -> vector<4x2xf32>
    %184 = arith.truncf %183 : vector<4x2xf32> to vector<4x2xbf16>
    %c0_203 = arith.constant 0 : index
    %c0_204 = arith.constant 0 : index
    %185 = vector.load %arg6[%c0_203, %c0_204] : memref<2x4xbf16, #tpu.memory_space<vmem>>, vector<2x4xbf16>
    %cst_205 = arith.constant dense<0.000000e+00> : vector<4x4xf32>
    %186 = tpu.matmul %184, %185, %cst_205 {dimension_numbers = #tpu.dot_dimension_numbers<[1], [0], [0], [1], [0, 0, 1, 1], [], []>} : vector<4x2xbf16>, vector<2x4xbf16>, vector<4x4xf32> -> vector<4x4xf32>
    %c0_206 = arith.constant 0 : index
    %c6_207 = arith.constant 6 : index
    %c0_208 = arith.constant 0 : index
    %c0_209 = arith.constant 0 : index
    %187 = vector.load %arg3[%c0_206, %c6_207, %c0_208, %c0_209] : memref<1x8x4x4xbf16, #tpu.memory_space<vmem>>, vector<1x1x4x4xbf16>
    %188 = vector.shape_cast %187 : vector<1x1x4x4xbf16> to vector<4x4xbf16>
    %189 = arith.extf %188 : vector<4x4xbf16> to vector<4x4xf32>
    %190 = arith.addf %186, %189 : vector<4x4xf32>
    %c0_210 = arith.constant 0 : index
    %c0_211 = arith.constant 0 : index
    %191 = vector.load %arg7[%c0_210, %c0_211] : memref<8x4xbf16, #tpu.memory_space<vmem>>, vector<8x4xbf16>
    %192 = arith.truncf %190 : vector<4x4xf32> to vector<4x4xbf16>
    %cst_212 = arith.constant dense<0.000000e+00> : vector<8x4xf32>
    %193 = tpu.matmul %191, %192, %cst_212 {dimension_numbers = #tpu.dot_dimension_numbers<[1], [0], [0], [1], [0, 0, 1, 1], [], []>} : vector<8x4xbf16>, vector<4x4xbf16>, vector<8x4xf32> -> vector<8x4xf32>
    %194 = arith.truncf %193 : vector<8x4xf32> to vector<8x4xbf16>
    %c0_213 = arith.constant 0 : index
    %c0_214 = arith.constant 0 : index
    %195 = vector.load %arg8[%c0_213, %c0_214] : memref<4x8xbf16, #tpu.memory_space<vmem>>, vector<4x8xbf16>
    %cst_215 = arith.constant dense<0.000000e+00> : vector<8x8xf32>
    %196 = tpu.matmul %194, %195, %cst_215 {dimension_numbers = #tpu.dot_dimension_numbers<[1], [0], [0], [1], [0, 0, 1, 1], [], []>} : vector<8x4xbf16>, vector<4x8xbf16>, vector<8x8xf32> -> vector<8x8xf32>
    %c0_216 = arith.constant 0 : index
    %c6_217 = arith.constant 6 : index
    %c0_218 = arith.constant 0 : index
    %c0_219 = arith.constant 0 : index
    %197 = vector.load %arg2[%c0_216, %c6_217, %c0_218, %c0_219] : memref<1x8x8x8xbf16, #tpu.memory_space<vmem>>, vector<1x1x8x8xbf16>
    %198 = vector.shape_cast %197 : vector<1x1x8x8xbf16> to vector<8x8xbf16>
    %199 = arith.extf %198 : vector<8x8xbf16> to vector<8x8xf32>
    %200 = arith.addf %196, %199 : vector<8x8xf32>
    %c0_220 = arith.constant 0 : index
    %c0_221 = arith.constant 0 : index
    %201 = vector.load %arg9[%c0_220, %c0_221] : memref<64x8xbf16, #tpu.memory_space<vmem>>, vector<64x8xbf16>
    %202 = arith.truncf %200 : vector<8x8xf32> to vector<8x8xbf16>
    %cst_222 = arith.constant dense<0.000000e+00> : vector<64x8xf32>
    %203 = tpu.matmul %201, %202, %cst_222 {dimension_numbers = #tpu.dot_dimension_numbers<[1], [0], [0], [1], [0, 0, 1, 1], [], []>} : vector<64x8xbf16>, vector<8x8xbf16>, vector<64x8xf32> -> vector<64x8xf32>
    %204 = arith.truncf %203 : vector<64x8xf32> to vector<64x8xbf16>
    %c0_223 = arith.constant 0 : index
    %c0_224 = arith.constant 0 : index
    %205 = vector.load %arg10[%c0_223, %c0_224] : memref<8x64xbf16, #tpu.memory_space<vmem>>, vector<8x64xbf16>
    %cst_225 = arith.constant dense<0.000000e+00> : vector<64x64xf32>
    %206 = tpu.matmul %204, %205, %cst_225 {dimension_numbers = #tpu.dot_dimension_numbers<[1], [0], [0], [1], [0, 0, 1, 1], [], []>} : vector<64x8xbf16>, vector<8x64xbf16>, vector<64x64xf32> -> vector<64x64xf32>
    %c0_226 = arith.constant 0 : index
    %c6_227 = arith.constant 6 : index
    %c0_228 = arith.constant 0 : index
    %c0_229 = arith.constant 0 : index
    %207 = vector.load %arg11[%c0_226, %c6_227, %c0_228, %c0_229] : memref<1x8x64x64xf32, #tpu.memory_space<vmem>>, vector<1x1x64x64xf32>
    %208 = vector.shape_cast %207 : vector<1x1x64x64xf32> to vector<64x64xf32>
    %209 = vector.shape_cast %206 : vector<64x64xf32> to vector<1x1x64x64xf32>
    tpu.vector_store %arg11[%c0_226, %c6_227, %c0_228, %c0_229], %209 {strides = array<i32>} : memref<1x8x64x64xf32, #tpu.memory_space<vmem>>, vector<1x1x64x64xf32>,
    %c0_230 = arith.constant 0 : index
    %c0_231 = arith.constant 0 : index
    %210 = vector.load %arg5[%c0_230, %c0_231] : memref<4x2xbf16, #tpu.memory_space<vmem>>, vector<4x2xbf16>
    %c0_232 = arith.constant 0 : index
    %c7 = arith.constant 7 : index
    %c0_233 = arith.constant 0 : index
    %c0_234 = arith.constant 0 : index
    %211 = vector.load %arg4[%c0_232, %c7, %c0_233, %c0_234] : memref<1x8x2x2xbf16, #tpu.memory_space<vmem>>, vector<1x1x2x2xbf16>
    %212 = vector.shape_cast %211 : vector<1x1x2x2xbf16> to vector<2x2xbf16>
    %cst_235 = arith.constant dense<0.000000e+00> : vector<4x2xf32>
    %213 = tpu.matmul %210, %212, %cst_235 {dimension_numbers = #tpu.dot_dimension_numbers<[1], [0], [0], [1], [0, 0, 1, 1], [], []>} : vector<4x2xbf16>, vector<2x2xbf16>, vector<4x2xf32> -> vector<4x2xf32>
    %214 = arith.truncf %213 : vector<4x2xf32> to vector<4x2xbf16>
    %c0_236 = arith.constant 0 : index
    %c0_237 = arith.constant 0 : index
    %215 = vector.load %arg6[%c0_236, %c0_237] : memref<2x4xbf16, #tpu.memory_space<vmem>>, vector<2x4xbf16>
    %cst_238 = arith.constant dense<0.000000e+00> : vector<4x4xf32>
    %216 = tpu.matmul %214, %215, %cst_238 {dimension_numbers = #tpu.dot_dimension_numbers<[1], [0], [0], [1], [0, 0, 1, 1], [], []>} : vector<4x2xbf16>, vector<2x4xbf16>, vector<4x4xf32> -> vector<4x4xf32>
    %c0_239 = arith.constant 0 : index
    %c7_240 = arith.constant 7 : index
    %c0_241 = arith.constant 0 : index
    %c0_242 = arith.constant 0 : index
    %217 = vector.load %arg3[%c0_239, %c7_240, %c0_241, %c0_242] : memref<1x8x4x4xbf16, #tpu.memory_space<vmem>>, vector<1x1x4x4xbf16>
    %218 = vector.shape_cast %217 : vector<1x1x4x4xbf16> to vector<4x4xbf16>
    %219 = arith.extf %218 : vector<4x4xbf16> to vector<4x4xf32>
    %220 = arith.addf %216, %219 : vector<4x4xf32>
    %c0_243 = arith.constant 0 : index
    %c0_244 = arith.constant 0 : index
    %221 = vector.load %arg7[%c0_243, %c0_244] : memref<8x4xbf16, #tpu.memory_space<vmem>>, vector<8x4xbf16>
    %222 = arith.truncf %220 : vector<4x4xf32> to vector<4x4xbf16>
    %cst_245 = arith.constant dense<0.000000e+00> : vector<8x4xf32>
    %223 = tpu.matmul %221, %222, %cst_245 {dimension_numbers = #tpu.dot_dimension_numbers<[1], [0], [0], [1], [0, 0, 1, 1], [], []>} : vector<8x4xbf16>, vector<4x4xbf16>, vector<8x4xf32> -> vector<8x4xf32>
    %224 = arith.truncf %223 : vector<8x4xf32> to vector<8x4xbf16>
    %c0_246 = arith.constant 0 : index
    %c0_247 = arith.constant 0 : index
    %225 = vector.load %arg8[%c0_246, %c0_247] : memref<4x8xbf16, #tpu.memory_space<vmem>>, vector<4x8xbf16>
    %cst_248 = arith.constant dense<0.000000e+00> : vector<8x8xf32>
    %226 = tpu.matmul %224, %225, %cst_248 {dimension_numbers = #tpu.dot_dimension_numbers<[1], [0], [0], [1], [0, 0, 1, 1], [], []>} : vector<8x4xbf16>, vector<4x8xbf16>, vector<8x8xf32> -> vector<8x8xf32>
    %c0_249 = arith.constant 0 : index
    %c7_250 = arith.constant 7 : index
    %c0_251 = arith.constant 0 : index
    %c0_252 = arith.constant 0 : index
    %227 = vector.load %arg2[%c0_249, %c7_250, %c0_251, %c0_252] : memref<1x8x8x8xbf16, #tpu.memory_space<vmem>>, vector<1x1x8x8xbf16>
    %228 = vector.shape_cast %227 : vector<1x1x8x8xbf16> to vector<8x8xbf16>
    %229 = arith.extf %228 : vector<8x8xbf16> to vector<8x8xf32>
    %230 = arith.addf %226, %229 : vector<8x8xf32>
    %c0_253 = arith.constant 0 : index
    %c0_254 = arith.constant 0 : index
    %231 = vector.load %arg9[%c0_253, %c0_254] : memref<64x8xbf16, #tpu.memory_space<vmem>>, vector<64x8xbf16>
    %232 = arith.truncf %230 : vector<8x8xf32> to vector<8x8xbf16>
    %cst_255 = arith.constant dense<0.000000e+00> : vector<64x8xf32>
    %233 = tpu.matmul %231, %232, %cst_255 {dimension_numbers = #tpu.dot_dimension_numbers<[1], [0], [0], [1], [0, 0, 1, 1], [], []>} : vector<64x8xbf16>, vector<8x8xbf16>, vector<64x8xf32> -> vector<64x8xf32>
    %234 = arith.truncf %233 : vector<64x8xf32> to vector<64x8xbf16>
    %c0_256 = arith.constant 0 : index
    %c0_257 = arith.constant 0 : index
    %235 = vector.load %arg10[%c0_256, %c0_257] : memref<8x64xbf16, #tpu.memory_space<vmem>>, vector<8x64xbf16>
    %cst_258 = arith.constant dense<0.000000e+00> : vector<64x64xf32>
    %236 = tpu.matmul %234, %235, %cst_258 {dimension_numbers = #tpu.dot_dimension_numbers<[1], [0], [0], [1], [0, 0, 1, 1], [], []>} : vector<64x8xbf16>, vector<8x64xbf16>, vector<64x64xf32> -> vector<64x64xf32>
    %c0_259 = arith.constant 0 : index
    %c7_260 = arith.constant 7 : index
    %c0_261 = arith.constant 0 : index
    %c0_262 = arith.constant 0 : index
    %237 = vector.load %arg11[%c0_259, %c7_260, %c0_261, %c0_262] : memref<1x8x64x64xf32, #tpu.memory_space<vmem>>, vector<1x1x64x64xf32>
    %238 = vector.shape_cast %237 : vector<1x1x64x64xf32> to vector<64x64xf32>
    %239 = vector.shape_cast %236 : vector<64x64xf32> to vector<1x1x64x64xf32>
    tpu.vector_store %arg11[%c0_259, %c7_260, %c0_261, %c0_262], %239 {strides = array<i32>} : memref<1x8x64x64xf32, #tpu.memory_space<vmem>>, vector<1x1x64x64xf32>,
    return
  }
  func.func @transform_0(%arg0: i32, %arg1: i32) -> (i32, i32, i32, i32) {
    %c0_i32 = arith.constant 0 : i32
    %c0_i32_0 = arith.constant 0 : i32
    %c0_i32_1 = arith.constant 0 : i32
    %c0_i32_2 = arith.constant 0 : i32
    return %arg0, %c0_i32, %c0_i32_0, %c0_i32_1 : i32, i32, i32, i32
  }
  func.func @transform_1(%arg0: i32, %arg1: i32) -> (i32, i32, i32, i32) {
    %c0_i32 = arith.constant 0 : i32
    %c0_i32_0 = arith.constant 0 : i32
    %c0_i32_1 = arith.constant 0 : i32
    %c0_i32_2 = arith.constant 0 : i32
    return %arg0, %c0_i32, %c0_i32_0, %c0_i32_1 : i32, i32, i32, i32
  }
  func.func @transform_2(%arg0: i32, %arg1: i32) -> (i32, i32, i32, i32) {
    %c0_i32 = arith.constant 0 : i32
    %c0_i32_0 = arith.constant 0 : i32
    %c0_i32_1 = arith.constant 0 : i32
    %c0_i32_2 = arith.constant 0 : i32
    return %arg0, %c0_i32, %c0_i32_0, %c0_i32_1 : i32, i32, i32, i32
  }
  func.func @transform_3(%arg0: i32, %arg1: i32) -> (i32, i32) {
    %c0_i32 = arith.constant 0 : i32
    %c0_i32_0 = arith.constant 0 : i32
    %c0_i32_1 = arith.constant 0 : i32
    return %c0_i32, %c0_i32_0 : i32, i32
  }
  func.func @transform_4(%arg0: i32, %arg1: i32) -> (i32, i32) {
    %c0_i32 = arith.constant 0 : i32
    %c0_i32_0 = arith.constant 0 : i32
    %c0_i32_1 = arith.constant 0 : i32
    return %c0_i32, %c0_i32_0 : i32, i32
  }
  func.func @transform_5(%arg0: i32, %arg1: i32) -> (i32, i32) {
    %c0_i32 = arith.constant 0 : i32
    %c0_i32_0 = arith.constant 0 : i32
    %c0_i32_1 = arith.constant 0 : i32
    return %c0_i32, %c0_i32_0 : i32, i32
  }
  func.func @transform_6(%arg0: i32, %arg1: i32) -> (i32, i32) {
    %c0_i32 = arith.constant 0 : i32
    %c0_i32_0 = arith.constant 0 : i32
    %c0_i32_1 = arith.constant 0 : i32
    return %c0_i32, %c0_i32_0 : i32, i32
  }
  func.func @transform_7(%arg0: i32, %arg1: i32) -> (i32, i32) {
    %c0_i32 = arith.constant 0 : i32
    %c0_i32_0 = arith.constant 0 : i32
    return %arg1, %c0_i32 : i32, i32
  }
  func.func @transform_8(%arg0: i32, %arg1: i32) -> (i32, i32) {
    %c0_i32 = arith.constant 0 : i32
    %c0_i32_0 = arith.constant 0 : i32
    %c0_i32_1 = arith.constant 0 : i32
    return %c0_i32, %c0_i32_0 : i32, i32
  }
  func.func @transform_9(%arg0: i32, %arg1: i32) -> (i32, i32, i32, i32) {
    %c0_i32 = arith.constant 0 : i32
    %c0_i32_0 = arith.constant 0 : i32
    %c0_i32_1 = arith.constant 0 : i32
    return %arg0, %c0_i32, %arg1, %c0_i32_0 : i32, i32, i32, i32
  }
}

</mosaic_0001>

<llo_original>
// kernel: fcn_forward.7
$region0: #{fcn_forward.7}
  #allocation0 [shape = 'u32[]', space=smem, size = 0x4, offset = 0x4, fixed_abs, tag = 'smem constant byte address 0x4 - core index']
  #allocation1 [shape = 'u32[144,128]{1,0:T(1,128)}', space=vmem, size = 0x12000, scoped, tag = 'internal scratch']
  %s0 = inlined_call_operand.vmem [shape: bf16[2,3,64], index: 0, kind: input, shape index: {}]
  %s1 = inlined_call_operand.vmem [shape: bf16[128,3], index: 1, kind: input, shape index: {}]
  %s2 = inlined_call_operand.vmem [shape: f32[128,1], index: 2, kind: input, shape index: {}]
  %s3 = inlined_call_operand.vmem [shape: bf16[2,128,64], index: 3, kind: output, shape index: {}]
  %s4 = sld [smem:[#allocation0]]
  $region45: #{fcn_forward.7} parent=0
    _
  %s6 = ssub.s32 1, %s4
  %s7 = scalar_select 0, %s6, %s4
  loop: start=0, step=1, limit=4
  $region2: #{fcn_forward.7} parent=0 // loop_pre_header
    _
  $region3: #{fcn_forward.7} parent=0 // loop_header
    %s9 = sphi 0, %s13
    %p10 = scmp.ge.s32.totalorder %s9, 4
    %s16 = sphi 0, %s28
    %s17 = sphi 0, %s24
    %s18 = sphi 0, %s16
    %s19 = sphi 0, %s17
    %s20 = sphi 0, %s18
    %s21 = sphi 0, %s19
    %s33 = sphi 0, %s35
    %s36 = sphi 0, %s33
    %s37 = sphi 0, %s36
    %s53 = sphi 0, %s37
    %s57 = sphi 0, %s57
    %s59 = sphi 0, %s57
    %s60 = sphi 0, %s59
    %s74 = sphi 0, %s60
    %s78 = sphi 0, %s78
    %s80 = sphi 0, %s78
    %s81 = sphi 0, %s80
    %s95 = sphi 0, %s81
    %s103 = sphi 0, %s105
    %s106 = sphi 0, %s103
    %s107 = sphi 0, %s106
    %s123 = sphi 0, %s107
  $region4: #{fcn_forward.7} parent=0 // loop_header_branch
    %12 = sbr.rel (%p10) target = $region8
  $region5: #{fcn_forward.7} parent=0 // loop_body
    %s14 = ssub.s32 %s9, 1
    %s15 = ssub.s32 %s9, 2
    %s22 = sadd.s32 1, %s17
    %p23 = scmp.ge.s32.totalorder %s22, 1
    %s24 = scalar_select %p23, 0, %s22
    %s25 = sadd.s32 1, %s16
    %s26 = scalar_select %p23, %s25, %s16
    %p27 = scmp.ge.s32.totalorder %s26, 2
    %s28 = scalar_select %p27, 0, %s26
    %s29 = ssub.s32 %s16, %s28
    %s30 = ssub.s32 %s17, %s24
    %s31 = sor.u32 %s29, %s30
    %p32 = scmp.eq.s32.totalorder %s31, 0
    %s34 = sadd.s32 %s33, 1
    %s35 = scalar_select %p32, %s33, %s34
    %p38 = pneg %p32
    %p39 = scmp.eq.s32.totalorder %s9, 1
    %p40 = por %p38, %p39
    %p41 = scmp.ne.s32.totalorder %s33, %s36
    %p42 = scmp.eq.s32.totalorder %s9, 0
    %p43 = por %p41, %p42
    %p44 = scmp.ne.s32.totalorder %s33, %s36
    %p45 = scmp.eq.s32.totalorder %s14, 1
    %p46 = por %p44, %p45
    %p47 = scmp.ne.s32.totalorder %s36, %s37
    %p48 = scmp.eq.s32.totalorder %s14, 0
    %p49 = por %p47, %p48
    %p50 = scmp.ne.s32.totalorder %s36, %s37
    %p51 = scmp.eq.s32.totalorder %s15, 1
    %p52 = por %p50, %p51
    %p54 = scmp.ne.s32.totalorder %s37, %s53
    %p55 = scmp.eq.s32.totalorder %s15, 0
    %p56 = por %p54, %p55
    %s58 = sadd.s32 %s57, 1
    %p61 = scmp.eq.s32.totalorder %s9, 1
    %p62 = scmp.ne.s32.totalorder %s57, %s59
    %p63 = scmp.eq.s32.totalorder %s9, 0
    %p64 = por %p62, %p63
    %p65 = scmp.ne.s32.totalorder %s57, %s59
    %p66 = scmp.eq.s32.totalorder %s14, 1
    %p67 = por %p65, %p66
    %p68 = scmp.ne.s32.totalorder %s59, %s60
    %p69 = scmp.eq.s32.totalorder %s14, 0
    %p70 = por %p68, %p69
    %p71 = scmp.ne.s32.totalorder %s59, %s60
    %p72 = scmp.eq.s32.totalorder %s15, 1
    %p73 = por %p71, %p72
    %p75 = scmp.ne.s32.totalorder %s60, %s74
    %p76 = scmp.eq.s32.totalorder %s15, 0
    %p77 = por %p75, %p76
    %s79 = sadd.s32 %s78, 1
    %p82 = scmp.eq.s32.totalorder %s9, 1
    %p83 = scmp.ne.s32.totalorder %s78, %s80
    %p84 = scmp.eq.s32.totalorder %s9, 0
    %p85 = por %p83, %p84
    %p86 = scmp.ne.s32.totalorder %s78, %s80
    %p87 = scmp.eq.s32.totalorder %s14, 1
    %p88 = por %p86, %p87
    %p89 = scmp.ne.s32.totalorder %s80, %s81
    %p90 = scmp.eq.s32.totalorder %s14, 0
    %p91 = por %p89, %p90
    %p92 = scmp.ne.s32.totalorder %s80, %s81
    %p93 = scmp.eq.s32.totalorder %s15, 1
    %p94 = por %p92, %p93
    %p96 = scmp.ne.s32.totalorder %s81, %s95
    %p97 = scmp.eq.s32.totalorder %s15, 0
    %p98 = por %p96, %p97
    %s99 = ssub.s32 %s16, %s28
    %s100 = ssub.s32 %s17, %s24
    %s101 = sor.u32 %s99, %s100
    %p102 = scmp.eq.s32.totalorder %s101, 0
    %s104 = sadd.s32 %s103, 1
    %s105 = scalar_select %p102, %s103, %s104
    %p108 = pneg %p102
    %p109 = scmp.eq.s32.totalorder %s9, 1
    %p110 = por %p108, %p109
    %p111 = scmp.ne.s32.totalorder %s103, %s106
    %p112 = scmp.eq.s32.totalorder %s9, 0
    %p113 = por %p111, %p112
    %p114 = scmp.ne.s32.totalorder %s103, %s106
    %p115 = scmp.eq.s32.totalorder %s14, 1
    %p116 = por %p114, %p115
    %p117 = scmp.ne.s32.totalorder %s106, %s107
    %p118 = scmp.eq.s32.totalorder %s14, 0
    %p119 = por %p117, %p118
    %p120 = scmp.ne.s32.totalorder %s106, %s107
    %p121 = scmp.eq.s32.totalorder %s15, 1
    %p122 = por %p120, %p121
    %p124 = scmp.ne.s32.totalorder %s107, %s123
    %p125 = scmp.eq.s32.totalorder %s15, 0
    %p126 = por %p124, %p125
    %p127 = scmp.le.s32.totalorder 1, %s9
    %p128 = scmp.lt.s32.totalorder %s9, 3
    %p129 = pnand %p127, %p128
    %p130 = pneg %p129
    // Predicated region
    $region9: #{fcn_forward.7} parent=5 // pred_check
      _
    $region10: #{fcn_forward.7} parent=5 // pred_check_branch
      %132 = sbr.rel (%p129) target = $region12
    $region11: #{fcn_forward.7} parent=5 // pred_region
      %s133 = ssub.s32 %s9, 1
      // Predicated region
      $region13: #{fcn_forward.7} parent=11 // pred_check
        %p134 = pneg %p70
      $region14: #{fcn_forward.7} parent=11 // pred_check_branch
        %136 = sbr.rel (%p134) target = $region16
      $region15: #{fcn_forward.7} parent=11 // pred_region
        _
      $region16: #{fcn_forward.7} parent=11 // pred_fallthru
        _
      // Predicated region
      $region17: #{fcn_forward.7} parent=11 // pred_check
        %p137 = pneg %p91
      $region18: #{fcn_forward.7} parent=11 // pred_check_branch
        %139 = sbr.rel (%p137) target = $region20
      $region19: #{fcn_forward.7} parent=11 // pred_region
        _
      $region20: #{fcn_forward.7} parent=11 // pred_fallthru
        _
    $region12: #{fcn_forward.7} parent=5 // pred_fallthru
      _
    %p140 = scmp.lt.s32.totalorder %s9, 2
    // Predicated region
    $region21: #{fcn_forward.7} parent=5 // pred_check
      %p141 = pneg %p140
    $region22: #{fcn_forward.7} parent=5 // pred_check_branch
      %143 = sbr.rel (%p141) target = $region24
    $region23: #{fcn_forward.7} parent=5 // pred_region
      // Predicated region
      $region25: #{fcn_forward.7} parent=23 // pred_check
        %p144 = pneg %p43
      $region26: #{fcn_forward.7} parent=23 // pred_check_branch
        %146 = sbr.rel (%p144) target = $region28
      $region27: #{fcn_forward.7} parent=23 // pred_region
        %p147 = scmp.lt.s32.totalorder %s16, 1
        %s148 = scalar_select %p147, %s16, 1
        %p149 = scmp.lt.s32.totalorder %s17, 0
        %s150 = scalar_select %p149, %s17, 0
        %s151 = sadd.s32 %s150, %s148
        %s152 = smul.addr %s151, 2
        %s153 = scalar_lea.vmem %s0, %s152
      $region28: #{fcn_forward.7} parent=23 // pred_fallthru
        _
    $region24: #{fcn_forward.7} parent=5 // pred_fallthru
      _
    %p154 = scmp.le.s32.totalorder 1, %s9
    %p155 = scmp.lt.s32.totalorder %s9, 3
    %p156 = pnand %p154, %p155
    %p157 = pneg %p156
    // Predicated region
    $region29: #{fcn_forward.7} parent=5 // pred_check
      _
    $region30: #{fcn_forward.7} parent=5 // pred_check_branch
      %159 = sbr.rel (%p156) target = $region32
    $region31: #{fcn_forward.7} parent=5 // pred_region
      %s160 = ssub.s32 %s9, 1
      %p161 = scmp.lt.s32.totalorder %s18, 1
      %s162 = scalar_select %p161, %s18, 1
      %p163 = scmp.lt.s32.totalorder %s19, 0
      %s164 = scalar_select %p163, %s19, 0
      %s165 = sadd.s32 %s164, %s162
      %s166 = smul.addr %s165, 2
      %s167 = scalar_lea.vmem %s0, %s166
      %p168 = pneg %p49
      %p169 = pneg %p46
      %p170 = pneg %p70
      %p171 = pneg %p67
      %p172 = pneg %p91
      %p173 = pneg %p88
      %p174 = pneg %p119
      %p175 = pneg %p116
      %p176 = scmp.lt.s32.totalorder %s18, 1
      %s177 = scalar_select %p176, %s18, 1
      %p178 = scmp.lt.s32.totalorder %s19, 0
      %s179 = scalar_select %p178, %s19, 0
      %s180 = smul.addr %s177, 16
      %s181 = sadd.s32 %s179, %s180
      %s182 = smul.addr %s181, 4
      %s183 = scalar_lea.vmem %s3, %s182
      %p184 = scmp.lt.s32.totalorder %s18, 1
      %s185 = scalar_select %p184, %s18, 1
      %p186 = scmp.lt.s32.totalorder %s19, 0
      %s187 = scalar_select %p186, %s19, 0
      %s188 = sadd.s32 %s187, %s185
      %s189 = smul.addr %s188, 2
      %s190 = scalar_lea.vmem %s0, %s189
      %p191 = scmp.lt.s32.totalorder %s18, 1
      %s192 = scalar_select %p191, %s18, 1
      %p193 = scmp.lt.s32.totalorder %s19, 0
      %s194 = scalar_select %p193, %s19, 0
      %s195 = smul.addr %s192, 16
      %s196 = sadd.s32 %s194, %s195
      %s197 = smul.addr %s196, 4
      %s198 = scalar_lea.vmem %s3, %s197
      %v200 = vld [vmem:[%s1] sm:$0xf]
      %v201 = vld [vmem:[%s1 + $0x4] sm:$0xf]
      %v202 = vld [vmem:[%s1 + $0x8] sm:$0xf]
      %v203 = vld [vmem:[%s1 + $0xc] sm:$0xf]
      %v204 = vld [vmem:[%s1 + $0x10] sm:$0xf]
      %v205 = vld [vmem:[%s1 + $0x14] sm:$0xf]
      %v206 = vld [vmem:[%s1 + $0x18] sm:$0xf]
      %v207 = vld [vmem:[%s1 + $0x1c] sm:$0xf]
      %v208 = vld [vmem:[%s1 + $0x20] sm:$0xf]
      %v209 = vld [vmem:[%s1 + $0x24] sm:$0xf]
      %v210 = vld [vmem:[%s1 + $0x28] sm:$0xf]
      %v211 = vld [vmem:[%s1 + $0x2c] sm:$0xf]
      %v212 = vld [vmem:[%s1 + $0x30] sm:$0xf]
      %v213 = vld [vmem:[%s1 + $0x34] sm:$0xf]
      %v214 = vld [vmem:[%s1 + $0x38] sm:$0xf]
      %v215 = vld [vmem:[%s1 + $0x3c] sm:$0xf]
      %v216 = vld [vmem:[%s190] sm:$0x3]
      %v217 = vld [vmem:[%s2] sm:$0xff]
      %v218 = vld [vmem:[%s2 + $0x8] sm:$0xff]
      %v219 = vld [vmem:[%s2 + $0x10] sm:$0xff]
      %v220 = vld [vmem:[%s2 + $0x18] sm:$0xff]
      %v221 = vld [vmem:[%s2 + $0x20] sm:$0xff]
      %v222 = vld [vmem:[%s2 + $0x28] sm:$0xff]
      %v223 = vld [vmem:[%s2 + $0x30] sm:$0xff]
      %v224 = vld [vmem:[%s2 + $0x38] sm:$0xff]
      %v225 = vld [vmem:[%s2 + $0x40] sm:$0xff]
      %v226 = vld [vmem:[%s2 + $0x48] sm:$0xff]
      %v227 = vld [vmem:[%s2 + $0x50] sm:$0xff]
      %v228 = vld [vmem:[%s2 + $0x58] sm:$0xff]
      %v229 = vld [vmem:[%s2 + $0x60] sm:$0xff]
      %v230 = vld [vmem:[%s2 + $0x68] sm:$0xff]
      %v231 = vld [vmem:[%s2 + $0x70] sm:$0xff]
      %v232 = vld [vmem:[%s2 + $0x78] sm:$0xff]
      %234 = vset.pattern.permute.xlu0 0
      %235 = vperm.xlu0 %234, %v217
      %v236 = vpop.permute.xlu0 %235
      %239 = vset.pattern.permute.xlu0 0
      %240 = vperm.xlu0 %239, %v218
      %v241 = vpop.permute.xlu0 %240
      %244 = vset.pattern.permute.xlu0 0
      %245 = vperm.xlu0 %244, %v219
      %v246 = vpop.permute.xlu0 %245
      %249 = vset.pattern.permute.xlu0 0
      %250 = vperm.xlu0 %249, %v220
      %v251 = vpop.permute.xlu0 %250
      %254 = vset.pattern.permute.xlu0 0
      %255 = vperm.xlu0 %254, %v221
      %v256 = vpop.permute.xlu0 %255
      %259 = vset.pattern.permute.xlu0 0
      %260 = vperm.xlu0 %259, %v222
      %v261 = vpop.permute.xlu0 %260
      %264 = vset.pattern.permute.xlu0 0
      %265 = vperm.xlu0 %264, %v223
      %v266 = vpop.permute.xlu0 %265
      %269 = vset.pattern.permute.xlu0 0
      %270 = vperm.xlu0 %269, %v224
      %v271 = vpop.permute.xlu0 %270
      %274 = vset.pattern.permute.xlu0 0
      %275 = vperm.xlu0 %274, %v225
      %v276 = vpop.permute.xlu0 %275
      %279 = vset.pattern.permute.xlu0 0
      %280 = vperm.xlu0 %279, %v226
      %v281 = vpop.permute.xlu0 %280
      %284 = vset.pattern.permute.xlu0 0
      %285 = vperm.xlu0 %284, %v227
      %v286 = vpop.permute.xlu0 %285
      %289 = vset.pattern.permute.xlu0 0
      %290 = vperm.xlu0 %289, %v228
      %v291 = vpop.permute.xlu0 %290
      %294 = vset.pattern.permute.xlu0 0
      %295 = vperm.xlu0 %294, %v229
      %v296 = vpop.permute.xlu0 %295
      %299 = vset.pattern.permute.xlu0 0
      %300 = vperm.xlu0 %299, %v230
      %v301 = vpop.permute.xlu0 %300
      %304 = vset.pattern.permute.xlu0 0
      %305 = vperm.xlu0 %304, %v231
      %v306 = vpop.permute.xlu0 %305
      %309 = vset.pattern.permute.xlu0 0
      %310 = vperm.xlu0 %309, %v232
      %v311 = vpop.permute.xlu0 %310
      %v329 = vunpack.c.l.b16 %v200
      %v330 = vunpack.c.l.b16 %v201
      %v331 = vunpack.c.l.b16 %v202
      %v332 = vunpack.c.l.b16 %v203
      %v333 = vunpack.c.l.b16 %v204
      %v334 = vunpack.c.l.b16 %v205
      %v335 = vunpack.c.l.b16 %v206
      %v336 = vunpack.c.l.b16 %v207
      %v337 = vunpack.c.l.b16 %v208
      %v338 = vunpack.c.l.b16 %v209
      %v339 = vunpack.c.l.b16 %v210
      %v340 = vunpack.c.l.b16 %v211
      %v341 = vunpack.c.l.b16 %v212
      %v342 = vunpack.c.l.b16 %v213
      %v343 = vunpack.c.l.b16 %v214
      %v344 = vunpack.c.l.b16 %v215
      %v345 = vpack.c.b16 %v330, %v329
      %v346 = vpack.c.b16 %v332, %v331
      %v347 = vpack.c.b16 %v334, %v333
      %v348 = vpack.c.b16 %v336, %v335
      %v349 = vpack.c.b16 %v338, %v337
      %v350 = vpack.c.b16 %v340, %v339
      %v351 = vpack.c.b16 %v342, %v341
      %v352 = vpack.c.b16 %v344, %v343
      %vm353 = vcmask 23552
      %v355 = vsel %vm353, %v345, 0
      %v358 = vsel %vm353, %v346, 0
      %v361 = vsel %vm353, %v347, 0
      %v364 = vsel %vm353, %v348, 0
      %v367 = vsel %vm353, %v349, 0
      %v370 = vsel %vm353, %v350, 0
      %v373 = vsel %vm353, %v351, 0
      %v376 = vsel %vm353, %v352, 0
      %vm378 = vcmask 1040384
      %vm379 = vcmask 1041408
      %v380 = vsel %vm378, 4294967295, 65535
      %v381 = vsel %vm379, %v380, 0
      %v383 = vand.u32 %v216, %v381
      %385 = vmatprep.subr.bf16.mxu0 0
      %386 = vmatpush1.bf16.msra.mxu0 0
      %387 = vmatprep.subr.bf16.mxu0 0
      %388 = vmatpush1.bf16.msra.mxu0 0
      %389 = vmatprep.subr.bf16.mxu0 0
      %390 = vmatpush1.bf16.msra.mxu0 0
      %391 = vmatprep.subr.bf16.mxu0 0
      %392 = vmatpush1.bf16.msra.mxu0 0
      %393 = vmatprep.subr.bf16.mxu0 0
      %394 = vmatpush1.bf16.msra.mxu0 0
      %395 = vmatprep.subr.bf16.mxu0 0
      %396 = vmatpush1.bf16.msra.mxu0 0
      %397 = vmatprep.subr.bf16.mxu0 0
      %398 = vmatpush1.bf16.msra.mxu0 0
      %399 = vmatprep.subr.bf16.mxu0 0
      %400 = vmatpush1.bf16.msra.mxu0 %v383
      %401 = vmatprep.subr.bf16.mxu0 0
      %402 = vmatpush2.bf16.msra.mxu0 0
      %403 = vmatprep.subr.bf16.mxu0 0
      %404 = vmatpush2.bf16.msra.mxu0 0
      %405 = vmatprep.subr.bf16.mxu0 0
      %406 = vmatpush2.bf16.msra.mxu0 0
      %407 = vmatprep.subr.bf16.mxu0 0
      %408 = vmatpush2.bf16.msra.mxu0 0
      %409 = vmatprep.subr.bf16.mxu0 0
      %410 = vmatpush2.bf16.msra.mxu0 0
      %411 = vmatprep.subr.bf16.mxu0 0
      %412 = vmatpush2.bf16.msra.mxu0 0
      %413 = vmatprep.subr.bf16.mxu0 0
      %414 = vmatpush2.bf16.msra.mxu0 0
      %415 = vmatprep.subr.bf16.mxu0 0
      %416 = vmatpush2.bf16.msra.mxu0 0
      %417 = vmatprep.mubr.bf16.mxu0 0
      %418 = vmatmul.mubr.bf16.gmra.mxu0 %v355
      %v419 = vpop.f32.mrf.mxu0
      %v420 = vadd.f32 %v236, %v419
      %v421 = vpop.f32.mrf.mxu0
      %v422 = vpop.f32.mrf.mxu0
      %v423 = vadd.f32 %v241, %v422
      %v424 = vpop.f32.mrf.mxu0
      %425 = vmatprep.mubr.bf16.mxu0 0
      %426 = vmatmul.mubr.bf16.gmra.mxu0 %v358
      %v427 = vpop.f32.mrf.mxu0
      %v428 = vadd.f32 %v246, %v427
      %v429 = vpop.f32.mrf.mxu0
      %v430 = vpop.f32.mrf.mxu0
      %v431 = vadd.f32 %v251, %v430
      %v432 = vpop.f32.mrf.mxu0
      %433 = vmatprep.mubr.bf16.mxu0 0
      %434 = vmatmul.mubr.bf16.gmra.mxu0 %v361
      %v435 = vpop.f32.mrf.mxu0
      %v436 = vadd.f32 %v256, %v435
      %v437 = vpop.f32.mrf.mxu0
      %v438 = vpop.f32.mrf.mxu0
      %v439 = vadd.f32 %v261, %v438
      %v440 = vpop.f32.mrf.mxu0
      %441 = vmatprep.mubr.bf16.mxu0 0
      %442 = vmatmul.mubr.bf16.gmra.mxu0 %v364
      %v443 = vpop.f32.mrf.mxu0
      %v444 = vadd.f32 %v266, %v443
      %v445 = vpop.f32.mrf.mxu0
      %v446 = vpop.f32.mrf.mxu0
      %v447 = vadd.f32 %v271, %v446
      %v448 = vpop.f32.mrf.mxu0
      %449 = vmatprep.mubr.bf16.mxu0 0
      %450 = vmatmul.mubr.bf16.gmra.mxu0 %v367
      %v451 = vpop.f32.mrf.mxu0
      %v452 = vadd.f32 %v276, %v451
      %v453 = vpop.f32.mrf.mxu0
      %v454 = vpop.f32.mrf.mxu0
      %v455 = vadd.f32 %v281, %v454
      %v456 = vpop.f32.mrf.mxu0
      %457 = vmatprep.mubr.bf16.mxu0 0
      %458 = vmatmul.mubr.bf16.gmra.mxu0 %v370
      %v459 = vpop.f32.mrf.mxu0
      %v460 = vadd.f32 %v286, %v459
      %v461 = vpop.f32.mrf.mxu0
      %v462 = vpop.f32.mrf.mxu0
      %v463 = vadd.f32 %v291, %v462
      %v464 = vpop.f32.mrf.mxu0
      %465 = vmatprep.mubr.bf16.mxu0 0
      %466 = vmatmul.mubr.bf16.gmra.mxu0 %v373
      %v467 = vpop.f32.mrf.mxu0
      %v468 = vadd.f32 %v296, %v467
      %v469 = vpop.f32.mrf.mxu0
      %v470 = vpop.f32.mrf.mxu0
      %v471 = vadd.f32 %v301, %v470
      %v472 = vpop.f32.mrf.mxu0
      %473 = vmatprep.mubr.bf16.mxu0 0
      %474 = vmatmul.mubr.bf16.gmra.mxu0 %v376
      %v475 = vpop.f32.mrf.mxu0
      %v476 = vadd.f32 %v306, %v475
      %v477 = vpop.f32.mrf.mxu0
      %v478 = vpop.f32.mrf.mxu0
      %v479 = vadd.f32 %v311, %v478
      %v480 = vpop.f32.mrf.mxu0
      %481 = vdwg.mxu0
      %v482 = vmax.f32 %v420, 0.0
      %v483 = vmax.f32 %v423, 0.0
      %v484 = vmax.f32 %v428, 0.0
      %v485 = vmax.f32 %v431, 0.0
      %v486 = vmax.f32 %v436, 0.0
      %v487 = vmax.f32 %v439, 0.0
      %v488 = vmax.f32 %v444, 0.0
      %v489 = vmax.f32 %v447, 0.0
      %v490 = vmax.f32 %v452, 0.0
      %v491 = vmax.f32 %v455, 0.0
      %v492 = vmax.f32 %v460, 0.0
      %v493 = vmax.f32 %v463, 0.0
      %v494 = vmax.f32 %v468, 0.0
      %v495 = vmax.f32 %v471, 0.0
      %v496 = vmax.f32 %v476, 0.0
      %v497 = vmax.f32 %v479, 0.0
      %v498 = vpack.c.bf16 %v483, %v482
      %v499 = vpack.c.bf16 %v485, %v484
      %v500 = vpack.c.bf16 %v487, %v486
      %v501 = vpack.c.bf16 %v489, %v488
      %v502 = vpack.c.bf16 %v491, %v490
      %v503 = vpack.c.bf16 %v493, %v492
      %v504 = vpack.c.bf16 %v495, %v494
      %v505 = vpack.c.bf16 %v497, %v496
      %v514 = vunpack.c.l.b16 %v498
      %v515 = vunpack.c.h.b16 %v498
      %v516 = vunpack.c.l.b16 %v499
      %v517 = vunpack.c.h.b16 %v499
      %v518 = vunpack.c.l.b16 %v500
      %v519 = vunpack.c.h.b16 %v500
      %v520 = vunpack.c.l.b16 %v501
      %v521 = vunpack.c.h.b16 %v501
      %v522 = vunpack.c.l.b16 %v502
      %v523 = vunpack.c.h.b16 %v502
      %v524 = vunpack.c.l.b16 %v503
      %v525 = vunpack.c.h.b16 %v503
      %v526 = vunpack.c.l.b16 %v504
      %v527 = vunpack.c.h.b16 %v504
      %v528 = vunpack.c.l.b16 %v505
      %v529 = vunpack.c.h.b16 %v505
      %v530 = vpack.c.b16 %v514, %v514
      %v531 = vpack.c.b16 %v515, %v515
      %v532 = vpack.c.b16 %v516, %v516
      %v533 = vpack.c.b16 %v517, %v517
      %v534 = vpack.c.b16 %v518, %v518
      %v535 = vpack.c.b16 %v519, %v519
      %v536 = vpack.c.b16 %v520, %v520
      %v537 = vpack.c.b16 %v521, %v521
      %v538 = vpack.c.b16 %v522, %v522
      %v539 = vpack.c.b16 %v523, %v523
      %v540 = vpack.c.b16 %v524, %v524
      %v541 = vpack.c.b16 %v525, %v525
      %v542 = vpack.c.b16 %v526, %v526
      %v543 = vpack.c.b16 %v527, %v527
      %v544 = vpack.c.b16 %v528, %v528
      %v545 = vpack.c.b16 %v529, %v529
      %vm562 = vcmask 519168
      %563 = vst.msk [vmem:[%s198] sm:$0xf] %vm562, %v530
      %564 = vst.msk [vmem:[%s198 + $0x4] sm:$0xf] %vm562, %v531
      %565 = vst.msk [vmem:[%s198 + $0x8] sm:$0xf] %vm562, %v532
      %566 = vst.msk [vmem:[%s198 + $0xc] sm:$0xf] %vm562, %v533
      %567 = vst.msk [vmem:[%s198 + $0x10] sm:$0xf] %vm562, %v534
      %568 = vst.msk [vmem:[%s198 + $0x14] sm:$0xf] %vm562, %v535
      %569 = vst.msk [vmem:[%s198 + $0x18] sm:$0xf] %vm562, %v536
      %570 = vst.msk [vmem:[%s198 + $0x1c] sm:$0xf] %vm562, %v537
      %571 = vst.msk [vmem:[%s198 + $0x20] sm:$0xf] %vm562, %v538
      %572 = vst.msk [vmem:[%s198 + $0x24] sm:$0xf] %vm562, %v539
      %573 = vst.msk [vmem:[%s198 + $0x28] sm:$0xf] %vm562, %v540
      %574 = vst.msk [vmem:[%s198 + $0x2c] sm:$0xf] %vm562, %v541
      %575 = vst.msk [vmem:[%s198 + $0x30] sm:$0xf] %vm562, %v542
      %576 = vst.msk [vmem:[%s198 + $0x34] sm:$0xf] %vm562, %v543
      %577 = vst.msk [vmem:[%s198 + $0x38] sm:$0xf] %vm562, %v544
      %578 = vst.msk [vmem:[%s198 + $0x3c] sm:$0xf] %vm562, %v545
      %p579 = scmp.lt.s32.totalorder %s18, 1
      %s580 = scalar_select %p579, %s18, 1
      %p581 = scmp.lt.s32.totalorder %s19, 0
      %s582 = scalar_select %p581, %s19, 0
      %s583 = smul.addr %s580, 16
      %s584 = sadd.s32 %s582, %s583
      %s585 = smul.addr %s584, 4
      %s586 = scalar_lea.vmem %s3, %s585
      // Predicated region
      $region33: #{fcn_forward.7} parent=31 // pred_check
        %p587 = pneg %p116
      $region34: #{fcn_forward.7} parent=31 // pred_check_branch
        %589 = sbr.rel (%p587) target = $region36
      $region35: #{fcn_forward.7} parent=31 // pred_region
        _
      $region36: #{fcn_forward.7} parent=31 // pred_fallthru
        _
    $region32: #{fcn_forward.7} parent=5 // pred_fallthru
      _
    %p590 = scmp.le.s32.totalorder 2, %s9
    // Predicated region
    $region37: #{fcn_forward.7} parent=5 // pred_check
      %p591 = pneg %p590
    $region38: #{fcn_forward.7} parent=5 // pred_check_branch
      %593 = sbr.rel (%p591) target = $region40
    $region39: #{fcn_forward.7} parent=5 // pred_region
      %s594 = ssub.s32 %s9, 2
      // Predicated region
      $region41: #{fcn_forward.7} parent=39 // pred_check
        %p595 = pneg %p122
      $region42: #{fcn_forward.7} parent=39 // pred_check_branch
        %597 = sbr.rel (%p595) target = $region44
      $region43: #{fcn_forward.7} parent=39 // pred_region
        %p598 = scmp.lt.s32.totalorder %s20, 1
        %s599 = scalar_select %p598, %s20, 1
        %p600 = scmp.lt.s32.totalorder %s21, 0
        %s601 = scalar_select %p600, %s21, 0
        %s602 = smul.addr %s599, 16
        %s603 = sadd.s32 %s601, %s602
        %s604 = smul.addr %s603, 4
        %s605 = scalar_lea.vmem %s3, %s604
      $region44: #{fcn_forward.7} parent=39 // pred_fallthru
        _
    $region40: #{fcn_forward.7} parent=5 // pred_fallthru
      _
  $region6: #{fcn_forward.7} parent=0 // loop_footer
    %s13 = sadd.s32 1, %s9
  $region7: #{fcn_forward.7} parent=0 // loop_footer_branch
    %8 = sbr.rel target = $region3
  $region8: #{fcn_forward.7} parent=0 // loop_exit
    _

// kernel: fcn_forward.8
$region0: #{fcn_forward.8}
  #allocation0 [shape = 'u32[]', space=smem, size = 0x4, offset = 0x4, fixed_abs, tag = 'smem constant byte address 0x4 - core index']
  #allocation1 [shape = 'u32[144,128]{1,0:T(1,128)}', space=vmem, size = 0x12000, scoped, tag = 'internal scratch']
  %s0 = inlined_call_operand.vmem [shape: bf16[2,128,16], index: 0, kind: input, shape index: {}]
  %s1 = inlined_call_operand.vmem [shape: bf16[256,128], index: 1, kind: input, shape index: {}]
  %s2 = inlined_call_operand.vmem [shape: f32[256,1], index: 2, kind: input, shape index: {}]
  %s3 = inlined_call_operand.vmem [shape: bf16[2,256,16], index: 3, kind: output, shape index: {}]
  %s4 = sld [smem:[#allocation0]]
  $region45: #{fcn_forward.8} parent=0
    _
  %s6 = ssub.s32 1, %s4
  %s7 = scalar_select 0, %s6, %s4
  loop: start=0, step=1, limit=4
  $region2: #{fcn_forward.8} parent=0 // loop_pre_header
    _
  $region3: #{fcn_forward.8} parent=0 // loop_header
    %s9 = sphi 0, %s13
    %p10 = scmp.ge.s32.totalorder %s9, 4
    %s16 = sphi 0, %s28
    %s17 = sphi 0, %s24
    %s18 = sphi 0, %s16
    %s19 = sphi 0, %s17
    %s20 = sphi 0, %s18
    %s21 = sphi 0, %s19
    %s33 = sphi 0, %s35
    %s36 = sphi 0, %s33
    %s37 = sphi 0, %s36
    %s53 = sphi 0, %s37
    %s57 = sphi 0, %s57
    %s59 = sphi 0, %s57
    %s60 = sphi 0, %s59
    %s74 = sphi 0, %s60
    %s78 = sphi 0, %s78
    %s80 = sphi 0, %s78
    %s81 = sphi 0, %s80
    %s95 = sphi 0, %s81
    %s103 = sphi 0, %s105
    %s106 = sphi 0, %s103
    %s107 = sphi 0, %s106
    %s123 = sphi 0, %s107
  $region4: #{fcn_forward.8} parent=0 // loop_header_branch
    %12 = sbr.rel (%p10) target = $region8
  $region5: #{fcn_forward.8} parent=0 // loop_body
    %s14 = ssub.s32 %s9, 1
    %s15 = ssub.s32 %s9, 2
    %s22 = sadd.s32 1, %s17
    %p23 = scmp.ge.s32.totalorder %s22, 1
    %s24 = scalar_select %p23, 0, %s22
    %s25 = sadd.s32 1, %s16
    %s26 = scalar_select %p23, %s25, %s16
    %p27 = scmp.ge.s32.totalorder %s26, 2
    %s28 = scalar_select %p27, 0, %s26
    %s29 = ssub.s32 %s16, %s28
    %s30 = ssub.s32 %s17, %s24
    %s31 = sor.u32 %s29, %s30
    %p32 = scmp.eq.s32.totalorder %s31, 0
    %s34 = sadd.s32 %s33, 1
    %s35 = scalar_select %p32, %s33, %s34
    %p38 = pneg %p32
    %p39 = scmp.eq.s32.totalorder %s9, 1
    %p40 = por %p38, %p39
    %p41 = scmp.ne.s32.totalorder %s33, %s36
    %p42 = scmp.eq.s32.totalorder %s9, 0
    %p43 = por %p41, %p42
    %p44 = scmp.ne.s32.totalorder %s33, %s36
    %p45 = scmp.eq.s32.totalorder %s14, 1
    %p46 = por %p44, %p45
    %p47 = scmp.ne.s32.totalorder %s36, %s37
    %p48 = scmp.eq.s32.totalorder %s14, 0
    %p49 = por %p47, %p48
    %p50 = scmp.ne.s32.totalorder %s36, %s37
    %p51 = scmp.eq.s32.totalorder %s15, 1
    %p52 = por %p50, %p51
    %p54 = scmp.ne.s32.totalorder %s37, %s53
    %p55 = scmp.eq.s32.totalorder %s15, 0
    %p56 = por %p54, %p55
    %s58 = sadd.s32 %s57, 1
    %p61 = scmp.eq.s32.totalorder %s9, 1
    %p62 = scmp.ne.s32.totalorder %s57, %s59
    %p63 = scmp.eq.s32.totalorder %s9, 0
    %p64 = por %p62, %p63
    %p65 = scmp.ne.s32.totalorder %s57, %s59
    %p66 = scmp.eq.s32.totalorder %s14, 1
    %p67 = por %p65, %p66
    %p68 = scmp.ne.s32.totalorder %s59, %s60
    %p69 = scmp.eq.s32.totalorder %s14, 0
    %p70 = por %p68, %p69
    %p71 = scmp.ne.s32.totalorder %s59, %s60
    %p72 = scmp.eq.s32.totalorder %s15, 1
    %p73 = por %p71, %p72
    %p75 = scmp.ne.s32.totalorder %s60, %s74
    %p76 = scmp.eq.s32.totalorder %s15, 0
    %p77 = por %p75, %p76
    %s79 = sadd.s32 %s78, 1
    %p82 = scmp.eq.s32.totalorder %s9, 1
    %p83 = scmp.ne.s32.totalorder %s78, %s80
    %p84 = scmp.eq.s32.totalorder %s9, 0
    %p85 = por %p83, %p84
    %p86 = scmp.ne.s32.totalorder %s78, %s80
    %p87 = scmp.eq.s32.totalorder %s14, 1
    %p88 = por %p86, %p87
    %p89 = scmp.ne.s32.totalorder %s80, %s81
    %p90 = scmp.eq.s32.totalorder %s14, 0
    %p91 = por %p89, %p90
    %p92 = scmp.ne.s32.totalorder %s80, %s81
    %p93 = scmp.eq.s32.totalorder %s15, 1
    %p94 = por %p92, %p93
    %p96 = scmp.ne.s32.totalorder %s81, %s95
    %p97 = scmp.eq.s32.totalorder %s15, 0
    %p98 = por %p96, %p97
    %s99 = ssub.s32 %s16, %s28
    %s100 = ssub.s32 %s17, %s24
    %s101 = sor.u32 %s99, %s100
    %p102 = scmp.eq.s32.totalorder %s101, 0
    %s104 = sadd.s32 %s103, 1
    %s105 = scalar_select %p102, %s103, %s104
    %p108 = pneg %p102
    %p109 = scmp.eq.s32.totalorder %s9, 1
    %p110 = por %p108, %p109
    %p111 = scmp.ne.s32.totalorder %s103, %s106
    %p112 = scmp.eq.s32.totalorder %s9, 0
    %p113 = por %p111, %p112
    %p114 = scmp.ne.s32.totalorder %s103, %s106
    %p115 = scmp.eq.s32.totalorder %s14, 1
    %p116 = por %p114, %p115
    %p117 = scmp.ne.s32.totalorder %s106, %s107
    %p118 = scmp.eq.s32.totalorder %s14, 0
    %p119 = por %p117, %p118
    %p120 = scmp.ne.s32.totalorder %s106, %s107
    %p121 = scmp.eq.s32.totalorder %s15, 1
    %p122 = por %p120, %p121
    %p124 = scmp.ne.s32.totalorder %s107, %s123
    %p125 = scmp.eq.s32.totalorder %s15, 0
    %p126 = por %p124, %p125
    %p127 = scmp.le.s32.totalorder 1, %s9
    %p128 = scmp.lt.s32.totalorder %s9, 3
    %p129 = pnand %p127, %p128
    %p130 = pneg %p129
    // Predicated region
    $region9: #{fcn_forward.8} parent=5 // pred_check
      _
    $region10: #{fcn_forward.8} parent=5 // pred_check_branch
      %132 = sbr.rel (%p129) target = $region12
    $region11: #{fcn_forward.8} parent=5 // pred_region
      %s133 = ssub.s32 %s9, 1
      // Predicated region
      $region13: #{fcn_forward.8} parent=11 // pred_check
        %p134 = pneg %p70
      $region14: #{fcn_forward.8} parent=11 // pred_check_branch
        %136 = sbr.rel (%p134) target = $region16
      $region15: #{fcn_forward.8} parent=11 // pred_region
        _
      $region16: #{fcn_forward.8} parent=11 // pred_fallthru
        _
      // Predicated region
      $region17: #{fcn_forward.8} parent=11 // pred_check
        %p137 = pneg %p91
      $region18: #{fcn_forward.8} parent=11 // pred_check_branch
        %139 = sbr.rel (%p137) target = $region20
      $region19: #{fcn_forward.8} parent=11 // pred_region
        _
      $region20: #{fcn_forward.8} parent=11 // pred_fallthru
        _
    $region12: #{fcn_forward.8} parent=5 // pred_fallthru
      _
    %p140 = scmp.lt.s32.totalorder %s9, 2
    // Predicated region
    $region21: #{fcn_forward.8} parent=5 // pred_check
      %p141 = pneg %p140
    $region22: #{fcn_forward.8} parent=5 // pred_check_branch
      %143 = sbr.rel (%p141) target = $region24
    $region23: #{fcn_forward.8} parent=5 // pred_region
      // Predicated region
      $region25: #{fcn_forward.8} parent=23 // pred_check
        %p144 = pneg %p43
      $region26: #{fcn_forward.8} parent=23 // pred_check_branch
        %146 = sbr.rel (%p144) target = $region28
      $region27: #{fcn_forward.8} parent=23 // pred_region
        %p147 = scmp.lt.s32.totalorder %s16, 1
        %s148 = scalar_select %p147, %s16, 1
        %p149 = scmp.lt.s32.totalorder %s17, 0
        %s150 = scalar_select %p149, %s17, 0
        %s151 = smul.addr %s148, 16
        %s152 = sadd.s32 %s150, %s151
        %s153 = smul.addr %s152, 4
        %s154 = scalar_lea.vmem %s0, %s153
      $region28: #{fcn_forward.8} parent=23 // pred_fallthru
        _
    $region24: #{fcn_forward.8} parent=5 // pred_fallthru
      _
    %p155 = scmp.le.s32.totalorder 1, %s9
    %p156 = scmp.lt.s32.totalorder %s9, 3
    %p157 = pnand %p155, %p156
    %p158 = pneg %p157
    // Predicated region
    $region29: #{fcn_forward.8} parent=5 // pred_check
      _
    $region30: #{fcn_forward.8} parent=5 // pred_check_branch
      %160 = sbr.rel (%p157) target = $region32
    $region31: #{fcn_forward.8} parent=5 // pred_region
      %s161 = ssub.s32 %s9, 1
      %p162 = scmp.lt.s32.totalorder %s18, 1
      %s163 = scalar_select %p162, %s18, 1
      %p164 = scmp.lt.s32.totalorder %s19, 0
      %s165 = scalar_select %p164, %s19, 0
      %s166 = smul.addr %s163, 16
      %s167 = sadd.s32 %s165, %s166
      %s168 = smul.addr %s167, 4
      %s169 = scalar_lea.vmem %s0, %s168
      %p170 = pneg %p49
      %p171 = pneg %p46
      %p172 = pneg %p70
      %p173 = pneg %p67
      %p174 = pneg %p91
      %p175 = pneg %p88
      %p176 = pneg %p119
      %p177 = pneg %p116
      %p178 = scmp.lt.s32.totalorder %s18, 1
      %s179 = scalar_select %p178, %s18, 1
      %p180 = scmp.lt.s32.totalorder %s19, 0
      %s181 = scalar_select %p180, %s19, 0
      %s182 = smul.addr %s179, 32
      %s183 = sadd.s32 %s181, %s182
      %s184 = smul.addr %s183, 4
      %s185 = scalar_lea.vmem %s3, %s184
      %p186 = scmp.lt.s32.totalorder %s18, 1
      %s187 = scalar_select %p186, %s18, 1
      %p188 = scmp.lt.s32.totalorder %s19, 0
      %s189 = scalar_select %p188, %s19, 0
      %s190 = smul.addr %s187, 16
      %s191 = sadd.s32 %s189, %s190
      %s192 = smul.addr %s191, 4
      %s193 = scalar_lea.vmem %s0, %s192
      %p194 = scmp.lt.s32.totalorder %s18, 1
      %s195 = scalar_select %p194, %s18, 1
      %p196 = scmp.lt.s32.totalorder %s19, 0
      %s197 = scalar_select %p196, %s19, 0
      %s198 = smul.addr %s195, 32
      %s199 = sadd.s32 %s197, %s198
      %s200 = smul.addr %s199, 4
      %s201 = scalar_lea.vmem %s3, %s200
      %v203 = vld [vmem:[%s1] sm:$0xf]
      %v204 = vld [vmem:[%s1 + $0x4] sm:$0xf]
      %v205 = vld [vmem:[%s1 + $0x8] sm:$0xf]
      %v206 = vld [vmem:[%s1 + $0xc] sm:$0xf]
      %v207 = vld [vmem:[%s1 + $0x10] sm:$0xf]
      %v208 = vld [vmem:[%s1 + $0x14] sm:$0xf]
      %v209 = vld [vmem:[%s1 + $0x18] sm:$0xf]
      %v210 = vld [vmem:[%s1 + $0x1c] sm:$0xf]
      %v211 = vld [vmem:[%s1 + $0x20] sm:$0xf]
      %v212 = vld [vmem:[%s1 + $0x24] sm:$0xf]
      %v213 = vld [vmem:[%s1 + $0x28] sm:$0xf]
      %v214 = vld [vmem:[%s1 + $0x2c] sm:$0xf]
      %v215 = vld [vmem:[%s1 + $0x30] sm:$0xf]
      %v216 = vld [vmem:[%s1 + $0x34] sm:$0xf]
      %v217 = vld [vmem:[%s1 + $0x38] sm:$0xf]
      %v218 = vld [vmem:[%s1 + $0x3c] sm:$0xf]
      %v219 = vld [vmem:[%s1 + $0x40] sm:$0xf]
      %v220 = vld [vmem:[%s1 + $0x44] sm:$0xf]
      %v221 = vld [vmem:[%s1 + $0x48] sm:$0xf]
      %v222 = vld [vmem:[%s1 + $0x4c] sm:$0xf]
      %v223 = vld [vmem:[%s1 + $0x50] sm:$0xf]
      %v224 = vld [vmem:[%s1 + $0x54] sm:$0xf]
      %v225 = vld [vmem:[%s1 + $0x58] sm:$0xf]
      %v226 = vld [vmem:[%s1 + $0x5c] sm:$0xf]
      %v227 = vld [vmem:[%s1 + $0x60] sm:$0xf]
      %v228 = vld [vmem:[%s1 + $0x64] sm:$0xf]
      %v229 = vld [vmem:[%s1 + $0x68] sm:$0xf]
      %v230 = vld [vmem:[%s1 + $0x6c] sm:$0xf]
      %v231 = vld [vmem:[%s1 + $0x70] sm:$0xf]
      %v232 = vld [vmem:[%s1 + $0x74] sm:$0xf]
      %v233 = vld [vmem:[%s1 + $0x78] sm:$0xf]
      %v234 = vld [vmem:[%s1 + $0x7c] sm:$0xf]
      %v235 = vld [vmem:[%s193] sm:$0xf]
      %v236 = vld [vmem:[%s193 + $0x4] sm:$0xf]
      %v237 = vld [vmem:[%s193 + $0x8] sm:$0xf]
      %v238 = vld [vmem:[%s193 + $0xc] sm:$0xf]
      %v239 = vld [vmem:[%s193 + $0x10] sm:$0xf]
      %v240 = vld [vmem:[%s193 + $0x14] sm:$0xf]
      %v241 = vld [vmem:[%s193 + $0x18] sm:$0xf]
      %v242 = vld [vmem:[%s193 + $0x1c] sm:$0xf]
      %v243 = vld [vmem:[%s193 + $0x20] sm:$0xf]
      %v244 = vld [vmem:[%s193 + $0x24] sm:$0xf]
      %v245 = vld [vmem:[%s193 + $0x28] sm:$0xf]
      %v246 = vld [vmem:[%s193 + $0x2c] sm:$0xf]
      %v247 = vld [vmem:[%s193 + $0x30] sm:$0xf]
      %v248 = vld [vmem:[%s193 + $0x34] sm:$0xf]
      %v249 = vld [vmem:[%s193 + $0x38] sm:$0xf]
      %v250 = vld [vmem:[%s193 + $0x3c] sm:$0xf]
      %v251 = vld [vmem:[%s2] sm:$0xff]
      %v252 = vld [vmem:[%s2 + $0x8] sm:$0xff]
      %v253 = vld [vmem:[%s2 + $0x10] sm:$0xff]
      %v254 = vld [vmem:[%s2 + $0x18] sm:$0xff]
      %v255 = vld [vmem:[%s2 + $0x20] sm:$0xff]
      %v256 = vld [vmem:[%s2 + $0x28] sm:$0xff]
      %v257 = vld [vmem:[%s2 + $0x30] sm:$0xff]
      %v258 = vld [vmem:[%s2 + $0x38] sm:$0xff]
      %v259 = vld [vmem:[%s2 + $0x40] sm:$0xff]
      %v260 = vld [vmem:[%s2 + $0x48] sm:$0xff]
      %v261 = vld [vmem:[%s2 + $0x50] sm:$0xff]
      %v262 = vld [vmem:[%s2 + $0x58] sm:$0xff]
      %v263 = vld [vmem:[%s2 + $0x60] sm:$0xff]
      %v264 = vld [vmem:[%s2 + $0x68] sm:$0xff]
      %v265 = vld [vmem:[%s2 + $0x70] sm:$0xff]
      %v266 = vld [vmem:[%s2 + $0x78] sm:$0xff]
      %v267 = vld [vmem:[%s2 + $0x80] sm:$0xff]
      %v268 = vld [vmem:[%s2 + $0x88] sm:$0xff]
      %v269 = vld [vmem:[%s2 + $0x90] sm:$0xff]
      %v270 = vld [vmem:[%s2 + $0x98] sm:$0xff]
      %v271 = vld [vmem:[%s2 + $0xa0] sm:$0xff]
      %v272 = vld [vmem:[%s2 + $0xa8] sm:$0xff]
      %v273 = vld [vmem:[%s2 + $0xb0] sm:$0xff]
      %v274 = vld [vmem:[%s2 + $0xb8] sm:$0xff]
      %v275 = vld [vmem:[%s2 + $0xc0] sm:$0xff]
      %v276 = vld [vmem:[%s2 + $0xc8] sm:$0xff]
      %v277 = vld [vmem:[%s2 + $0xd0] sm:$0xff]
      %v278 = vld [vmem:[%s2 + $0xd8] sm:$0xff]
      %v279 = vld [vmem:[%s2 + $0xe0] sm:$0xff]
      %v280 = vld [vmem:[%s2 + $0xe8] sm:$0xff]
      %v281 = vld [vmem:[%s2 + $0xf0] sm:$0xff]
      %v282 = vld [vmem:[%s2 + $0xf8] sm:$0xff]
      %284 = vset.pattern.permute.xlu0 0
      %285 = vperm.xlu0 %284, %v251
      %v286 = vpop.permute.xlu0 %285
      %289 = vset.pattern.permute.xlu0 0
      %290 = vperm.xlu0 %289, %v252
      %v291 = vpop.permute.xlu0 %290
      %294 = vset.pattern.permute.xlu0 0
      %295 = vperm.xlu0 %294, %v253
      %v296 = vpop.permute.xlu0 %295
      %299 = vset.pattern.permute.xlu0 0
      %300 = vperm.xlu0 %299, %v254
      %v301 = vpop.permute.xlu0 %300
      %304 = vset.pattern.permute.xlu0 0
      %305 = vperm.xlu0 %304, %v255
      %v306 = vpop.permute.xlu0 %305
      %309 = vset.pattern.permute.xlu0 0
      %310 = vperm.xlu0 %309, %v256
      %v311 = vpop.permute.xlu0 %310
      %314 = vset.pattern.permute.xlu0 0
      %315 = vperm.xlu0 %314, %v257
      %v316 = vpop.permute.xlu0 %315
      %319 = vset.pattern.permute.xlu0 0
      %320 = vperm.xlu0 %319, %v258
      %v321 = vpop.permute.xlu0 %320
      %324 = vset.pattern.permute.xlu0 0
      %325 = vperm.xlu0 %324, %v259
      %v326 = vpop.permute.xlu0 %325
      %329 = vset.pattern.permute.xlu0 0
      %330 = vperm.xlu0 %329, %v260
      %v331 = vpop.permute.xlu0 %330
      %334 = vset.pattern.permute.xlu0 0
      %335 = vperm.xlu0 %334, %v261
      %v336 = vpop.permute.xlu0 %335
      %339 = vset.pattern.permute.xlu0 0
      %340 = vperm.xlu0 %339, %v262
      %v341 = vpop.permute.xlu0 %340
      %344 = vset.pattern.permute.xlu0 0
      %345 = vperm.xlu0 %344, %v263
      %v346 = vpop.permute.xlu0 %345
      %349 = vset.pattern.permute.xlu0 0
      %350 = vperm.xlu0 %349, %v264
      %v351 = vpop.permute.xlu0 %350
      %354 = vset.pattern.permute.xlu0 0
      %355 = vperm.xlu0 %354, %v265
      %v356 = vpop.permute.xlu0 %355
      %359 = vset.pattern.permute.xlu0 0
      %360 = vperm.xlu0 %359, %v266
      %v361 = vpop.permute.xlu0 %360
      %364 = vset.pattern.permute.xlu0 0
      %365 = vperm.xlu0 %364, %v267
      %v366 = vpop.permute.xlu0 %365
      %369 = vset.pattern.permute.xlu0 0
      %370 = vperm.xlu0 %369, %v268
      %v371 = vpop.permute.xlu0 %370
      %374 = vset.pattern.permute.xlu0 0
      %375 = vperm.xlu0 %374, %v269
      %v376 = vpop.permute.xlu0 %375
      %379 = vset.pattern.permute.xlu0 0
      %380 = vperm.xlu0 %379, %v270
      %v381 = vpop.permute.xlu0 %380
      %384 = vset.pattern.permute.xlu0 0
      %385 = vperm.xlu0 %384, %v271
      %v386 = vpop.permute.xlu0 %385
      %389 = vset.pattern.permute.xlu0 0
      %390 = vperm.xlu0 %389, %v272
      %v391 = vpop.permute.xlu0 %390
      %394 = vset.pattern.permute.xlu0 0
      %395 = vperm.xlu0 %394, %v273
      %v396 = vpop.permute.xlu0 %395
      %399 = vset.pattern.permute.xlu0 0
      %400 = vperm.xlu0 %399, %v274
      %v401 = vpop.permute.xlu0 %400
      %404 = vset.pattern.permute.xlu0 0
      %405 = vperm.xlu0 %404, %v275
      %v406 = vpop.permute.xlu0 %405
      %409 = vset.pattern.permute.xlu0 0
      %410 = vperm.xlu0 %409, %v276
      %v411 = vpop.permute.xlu0 %410
      %414 = vset.pattern.permute.xlu0 0
      %415 = vperm.xlu0 %414, %v277
      %v416 = vpop.permute.xlu0 %415
      %419 = vset.pattern.permute.xlu0 0
      %420 = vperm.xlu0 %419, %v278
      %v421 = vpop.permute.xlu0 %420
      %424 = vset.pattern.permute.xlu0 0
      %425 = vperm.xlu0 %424, %v279
      %v426 = vpop.permute.xlu0 %425
      %429 = vset.pattern.permute.xlu0 0
      %430 = vperm.xlu0 %429, %v280
      %v431 = vpop.permute.xlu0 %430
      %434 = vset.pattern.permute.xlu0 0
      %435 = vperm.xlu0 %434, %v281
      %v436 = vpop.permute.xlu0 %435
      %439 = vset.pattern.permute.xlu0 0
      %440 = vperm.xlu0 %439, %v282
      %v441 = vpop.permute.xlu0 %440
      %v475 = vunpack.c.l.b16 %v203
      %v476 = vunpack.c.l.b16 %v204
      %v477 = vunpack.c.l.b16 %v205
      %v478 = vunpack.c.l.b16 %v206
      %v479 = vunpack.c.l.b16 %v207
      %v480 = vunpack.c.l.b16 %v208
      %v481 = vunpack.c.l.b16 %v209
      %v482 = vunpack.c.l.b16 %v210
      %v483 = vunpack.c.l.b16 %v211
      %v484 = vunpack.c.l.b16 %v212
      %v485 = vunpack.c.l.b16 %v213
      %v486 = vunpack.c.l.b16 %v214
      %v487 = vunpack.c.l.b16 %v215
      %v488 = vunpack.c.l.b16 %v216
      %v489 = vunpack.c.l.b16 %v217
      %v490 = vunpack.c.l.b16 %v218
      %v491 = vunpack.c.l.b16 %v219
      %v492 = vunpack.c.l.b16 %v220
      %v493 = vunpack.c.l.b16 %v221
      %v494 = vunpack.c.l.b16 %v222
      %v495 = vunpack.c.l.b16 %v223
      %v496 = vunpack.c.l.b16 %v224
      %v497 = vunpack.c.l.b16 %v225
      %v498 = vunpack.c.l.b16 %v226
      %v499 = vunpack.c.l.b16 %v227
      %v500 = vunpack.c.l.b16 %v228
      %v501 = vunpack.c.l.b16 %v229
      %v502 = vunpack.c.l.b16 %v230
      %v503 = vunpack.c.l.b16 %v231
      %v504 = vunpack.c.l.b16 %v232
      %v505 = vunpack.c.l.b16 %v233
      %v506 = vunpack.c.l.b16 %v234
      %v507 = vpack.c.b16 %v476, %v475
      %v508 = vpack.c.b16 %v478, %v477
      %v509 = vpack.c.b16 %v480, %v479
      %v510 = vpack.c.b16 %v482, %v481
      %v511 = vpack.c.b16 %v484, %v483
      %v512 = vpack.c.b16 %v486, %v485
      %v513 = vpack.c.b16 %v488, %v487
      %v514 = vpack.c.b16 %v490, %v489
      %v515 = vpack.c.b16 %v492, %v491
      %v516 = vpack.c.b16 %v494, %v493
      %v517 = vpack.c.b16 %v496, %v495
      %v518 = vpack.c.b16 %v498, %v497
      %v519 = vpack.c.b16 %v500, %v499
      %v520 = vpack.c.b16 %v502, %v501
      %v521 = vpack.c.b16 %v504, %v503
      %v522 = vpack.c.b16 %v506, %v505
      %v555 = vunpack.c.l.b16 %v235
      %v556 = vunpack.c.l.b16 %v236
      %v557 = vunpack.c.l.b16 %v237
      %v558 = vunpack.c.l.b16 %v238
      %v559 = vunpack.c.l.b16 %v239
      %v560 = vunpack.c.l.b16 %v240
      %v561 = vunpack.c.l.b16 %v241
      %v562 = vunpack.c.l.b16 %v242
      %v563 = vunpack.c.l.b16 %v243
      %v564 = vunpack.c.l.b16 %v244
      %v565 = vunpack.c.l.b16 %v245
      %v566 = vunpack.c.l.b16 %v246
      %v567 = vunpack.c.l.b16 %v247
      %v568 = vunpack.c.l.b16 %v248
      %v569 = vunpack.c.l.b16 %v249
      %v570 = vunpack.c.l.b16 %v250
      %v571 = vpack.c.b16 %v556, %v555
      %v572 = vpack.c.b16 %v558, %v557
      %v573 = vpack.c.b16 %v560, %v559
      %v574 = vpack.c.b16 %v562, %v561
      %v575 = vpack.c.b16 %v564, %v563
      %v576 = vpack.c.b16 %v566, %v565
      %v577 = vpack.c.b16 %v568, %v567
      %v578 = vpack.c.b16 %v570, %v569
      %587 = vmatprep.subr.bf16.mxu0 0
      %588 = vmatpush1.bf16.msra.mxu0 %v578
      %589 = vmatprep.subr.bf16.mxu0 0
      %590 = vmatpush1.bf16.msra.mxu0 %v577
      %591 = vmatprep.subr.bf16.mxu0 0
      %592 = vmatpush1.bf16.msra.mxu0 %v576
      %593 = vmatprep.subr.bf16.mxu0 0
      %594 = vmatpush1.bf16.msra.mxu0 %v575
      %595 = vmatprep.subr.bf16.mxu0 0
      %596 = vmatpush1.bf16.msra.mxu0 %v574
      %597 = vmatprep.subr.bf16.mxu0 0
      %598 = vmatpush1.bf16.msra.mxu0 %v573
      %599 = vmatprep.subr.bf16.mxu0 0
      %600 = vmatpush1.bf16.msra.mxu0 %v572
      %601 = vmatprep.subr.bf16.mxu0 0
      %602 = vmatpush1.bf16.msra.mxu0 %v571
      %603 = vmatprep.subr.bf16.mxu0 0
      %604 = vmatpush2.bf16.msra.mxu0 0
      %605 = vmatprep.subr.bf16.mxu0 0
      %606 = vmatpush2.bf16.msra.mxu0 0
      %607 = vmatprep.subr.bf16.mxu0 0
      %608 = vmatpush2.bf16.msra.mxu0 0
      %609 = vmatprep.subr.bf16.mxu0 0
      %610 = vmatpush2.bf16.msra.mxu0 0
      %611 = vmatprep.subr.bf16.mxu0 0
      %612 = vmatpush2.bf16.msra.mxu0 0
      %613 = vmatprep.subr.bf16.mxu0 0
      %614 = vmatpush2.bf16.msra.mxu0 0
      %615 = vmatprep.subr.bf16.mxu0 0
      %616 = vmatpush2.bf16.msra.mxu0 0
      %617 = vmatprep.subr.bf16.mxu0 0
      %618 = vmatpush2.bf16.msra.mxu0 0
      %619 = vmatprep.mubr.bf16.mxu0 0
      %620 = vmatmul.mubr.bf16.gmra.mxu0 %v507
      %v621 = vpop.f32.mrf.mxu0
      %v622 = vadd.f32 %v286, %v621
      %v623 = vpop.f32.mrf.mxu0
      %v624 = vpop.f32.mrf.mxu0
      %v625 = vadd.f32 %v291, %v624
      %v626 = vpop.f32.mrf.mxu0
      %627 = vmatprep.mubr.bf16.mxu0 0
      %628 = vmatmul.mubr.bf16.gmra.mxu0 %v508
      %v629 = vpop.f32.mrf.mxu0
      %v630 = vadd.f32 %v296, %v629
      %v631 = vpop.f32.mrf.mxu0
      %v632 = vpop.f32.mrf.mxu0
      %v633 = vadd.f32 %v301, %v632
      %v634 = vpop.f32.mrf.mxu0
      %635 = vmatprep.mubr.bf16.mxu0 0
      %636 = vmatmul.mubr.bf16.gmra.mxu0 %v509
      %v637 = vpop.f32.mrf.mxu0
      %v638 = vadd.f32 %v306, %v637
      %v639 = vpop.f32.mrf.mxu0
      %v640 = vpop.f32.mrf.mxu0
      %v641 = vadd.f32 %v311, %v640
      %v642 = vpop.f32.mrf.mxu0
      %643 = vmatprep.mubr.bf16.mxu0 0
      %644 = vmatmul.mubr.bf16.gmra.mxu0 %v510
      %v645 = vpop.f32.mrf.mxu0
      %v646 = vadd.f32 %v316, %v645
      %v647 = vpop.f32.mrf.mxu0
      %v648 = vpop.f32.mrf.mxu0
      %v649 = vadd.f32 %v321, %v648
      %v650 = vpop.f32.mrf.mxu0
      %651 = vmatprep.mubr.bf16.mxu0 0
      %652 = vmatmul.mubr.bf16.gmra.mxu0 %v511
      %v653 = vpop.f32.mrf.mxu0
      %v654 = vadd.f32 %v326, %v653
      %v655 = vpop.f32.mrf.mxu0
      %v656 = vpop.f32.mrf.mxu0
      %v657 = vadd.f32 %v331, %v656
      %v658 = vpop.f32.mrf.mxu0
      %659 = vmatprep.mubr.bf16.mxu0 0
      %660 = vmatmul.mubr.bf16.gmra.mxu0 %v512
      %v661 = vpop.f32.mrf.mxu0
      %v662 = vadd.f32 %v336, %v661
      %v663 = vpop.f32.mrf.mxu0
      %v664 = vpop.f32.mrf.mxu0
      %v665 = vadd.f32 %v341, %v664
      %v666 = vpop.f32.mrf.mxu0
      %667 = vmatprep.mubr.bf16.mxu0 0
      %668 = vmatmul.mubr.bf16.gmra.mxu0 %v513
      %v669 = vpop.f32.mrf.mxu0
      %v670 = vadd.f32 %v346, %v669
      %v671 = vpop.f32.mrf.mxu0
      %v672 = vpop.f32.mrf.mxu0
      %v673 = vadd.f32 %v351, %v672
      %v674 = vpop.f32.mrf.mxu0
      %675 = vmatprep.mubr.bf16.mxu0 0
      %676 = vmatmul.mubr.bf16.gmra.mxu0 %v514
      %v677 = vpop.f32.mrf.mxu0
      %v678 = vadd.f32 %v356, %v677
      %v679 = vpop.f32.mrf.mxu0
      %v680 = vpop.f32.mrf.mxu0
      %v681 = vadd.f32 %v361, %v680
      %v682 = vpop.f32.mrf.mxu0
      %683 = vmatprep.mubr.bf16.mxu0 0
      %684 = vmatmul.mubr.bf16.gmra.mxu0 %v515
      %v685 = vpop.f32.mrf.mxu0
      %v686 = vadd.f32 %v366, %v685
      %v687 = vpop.f32.mrf.mxu0
      %v688 = vpop.f32.mrf.mxu0
      %v689 = vadd.f32 %v371, %v688
      %v690 = vpop.f32.mrf.mxu0
      %691 = vmatprep.mubr.bf16.mxu0 0
      %692 = vmatmul.mubr.bf16.gmra.mxu0 %v516
      %v693 = vpop.f32.mrf.mxu0
      %v694 = vadd.f32 %v376, %v693
      %v695 = vpop.f32.mrf.mxu0
      %v696 = vpop.f32.mrf.mxu0
      %v697 = vadd.f32 %v381, %v696
      %v698 = vpop.f32.mrf.mxu0
      %699 = vmatprep.mubr.bf16.mxu0 0
      %700 = vmatmul.mubr.bf16.gmra.mxu0 %v517
      %v701 = vpop.f32.mrf.mxu0
      %v702 = vadd.f32 %v386, %v701
      %v703 = vpop.f32.mrf.mxu0
      %v704 = vpop.f32.mrf.mxu0
      %v705 = vadd.f32 %v391, %v704
      %v706 = vpop.f32.mrf.mxu0
      %707 = vmatprep.mubr.bf16.mxu0 0
      %708 = vmatmul.mubr.bf16.gmra.mxu0 %v518
      %v709 = vpop.f32.mrf.mxu0
      %v710 = vadd.f32 %v396, %v709
      %v711 = vpop.f32.mrf.mxu0
      %v712 = vpop.f32.mrf.mxu0
      %v713 = vadd.f32 %v401, %v712
      %v714 = vpop.f32.mrf.mxu0
      %715 = vmatprep.mubr.bf16.mxu0 0
      %716 = vmatmul.mubr.bf16.gmra.mxu0 %v519
      %v717 = vpop.f32.mrf.mxu0
      %v718 = vadd.f32 %v406, %v717
      %v719 = vpop.f32.mrf.mxu0
      %v720 = vpop.f32.mrf.mxu0
      %v721 = vadd.f32 %v411, %v720
      %v722 = vpop.f32.mrf.mxu0
      %723 = vmatprep.mubr.bf16.mxu0 0
      %724 = vmatmul.mubr.bf16.gmra.mxu0 %v520
      %v725 = vpop.f32.mrf.mxu0
      %v726 = vadd.f32 %v416, %v725
      %v727 = vpop.f32.mrf.mxu0
      %v728 = vpop.f32.mrf.mxu0
      %v729 = vadd.f32 %v421, %v728
      %v730 = vpop.f32.mrf.mxu0
      %731 = vmatprep.mubr.bf16.mxu0 0
      %732 = vmatmul.mubr.bf16.gmra.mxu0 %v521
      %v733 = vpop.f32.mrf.mxu0
      %v734 = vadd.f32 %v426, %v733
      %v735 = vpop.f32.mrf.mxu0
      %v736 = vpop.f32.mrf.mxu0
      %v737 = vadd.f32 %v431, %v736
      %v738 = vpop.f32.mrf.mxu0
      %739 = vmatprep.mubr.bf16.mxu0 0
      %740 = vmatmul.mubr.bf16.gmra.mxu0 %v522
      %v741 = vpop.f32.mrf.mxu0
      %v742 = vadd.f32 %v436, %v741
      %v743 = vpop.f32.mrf.mxu0
      %v744 = vpop.f32.mrf.mxu0
      %v745 = vadd.f32 %v441, %v744
      %v746 = vpop.f32.mrf.mxu0
      %747 = vdwg.mxu0
      %v748 = vmax.f32 %v622, 0.0
      %v749 = vmax.f32 %v625, 0.0
      %v750 = vmax.f32 %v630, 0.0
      %v751 = vmax.f32 %v633, 0.0
      %v752 = vmax.f32 %v638, 0.0
      %v753 = vmax.f32 %v641, 0.0
      %v754 = vmax.f32 %v646, 0.0
      %v755 = vmax.f32 %v649, 0.0
      %v756 = vmax.f32 %v654, 0.0
      %v757 = vmax.f32 %v657, 0.0
      %v758 = vmax.f32 %v662, 0.0
      %v759 = vmax.f32 %v665, 0.0
      %v760 = vmax.f32 %v670, 0.0
      %v761 = vmax.f32 %v673, 0.0
      %v762 = vmax.f32 %v678, 0.0
      %v763 = vmax.f32 %v681, 0.0
      %v764 = vmax.f32 %v686, 0.0
      %v765 = vmax.f32 %v689, 0.0
      %v766 = vmax.f32 %v694, 0.0
      %v767 = vmax.f32 %v697, 0.0
      %v768 = vmax.f32 %v702, 0.0
      %v769 = vmax.f32 %v705, 0.0
      %v770 = vmax.f32 %v710, 0.0
      %v771 = vmax.f32 %v713, 0.0
      %v772 = vmax.f32 %v718, 0.0
      %v773 = vmax.f32 %v721, 0.0
      %v774 = vmax.f32 %v726, 0.0
      %v775 = vmax.f32 %v729, 0.0
      %v776 = vmax.f32 %v734, 0.0
      %v777 = vmax.f32 %v737, 0.0
      %v778 = vmax.f32 %v742, 0.0
      %v779 = vmax.f32 %v745, 0.0
      %v780 = vpack.c.bf16 %v749, %v748
      %v781 = vpack.c.bf16 %v751, %v750
      %v782 = vpack.c.bf16 %v753, %v752
      %v783 = vpack.c.bf16 %v755, %v754
      %v784 = vpack.c.bf16 %v757, %v756
      %v785 = vpack.c.bf16 %v759, %v758
      %v786 = vpack.c.bf16 %v761, %v760
      %v787 = vpack.c.bf16 %v763, %v762
      %v788 = vpack.c.bf16 %v765, %v764
      %v789 = vpack.c.bf16 %v767, %v766
      %v790 = vpack.c.bf16 %v769, %v768
      %v791 = vpack.c.bf16 %v771, %v770
      %v792 = vpack.c.bf16 %v773, %v772
      %v793 = vpack.c.bf16 %v775, %v774
      %v794 = vpack.c.bf16 %v777, %v776
      %v795 = vpack.c.bf16 %v779, %v778
      %v812 = vunpack.c.l.b16 %v780
      %v813 = vunpack.c.h.b16 %v780
      %v814 = vunpack.c.l.b16 %v781
      %v815 = vunpack.c.h.b16 %v781
      %v816 = vunpack.c.l.b16 %v782
      %v817 = vunpack.c.h.b16 %v782
      %v818 = vunpack.c.l.b16 %v783
      %v819 = vunpack.c.h.b16 %v783
      %v820 = vunpack.c.l.b16 %v784
      %v821 = vunpack.c.h.b16 %v784
      %v822 = vunpack.c.l.b16 %v785
      %v823 = vunpack.c.h.b16 %v785
      %v824 = vunpack.c.l.b16 %v786
      %v825 = vunpack.c.h.b16 %v786
      %v826 = vunpack.c.l.b16 %v787
      %v827 = vunpack.c.h.b16 %v787
      %v828 = vunpack.c.l.b16 %v788
      %v829 = vunpack.c.h.b16 %v788
      %v830 = vunpack.c.l.b16 %v789
      %v831 = vunpack.c.h.b16 %v789
      %v832 = vunpack.c.l.b16 %v790
      %v833 = vunpack.c.h.b16 %v790
      %v834 = vunpack.c.l.b16 %v791
      %v835 = vunpack.c.h.b16 %v791
      %v836 = vunpack.c.l.b16 %v792
      %v837 = vunpack.c.h.b16 %v792
      %v838 = vunpack.c.l.b16 %v793
      %v839 = vunpack.c.h.b16 %v793
      %v840 = vunpack.c.l.b16 %v794
      %v841 = vunpack.c.h.b16 %v794
      %v842 = vunpack.c.l.b16 %v795
      %v843 = vunpack.c.h.b16 %v795
      %v844 = vpack.c.b16 %v812, %v812
      %v845 = vpack.c.b16 %v813, %v813
      %v846 = vpack.c.b16 %v814, %v814
      %v847 = vpack.c.b16 %v815, %v815
      %v848 = vpack.c.b16 %v816, %v816
      %v849 = vpack.c.b16 %v817, %v817
      %v850 = vpack.c.b16 %v818, %v818
      %v851 = vpack.c.b16 %v819, %v819
      %v852 = vpack.c.b16 %v820, %v820
      %v853 = vpack.c.b16 %v821, %v821
      %v854 = vpack.c.b16 %v822, %v822
      %v855 = vpack.c.b16 %v823, %v823
      %v856 = vpack.c.b16 %v824, %v824
      %v857 = vpack.c.b16 %v825, %v825
      %v858 = vpack.c.b16 %v826, %v826
      %v859 = vpack.c.b16 %v827, %v827
      %v860 = vpack.c.b16 %v828, %v828
      %v861 = vpack.c.b16 %v829, %v829
      %v862 = vpack.c.b16 %v830, %v830
      %v863 = vpack.c.b16 %v831, %v831
      %v864 = vpack.c.b16 %v832, %v832
      %v865 = vpack.c.b16 %v833, %v833
      %v866 = vpack.c.b16 %v834, %v834
      %v867 = vpack.c.b16 %v835, %v835
      %v868 = vpack.c.b16 %v836, %v836
      %v869 = vpack.c.b16 %v837, %v837
      %v870 = vpack.c.b16 %v838, %v838
      %v871 = vpack.c.b16 %v839, %v839
      %v872 = vpack.c.b16 %v840, %v840
      %v873 = vpack.c.b16 %v841, %v841
      %v874 = vpack.c.b16 %v842, %v842
      %v875 = vpack.c.b16 %v843, %v843
      %vm908 = vcmask 125952
      %909 = vst.msk [vmem:[%s201] sm:$0xf] %vm908, %v844
      %910 = vst.msk [vmem:[%s201 + $0x4] sm:$0xf] %vm908, %v845
      %911 = vst.msk [vmem:[%s201 + $0x8] sm:$0xf] %vm908, %v846
      %912 = vst.msk [vmem:[%s201 + $0xc] sm:$0xf] %vm908, %v847
      %913 = vst.msk [vmem:[%s201 + $0x10] sm:$0xf] %vm908, %v848
      %914 = vst.msk [vmem:[%s201 + $0x14] sm:$0xf] %vm908, %v849
      %915 = vst.msk [vmem:[%s201 + $0x18] sm:$0xf] %vm908, %v850
      %916 = vst.msk [vmem:[%s201 + $0x1c] sm:$0xf] %vm908, %v851
      %917 = vst.msk [vmem:[%s201 + $0x20] sm:$0xf] %vm908, %v852
      %918 = vst.msk [vmem:[%s201 + $0x24] sm:$0xf] %vm908, %v853
      %919 = vst.msk [vmem:[%s201 + $0x28] sm:$0xf] %vm908, %v854
      %920 = vst.msk [vmem:[%s201 + $0x2c] sm:$0xf] %vm908, %v855
      %921 = vst.msk [vmem:[%s201 + $0x30] sm:$0xf] %vm908, %v856
      %922 = vst.msk [vmem:[%s201 + $0x34] sm:$0xf] %vm908, %v857
      %923 = vst.msk [vmem:[%s201 + $0x38] sm:$0xf] %vm908, %v858
      %924 = vst.msk [vmem:[%s201 + $0x3c] sm:$0xf] %vm908, %v859
      %925 = vst.msk [vmem:[%s201 + $0x40] sm:$0xf] %vm908, %v860
      %926 = vst.msk [vmem:[%s201 + $0x44] sm:$0xf] %vm908, %v861
      %927 = vst.msk [vmem:[%s201 + $0x48] sm:$0xf] %vm908, %v862
      %928 = vst.msk [vmem:[%s201 + $0x4c] sm:$0xf] %vm908, %v863
      %929 = vst.msk [vmem:[%s201 + $0x50] sm:$0xf] %vm908, %v864
      %930 = vst.msk [vmem:[%s201 + $0x54] sm:$0xf] %vm908, %v865
      %931 = vst.msk [vmem:[%s201 + $0x58] sm:$0xf] %vm908, %v866
      %932 = vst.msk [vmem:[%s201 + $0x5c] sm:$0xf] %vm908, %v867
      %933 = vst.msk [vmem:[%s201 + $0x60] sm:$0xf] %vm908, %v868
      %934 = vst.msk [vmem:[%s201 + $0x64] sm:$0xf] %vm908, %v869
      %935 = vst.msk [vmem:[%s201 + $0x68] sm:$0xf] %vm908, %v870
      %936 = vst.msk [vmem:[%s201 + $0x6c] sm:$0xf] %vm908, %v871
      %937 = vst.msk [vmem:[%s201 + $0x70] sm:$0xf] %vm908, %v872
      %938 = vst.msk [vmem:[%s201 + $0x74] sm:$0xf] %vm908, %v873
      %939 = vst.msk [vmem:[%s201 + $0x78] sm:$0xf] %vm908, %v874
      %940 = vst.msk [vmem:[%s201 + $0x7c] sm:$0xf] %vm908, %v875
      %p941 = scmp.lt.s32.totalorder %s18, 1
      %s942 = scalar_select %p941, %s18, 1
      %p943 = scmp.lt.s32.totalorder %s19, 0
      %s944 = scalar_select %p943, %s19, 0
      %s945 = smul.addr %s942, 32
      %s946 = sadd.s32 %s944, %s945
      %s947 = smul.addr %s946, 4
      %s948 = scalar_lea.vmem %s3, %s947
      // Predicated region
      $region33: #{fcn_forward.8} parent=31 // pred_check
        %p949 = pneg %p116
      $region34: #{fcn_forward.8} parent=31 // pred_check_branch
        %951 = sbr.rel (%p949) target = $region36
      $region35: #{fcn_forward.8} parent=31 // pred_region
        _
      $region36: #{fcn_forward.8} parent=31 // pred_fallthru
        _
    $region32: #{fcn_forward.8} parent=5 // pred_fallthru
      _
    %p952 = scmp.le.s32.totalorder 2, %s9
    // Predicated region
    $region37: #{fcn_forward.8} parent=5 // pred_check
      %p953 = pneg %p952
    $region38: #{fcn_forward.8} parent=5 // pred_check_branch
      %955 = sbr.rel (%p953) target = $region40
    $region39: #{fcn_forward.8} parent=5 // pred_region
      %s956 = ssub.s32 %s9, 2
      // Predicated region
      $region41: #{fcn_forward.8} parent=39 // pred_check
        %p957 = pneg %p122
      $region42: #{fcn_forward.8} parent=39 // pred_check_branch
        %959 = sbr.rel (%p957) target = $region44
      $region43: #{fcn_forward.8} parent=39 // pred_region
        %p960 = scmp.lt.s32.totalorder %s20, 1
        %s961 = scalar_select %p960, %s20, 1
        %p962 = scmp.lt.s32.totalorder %s21, 0
        %s963 = scalar_select %p962, %s21, 0
        %s964 = smul.addr %s961, 32
        %s965 = sadd.s32 %s963, %s964
        %s966 = smul.addr %s965, 4
        %s967 = scalar_lea.vmem %s3, %s966
      $region44: #{fcn_forward.8} parent=39 // pred_fallthru
        _
    $region40: #{fcn_forward.8} parent=5 // pred_fallthru
      _
  $region6: #{fcn_forward.8} parent=0 // loop_footer
    %s13 = sadd.s32 1, %s9
  $region7: #{fcn_forward.8} parent=0 // loop_footer_branch
    %8 = sbr.rel target = $region3
  $region8: #{fcn_forward.8} parent=0 // loop_exit
    _

// kernel: fcn_forward.10
$region0: #{fcn_forward.10}
  #allocation0 [shape = 'u32[]', space=smem, size = 0x4, offset = 0x4, fixed_abs, tag = 'smem constant byte address 0x4 - core index']
  #allocation1 [shape = 'u32[144,128]{1,0:T(1,128)}', space=vmem, size = 0x12000, scoped, tag = 'internal scratch']
  %s0 = inlined_call_operand.vmem [shape: bf16[2,512,4], index: 0, kind: input, shape index: {}]
  %s1 = inlined_call_operand.vmem [shape: bf16[8,512], index: 1, kind: input, shape index: {}]
  %s2 = inlined_call_operand.vmem [shape: f32[8,1], index: 2, kind: input, shape index: {}]
  %s3 = inlined_call_operand.vmem [shape: bf16[2,8,4], index: 3, kind: output, shape index: {}]
  %s4 = sld [smem:[#allocation0]]
  $region45: #{fcn_forward.10} parent=0
    _
  %s6 = ssub.s32 1, %s4
  %s7 = scalar_select 0, %s6, %s4
  loop: start=0, step=1, limit=4
  $region2: #{fcn_forward.10} parent=0 // loop_pre_header
    _
  $region3: #{fcn_forward.10} parent=0 // loop_header
    %s9 = sphi 0, %s13
    %p10 = scmp.ge.s32.totalorder %s9, 4
    %s16 = sphi 0, %s28
    %s17 = sphi 0, %s24
    %s18 = sphi 0, %s16
    %s19 = sphi 0, %s17
    %s20 = sphi 0, %s18
    %s21 = sphi 0, %s19
    %s33 = sphi 0, %s35
    %s36 = sphi 0, %s33
    %s37 = sphi 0, %s36
    %s53 = sphi 0, %s37
    %s57 = sphi 0, %s57
    %s59 = sphi 0, %s57
    %s60 = sphi 0, %s59
    %s74 = sphi 0, %s60
    %s78 = sphi 0, %s78
    %s80 = sphi 0, %s78
    %s81 = sphi 0, %s80
    %s95 = sphi 0, %s81
    %s103 = sphi 0, %s105
    %s106 = sphi 0, %s103
    %s107 = sphi 0, %s106
    %s123 = sphi 0, %s107
  $region4: #{fcn_forward.10} parent=0 // loop_header_branch
    %12 = sbr.rel (%p10) target = $region8
  $region5: #{fcn_forward.10} parent=0 // loop_body
    %s14 = ssub.s32 %s9, 1
    %s15 = ssub.s32 %s9, 2
    %s22 = sadd.s32 1, %s17
    %p23 = scmp.ge.s32.totalorder %s22, 1
    %s24 = scalar_select %p23, 0, %s22
    %s25 = sadd.s32 1, %s16
    %s26 = scalar_select %p23, %s25, %s16
    %p27 = scmp.ge.s32.totalorder %s26, 2
    %s28 = scalar_select %p27, 0, %s26
    %s29 = ssub.s32 %s16, %s28
    %s30 = ssub.s32 %s17, %s24
    %s31 = sor.u32 %s29, %s30
    %p32 = scmp.eq.s32.totalorder %s31, 0
    %s34 = sadd.s32 %s33, 1
    %s35 = scalar_select %p32, %s33, %s34
    %p38 = pneg %p32
    %p39 = scmp.eq.s32.totalorder %s9, 1
    %p40 = por %p38, %p39
    %p41 = scmp.ne.s32.totalorder %s33, %s36
    %p42 = scmp.eq.s32.totalorder %s9, 0
    %p43 = por %p41, %p42
    %p44 = scmp.ne.s32.totalorder %s33, %s36
    %p45 = scmp.eq.s32.totalorder %s14, 1
    %p46 = por %p44, %p45
    %p47 = scmp.ne.s32.totalorder %s36, %s37
    %p48 = scmp.eq.s32.totalorder %s14, 0
    %p49 = por %p47, %p48
    %p50 = scmp.ne.s32.totalorder %s36, %s37
    %p51 = scmp.eq.s32.totalorder %s15, 1
    %p52 = por %p50, %p51
    %p54 = scmp.ne.s32.totalorder %s37, %s53
    %p55 = scmp.eq.s32.totalorder %s15, 0
    %p56 = por %p54, %p55
    %s58 = sadd.s32 %s57, 1
    %p61 = scmp.eq.s32.totalorder %s9, 1
    %p62 = scmp.ne.s32.totalorder %s57, %s59
    %p63 = scmp.eq.s32.totalorder %s9, 0
    %p64 = por %p62, %p63
    %p65 = scmp.ne.s32.totalorder %s57, %s59
    %p66 = scmp.eq.s32.totalorder %s14, 1
    %p67 = por %p65, %p66
    %p68 = scmp.ne.s32.totalorder %s59, %s60
    %p69 = scmp.eq.s32.totalorder %s14, 0
    %p70 = por %p68, %p69
    %p71 = scmp.ne.s32.totalorder %s59, %s60
    %p72 = scmp.eq.s32.totalorder %s15, 1
    %p73 = por %p71, %p72
    %p75 = scmp.ne.s32.totalorder %s60, %s74
    %p76 = scmp.eq.s32.totalorder %s15, 0
    %p77 = por %p75, %p76
    %s79 = sadd.s32 %s78, 1
    %p82 = scmp.eq.s32.totalorder %s9, 1
    %p83 = scmp.ne.s32.totalorder %s78, %s80
    %p84 = scmp.eq.s32.totalorder %s9, 0
    %p85 = por %p83, %p84
    %p86 = scmp.ne.s32.totalorder %s78, %s80
    %p87 = scmp.eq.s32.totalorder %s14, 1
    %p88 = por %p86, %p87
    %p89 = scmp.ne.s32.totalorder %s80, %s81
    %p90 = scmp.eq.s32.totalorder %s14, 0
    %p91 = por %p89, %p90
    %p92 = scmp.ne.s32.totalorder %s80, %s81
    %p93 = scmp.eq.s32.totalorder %s15, 1
    %p94 = por %p92, %p93
    %p96 = scmp.ne.s32.totalorder %s81, %s95
    %p97 = scmp.eq.s32.totalorder %s15, 0
    %p98 = por %p96, %p97
    %s99 = ssub.s32 %s16, %s28
    %s100 = ssub.s32 %s17, %s24
    %s101 = sor.u32 %s99, %s100
    %p102 = scmp.eq.s32.totalorder %s101, 0
    %s104 = sadd.s32 %s103, 1
    %s105 = scalar_select %p102, %s103, %s104
    %p108 = pneg %p102
    %p109 = scmp.eq.s32.totalorder %s9, 1
    %p110 = por %p108, %p109
    %p111 = scmp.ne.s32.totalorder %s103, %s106
    %p112 = scmp.eq.s32.totalorder %s9, 0
    %p113 = por %p111, %p112
    %p114 = scmp.ne.s32.totalorder %s103, %s106
    %p115 = scmp.eq.s32.totalorder %s14, 1
    %p116 = por %p114, %p115
    %p117 = scmp.ne.s32.totalorder %s106, %s107
    %p118 = scmp.eq.s32.totalorder %s14, 0
    %p119 = por %p117, %p118
    %p120 = scmp.ne.s32.totalorder %s106, %s107
    %p121 = scmp.eq.s32.totalorder %s15, 1
    %p122 = por %p120, %p121
    %p124 = scmp.ne.s32.totalorder %s107, %s123
    %p125 = scmp.eq.s32.totalorder %s15, 0
    %p126 = por %p124, %p125
    %p127 = scmp.le.s32.totalorder 1, %s9
    %p128 = scmp.lt.s32.totalorder %s9, 3
    %p129 = pnand %p127, %p128
    %p130 = pneg %p129
    // Predicated region
    $region9: #{fcn_forward.10} parent=5 // pred_check
      _
    $region10: #{fcn_forward.10} parent=5 // pred_check_branch
      %132 = sbr.rel (%p129) target = $region12
    $region11: #{fcn_forward.10} parent=5 // pred_region
      %s133 = ssub.s32 %s9, 1
      // Predicated region
      $region13: #{fcn_forward.10} parent=11 // pred_check
        %p134 = pneg %p70
      $region14: #{fcn_forward.10} parent=11 // pred_check_branch
        %136 = sbr.rel (%p134) target = $region16
      $region15: #{fcn_forward.10} parent=11 // pred_region
        _
      $region16: #{fcn_forward.10} parent=11 // pred_fallthru
        _
      // Predicated region
      $region17: #{fcn_forward.10} parent=11 // pred_check
        %p137 = pneg %p91
      $region18: #{fcn_forward.10} parent=11 // pred_check_branch
        %139 = sbr.rel (%p137) target = $region20
      $region19: #{fcn_forward.10} parent=11 // pred_region
        _
      $region20: #{fcn_forward.10} parent=11 // pred_fallthru
        _
    $region12: #{fcn_forward.10} parent=5 // pred_fallthru
      _
    %p140 = scmp.lt.s32.totalorder %s9, 2
    // Predicated region
    $region21: #{fcn_forward.10} parent=5 // pred_check
      %p141 = pneg %p140
    $region22: #{fcn_forward.10} parent=5 // pred_check_branch
      %143 = sbr.rel (%p141) target = $region24
    $region23: #{fcn_forward.10} parent=5 // pred_region
      // Predicated region
      $region25: #{fcn_forward.10} parent=23 // pred_check
        %p144 = pneg %p43
      $region26: #{fcn_forward.10} parent=23 // pred_check_branch
        %146 = sbr.rel (%p144) target = $region28
      $region27: #{fcn_forward.10} parent=23 // pred_region
        %p147 = scmp.lt.s32.totalorder %s16, 1
        %s148 = scalar_select %p147, %s16, 1
        %p149 = scmp.lt.s32.totalorder %s17, 0
        %s150 = scalar_select %p149, %s17, 0
        %s151 = smul.addr %s148, 64
        %s152 = sadd.s32 %s150, %s151
        %s153 = smul.addr %s152, 4
        %s154 = scalar_lea.vmem %s0, %s153
      $region28: #{fcn_forward.10} parent=23 // pred_fallthru
        _
    $region24: #{fcn_forward.10} parent=5 // pred_fallthru
      _
    %p155 = scmp.le.s32.totalorder 1, %s9
    %p156 = scmp.lt.s32.totalorder %s9, 3
    %p157 = pnand %p155, %p156
    %p158 = pneg %p157
    // Predicated region
    $region29: #{fcn_forward.10} parent=5 // pred_check
      _
    $region30: #{fcn_forward.10} parent=5 // pred_check_branch
      %160 = sbr.rel (%p157) target = $region32
    $region31: #{fcn_forward.10} parent=5 // pred_region
      %s161 = ssub.s32 %s9, 1
      %p162 = scmp.lt.s32.totalorder %s18, 1
      %s163 = scalar_select %p162, %s18, 1
      %p164 = scmp.lt.s32.totalorder %s19, 0
      %s165 = scalar_select %p164, %s19, 0
      %s166 = smul.addr %s163, 64
      %s167 = sadd.s32 %s165, %s166
      %s168 = smul.addr %s167, 4
      %s169 = scalar_lea.vmem %s0, %s168
      %p170 = pneg %p49
      %p171 = pneg %p46
      %p172 = pneg %p70
      %p173 = pneg %p67
      %p174 = pneg %p91
      %p175 = pneg %p88
      %p176 = pneg %p119
      %p177 = pneg %p116
      %p178 = scmp.lt.s32.totalorder %s18, 1
      %s179 = scalar_select %p178, %s18, 1
      %p180 = scmp.lt.s32.totalorder %s19, 0
      %s181 = scalar_select %p180, %s19, 0
      %s182 = sadd.s32 %s181, %s179
      %s183 = smul.addr %s182, 4
      %s184 = scalar_lea.vmem %s3, %s183
      %p185 = scmp.lt.s32.totalorder %s18, 1
      %s186 = scalar_select %p185, %s18, 1
      %p187 = scmp.lt.s32.totalorder %s19, 0
      %s188 = scalar_select %p187, %s19, 0
      %s189 = smul.addr %s186, 64
      %s190 = sadd.s32 %s188, %s189
      %s191 = smul.addr %s190, 4
      %s192 = scalar_lea.vmem %s0, %s191
      %p193 = scmp.lt.s32.totalorder %s18, 1
      %s194 = scalar_select %p193, %s18, 1
      %p195 = scmp.lt.s32.totalorder %s19, 0
      %s196 = scalar_select %p195, %s19, 0
      %s197 = sadd.s32 %s196, %s194
      %s198 = smul.addr %s197, 4
      %s199 = scalar_lea.vmem %s3, %s198
      %v201 = vld [vmem:[%s1] sm:$0xff]
      %v202 = vld [vmem:[%s1 + $0x8] sm:$0xff]
      %v203 = vld [vmem:[%s192] sm:$0xf]
      %v204 = vld [vmem:[%s192 + $0x4] sm:$0xf]
      %v205 = vld [vmem:[%s192 + $0x8] sm:$0xf]
      %v206 = vld [vmem:[%s192 + $0xc] sm:$0xf]
      %v207 = vld [vmem:[%s192 + $0x10] sm:$0xf]
      %v208 = vld [vmem:[%s192 + $0x14] sm:$0xf]
      %v209 = vld [vmem:[%s192 + $0x18] sm:$0xf]
      %v210 = vld [vmem:[%s192 + $0x1c] sm:$0xf]
      %v211 = vld [vmem:[%s192 + $0x20] sm:$0xf]
      %v212 = vld [vmem:[%s192 + $0x24] sm:$0xf]
      %v213 = vld [vmem:[%s192 + $0x28] sm:$0xf]
      %v214 = vld [vmem:[%s192 + $0x2c] sm:$0xf]
      %v215 = vld [vmem:[%s192 + $0x30] sm:$0xf]
      %v216 = vld [vmem:[%s192 + $0x34] sm:$0xf]
      %v217 = vld [vmem:[%s192 + $0x38] sm:$0xf]
      %v218 = vld [vmem:[%s192 + $0x3c] sm:$0xf]
      %v219 = vld [vmem:[%s192 + $0x40] sm:$0xf]
      %v220 = vld [vmem:[%s192 + $0x44] sm:$0xf]
      %v221 = vld [vmem:[%s192 + $0x48] sm:$0xf]
      %v222 = vld [vmem:[%s192 + $0x4c] sm:$0xf]
      %v223 = vld [vmem:[%s192 + $0x50] sm:$0xf]
      %v224 = vld [vmem:[%s192 + $0x54] sm:$0xf]
      %v225 = vld [vmem:[%s192 + $0x58] sm:$0xf]
      %v226 = vld [vmem:[%s192 + $0x5c] sm:$0xf]
      %v227 = vld [vmem:[%s192 + $0x60] sm:$0xf]
      %v228 = vld [vmem:[%s192 + $0x64] sm:$0xf]
      %v229 = vld [vmem:[%s192 + $0x68] sm:$0xf]
      %v230 = vld [vmem:[%s192 + $0x6c] sm:$0xf]
      %v231 = vld [vmem:[%s192 + $0x70] sm:$0xf]
      %v232 = vld [vmem:[%s192 + $0x74] sm:$0xf]
      %v233 = vld [vmem:[%s192 + $0x78] sm:$0xf]
      %v234 = vld [vmem:[%s192 + $0x7c] sm:$0xf]
      %v235 = vld [vmem:[%s192 + $0x80] sm:$0xf]
      %v236 = vld [vmem:[%s192 + $0x84] sm:$0xf]
      %v237 = vld [vmem:[%s192 + $0x88] sm:$0xf]
      %v238 = vld [vmem:[%s192 + $0x8c] sm:$0xf]
      %v239 = vld [vmem:[%s192 + $0x90] sm:$0xf]
      %v240 = vld [vmem:[%s192 + $0x94] sm:$0xf]
      %v241 = vld [vmem:[%s192 + $0x98] sm:$0xf]
      %v242 = vld [vmem:[%s192 + $0x9c] sm:$0xf]
      %v243 = vld [vmem:[%s192 + $0xa0] sm:$0xf]
      %v244 = vld [vmem:[%s192 + $0xa4] sm:$0xf]
      %v245 = vld [vmem:[%s192 + $0xa8] sm:$0xf]
      %v246 = vld [vmem:[%s192 + $0xac] sm:$0xf]
      %v247 = vld [vmem:[%s192 + $0xb0] sm:$0xf]
      %v248 = vld [vmem:[%s192 + $0xb4] sm:$0xf]
      %v249 = vld [vmem:[%s192 + $0xb8] sm:$0xf]
      %v250 = vld [vmem:[%s192 + $0xbc] sm:$0xf]
      %v251 = vld [vmem:[%s192 + $0xc0] sm:$0xf]
      %v252 = vld [vmem:[%s192 + $0xc4] sm:$0xf]
      %v253 = vld [vmem:[%s192 + $0xc8] sm:$0xf]
      %v254 = vld [vmem:[%s192 + $0xcc] sm:$0xf]
      %v255 = vld [vmem:[%s192 + $0xd0] sm:$0xf]
      %v256 = vld [vmem:[%s192 + $0xd4] sm:$0xf]
      %v257 = vld [vmem:[%s192 + $0xd8] sm:$0xf]
      %v258 = vld [vmem:[%s192 + $0xdc] sm:$0xf]
      %v259 = vld [vmem:[%s192 + $0xe0] sm:$0xf]
      %v260 = vld [vmem:[%s192 + $0xe4] sm:$0xf]
      %v261 = vld [vmem:[%s192 + $0xe8] sm:$0xf]
      %v262 = vld [vmem:[%s192 + $0xec] sm:$0xf]
      %v263 = vld [vmem:[%s192 + $0xf0] sm:$0xf]
      %v264 = vld [vmem:[%s192 + $0xf4] sm:$0xf]
      %v265 = vld [vmem:[%s192 + $0xf8] sm:$0xf]
      %v266 = vld [vmem:[%s192 + $0xfc] sm:$0xf]
      %v267 = vld [vmem:[%s2] sm:$0xff]
      %269 = vset.pattern.permute.xlu0 0
      %270 = vperm.xlu0 %269, %v267
      %v271 = vpop.permute.xlu0 %270
      %v275 = vunpack.c.l.b16 %v201
      %v276 = vunpack.c.h.b16 %v201
      %v277 = vunpack.c.l.b16 %v202
      %v278 = vunpack.c.h.b16 %v202
      %v279 = vpack.c.b16 %v275, %v275
      %v280 = vpack.c.b16 %v276, %v276
      %v281 = vpack.c.b16 %v277, %v277
      %v282 = vpack.c.b16 %v278, %v278
      %v351 = vunpack.c.l.b16 %v203
      %v352 = vunpack.c.l.b16 %v204
      %v353 = vunpack.c.l.b16 %v205
      %v354 = vunpack.c.l.b16 %v206
      %v355 = vunpack.c.l.b16 %v207
      %v356 = vunpack.c.l.b16 %v208
      %v357 = vunpack.c.l.b16 %v209
      %v358 = vunpack.c.l.b16 %v210
      %v359 = vunpack.c.l.b16 %v211
      %v360 = vunpack.c.l.b16 %v212
      %v361 = vunpack.c.l.b16 %v213
      %v362 = vunpack.c.l.b16 %v214
      %v363 = vunpack.c.l.b16 %v215
      %v364 = vunpack.c.l.b16 %v216
      %v365 = vunpack.c.l.b16 %v217
      %v366 = vunpack.c.l.b16 %v218
      %v367 = vunpack.c.l.b16 %v219
      %v368 = vunpack.c.l.b16 %v220
      %v369 = vunpack.c.l.b16 %v221
      %v370 = vunpack.c.l.b16 %v222
      %v371 = vunpack.c.l.b16 %v223
      %v372 = vunpack.c.l.b16 %v224
      %v373 = vunpack.c.l.b16 %v225
      %v374 = vunpack.c.l.b16 %v226
      %v375 = vunpack.c.l.b16 %v227
      %v376 = vunpack.c.l.b16 %v228
      %v377 = vunpack.c.l.b16 %v229
      %v378 = vunpack.c.l.b16 %v230
      %v379 = vunpack.c.l.b16 %v231
      %v380 = vunpack.c.l.b16 %v232
      %v381 = vunpack.c.l.b16 %v233
      %v382 = vunpack.c.l.b16 %v234
      %v383 = vunpack.c.l.b16 %v235
      %v384 = vunpack.c.l.b16 %v236
      %v385 = vunpack.c.l.b16 %v237
      %v386 = vunpack.c.l.b16 %v238
      %v387 = vunpack.c.l.b16 %v239
      %v388 = vunpack.c.l.b16 %v240
      %v389 = vunpack.c.l.b16 %v241
      %v390 = vunpack.c.l.b16 %v242
      %v391 = vunpack.c.l.b16 %v243
      %v392 = vunpack.c.l.b16 %v244
      %v393 = vunpack.c.l.b16 %v245
      %v394 = vunpack.c.l.b16 %v246
      %v395 = vunpack.c.l.b16 %v247
      %v396 = vunpack.c.l.b16 %v248
      %v397 = vunpack.c.l.b16 %v249
      %v398 = vunpack.c.l.b16 %v250
      %v399 = vunpack.c.l.b16 %v251
      %v400 = vunpack.c.l.b16 %v252
      %v401 = vunpack.c.l.b16 %v253
      %v402 = vunpack.c.l.b16 %v254
      %v403 = vunpack.c.l.b16 %v255
      %v404 = vunpack.c.l.b16 %v256
      %v405 = vunpack.c.l.b16 %v257
      %v406 = vunpack.c.l.b16 %v258
      %v407 = vunpack.c.l.b16 %v259
      %v408 = vunpack.c.l.b16 %v260
      %v409 = vunpack.c.l.b16 %v261
      %v410 = vunpack.c.l.b16 %v262
      %v411 = vunpack.c.l.b16 %v263
      %v412 = vunpack.c.l.b16 %v264
      %v413 = vunpack.c.l.b16 %v265
      %v414 = vunpack.c.l.b16 %v266
      %v415 = vpack.c.b16 %v352, %v351
      %v416 = vpack.c.b16 %v354, %v353
      %v417 = vpack.c.b16 %v356, %v355
      %v418 = vpack.c.b16 %v358, %v357
      %v419 = vpack.c.b16 %v360, %v359
      %v420 = vpack.c.b16 %v362, %v361
      %v421 = vpack.c.b16 %v364, %v363
      %v422 = vpack.c.b16 %v366, %v365
      %v423 = vpack.c.b16 %v368, %v367
      %v424 = vpack.c.b16 %v370, %v369
      %v425 = vpack.c.b16 %v372, %v371
      %v426 = vpack.c.b16 %v374, %v373
      %v427 = vpack.c.b16 %v376, %v375
      %v428 = vpack.c.b16 %v378, %v377
      %v429 = vpack.c.b16 %v380, %v379
      %v430 = vpack.c.b16 %v382, %v381
      %v431 = vpack.c.b16 %v384, %v383
      %v432 = vpack.c.b16 %v386, %v385
      %v433 = vpack.c.b16 %v388, %v387
      %v434 = vpack.c.b16 %v390, %v389
      %v435 = vpack.c.b16 %v392, %v391
      %v436 = vpack.c.b16 %v394, %v393
      %v437 = vpack.c.b16 %v396, %v395
      %v438 = vpack.c.b16 %v398, %v397
      %v439 = vpack.c.b16 %v400, %v399
      %v440 = vpack.c.b16 %v402, %v401
      %v441 = vpack.c.b16 %v404, %v403
      %v442 = vpack.c.b16 %v406, %v405
      %v443 = vpack.c.b16 %v408, %v407
      %v444 = vpack.c.b16 %v410, %v409
      %v445 = vpack.c.b16 %v412, %v411
      %v446 = vpack.c.b16 %v414, %v413
      %479 = vmatprep.subr.bf16.mxu0 0
      %480 = vmatpush1.bf16.msra.mxu0 %v422
      %481 = vmatprep.subr.bf16.mxu0 0
      %482 = vmatpush1.bf16.msra.mxu0 %v421
      %483 = vmatprep.subr.bf16.mxu0 0
      %484 = vmatpush1.bf16.msra.mxu0 %v420
      %485 = vmatprep.subr.bf16.mxu0 0
      %486 = vmatpush1.bf16.msra.mxu0 %v419
      %487 = vmatprep.subr.bf16.mxu0 0
      %488 = vmatpush1.bf16.msra.mxu0 %v418
      %489 = vmatprep.subr.bf16.mxu0 0
      %490 = vmatpush1.bf16.msra.mxu0 %v417
      %491 = vmatprep.subr.bf16.mxu0 0
      %492 = vmatpush1.bf16.msra.mxu0 %v416
      %493 = vmatprep.subr.bf16.mxu0 0
      %494 = vmatpush1.bf16.msra.mxu0 %v415
      %495 = vmatprep.subr.bf16.mxu0 0
      %496 = vmatpush2.bf16.msra.mxu0 %v430
      %497 = vmatprep.subr.bf16.mxu0 0
      %498 = vmatpush2.bf16.msra.mxu0 %v429
      %499 = vmatprep.subr.bf16.mxu0 0
      %500 = vmatpush2.bf16.msra.mxu0 %v428
      %501 = vmatprep.subr.bf16.mxu0 0
      %502 = vmatpush2.bf16.msra.mxu0 %v427
      %503 = vmatprep.subr.bf16.mxu0 0
      %504 = vmatpush2.bf16.msra.mxu0 %v426
      %505 = vmatprep.subr.bf16.mxu0 0
      %506 = vmatpush2.bf16.msra.mxu0 %v425
      %507 = vmatprep.subr.bf16.mxu0 0
      %508 = vmatpush2.bf16.msra.mxu0 %v424
      %509 = vmatprep.subr.bf16.mxu0 0
      %510 = vmatpush2.bf16.msra.mxu0 %v423
      %511 = vmatprep.mubr.bf16.mxu0 %v280
      %512 = vmatmul.mubr.bf16.gmra.mxu0 %v279
      %v513 = vpop.f32.mrf.mxu0
      %v514 = vadd.f32 %v271, %v513
      %v515 = vpop.f32.mrf.mxu0
      %v516 = vpop.f32.mrf.mxu0
      %v517 = vpop.f32.mrf.mxu0
      %518 = vdwg.mxu0
      %519 = vmatprep.subr.bf16.mxu0 0
      %520 = vmatpush1.bf16.msra.mxu0 %v438
      %521 = vmatprep.subr.bf16.mxu0 0
      %522 = vmatpush1.bf16.msra.mxu0 %v437
      %523 = vmatprep.subr.bf16.mxu0 0
      %524 = vmatpush1.bf16.msra.mxu0 %v436
      %525 = vmatprep.subr.bf16.mxu0 0
      %526 = vmatpush1.bf16.msra.mxu0 %v435
      %527 = vmatprep.subr.bf16.mxu0 0
      %528 = vmatpush1.bf16.msra.mxu0 %v434
      %529 = vmatprep.subr.bf16.mxu0 0
      %530 = vmatpush1.bf16.msra.mxu0 %v433
      %531 = vmatprep.subr.bf16.mxu0 0
      %532 = vmatpush1.bf16.msra.mxu0 %v432
      %533 = vmatprep.subr.bf16.mxu0 0
      %534 = vmatpush1.bf16.msra.mxu0 %v431
      %535 = vmatprep.subr.bf16.mxu0 0
      %536 = vmatpush2.bf16.msra.mxu0 %v446
      %537 = vmatprep.subr.bf16.mxu0 0
      %538 = vmatpush2.bf16.msra.mxu0 %v445
      %539 = vmatprep.subr.bf16.mxu0 0
      %540 = vmatpush2.bf16.msra.mxu0 %v444
      %541 = vmatprep.subr.bf16.mxu0 0
      %542 = vmatpush2.bf16.msra.mxu0 %v443
      %543 = vmatprep.subr.bf16.mxu0 0
      %544 = vmatpush2.bf16.msra.mxu0 %v442
      %545 = vmatprep.subr.bf16.mxu0 0
      %546 = vmatpush2.bf16.msra.mxu0 %v441
      %547 = vmatprep.subr.bf16.mxu0 0
      %548 = vmatpush2.bf16.msra.mxu0 %v440
      %549 = vmatprep.subr.bf16.mxu0 0
      %550 = vmatpush2.bf16.msra.mxu0 %v439
      %551 = vmatprep.mubr.bf16.mxu0 %v282
      %552 = vmatmul.mubr.bf16.gmra.mxu0 %v281
      %v553 = vpop.f32.mrf.mxu0
      %v554 = vadd.f32 %v514, %v553
      %v555 = vpop.f32.mrf.mxu0
      %v556 = vpop.f32.mrf.mxu0
      %v557 = vpop.f32.mrf.mxu0
      %558 = vdwg.mxu0
      %v559 = vpack.c.bf16 %v554, %v554
      %vm560 = vcmask 27648
      %561 = vst.msk [vmem:[%s199] sm:$0xf] %vm560, %v559
      %p562 = scmp.lt.s32.totalorder %s18, 1
      %s563 = scalar_select %p562, %s18, 1
      %p564 = scmp.lt.s32.totalorder %s19, 0
      %s565 = scalar_select %p564, %s19, 0
      %s566 = sadd.s32 %s565, %s563
      %s567 = smul.addr %s566, 4
      %s568 = scalar_lea.vmem %s3, %s567
      // Predicated region
      $region33: #{fcn_forward.10} parent=31 // pred_check
        %p569 = pneg %p116
      $region34: #{fcn_forward.10} parent=31 // pred_check_branch
        %571 = sbr.rel (%p569) target = $region36
      $region35: #{fcn_forward.10} parent=31 // pred_region
        _
      $region36: #{fcn_forward.10} parent=31 // pred_fallthru
        _
    $region32: #{fcn_forward.10} parent=5 // pred_fallthru
      _
    %p572 = scmp.le.s32.totalorder 2, %s9
    // Predicated region
    $region37: #{fcn_forward.10} parent=5 // pred_check
      %p573 = pneg %p572
    $region38: #{fcn_forward.10} parent=5 // pred_check_branch
      %575 = sbr.rel (%p573) target = $region40
    $region39: #{fcn_forward.10} parent=5 // pred_region
      %s576 = ssub.s32 %s9, 2
      // Predicated region
      $region41: #{fcn_forward.10} parent=39 // pred_check
        %p577 = pneg %p122
      $region42: #{fcn_forward.10} parent=39 // pred_check_branch
        %579 = sbr.rel (%p577) target = $region44
      $region43: #{fcn_forward.10} parent=39 // pred_region
        %p580 = scmp.lt.s32.totalorder %s20, 1
        %s581 = scalar_select %p580, %s20, 1
        %p582 = scmp.lt.s32.totalorder %s21, 0
        %s583 = scalar_select %p582, %s21, 0
        %s584 = sadd.s32 %s583, %s581
        %s585 = smul.addr %s584, 4
        %s586 = scalar_lea.vmem %s3, %s585
      $region44: #{fcn_forward.10} parent=39 // pred_fallthru
        _
    $region40: #{fcn_forward.10} parent=5 // pred_fallthru
      _
  $region6: #{fcn_forward.10} parent=0 // loop_footer
    %s13 = sadd.s32 1, %s9
  $region7: #{fcn_forward.10} parent=0 // loop_footer_branch
    %8 = sbr.rel target = $region3
  $region8: #{fcn_forward.10} parent=0 // loop_exit
    _

// kernel: fcn_forward.11
$region0: #{fcn_forward.11}
  #allocation0 [shape = 'u32[]', space=smem, size = 0x4, offset = 0x4, fixed_abs, tag = 'smem constant byte address 0x4 - core index']
  #allocation1 [shape = 'u32[144,128]{1,0:T(1,128)}', space=vmem, size = 0x12000, scoped, tag = 'internal scratch']
  %s0 = inlined_call_operand.vmem [shape: bf16[2,256,16], index: 0, kind: input, shape index: {}]
  %s1 = inlined_call_operand.vmem [shape: bf16[8,256], index: 1, kind: input, shape index: {}]
  %s2 = inlined_call_operand.vmem [shape: f32[8,1], index: 2, kind: input, shape index: {}]
  %s3 = inlined_call_operand.vmem [shape: bf16[2,8,16], index: 3, kind: output, shape index: {}]
  %s4 = sld [smem:[#allocation0]]
  $region45: #{fcn_forward.11} parent=0
    _
  %s6 = ssub.s32 1, %s4
  %s7 = scalar_select 0, %s6, %s4
  loop: start=0, step=1, limit=4
  $region2: #{fcn_forward.11} parent=0 // loop_pre_header
    _
  $region3: #{fcn_forward.11} parent=0 // loop_header
    %s9 = sphi 0, %s13
    %p10 = scmp.ge.s32.totalorder %s9, 4
    %s16 = sphi 0, %s28
    %s17 = sphi 0, %s24
    %s18 = sphi 0, %s16
    %s19 = sphi 0, %s17
    %s20 = sphi 0, %s18
    %s21 = sphi 0, %s19
    %s33 = sphi 0, %s35
    %s36 = sphi 0, %s33
    %s37 = sphi 0, %s36
    %s53 = sphi 0, %s37
    %s57 = sphi 0, %s57
    %s59 = sphi 0, %s57
    %s60 = sphi 0, %s59
    %s74 = sphi 0, %s60
    %s78 = sphi 0, %s78
    %s80 = sphi 0, %s78
    %s81 = sphi 0, %s80
    %s95 = sphi 0, %s81
    %s103 = sphi 0, %s105
    %s106 = sphi 0, %s103
    %s107 = sphi 0, %s106
    %s123 = sphi 0, %s107
  $region4: #{fcn_forward.11} parent=0 // loop_header_branch
    %12 = sbr.rel (%p10) target = $region8
  $region5: #{fcn_forward.11} parent=0 // loop_body
    %s14 = ssub.s32 %s9, 1
    %s15 = ssub.s32 %s9, 2
    %s22 = sadd.s32 1, %s17
    %p23 = scmp.ge.s32.totalorder %s22, 1
    %s24 = scalar_select %p23, 0, %s22
    %s25 = sadd.s32 1, %s16
    %s26 = scalar_select %p23, %s25, %s16
    %p27 = scmp.ge.s32.totalorder %s26, 2
    %s28 = scalar_select %p27, 0, %s26
    %s29 = ssub.s32 %s16, %s28
    %s30 = ssub.s32 %s17, %s24
    %s31 = sor.u32 %s29, %s30
    %p32 = scmp.eq.s32.totalorder %s31, 0
    %s34 = sadd.s32 %s33, 1
    %s35 = scalar_select %p32, %s33, %s34
    %p38 = pneg %p32
    %p39 = scmp.eq.s32.totalorder %s9, 1
    %p40 = por %p38, %p39
    %p41 = scmp.ne.s32.totalorder %s33, %s36
    %p42 = scmp.eq.s32.totalorder %s9, 0
    %p43 = por %p41, %p42
    %p44 = scmp.ne.s32.totalorder %s33, %s36
    %p45 = scmp.eq.s32.totalorder %s14, 1
    %p46 = por %p44, %p45
    %p47 = scmp.ne.s32.totalorder %s36, %s37
    %p48 = scmp.eq.s32.totalorder %s14, 0
    %p49 = por %p47, %p48
    %p50 = scmp.ne.s32.totalorder %s36, %s37
    %p51 = scmp.eq.s32.totalorder %s15, 1
    %p52 = por %p50, %p51
    %p54 = scmp.ne.s32.totalorder %s37, %s53
    %p55 = scmp.eq.s32.totalorder %s15, 0
    %p56 = por %p54, %p55
    %s58 = sadd.s32 %s57, 1
    %p61 = scmp.eq.s32.totalorder %s9, 1
    %p62 = scmp.ne.s32.totalorder %s57, %s59
    %p63 = scmp.eq.s32.totalorder %s9, 0
    %p64 = por %p62, %p63
    %p65 = scmp.ne.s32.totalorder %s57, %s59
    %p66 = scmp.eq.s32.totalorder %s14, 1
    %p67 = por %p65, %p66
    %p68 = scmp.ne.s32.totalorder %s59, %s60
    %p69 = scmp.eq.s32.totalorder %s14, 0
    %p70 = por %p68, %p69
    %p71 = scmp.ne.s32.totalorder %s59, %s60
    %p72 = scmp.eq.s32.totalorder %s15, 1
    %p73 = por %p71, %p72
    %p75 = scmp.ne.s32.totalorder %s60, %s74
    %p76 = scmp.eq.s32.totalorder %s15, 0
    %p77 = por %p75, %p76
    %s79 = sadd.s32 %s78, 1
    %p82 = scmp.eq.s32.totalorder %s9, 1
    %p83 = scmp.ne.s32.totalorder %s78, %s80
    %p84 = scmp.eq.s32.totalorder %s9, 0
    %p85 = por %p83, %p84
    %p86 = scmp.ne.s32.totalorder %s78, %s80
    %p87 = scmp.eq.s32.totalorder %s14, 1
    %p88 = por %p86, %p87
    %p89 = scmp.ne.s32.totalorder %s80, %s81
    %p90 = scmp.eq.s32.totalorder %s14, 0
    %p91 = por %p89, %p90
    %p92 = scmp.ne.s32.totalorder %s80, %s81
    %p93 = scmp.eq.s32.totalorder %s15, 1
    %p94 = por %p92, %p93
    %p96 = scmp.ne.s32.totalorder %s81, %s95
    %p97 = scmp.eq.s32.totalorder %s15, 0
    %p98 = por %p96, %p97
    %s99 = ssub.s32 %s16, %s28
    %s100 = ssub.s32 %s17, %s24
    %s101 = sor.u32 %s99, %s100
    %p102 = scmp.eq.s32.totalorder %s101, 0
    %s104 = sadd.s32 %s103, 1
    %s105 = scalar_select %p102, %s103, %s104
    %p108 = pneg %p102
    %p109 = scmp.eq.s32.totalorder %s9, 1
    %p110 = por %p108, %p109
    %p111 = scmp.ne.s32.totalorder %s103, %s106
    %p112 = scmp.eq.s32.totalorder %s9, 0
    %p113 = por %p111, %p112
    %p114 = scmp.ne.s32.totalorder %s103, %s106
    %p115 = scmp.eq.s32.totalorder %s14, 1
    %p116 = por %p114, %p115
    %p117 = scmp.ne.s32.totalorder %s106, %s107
    %p118 = scmp.eq.s32.totalorder %s14, 0
    %p119 = por %p117, %p118
    %p120 = scmp.ne.s32.totalorder %s106, %s107
    %p121 = scmp.eq.s32.totalorder %s15, 1
    %p122 = por %p120, %p121
    %p124 = scmp.ne.s32.totalorder %s107, %s123
    %p125 = scmp.eq.s32.totalorder %s15, 0
    %p126 = por %p124, %p125
    %p127 = scmp.le.s32.totalorder 1, %s9
    %p128 = scmp.lt.s32.totalorder %s9, 3
    %p129 = pnand %p127, %p128
    %p130 = pneg %p129
    // Predicated region
    $region9: #{fcn_forward.11} parent=5 // pred_check
      _
    $region10: #{fcn_forward.11} parent=5 // pred_check_branch
      %132 = sbr.rel (%p129) target = $region12
    $region11: #{fcn_forward.11} parent=5 // pred_region
      %s133 = ssub.s32 %s9, 1
      // Predicated region
      $region13: #{fcn_forward.11} parent=11 // pred_check
        %p134 = pneg %p70
      $region14: #{fcn_forward.11} parent=11 // pred_check_branch
        %136 = sbr.rel (%p134) target = $region16
      $region15: #{fcn_forward.11} parent=11 // pred_region
        _
      $region16: #{fcn_forward.11} parent=11 // pred_fallthru
        _
      // Predicated region
      $region17: #{fcn_forward.11} parent=11 // pred_check
        %p137 = pneg %p91
      $region18: #{fcn_forward.11} parent=11 // pred_check_branch
        %139 = sbr.rel (%p137) target = $region20
      $region19: #{fcn_forward.11} parent=11 // pred_region
        _
      $region20: #{fcn_forward.11} parent=11 // pred_fallthru
        _
    $region12: #{fcn_forward.11} parent=5 // pred_fallthru
      _
    %p140 = scmp.lt.s32.totalorder %s9, 2
    // Predicated region
    $region21: #{fcn_forward.11} parent=5 // pred_check
      %p141 = pneg %p140
    $region22: #{fcn_forward.11} parent=5 // pred_check_branch
      %143 = sbr.rel (%p141) target = $region24
    $region23: #{fcn_forward.11} parent=5 // pred_region
      // Predicated region
      $region25: #{fcn_forward.11} parent=23 // pred_check
        %p144 = pneg %p43
      $region26: #{fcn_forward.11} parent=23 // pred_check_branch
        %146 = sbr.rel (%p144) target = $region28
      $region27: #{fcn_forward.11} parent=23 // pred_region
        %p147 = scmp.lt.s32.totalorder %s16, 1
        %s148 = scalar_select %p147, %s16, 1
        %p149 = scmp.lt.s32.totalorder %s17, 0
        %s150 = scalar_select %p149, %s17, 0
        %s151 = smul.addr %s148, 32
        %s152 = sadd.s32 %s150, %s151
        %s153 = smul.addr %s152, 4
        %s154 = scalar_lea.vmem %s0, %s153
      $region28: #{fcn_forward.11} parent=23 // pred_fallthru
        _
    $region24: #{fcn_forward.11} parent=5 // pred_fallthru
      _
    %p155 = scmp.le.s32.totalorder 1, %s9
    %p156 = scmp.lt.s32.totalorder %s9, 3
    %p157 = pnand %p155, %p156
    %p158 = pneg %p157
    // Predicated region
    $region29: #{fcn_forward.11} parent=5 // pred_check
      _
    $region30: #{fcn_forward.11} parent=5 // pred_check_branch
      %160 = sbr.rel (%p157) target = $region32
    $region31: #{fcn_forward.11} parent=5 // pred_region
      %s161 = ssub.s32 %s9, 1
      %p162 = scmp.lt.s32.totalorder %s18, 1
      %s163 = scalar_select %p162, %s18, 1
      %p164 = scmp.lt.s32.totalorder %s19, 0
      %s165 = scalar_select %p164, %s19, 0
      %s166 = smul.addr %s163, 32
      %s167 = sadd.s32 %s165, %s166
      %s168 = smul.addr %s167, 4
      %s169 = scalar_lea.vmem %s0, %s168
      %p170 = pneg %p49
      %p171 = pneg %p46
      %p172 = pneg %p70
      %p173 = pneg %p67
      %p174 = pneg %p91
      %p175 = pneg %p88
      %p176 = pneg %p119
      %p177 = pneg %p116
      %p178 = scmp.lt.s32.totalorder %s18, 1
      %s179 = scalar_select %p178, %s18, 1
      %p180 = scmp.lt.s32.totalorder %s19, 0
      %s181 = scalar_select %p180, %s19, 0
      %s182 = sadd.s32 %s181, %s179
      %s183 = smul.addr %s182, 4
      %s184 = scalar_lea.vmem %s3, %s183
      %p185 = scmp.lt.s32.totalorder %s18, 1
      %s186 = scalar_select %p185, %s18, 1
      %p187 = scmp.lt.s32.totalorder %s19, 0
      %s188 = scalar_select %p187, %s19, 0
      %s189 = smul.addr %s186, 32
      %s190 = sadd.s32 %s188, %s189
      %s191 = smul.addr %s190, 4
      %s192 = scalar_lea.vmem %s0, %s191
      %p193 = scmp.lt.s32.totalorder %s18, 1
      %s194 = scalar_select %p193, %s18, 1
      %p195 = scmp.lt.s32.totalorder %s19, 0
      %s196 = scalar_select %p195, %s19, 0
      %s197 = sadd.s32 %s196, %s194
      %s198 = smul.addr %s197, 4
      %s199 = scalar_lea.vmem %s3, %s198
      %v201 = vld [vmem:[%s1] sm:$0xff]
      %v202 = vld [vmem:[%s192] sm:$0xf]
      %v203 = vld [vmem:[%s192 + $0x4] sm:$0xf]
      %v204 = vld [vmem:[%s192 + $0x8] sm:$0xf]
      %v205 = vld [vmem:[%s192 + $0xc] sm:$0xf]
      %v206 = vld [vmem:[%s192 + $0x10] sm:$0xf]
      %v207 = vld [vmem:[%s192 + $0x14] sm:$0xf]
      %v208 = vld [vmem:[%s192 + $0x18] sm:$0xf]
      %v209 = vld [vmem:[%s192 + $0x1c] sm:$0xf]
      %v210 = vld [vmem:[%s192 + $0x20] sm:$0xf]
      %v211 = vld [vmem:[%s192 + $0x24] sm:$0xf]
      %v212 = vld [vmem:[%s192 + $0x28] sm:$0xf]
      %v213 = vld [vmem:[%s192 + $0x2c] sm:$0xf]
      %v214 = vld [vmem:[%s192 + $0x30] sm:$0xf]
      %v215 = vld [vmem:[%s192 + $0x34] sm:$0xf]
      %v216 = vld [vmem:[%s192 + $0x38] sm:$0xf]
      %v217 = vld [vmem:[%s192 + $0x3c] sm:$0xf]
      %v218 = vld [vmem:[%s192 + $0x40] sm:$0xf]
      %v219 = vld [vmem:[%s192 + $0x44] sm:$0xf]
      %v220 = vld [vmem:[%s192 + $0x48] sm:$0xf]
      %v221 = vld [vmem:[%s192 + $0x4c] sm:$0xf]
      %v222 = vld [vmem:[%s192 + $0x50] sm:$0xf]
      %v223 = vld [vmem:[%s192 + $0x54] sm:$0xf]
      %v224 = vld [vmem:[%s192 + $0x58] sm:$0xf]
      %v225 = vld [vmem:[%s192 + $0x5c] sm:$0xf]
      %v226 = vld [vmem:[%s192 + $0x60] sm:$0xf]
      %v227 = vld [vmem:[%s192 + $0x64] sm:$0xf]
      %v228 = vld [vmem:[%s192 + $0x68] sm:$0xf]
      %v229 = vld [vmem:[%s192 + $0x6c] sm:$0xf]
      %v230 = vld [vmem:[%s192 + $0x70] sm:$0xf]
      %v231 = vld [vmem:[%s192 + $0x74] sm:$0xf]
      %v232 = vld [vmem:[%s192 + $0x78] sm:$0xf]
      %v233 = vld [vmem:[%s192 + $0x7c] sm:$0xf]
      %v234 = vld [vmem:[%s2] sm:$0xff]
      %236 = vset.pattern.permute.xlu0 0
      %237 = vperm.xlu0 %236, %v234
      %v238 = vpop.permute.xlu0 %237
      %v241 = vunpack.c.l.b16 %v201
      %v242 = vunpack.c.h.b16 %v201
      %v243 = vpack.c.b16 %v241, %v241
      %v244 = vpack.c.b16 %v242, %v242
      %v279 = vunpack.c.l.b16 %v202
      %v280 = vunpack.c.l.b16 %v203
      %v281 = vunpack.c.l.b16 %v204
      %v282 = vunpack.c.l.b16 %v205
      %v283 = vunpack.c.l.b16 %v206
      %v284 = vunpack.c.l.b16 %v207
      %v285 = vunpack.c.l.b16 %v208
      %v286 = vunpack.c.l.b16 %v209
      %v287 = vunpack.c.l.b16 %v210
      %v288 = vunpack.c.l.b16 %v211
      %v289 = vunpack.c.l.b16 %v212
      %v290 = vunpack.c.l.b16 %v213
      %v291 = vunpack.c.l.b16 %v214
      %v292 = vunpack.c.l.b16 %v215
      %v293 = vunpack.c.l.b16 %v216
      %v294 = vunpack.c.l.b16 %v217
      %v295 = vunpack.c.l.b16 %v218
      %v296 = vunpack.c.l.b16 %v219
      %v297 = vunpack.c.l.b16 %v220
      %v298 = vunpack.c.l.b16 %v221
      %v299 = vunpack.c.l.b16 %v222
      %v300 = vunpack.c.l.b16 %v223
      %v301 = vunpack.c.l.b16 %v224
      %v302 = vunpack.c.l.b16 %v225
      %v303 = vunpack.c.l.b16 %v226
      %v304 = vunpack.c.l.b16 %v227
      %v305 = vunpack.c.l.b16 %v228
      %v306 = vunpack.c.l.b16 %v229
      %v307 = vunpack.c.l.b16 %v230
      %v308 = vunpack.c.l.b16 %v231
      %v309 = vunpack.c.l.b16 %v232
      %v310 = vunpack.c.l.b16 %v233
      %v311 = vpack.c.b16 %v280, %v279
      %v312 = vpack.c.b16 %v282, %v281
      %v313 = vpack.c.b16 %v284, %v283
      %v314 = vpack.c.b16 %v286, %v285
      %v315 = vpack.c.b16 %v288, %v287
      %v316 = vpack.c.b16 %v290, %v289
      %v317 = vpack.c.b16 %v292, %v291
      %v318 = vpack.c.b16 %v294, %v293
      %v319 = vpack.c.b16 %v296, %v295
      %v320 = vpack.c.b16 %v298, %v297
      %v321 = vpack.c.b16 %v300, %v299
      %v322 = vpack.c.b16 %v302, %v301
      %v323 = vpack.c.b16 %v304, %v303
      %v324 = vpack.c.b16 %v306, %v305
      %v325 = vpack.c.b16 %v308, %v307
      %v326 = vpack.c.b16 %v310, %v309
      %343 = vmatprep.subr.bf16.mxu0 0
      %344 = vmatpush1.bf16.msra.mxu0 %v318
      %345 = vmatprep.subr.bf16.mxu0 0
      %346 = vmatpush1.bf16.msra.mxu0 %v317
      %347 = vmatprep.subr.bf16.mxu0 0
      %348 = vmatpush1.bf16.msra.mxu0 %v316
      %349 = vmatprep.subr.bf16.mxu0 0
      %350 = vmatpush1.bf16.msra.mxu0 %v315
      %351 = vmatprep.subr.bf16.mxu0 0
      %352 = vmatpush1.bf16.msra.mxu0 %v314
      %353 = vmatprep.subr.bf16.mxu0 0
      %354 = vmatpush1.bf16.msra.mxu0 %v313
      %355 = vmatprep.subr.bf16.mxu0 0
      %356 = vmatpush1.bf16.msra.mxu0 %v312
      %357 = vmatprep.subr.bf16.mxu0 0
      %358 = vmatpush1.bf16.msra.mxu0 %v311
      %359 = vmatprep.subr.bf16.mxu0 0
      %360 = vmatpush2.bf16.msra.mxu0 %v326
      %361 = vmatprep.subr.bf16.mxu0 0
      %362 = vmatpush2.bf16.msra.mxu0 %v325
      %363 = vmatprep.subr.bf16.mxu0 0
      %364 = vmatpush2.bf16.msra.mxu0 %v324
      %365 = vmatprep.subr.bf16.mxu0 0
      %366 = vmatpush2.bf16.msra.mxu0 %v323
      %367 = vmatprep.subr.bf16.mxu0 0
      %368 = vmatpush2.bf16.msra.mxu0 %v322
      %369 = vmatprep.subr.bf16.mxu0 0
      %370 = vmatpush2.bf16.msra.mxu0 %v321
      %371 = vmatprep.subr.bf16.mxu0 0
      %372 = vmatpush2.bf16.msra.mxu0 %v320
      %373 = vmatprep.subr.bf16.mxu0 0
      %374 = vmatpush2.bf16.msra.mxu0 %v319
      %375 = vmatprep.mubr.bf16.mxu0 %v244
      %376 = vmatmul.mubr.bf16.gmra.mxu0 %v243
      %v377 = vpop.f32.mrf.mxu0
      %v378 = vadd.f32 %v238, %v377
      %v379 = vpop.f32.mrf.mxu0
      %v380 = vpop.f32.mrf.mxu0
      %v381 = vpop.f32.mrf.mxu0
      %382 = vdwg.mxu0
      %v383 = vpack.c.bf16 %v378, %v378
      %vm384 = vcmask 125952
      %385 = vst.msk [vmem:[%s199] sm:$0xf] %vm384, %v383
      %p386 = scmp.lt.s32.totalorder %s18, 1
      %s387 = scalar_select %p386, %s18, 1
      %p388 = scmp.lt.s32.totalorder %s19, 0
      %s389 = scalar_select %p388, %s19, 0
      %s390 = sadd.s32 %s389, %s387
      %s391 = smul.addr %s390, 4
      %s392 = scalar_lea.vmem %s3, %s391
      // Predicated region
      $region33: #{fcn_forward.11} parent=31 // pred_check
        %p393 = pneg %p116
      $region34: #{fcn_forward.11} parent=31 // pred_check_branch
        %395 = sbr.rel (%p393) target = $region36
      $region35: #{fcn_forward.11} parent=31 // pred_region
        _
      $region36: #{fcn_forward.11} parent=31 // pred_fallthru
        _
    $region32: #{fcn_forward.11} parent=5 // pred_fallthru
      _
    %p396 = scmp.le.s32.totalorder 2, %s9
    // Predicated region
    $region37: #{fcn_forward.11} parent=5 // pred_check
      %p397 = pneg %p396
    $region38: #{fcn_forward.11} parent=5 // pred_check_branch
      %399 = sbr.rel (%p397) target = $region40
    $region39: #{fcn_forward.11} parent=5 // pred_region
      %s400 = ssub.s32 %s9, 2
      // Predicated region
      $region41: #{fcn_forward.11} parent=39 // pred_check
        %p401 = pneg %p122
      $region42: #{fcn_forward.11} parent=39 // pred_check_branch
        %403 = sbr.rel (%p401) target = $region44
      $region43: #{fcn_forward.11} parent=39 // pred_region
        %p404 = scmp.lt.s32.totalorder %s20, 1
        %s405 = scalar_select %p404, %s20, 1
        %p406 = scmp.lt.s32.totalorder %s21, 0
        %s407 = scalar_select %p406, %s21, 0
        %s408 = sadd.s32 %s407, %s405
        %s409 = smul.addr %s408, 4
        %s410 = scalar_lea.vmem %s3, %s409
      $region44: #{fcn_forward.11} parent=39 // pred_fallthru
        _
    $region40: #{fcn_forward.11} parent=5 // pred_fallthru
      _
  $region6: #{fcn_forward.11} parent=0 // loop_footer
    %s13 = sadd.s32 1, %s9
  $region7: #{fcn_forward.11} parent=0 // loop_footer_branch
    %8 = sbr.rel target = $region3
  $region8: #{fcn_forward.11} parent=0 // loop_exit
    _

// kernel: fcn_forward.12
$region0: #{fcn_forward.12}
  #allocation0 [shape = 'u32[]', space=smem, size = 0x4, offset = 0x4, fixed_abs, tag = 'smem constant byte address 0x4 - core index']
  #allocation1 [shape = 'u32[144,128]{1,0:T(1,128)}', space=vmem, size = 0x12000, scoped, tag = 'internal scratch']
  %s0 = inlined_call_operand.vmem [shape: bf16[2,128,64], index: 0, kind: input, shape index: {}]
  %s1 = inlined_call_operand.vmem [shape: bf16[8,128], index: 1, kind: input, shape index: {}]
  %s2 = inlined_call_operand.vmem [shape: f32[8,1], index: 2, kind: input, shape index: {}]
  %s3 = inlined_call_operand.vmem [shape: bf16[2,8,64], index: 3, kind: output, shape index: {}]
  %s4 = sld [smem:[#allocation0]]
  $region45: #{fcn_forward.12} parent=0
    _
  %s6 = ssub.s32 1, %s4
  %s7 = scalar_select 0, %s6, %s4
  loop: start=0, step=1, limit=4
  $region2: #{fcn_forward.12} parent=0 // loop_pre_header
    _
  $region3: #{fcn_forward.12} parent=0 // loop_header
    %s9 = sphi 0, %s13
    %p10 = scmp.ge.s32.totalorder %s9, 4
    %s16 = sphi 0, %s28
    %s17 = sphi 0, %s24
    %s18 = sphi 0, %s16
    %s19 = sphi 0, %s17
    %s20 = sphi 0, %s18
    %s21 = sphi 0, %s19
    %s33 = sphi 0, %s35
    %s36 = sphi 0, %s33
    %s37 = sphi 0, %s36
    %s53 = sphi 0, %s37
    %s57 = sphi 0, %s57
    %s59 = sphi 0, %s57
    %s60 = sphi 0, %s59
    %s74 = sphi 0, %s60
    %s78 = sphi 0, %s78
    %s80 = sphi 0, %s78
    %s81 = sphi 0, %s80
    %s95 = sphi 0, %s81
    %s103 = sphi 0, %s105
    %s106 = sphi 0, %s103
    %s107 = sphi 0, %s106
    %s123 = sphi 0, %s107
  $region4: #{fcn_forward.12} parent=0 // loop_header_branch
    %12 = sbr.rel (%p10) target = $region8
  $region5: #{fcn_forward.12} parent=0 // loop_body
    %s14 = ssub.s32 %s9, 1
    %s15 = ssub.s32 %s9, 2
    %s22 = sadd.s32 1, %s17
    %p23 = scmp.ge.s32.totalorder %s22, 1
    %s24 = scalar_select %p23, 0, %s22
    %s25 = sadd.s32 1, %s16
    %s26 = scalar_select %p23, %s25, %s16
    %p27 = scmp.ge.s32.totalorder %s26, 2
    %s28 = scalar_select %p27, 0, %s26
    %s29 = ssub.s32 %s16, %s28
    %s30 = ssub.s32 %s17, %s24
    %s31 = sor.u32 %s29, %s30
    %p32 = scmp.eq.s32.totalorder %s31, 0
    %s34 = sadd.s32 %s33, 1
    %s35 = scalar_select %p32, %s33, %s34
    %p38 = pneg %p32
    %p39 = scmp.eq.s32.totalorder %s9, 1
    %p40 = por %p38, %p39
    %p41 = scmp.ne.s32.totalorder %s33, %s36
    %p42 = scmp.eq.s32.totalorder %s9, 0
    %p43 = por %p41, %p42
    %p44 = scmp.ne.s32.totalorder %s33, %s36
    %p45 = scmp.eq.s32.totalorder %s14, 1
    %p46 = por %p44, %p45
    %p47 = scmp.ne.s32.totalorder %s36, %s37
    %p48 = scmp.eq.s32.totalorder %s14, 0
    %p49 = por %p47, %p48
    %p50 = scmp.ne.s32.totalorder %s36, %s37
    %p51 = scmp.eq.s32.totalorder %s15, 1
    %p52 = por %p50, %p51
    %p54 = scmp.ne.s32.totalorder %s37, %s53
    %p55 = scmp.eq.s32.totalorder %s15, 0
    %p56 = por %p54, %p55
    %s58 = sadd.s32 %s57, 1
    %p61 = scmp.eq.s32.totalorder %s9, 1
    %p62 = scmp.ne.s32.totalorder %s57, %s59
    %p63 = scmp.eq.s32.totalorder %s9, 0
    %p64 = por %p62, %p63
    %p65 = scmp.ne.s32.totalorder %s57, %s59
    %p66 = scmp.eq.s32.totalorder %s14, 1
    %p67 = por %p65, %p66
    %p68 = scmp.ne.s32.totalorder %s59, %s60
    %p69 = scmp.eq.s32.totalorder %s14, 0
    %p70 = por %p68, %p69
    %p71 = scmp.ne.s32.totalorder %s59, %s60
    %p72 = scmp.eq.s32.totalorder %s15, 1
    %p73 = por %p71, %p72
    %p75 = scmp.ne.s32.totalorder %s60, %s74
    %p76 = scmp.eq.s32.totalorder %s15, 0
    %p77 = por %p75, %p76
    %s79 = sadd.s32 %s78, 1
    %p82 = scmp.eq.s32.totalorder %s9, 1
    %p83 = scmp.ne.s32.totalorder %s78, %s80
    %p84 = scmp.eq.s32.totalorder %s9, 0
    %p85 = por %p83, %p84
    %p86 = scmp.ne.s32.totalorder %s78, %s80
    %p87 = scmp.eq.s32.totalorder %s14, 1
    %p88 = por %p86, %p87
    %p89 = scmp.ne.s32.totalorder %s80, %s81
    %p90 = scmp.eq.s32.totalorder %s14, 0
    %p91 = por %p89, %p90
    %p92 = scmp.ne.s32.totalorder %s80, %s81
    %p93 = scmp.eq.s32.totalorder %s15, 1
    %p94 = por %p92, %p93
    %p96 = scmp.ne.s32.totalorder %s81, %s95
    %p97 = scmp.eq.s32.totalorder %s15, 0
    %p98 = por %p96, %p97
    %s99 = ssub.s32 %s16, %s28
    %s100 = ssub.s32 %s17, %s24
    %s101 = sor.u32 %s99, %s100
    %p102 = scmp.eq.s32.totalorder %s101, 0
    %s104 = sadd.s32 %s103, 1
    %s105 = scalar_select %p102, %s103, %s104
    %p108 = pneg %p102
    %p109 = scmp.eq.s32.totalorder %s9, 1
    %p110 = por %p108, %p109
    %p111 = scmp.ne.s32.totalorder %s103, %s106
    %p112 = scmp.eq.s32.totalorder %s9, 0
    %p113 = por %p111, %p112
    %p114 = scmp.ne.s32.totalorder %s103, %s106
    %p115 = scmp.eq.s32.totalorder %s14, 1
    %p116 = por %p114, %p115
    %p117 = scmp.ne.s32.totalorder %s106, %s107
    %p118 = scmp.eq.s32.totalorder %s14, 0
    %p119 = por %p117, %p118
    %p120 = scmp.ne.s32.totalorder %s106, %s107
    %p121 = scmp.eq.s32.totalorder %s15, 1
    %p122 = por %p120, %p121
    %p124 = scmp.ne.s32.totalorder %s107, %s123
    %p125 = scmp.eq.s32.totalorder %s15, 0
    %p126 = por %p124, %p125
    %p127 = scmp.le.s32.totalorder 1, %s9
    %p128 = scmp.lt.s32.totalorder %s9, 3
    %p129 = pnand %p127, %p128
    %p130 = pneg %p129
    // Predicated region
    $region9: #{fcn_forward.12} parent=5 // pred_check
      _
    $region10: #{fcn_forward.12} parent=5 // pred_check_branch
      %132 = sbr.rel (%p129) target = $region12
    $region11: #{fcn_forward.12} parent=5 // pred_region
      %s133 = ssub.s32 %s9, 1
      // Predicated region
      $region13: #{fcn_forward.12} parent=11 // pred_check
        %p134 = pneg %p70
      $region14: #{fcn_forward.12} parent=11 // pred_check_branch
        %136 = sbr.rel (%p134) target = $region16
      $region15: #{fcn_forward.12} parent=11 // pred_region
        _
      $region16: #{fcn_forward.12} parent=11 // pred_fallthru
        _
      // Predicated region
      $region17: #{fcn_forward.12} parent=11 // pred_check
        %p137 = pneg %p91
      $region18: #{fcn_forward.12} parent=11 // pred_check_branch
        %139 = sbr.rel (%p137) target = $region20
      $region19: #{fcn_forward.12} parent=11 // pred_region
        _
      $region20: #{fcn_forward.12} parent=11 // pred_fallthru
        _
    $region12: #{fcn_forward.12} parent=5 // pred_fallthru
      _
    %p140 = scmp.lt.s32.totalorder %s9, 2
    // Predicated region
    $region21: #{fcn_forward.12} parent=5 // pred_check
      %p141 = pneg %p140
    $region22: #{fcn_forward.12} parent=5 // pred_check_branch
      %143 = sbr.rel (%p141) target = $region24
    $region23: #{fcn_forward.12} parent=5 // pred_region
      // Predicated region
      $region25: #{fcn_forward.12} parent=23 // pred_check
        %p144 = pneg %p43
      $region26: #{fcn_forward.12} parent=23 // pred_check_branch
        %146 = sbr.rel (%p144) target = $region28
      $region27: #{fcn_forward.12} parent=23 // pred_region
        %p147 = scmp.lt.s32.totalorder %s16, 1
        %s148 = scalar_select %p147, %s16, 1
        %p149 = scmp.lt.s32.totalorder %s17, 0
        %s150 = scalar_select %p149, %s17, 0
        %s151 = smul.addr %s148, 16
        %s152 = sadd.s32 %s150, %s151
        %s153 = smul.addr %s152, 4
        %s154 = scalar_lea.vmem %s0, %s153
      $region28: #{fcn_forward.12} parent=23 // pred_fallthru
        _
    $region24: #{fcn_forward.12} parent=5 // pred_fallthru
      _
    %p155 = scmp.le.s32.totalorder 1, %s9
    %p156 = scmp.lt.s32.totalorder %s9, 3
    %p157 = pnand %p155, %p156
    %p158 = pneg %p157
    // Predicated region
    $region29: #{fcn_forward.12} parent=5 // pred_check
      _
    $region30: #{fcn_forward.12} parent=5 // pred_check_branch
      %160 = sbr.rel (%p157) target = $region32
    $region31: #{fcn_forward.12} parent=5 // pred_region
      %s161 = ssub.s32 %s9, 1
      %p162 = scmp.lt.s32.totalorder %s18, 1
      %s163 = scalar_select %p162, %s18, 1
      %p164 = scmp.lt.s32.totalorder %s19, 0
      %s165 = scalar_select %p164, %s19, 0
      %s166 = smul.addr %s163, 16
      %s167 = sadd.s32 %s165, %s166
      %s168 = smul.addr %s167, 4
      %s169 = scalar_lea.vmem %s0, %s168
      %p170 = pneg %p49
      %p171 = pneg %p46
      %p172 = pneg %p70
      %p173 = pneg %p67
      %p174 = pneg %p91
      %p175 = pneg %p88
      %p176 = pneg %p119
      %p177 = pneg %p116
      %p178 = scmp.lt.s32.totalorder %s18, 1
      %s179 = scalar_select %p178, %s18, 1
      %p180 = scmp.lt.s32.totalorder %s19, 0
      %s181 = scalar_select %p180, %s19, 0
      %s182 = sadd.s32 %s181, %s179
      %s183 = smul.addr %s182, 4
      %s184 = scalar_lea.vmem %s3, %s183
      %p185 = scmp.lt.s32.totalorder %s18, 1
      %s186 = scalar_select %p185, %s18, 1
      %p187 = scmp.lt.s32.totalorder %s19, 0
      %s188 = scalar_select %p187, %s19, 0
      %s189 = smul.addr %s186, 16
      %s190 = sadd.s32 %s188, %s189
      %s191 = smul.addr %s190, 4
      %s192 = scalar_lea.vmem %s0, %s191
      %p193 = scmp.lt.s32.totalorder %s18, 1
      %s194 = scalar_select %p193, %s18, 1
      %p195 = scmp.lt.s32.totalorder %s19, 0
      %s196 = scalar_select %p195, %s19, 0
      %s197 = sadd.s32 %s196, %s194
      %s198 = smul.addr %s197, 4
      %s199 = scalar_lea.vmem %s3, %s198
      %v201 = vld [vmem:[%s1] sm:$0xf]
      %v202 = vld [vmem:[%s192] sm:$0xf]
      %v203 = vld [vmem:[%s192 + $0x4] sm:$0xf]
      %v204 = vld [vmem:[%s192 + $0x8] sm:$0xf]
      %v205 = vld [vmem:[%s192 + $0xc] sm:$0xf]
      %v206 = vld [vmem:[%s192 + $0x10] sm:$0xf]
      %v207 = vld [vmem:[%s192 + $0x14] sm:$0xf]
      %v208 = vld [vmem:[%s192 + $0x18] sm:$0xf]
      %v209 = vld [vmem:[%s192 + $0x1c] sm:$0xf]
      %v210 = vld [vmem:[%s192 + $0x20] sm:$0xf]
      %v211 = vld [vmem:[%s192 + $0x24] sm:$0xf]
      %v212 = vld [vmem:[%s192 + $0x28] sm:$0xf]
      %v213 = vld [vmem:[%s192 + $0x2c] sm:$0xf]
      %v214 = vld [vmem:[%s192 + $0x30] sm:$0xf]
      %v215 = vld [vmem:[%s192 + $0x34] sm:$0xf]
      %v216 = vld [vmem:[%s192 + $0x38] sm:$0xf]
      %v217 = vld [vmem:[%s192 + $0x3c] sm:$0xf]
      %v218 = vld [vmem:[%s2] sm:$0xff]
      %220 = vset.pattern.permute.xlu0 0
      %221 = vperm.xlu0 %220, %v218
      %v222 = vpop.permute.xlu0 %221
      %v240 = vunpack.c.l.b16 %v202
      %v241 = vunpack.c.l.b16 %v203
      %v242 = vunpack.c.l.b16 %v204
      %v243 = vunpack.c.l.b16 %v205
      %v244 = vunpack.c.l.b16 %v206
      %v245 = vunpack.c.l.b16 %v207
      %v246 = vunpack.c.l.b16 %v208
      %v247 = vunpack.c.l.b16 %v209
      %v248 = vunpack.c.l.b16 %v210
      %v249 = vunpack.c.l.b16 %v211
      %v250 = vunpack.c.l.b16 %v212
      %v251 = vunpack.c.l.b16 %v213
      %v252 = vunpack.c.l.b16 %v214
      %v253 = vunpack.c.l.b16 %v215
      %v254 = vunpack.c.l.b16 %v216
      %v255 = vunpack.c.l.b16 %v217
      %v256 = vpack.c.b16 %v241, %v240
      %v257 = vpack.c.b16 %v243, %v242
      %v258 = vpack.c.b16 %v245, %v244
      %v259 = vpack.c.b16 %v247, %v246
      %v260 = vpack.c.b16 %v249, %v248
      %v261 = vpack.c.b16 %v251, %v250
      %v262 = vpack.c.b16 %v253, %v252
      %v263 = vpack.c.b16 %v255, %v254
      %272 = vmatprep.subr.bf16.mxu0 0
      %273 = vmatpush1.bf16.msra.mxu0 %v263
      %274 = vmatprep.subr.bf16.mxu0 0
      %275 = vmatpush1.bf16.msra.mxu0 %v262
      %276 = vmatprep.subr.bf16.mxu0 0
      %277 = vmatpush1.bf16.msra.mxu0 %v261
      %278 = vmatprep.subr.bf16.mxu0 0
      %279 = vmatpush1.bf16.msra.mxu0 %v260
      %280 = vmatprep.subr.bf16.mxu0 0
      %281 = vmatpush1.bf16.msra.mxu0 %v259
      %282 = vmatprep.subr.bf16.mxu0 0
      %283 = vmatpush1.bf16.msra.mxu0 %v258
      %284 = vmatprep.subr.bf16.mxu0 0
      %285 = vmatpush1.bf16.msra.mxu0 %v257
      %286 = vmatprep.subr.bf16.mxu0 0
      %287 = vmatpush1.bf16.msra.mxu0 %v256
      %288 = vmatprep.subr.bf16.mxu0 0
      %289 = vmatpush2.bf16.msra.mxu0 0
      %290 = vmatprep.subr.bf16.mxu0 0
      %291 = vmatpush2.bf16.msra.mxu0 0
      %292 = vmatprep.subr.bf16.mxu0 0
      %293 = vmatpush2.bf16.msra.mxu0 0
      %294 = vmatprep.subr.bf16.mxu0 0
      %295 = vmatpush2.bf16.msra.mxu0 0
      %296 = vmatprep.subr.bf16.mxu0 0
      %297 = vmatpush2.bf16.msra.mxu0 0
      %298 = vmatprep.subr.bf16.mxu0 0
      %299 = vmatpush2.bf16.msra.mxu0 0
      %300 = vmatprep.subr.bf16.mxu0 0
      %301 = vmatpush2.bf16.msra.mxu0 0
      %302 = vmatprep.subr.bf16.mxu0 0
      %303 = vmatpush2.bf16.msra.mxu0 0
      %304 = vmatprep.mubr.bf16.mxu0 0
      %305 = vmatmul.mubr.bf16.gmra.mxu0 %v201
      %v306 = vpop.f32.mrf.mxu0
      %v307 = vadd.f32 %v222, %v306
      %v308 = vpop.f32.mrf.mxu0
      %v309 = vpop.f32.mrf.mxu0
      %v310 = vpop.f32.mrf.mxu0
      %311 = vdwg.mxu0
      %v312 = vpack.c.bf16 %v307, %v307
      %vm313 = vcmask 519168
      %314 = vst.msk [vmem:[%s199] sm:$0xf] %vm313, %v312
      %p315 = scmp.lt.s32.totalorder %s18, 1
      %s316 = scalar_select %p315, %s18, 1
      %p317 = scmp.lt.s32.totalorder %s19, 0
      %s318 = scalar_select %p317, %s19, 0
      %s319 = sadd.s32 %s318, %s316
      %s320 = smul.addr %s319, 4
      %s321 = scalar_lea.vmem %s3, %s320
      // Predicated region
      $region33: #{fcn_forward.12} parent=31 // pred_check
        %p322 = pneg %p116
      $region34: #{fcn_forward.12} parent=31 // pred_check_branch
        %324 = sbr.rel (%p322) target = $region36
      $region35: #{fcn_forward.12} parent=31 // pred_region
        _
      $region36: #{fcn_forward.12} parent=31 // pred_fallthru
        _
    $region32: #{fcn_forward.12} parent=5 // pred_fallthru
      _
    %p325 = scmp.le.s32.totalorder 2, %s9
    // Predicated region
    $region37: #{fcn_forward.12} parent=5 // pred_check
      %p326 = pneg %p325
    $region38: #{fcn_forward.12} parent=5 // pred_check_branch
      %328 = sbr.rel (%p326) target = $region40
    $region39: #{fcn_forward.12} parent=5 // pred_region
      %s329 = ssub.s32 %s9, 2
      // Predicated region
      $region41: #{fcn_forward.12} parent=39 // pred_check
        %p330 = pneg %p122
      $region42: #{fcn_forward.12} parent=39 // pred_check_branch
        %332 = sbr.rel (%p330) target = $region44
      $region43: #{fcn_forward.12} parent=39 // pred_region
        %p333 = scmp.lt.s32.totalorder %s20, 1
        %s334 = scalar_select %p333, %s20, 1
        %p335 = scmp.lt.s32.totalorder %s21, 0
        %s336 = scalar_select %p335, %s21, 0
        %s337 = sadd.s32 %s336, %s334
        %s338 = smul.addr %s337, 4
        %s339 = scalar_lea.vmem %s3, %s338
      $region44: #{fcn_forward.12} parent=39 // pred_fallthru
        _
    $region40: #{fcn_forward.12} parent=5 // pred_fallthru
      _
  $region6: #{fcn_forward.12} parent=0 // loop_footer
    %s13 = sadd.s32 1, %s9
  $region7: #{fcn_forward.12} parent=0 // loop_footer_branch
    %8 = sbr.rel target = $region3
  $region8: #{fcn_forward.12} parent=0 // loop_exit
    _

// kernel: fcn_forward.9
$region0: #{fcn_forward.9}
  #allocation0 [shape = 'u32[]', space=smem, size = 0x4, offset = 0x4, fixed_abs, tag = 'smem constant byte address 0x4 - core index']
  #allocation1 [shape = 'u32[144,128]{1,0:T(1,128)}', space=vmem, size = 0x12000, scoped, tag = 'internal scratch']
  %s0 = inlined_call_operand.vmem [shape: bf16[2,256,4], index: 0, kind: input, shape index: {}]
  %s1 = inlined_call_operand.vmem [shape: bf16[512,256], index: 1, kind: input, shape index: {}]
  %s2 = inlined_call_operand.vmem [shape: f32[512,1], index: 2, kind: input, shape index: {}]
  %s3 = inlined_call_operand.vmem [shape: bf16[2,512,4], index: 3, kind: output, shape index: {}]
  %s4 = sld [smem:[#allocation0]]
  $region45: #{fcn_forward.9} parent=0
    _
  %s6 = ssub.s32 1, %s4
  %s7 = scalar_select 0, %s6, %s4
  loop: start=0, step=1, limit=4
  $region2: #{fcn_forward.9} parent=0 // loop_pre_header
    _
  $region3: #{fcn_forward.9} parent=0 // loop_header
    %s9 = sphi 0, %s13
    %p10 = scmp.ge.s32.totalorder %s9, 4
    %s16 = sphi 0, %s28
    %s17 = sphi 0, %s24
    %s18 = sphi 0, %s16
    %s19 = sphi 0, %s17
    %s20 = sphi 0, %s18
    %s21 = sphi 0, %s19
    %s33 = sphi 0, %s35
    %s36 = sphi 0, %s33
    %s37 = sphi 0, %s36
    %s53 = sphi 0, %s37
    %s57 = sphi 0, %s57
    %s59 = sphi 0, %s57
    %s60 = sphi 0, %s59
    %s74 = sphi 0, %s60
    %s78 = sphi 0, %s78
    %s80 = sphi 0, %s78
    %s81 = sphi 0, %s80
    %s95 = sphi 0, %s81
    %s103 = sphi 0, %s105
    %s106 = sphi 0, %s103
    %s107 = sphi 0, %s106
    %s123 = sphi 0, %s107
  $region4: #{fcn_forward.9} parent=0 // loop_header_branch
    %12 = sbr.rel (%p10) target = $region8
  $region5: #{fcn_forward.9} parent=0 // loop_body
    %s14 = ssub.s32 %s9, 1
    %s15 = ssub.s32 %s9, 2
    %s22 = sadd.s32 1, %s17
    %p23 = scmp.ge.s32.totalorder %s22, 1
    %s24 = scalar_select %p23, 0, %s22
    %s25 = sadd.s32 1, %s16
    %s26 = scalar_select %p23, %s25, %s16
    %p27 = scmp.ge.s32.totalorder %s26, 2
    %s28 = scalar_select %p27, 0, %s26
    %s29 = ssub.s32 %s16, %s28
    %s30 = ssub.s32 %s17, %s24
    %s31 = sor.u32 %s29, %s30
    %p32 = scmp.eq.s32.totalorder %s31, 0
    %s34 = sadd.s32 %s33, 1
    %s35 = scalar_select %p32, %s33, %s34
    %p38 = pneg %p32
    %p39 = scmp.eq.s32.totalorder %s9, 1
    %p40 = por %p38, %p39
    %p41 = scmp.ne.s32.totalorder %s33, %s36
    %p42 = scmp.eq.s32.totalorder %s9, 0
    %p43 = por %p41, %p42
    %p44 = scmp.ne.s32.totalorder %s33, %s36
    %p45 = scmp.eq.s32.totalorder %s14, 1
    %p46 = por %p44, %p45
    %p47 = scmp.ne.s32.totalorder %s36, %s37
    %p48 = scmp.eq.s32.totalorder %s14, 0
    %p49 = por %p47, %p48
    %p50 = scmp.ne.s32.totalorder %s36, %s37
    %p51 = scmp.eq.s32.totalorder %s15, 1
    %p52 = por %p50, %p51
    %p54 = scmp.ne.s32.totalorder %s37, %s53
    %p55 = scmp.eq.s32.totalorder %s15, 0
    %p56 = por %p54, %p55
    %s58 = sadd.s32 %s57, 1
    %p61 = scmp.eq.s32.totalorder %s9, 1
    %p62 = scmp.ne.s32.totalorder %s57, %s59
    %p63 = scmp.eq.s32.totalorder %s9, 0
    %p64 = por %p62, %p63
    %p65 = scmp.ne.s32.totalorder %s57, %s59
    %p66 = scmp.eq.s32.totalorder %s14, 1
    %p67 = por %p65, %p66
    %p68 = scmp.ne.s32.totalorder %s59, %s60
    %p69 = scmp.eq.s32.totalorder %s14, 0
    %p70 = por %p68, %p69
    %p71 = scmp.ne.s32.totalorder %s59, %s60
    %p72 = scmp.eq.s32.totalorder %s15, 1
    %p73 = por %p71, %p72
    %p75 = scmp.ne.s32.totalorder %s60, %s74
    %p76 = scmp.eq.s32.totalorder %s15, 0
    %p77 = por %p75, %p76
    %s79 = sadd.s32 %s78, 1
    %p82 = scmp.eq.s32.totalorder %s9, 1
    %p83 = scmp.ne.s32.totalorder %s78, %s80
    %p84 = scmp.eq.s32.totalorder %s9, 0
    %p85 = por %p83, %p84
    %p86 = scmp.ne.s32.totalorder %s78, %s80
    %p87 = scmp.eq.s32.totalorder %s14, 1
    %p88 = por %p86, %p87
    %p89 = scmp.ne.s32.totalorder %s80, %s81
    %p90 = scmp.eq.s32.totalorder %s14, 0
    %p91 = por %p89, %p90
    %p92 = scmp.ne.s32.totalorder %s80, %s81
    %p93 = scmp.eq.s32.totalorder %s15, 1
    %p94 = por %p92, %p93
    %p96 = scmp.ne.s32.totalorder %s81, %s95
    %p97 = scmp.eq.s32.totalorder %s15, 0
    %p98 = por %p96, %p97
    %s99 = ssub.s32 %s16, %s28
    %s100 = ssub.s32 %s17, %s24
    %s101 = sor.u32 %s99, %s100
    %p102 = scmp.eq.s32.totalorder %s101, 0
    %s104 = sadd.s32 %s103, 1
    %s105 = scalar_select %p102, %s103, %s104
    %p108 = pneg %p102
    %p109 = scmp.eq.s32.totalorder %s9, 1
    %p110 = por %p108, %p109
    %p111 = scmp.ne.s32.totalorder %s103, %s106
    %p112 = scmp.eq.s32.totalorder %s9, 0
    %p113 = por %p111, %p112
    %p114 = scmp.ne.s32.totalorder %s103, %s106
    %p115 = scmp.eq.s32.totalorder %s14, 1
    %p116 = por %p114, %p115
    %p117 = scmp.ne.s32.totalorder %s106, %s107
    %p118 = scmp.eq.s32.totalorder %s14, 0
    %p119 = por %p117, %p118
    %p120 = scmp.ne.s32.totalorder %s106, %s107
    %p121 = scmp.eq.s32.totalorder %s15, 1
    %p122 = por %p120, %p121
    %p124 = scmp.ne.s32.totalorder %s107, %s123
    %p125 = scmp.eq.s32.totalorder %s15, 0
    %p126 = por %p124, %p125
    %p127 = scmp.le.s32.totalorder 1, %s9
    %p128 = scmp.lt.s32.totalorder %s9, 3
    %p129 = pnand %p127, %p128
    %p130 = pneg %p129
    // Predicated region
    $region9: #{fcn_forward.9} parent=5 // pred_check
      _
    $region10: #{fcn_forward.9} parent=5 // pred_check_branch
      %132 = sbr.rel (%p129) target = $region12
    $region11: #{fcn_forward.9} parent=5 // pred_region
      %s133 = ssub.s32 %s9, 1
      // Predicated region
      $region13: #{fcn_forward.9} parent=11 // pred_check
        %p134 = pneg %p70
      $region14: #{fcn_forward.9} parent=11 // pred_check_branch
        %136 = sbr.rel (%p134) target = $region16
      $region15: #{fcn_forward.9} parent=11 // pred_region
        _
      $region16: #{fcn_forward.9} parent=11 // pred_fallthru
        _
      // Predicated region
      $region17: #{fcn_forward.9} parent=11 // pred_check
        %p137 = pneg %p91
      $region18: #{fcn_forward.9} parent=11 // pred_check_branch
        %139 = sbr.rel (%p137) target = $region20
      $region19: #{fcn_forward.9} parent=11 // pred_region
        _
      $region20: #{fcn_forward.9} parent=11 // pred_fallthru
        _
    $region12: #{fcn_forward.9} parent=5 // pred_fallthru
      _
    %p140 = scmp.lt.s32.totalorder %s9, 2
    // Predicated region
    $region21: #{fcn_forward.9} parent=5 // pred_check
      %p141 = pneg %p140
    $region22: #{fcn_forward.9} parent=5 // pred_check_branch
      %143 = sbr.rel (%p141) target = $region24
    $region23: #{fcn_forward.9} parent=5 // pred_region
      // Predicated region
      $region25: #{fcn_forward.9} parent=23 // pred_check
        %p144 = pneg %p43
      $region26: #{fcn_forward.9} parent=23 // pred_check_branch
        %146 = sbr.rel (%p144) target = $region28
      $region27: #{fcn_forward.9} parent=23 // pred_region
        %p147 = scmp.lt.s32.totalorder %s16, 1
        %s148 = scalar_select %p147, %s16, 1
        %p149 = scmp.lt.s32.totalorder %s17, 0
        %s150 = scalar_select %p149, %s17, 0
        %s151 = smul.addr %s148, 32
        %s152 = sadd.s32 %s150, %s151
        %s153 = smul.addr %s152, 4
        %s154 = scalar_lea.vmem %s0, %s153
      $region28: #{fcn_forward.9} parent=23 // pred_fallthru
        _
    $region24: #{fcn_forward.9} parent=5 // pred_fallthru
      _
    %p155 = scmp.le.s32.totalorder 1, %s9
    %p156 = scmp.lt.s32.totalorder %s9, 3
    %p157 = pnand %p155, %p156
    %p158 = pneg %p157
    // Predicated region
    $region29: #{fcn_forward.9} parent=5 // pred_check
      _
    $region30: #{fcn_forward.9} parent=5 // pred_check_branch
      %160 = sbr.rel (%p157) target = $region32
    $region31: #{fcn_forward.9} parent=5 // pred_region
      %s161 = ssub.s32 %s9, 1
      %p162 = scmp.lt.s32.totalorder %s18, 1
      %s163 = scalar_select %p162, %s18, 1
      %p164 = scmp.lt.s32.totalorder %s19, 0
      %s165 = scalar_select %p164, %s19, 0
      %s166 = smul.addr %s163, 32
      %s167 = sadd.s32 %s165, %s166
      %s168 = smul.addr %s167, 4
      %s169 = scalar_lea.vmem %s0, %s168
      %p170 = pneg %p49
      %p171 = pneg %p46
      %p172 = pneg %p70
      %p173 = pneg %p67
      %p174 = pneg %p91
      %p175 = pneg %p88
      %p176 = pneg %p119
      %p177 = pneg %p116
      %p178 = scmp.lt.s32.totalorder %s18, 1
      %s179 = scalar_select %p178, %s18, 1
      %p180 = scmp.lt.s32.totalorder %s19, 0
      %s181 = scalar_select %p180, %s19, 0
      %s182 = smul.addr %s179, 64
      %s183 = sadd.s32 %s181, %s182
      %s184 = smul.addr %s183, 4
      %s185 = scalar_lea.vmem %s3, %s184
      %p186 = scmp.lt.s32.totalorder %s18, 1
      %s187 = scalar_select %p186, %s18, 1
      %p188 = scmp.lt.s32.totalorder %s19, 0
      %s189 = scalar_select %p188, %s19, 0
      %s190 = smul.addr %s187, 32
      %s191 = sadd.s32 %s189, %s190
      %s192 = smul.addr %s191, 4
      %s193 = scalar_lea.vmem %s0, %s192
      %p194 = scmp.lt.s32.totalorder %s18, 1
      %s195 = scalar_select %p194, %s18, 1
      %p196 = scmp.lt.s32.totalorder %s19, 0
      %s197 = scalar_select %p196, %s19, 0
      %s198 = smul.addr %s195, 64
      %s199 = sadd.s32 %s197, %s198
      %s200 = smul.addr %s199, 4
      %s201 = scalar_lea.vmem %s3, %s200
      %v203 = vld [vmem:[%s1] sm:$0xff]
      %v204 = vld [vmem:[%s1 + $0x8] sm:$0xff]
      %v205 = vld [vmem:[%s1 + $0x10] sm:$0xff]
      %v206 = vld [vmem:[%s1 + $0x18] sm:$0xff]
      %v207 = vld [vmem:[%s1 + $0x20] sm:$0xff]
      %v208 = vld [vmem:[%s1 + $0x28] sm:$0xff]
      %v209 = vld [vmem:[%s1 + $0x30] sm:$0xff]
      %v210 = vld [vmem:[%s1 + $0x38] sm:$0xff]
      %v211 = vld [vmem:[%s1 + $0x40] sm:$0xff]
      %v212 = vld [vmem:[%s1 + $0x48] sm:$0xff]
      %v213 = vld [vmem:[%s1 + $0x50] sm:$0xff]
      %v214 = vld [vmem:[%s1 + $0x58] sm:$0xff]
      %v215 = vld [vmem:[%s1 + $0x60] sm:$0xff]
      %v216 = vld [vmem:[%s1 + $0x68] sm:$0xff]
      %v217 = vld [vmem:[%s1 + $0x70] sm:$0xff]
      %v218 = vld [vmem:[%s1 + $0x78] sm:$0xff]
      %v219 = vld [vmem:[%s1 + $0x80] sm:$0xff]
      %v220 = vld [vmem:[%s1 + $0x88] sm:$0xff]
      %v221 = vld [vmem:[%s1 + $0x90] sm:$0xff]
      %v222 = vld [vmem:[%s1 + $0x98] sm:$0xff]
      %v223 = vld [vmem:[%s1 + $0xa0] sm:$0xff]
      %v224 = vld [vmem:[%s1 + $0xa8] sm:$0xff]
      %v225 = vld [vmem:[%s1 + $0xb0] sm:$0xff]
      %v226 = vld [vmem:[%s1 + $0xb8] sm:$0xff]
      %v227 = vld [vmem:[%s1 + $0xc0] sm:$0xff]
      %v228 = vld [vmem:[%s1 + $0xc8] sm:$0xff]
      %v229 = vld [vmem:[%s1 + $0xd0] sm:$0xff]
      %v230 = vld [vmem:[%s1 + $0xd8] sm:$0xff]
      %v231 = vld [vmem:[%s1 + $0xe0] sm:$0xff]
      %v232 = vld [vmem:[%s1 + $0xe8] sm:$0xff]
      %v233 = vld [vmem:[%s1 + $0xf0] sm:$0xff]
      %v234 = vld [vmem:[%s1 + $0xf8] sm:$0xff]
      %v235 = vld [vmem:[%s1 + $0x100] sm:$0xff]
      %v236 = vld [vmem:[%s1 + $0x108] sm:$0xff]
      %v237 = vld [vmem:[%s1 + $0x110] sm:$0xff]
      %v238 = vld [vmem:[%s1 + $0x118] sm:$0xff]
      %v239 = vld [vmem:[%s1 + $0x120] sm:$0xff]
      %v240 = vld [vmem:[%s1 + $0x128] sm:$0xff]
      %v241 = vld [vmem:[%s1 + $0x130] sm:$0xff]
      %v242 = vld [vmem:[%s1 + $0x138] sm:$0xff]
      %v243 = vld [vmem:[%s1 + $0x140] sm:$0xff]
      %v244 = vld [vmem:[%s1 + $0x148] sm:$0xff]
      %v245 = vld [vmem:[%s1 + $0x150] sm:$0xff]
      %v246 = vld [vmem:[%s1 + $0x158] sm:$0xff]
      %v247 = vld [vmem:[%s1 + $0x160] sm:$0xff]
      %v248 = vld [vmem:[%s1 + $0x168] sm:$0xff]
      %v249 = vld [vmem:[%s1 + $0x170] sm:$0xff]
      %v250 = vld [vmem:[%s1 + $0x178] sm:$0xff]
      %v251 = vld [vmem:[%s1 + $0x180] sm:$0xff]
      %v252 = vld [vmem:[%s1 + $0x188] sm:$0xff]
      %v253 = vld [vmem:[%s1 + $0x190] sm:$0xff]
      %v254 = vld [vmem:[%s1 + $0x198] sm:$0xff]
      %v255 = vld [vmem:[%s1 + $0x1a0] sm:$0xff]
      %v256 = vld [vmem:[%s1 + $0x1a8] sm:$0xff]
      %v257 = vld [vmem:[%s1 + $0x1b0] sm:$0xff]
      %v258 = vld [vmem:[%s1 + $0x1b8] sm:$0xff]
      %v259 = vld [vmem:[%s1 + $0x1c0] sm:$0xff]
      %v260 = vld [vmem:[%s1 + $0x1c8] sm:$0xff]
      %v261 = vld [vmem:[%s1 + $0x1d0] sm:$0xff]
      %v262 = vld [vmem:[%s1 + $0x1d8] sm:$0xff]
      %v263 = vld [vmem:[%s1 + $0x1e0] sm:$0xff]
      %v264 = vld [vmem:[%s1 + $0x1e8] sm:$0xff]
      %v265 = vld [vmem:[%s1 + $0x1f0] sm:$0xff]
      %v266 = vld [vmem:[%s1 + $0x1f8] sm:$0xff]
      %v267 = vld [vmem:[%s193] sm:$0xf]
      %v268 = vld [vmem:[%s193 + $0x4] sm:$0xf]
      %v269 = vld [vmem:[%s193 + $0x8] sm:$0xf]
      %v270 = vld [vmem:[%s193 + $0xc] sm:$0xf]
      %v271 = vld [vmem:[%s193 + $0x10] sm:$0xf]
      %v272 = vld [vmem:[%s193 + $0x14] sm:$0xf]
      %v273 = vld [vmem:[%s193 + $0x18] sm:$0xf]
      %v274 = vld [vmem:[%s193 + $0x1c] sm:$0xf]
      %v275 = vld [vmem:[%s193 + $0x20] sm:$0xf]
      %v276 = vld [vmem:[%s193 + $0x24] sm:$0xf]
      %v277 = vld [vmem:[%s193 + $0x28] sm:$0xf]
      %v278 = vld [vmem:[%s193 + $0x2c] sm:$0xf]
      %v279 = vld [vmem:[%s193 + $0x30] sm:$0xf]
      %v280 = vld [vmem:[%s193 + $0x34] sm:$0xf]
      %v281 = vld [vmem:[%s193 + $0x38] sm:$0xf]
      %v282 = vld [vmem:[%s193 + $0x3c] sm:$0xf]
      %v283 = vld [vmem:[%s193 + $0x40] sm:$0xf]
      %v284 = vld [vmem:[%s193 + $0x44] sm:$0xf]
      %v285 = vld [vmem:[%s193 + $0x48] sm:$0xf]
      %v286 = vld [vmem:[%s193 + $0x4c] sm:$0xf]
      %v287 = vld [vmem:[%s193 + $0x50] sm:$0xf]
      %v288 = vld [vmem:[%s193 + $0x54] sm:$0xf]
      %v289 = vld [vmem:[%s193 + $0x58] sm:$0xf]
      %v290 = vld [vmem:[%s193 + $0x5c] sm:$0xf]
      %v291 = vld [vmem:[%s193 + $0x60] sm:$0xf]
      %v292 = vld [vmem:[%s193 + $0x64] sm:$0xf]
      %v293 = vld [vmem:[%s193 + $0x68] sm:$0xf]
      %v294 = vld [vmem:[%s193 + $0x6c] sm:$0xf]
      %v295 = vld [vmem:[%s193 + $0x70] sm:$0xf]
      %v296 = vld [vmem:[%s193 + $0x74] sm:$0xf]
      %v297 = vld [vmem:[%s193 + $0x78] sm:$0xf]
      %v298 = vld [vmem:[%s193 + $0x7c] sm:$0xf]
      %v299 = vld [vmem:[%s2] sm:$0xff]
      %v300 = vld [vmem:[%s2 + $0x8] sm:$0xff]
      %v301 = vld [vmem:[%s2 + $0x10] sm:$0xff]
      %v302 = vld [vmem:[%s2 + $0x18] sm:$0xff]
      %v303 = vld [vmem:[%s2 + $0x20] sm:$0xff]
      %v304 = vld [vmem:[%s2 + $0x28] sm:$0xff]
      %v305 = vld [vmem:[%s2 + $0x30] sm:$0xff]
      %v306 = vld [vmem:[%s2 + $0x38] sm:$0xff]
      %v307 = vld [vmem:[%s2 + $0x40] sm:$0xff]
      %v308 = vld [vmem:[%s2 + $0x48] sm:$0xff]
      %v309 = vld [vmem:[%s2 + $0x50] sm:$0xff]
      %v310 = vld [vmem:[%s2 + $0x58] sm:$0xff]
      %v311 = vld [vmem:[%s2 + $0x60] sm:$0xff]
      %v312 = vld [vmem:[%s2 + $0x68] sm:$0xff]
      %v313 = vld [vmem:[%s2 + $0x70] sm:$0xff]
      %v314 = vld [vmem:[%s2 + $0x78] sm:$0xff]
      %v315 = vld [vmem:[%s2 + $0x80] sm:$0xff]
      %v316 = vld [vmem:[%s2 + $0x88] sm:$0xff]
      %v317 = vld [vmem:[%s2 + $0x90] sm:$0xff]
      %v318 = vld [vmem:[%s2 + $0x98] sm:$0xff]
      %v319 = vld [vmem:[%s2 + $0xa0] sm:$0xff]
      %v320 = vld [vmem:[%s2 + $0xa8] sm:$0xff]
      %v321 = vld [vmem:[%s2 + $0xb0] sm:$0xff]
      %v322 = vld [vmem:[%s2 + $0xb8] sm:$0xff]
      %v323 = vld [vmem:[%s2 + $0xc0] sm:$0xff]
      %v324 = vld [vmem:[%s2 + $0xc8] sm:$0xff]
      %v325 = vld [vmem:[%s2 + $0xd0] sm:$0xff]
      %v326 = vld [vmem:[%s2 + $0xd8] sm:$0xff]
      %v327 = vld [vmem:[%s2 + $0xe0] sm:$0xff]
      %v328 = vld [vmem:[%s2 + $0xe8] sm:$0xff]
      %v329 = vld [vmem:[%s2 + $0xf0] sm:$0xff]
      %v330 = vld [vmem:[%s2 + $0xf8] sm:$0xff]
      %v331 = vld [vmem:[%s2 + $0x100] sm:$0xff]
      %v332 = vld [vmem:[%s2 + $0x108] sm:$0xff]
      %v333 = vld [vmem:[%s2 + $0x110] sm:$0xff]
      %v334 = vld [vmem:[%s2 + $0x118] sm:$0xff]
      %v335 = vld [vmem:[%s2 + $0x120] sm:$0xff]
      %v336 = vld [vmem:[%s2 + $0x128] sm:$0xff]
      %v337 = vld [vmem:[%s2 + $0x130] sm:$0xff]
      %v338 = vld [vmem:[%s2 + $0x138] sm:$0xff]
      %v339 = vld [vmem:[%s2 + $0x140] sm:$0xff]
      %v340 = vld [vmem:[%s2 + $0x148] sm:$0xff]
      %v341 = vld [vmem:[%s2 + $0x150] sm:$0xff]
      %v342 = vld [vmem:[%s2 + $0x158] sm:$0xff]
      %v343 = vld [vmem:[%s2 + $0x160] sm:$0xff]
      %v344 = vld [vmem:[%s2 + $0x168] sm:$0xff]
      %v345 = vld [vmem:[%s2 + $0x170] sm:$0xff]
      %v346 = vld [vmem:[%s2 + $0x178] sm:$0xff]
      %v347 = vld [vmem:[%s2 + $0x180] sm:$0xff]
      %v348 = vld [vmem:[%s2 + $0x188] sm:$0xff]
      %v349 = vld [vmem:[%s2 + $0x190] sm:$0xff]
      %v350 = vld [vmem:[%s2 + $0x198] sm:$0xff]
      %v351 = vld [vmem:[%s2 + $0x1a0] sm:$0xff]
      %v352 = vld [vmem:[%s2 + $0x1a8] sm:$0xff]
      %v353 = vld [vmem:[%s2 + $0x1b0] sm:$0xff]
      %v354 = vld [vmem:[%s2 + $0x1b8] sm:$0xff]
      %v355 = vld [vmem:[%s2 + $0x1c0] sm:$0xff]
      %v356 = vld [vmem:[%s2 + $0x1c8] sm:$0xff]
      %v357 = vld [vmem:[%s2 + $0x1d0] sm:$0xff]
      %v358 = vld [vmem:[%s2 + $0x1d8] sm:$0xff]
      %v359 = vld [vmem:[%s2 + $0x1e0] sm:$0xff]
      %v360 = vld [vmem:[%s2 + $0x1e8] sm:$0xff]
      %v361 = vld [vmem:[%s2 + $0x1f0] sm:$0xff]
      %v362 = vld [vmem:[%s2 + $0x1f8] sm:$0xff]
      %364 = vset.pattern.permute.xlu0 0
      %365 = vperm.xlu0 %364, %v299
      %v366 = vpop.permute.xlu0 %365
      %369 = vset.pattern.permute.xlu0 0
      %370 = vperm.xlu0 %369, %v300
      %v371 = vpop.permute.xlu0 %370
      %374 = vset.pattern.permute.xlu0 0
      %375 = vperm.xlu0 %374, %v301
      %v376 = vpop.permute.xlu0 %375
      %379 = vset.pattern.permute.xlu0 0
      %380 = vperm.xlu0 %379, %v302
      %v381 = vpop.permute.xlu0 %380
      %384 = vset.pattern.permute.xlu0 0
      %385 = vperm.xlu0 %384, %v303
      %v386 = vpop.permute.xlu0 %385
      %389 = vset.pattern.permute.xlu0 0
      %390 = vperm.xlu0 %389, %v304
      %v391 = vpop.permute.xlu0 %390
      %394 = vset.pattern.permute.xlu0 0
      %395 = vperm.xlu0 %394, %v305
      %v396 = vpop.permute.xlu0 %395
      %399 = vset.pattern.permute.xlu0 0
      %400 = vperm.xlu0 %399, %v306
      %v401 = vpop.permute.xlu0 %400
      %404 = vset.pattern.permute.xlu0 0
      %405 = vperm.xlu0 %404, %v307
      %v406 = vpop.permute.xlu0 %405
      %409 = vset.pattern.permute.xlu0 0
      %410 = vperm.xlu0 %409, %v308
      %v411 = vpop.permute.xlu0 %410
      %414 = vset.pattern.permute.xlu0 0
      %415 = vperm.xlu0 %414, %v309
      %v416 = vpop.permute.xlu0 %415
      %419 = vset.pattern.permute.xlu0 0
      %420 = vperm.xlu0 %419, %v310
      %v421 = vpop.permute.xlu0 %420
      %424 = vset.pattern.permute.xlu0 0
      %425 = vperm.xlu0 %424, %v311
      %v426 = vpop.permute.xlu0 %425
      %429 = vset.pattern.permute.xlu0 0
      %430 = vperm.xlu0 %429, %v312
      %v431 = vpop.permute.xlu0 %430
      %434 = vset.pattern.permute.xlu0 0
      %435 = vperm.xlu0 %434, %v313
      %v436 = vpop.permute.xlu0 %435
      %439 = vset.pattern.permute.xlu0 0
      %440 = vperm.xlu0 %439, %v314
      %v441 = vpop.permute.xlu0 %440
      %444 = vset.pattern.permute.xlu0 0
      %445 = vperm.xlu0 %444, %v315
      %v446 = vpop.permute.xlu0 %445
      %449 = vset.pattern.permute.xlu0 0
      %450 = vperm.xlu0 %449, %v316
      %v451 = vpop.permute.xlu0 %450
      %454 = vset.pattern.permute.xlu0 0
      %455 = vperm.xlu0 %454, %v317
      %v456 = vpop.permute.xlu0 %455
      %459 = vset.pattern.permute.xlu0 0
      %460 = vperm.xlu0 %459, %v318
      %v461 = vpop.permute.xlu0 %460
      %464 = vset.pattern.permute.xlu0 0
      %465 = vperm.xlu0 %464, %v319
      %v466 = vpop.permute.xlu0 %465
      %469 = vset.pattern.permute.xlu0 0
      %470 = vperm.xlu0 %469, %v320
      %v471 = vpop.permute.xlu0 %470
      %474 = vset.pattern.permute.xlu0 0
      %475 = vperm.xlu0 %474, %v321
      %v476 = vpop.permute.xlu0 %475
      %479 = vset.pattern.permute.xlu0 0
      %480 = vperm.xlu0 %479, %v322
      %v481 = vpop.permute.xlu0 %480
      %484 = vset.pattern.permute.xlu0 0
      %485 = vperm.xlu0 %484, %v323
      %v486 = vpop.permute.xlu0 %485
      %489 = vset.pattern.permute.xlu0 0
      %490 = vperm.xlu0 %489, %v324
      %v491 = vpop.permute.xlu0 %490
      %494 = vset.pattern.permute.xlu0 0
      %495 = vperm.xlu0 %494, %v325
      %v496 = vpop.permute.xlu0 %495
      %499 = vset.pattern.permute.xlu0 0
      %500 = vperm.xlu0 %499, %v326
      %v501 = vpop.permute.xlu0 %500
      %504 = vset.pattern.permute.xlu0 0
      %505 = vperm.xlu0 %504, %v327
      %v506 = vpop.permute.xlu0 %505
      %509 = vset.pattern.permute.xlu0 0
      %510 = vperm.xlu0 %509, %v328
      %v511 = vpop.permute.xlu0 %510
      %514 = vset.pattern.permute.xlu0 0
      %515 = vperm.xlu0 %514, %v329
      %v516 = vpop.permute.xlu0 %515
      %519 = vset.pattern.permute.xlu0 0
      %520 = vperm.xlu0 %519, %v330
      %v521 = vpop.permute.xlu0 %520
      %524 = vset.pattern.permute.xlu0 0
      %525 = vperm.xlu0 %524, %v331
      %v526 = vpop.permute.xlu0 %525
      %529 = vset.pattern.permute.xlu0 0
      %530 = vperm.xlu0 %529, %v332
      %v531 = vpop.permute.xlu0 %530
      %534 = vset.pattern.permute.xlu0 0
      %535 = vperm.xlu0 %534, %v333
      %v536 = vpop.permute.xlu0 %535
      %539 = vset.pattern.permute.xlu0 0
      %540 = vperm.xlu0 %539, %v334
      %v541 = vpop.permute.xlu0 %540
      %544 = vset.pattern.permute.xlu0 0
      %545 = vperm.xlu0 %544, %v335
      %v546 = vpop.permute.xlu0 %545
      %549 = vset.pattern.permute.xlu0 0
      %550 = vperm.xlu0 %549, %v336
      %v551 = vpop.permute.xlu0 %550
      %554 = vset.pattern.permute.xlu0 0
      %555 = vperm.xlu0 %554, %v337
      %v556 = vpop.permute.xlu0 %555
      %559 = vset.pattern.permute.xlu0 0
      %560 = vperm.xlu0 %559, %v338
      %v561 = vpop.permute.xlu0 %560
      %564 = vset.pattern.permute.xlu0 0
      %565 = vperm.xlu0 %564, %v339
      %v566 = vpop.permute.xlu0 %565
      %569 = vset.pattern.permute.xlu0 0
      %570 = vperm.xlu0 %569, %v340
      %v571 = vpop.permute.xlu0 %570
      %574 = vset.pattern.permute.xlu0 0
      %575 = vperm.xlu0 %574, %v341
      %v576 = vpop.permute.xlu0 %575
      %579 = vset.pattern.permute.xlu0 0
      %580 = vperm.xlu0 %579, %v342
      %v581 = vpop.permute.xlu0 %580
      %584 = vset.pattern.permute.xlu0 0
      %585 = vperm.xlu0 %584, %v343
      %v586 = vpop.permute.xlu0 %585
      %589 = vset.pattern.permute.xlu0 0
      %590 = vperm.xlu0 %589, %v344
      %v591 = vpop.permute.xlu0 %590
      %594 = vset.pattern.permute.xlu0 0
      %595 = vperm.xlu0 %594, %v345
      %v596 = vpop.permute.xlu0 %595
      %599 = vset.pattern.permute.xlu0 0
      %600 = vperm.xlu0 %599, %v346
      %v601 = vpop.permute.xlu0 %600
      %604 = vset.pattern.permute.xlu0 0
      %605 = vperm.xlu0 %604, %v347
      %v606 = vpop.permute.xlu0 %605
      %609 = vset.pattern.permute.xlu0 0
      %610 = vperm.xlu0 %609, %v348
      %v611 = vpop.permute.xlu0 %610
      %614 = vset.pattern.permute.xlu0 0
      %615 = vperm.xlu0 %614, %v349
      %v616 = vpop.permute.xlu0 %615
      %619 = vset.pattern.permute.xlu0 0
      %620 = vperm.xlu0 %619, %v350
      %v621 = vpop.permute.xlu0 %620
      %624 = vset.pattern.permute.xlu0 0
      %625 = vperm.xlu0 %624, %v351
      %v626 = vpop.permute.xlu0 %625
      %629 = vset.pattern.permute.xlu0 0
      %630 = vperm.xlu0 %629, %v352
      %v631 = vpop.permute.xlu0 %630
      %634 = vset.pattern.permute.xlu0 0
      %635 = vperm.xlu0 %634, %v353
      %v636 = vpop.permute.xlu0 %635
      %639 = vset.pattern.permute.xlu0 0
      %640 = vperm.xlu0 %639, %v354
      %v641 = vpop.permute.xlu0 %640
      %644 = vset.pattern.permute.xlu0 0
      %645 = vperm.xlu0 %644, %v355
      %v646 = vpop.permute.xlu0 %645
      %649 = vset.pattern.permute.xlu0 0
      %650 = vperm.xlu0 %649, %v356
      %v651 = vpop.permute.xlu0 %650
      %654 = vset.pattern.permute.xlu0 0
      %655 = vperm.xlu0 %654, %v357
      %v656 = vpop.permute.xlu0 %655
      %659 = vset.pattern.permute.xlu0 0
      %660 = vperm.xlu0 %659, %v358
      %v661 = vpop.permute.xlu0 %660
      %664 = vset.pattern.permute.xlu0 0
      %665 = vperm.xlu0 %664, %v359
      %v666 = vpop.permute.xlu0 %665
      %669 = vset.pattern.permute.xlu0 0
      %670 = vperm.xlu0 %669, %v360
      %v671 = vpop.permute.xlu0 %670
      %674 = vset.pattern.permute.xlu0 0
      %675 = vperm.xlu0 %674, %v361
      %v676 = vpop.permute.xlu0 %675
      %679 = vset.pattern.permute.xlu0 0
      %680 = vperm.xlu0 %679, %v362
      %v681 = vpop.permute.xlu0 %680
      %v747 = vunpack.c.l.b16 %v203
      %v748 = vunpack.c.h.b16 %v203
      %v749 = vunpack.c.l.b16 %v204
      %v750 = vunpack.c.h.b16 %v204
      %v751 = vunpack.c.l.b16 %v205
      %v752 = vunpack.c.h.b16 %v205
      %v753 = vunpack.c.l.b16 %v206
      %v754 = vunpack.c.h.b16 %v206
      %v755 = vunpack.c.l.b16 %v207
      %v756 = vunpack.c.h.b16 %v207
      %v757 = vunpack.c.l.b16 %v208
      %v758 = vunpack.c.h.b16 %v208
      %v759 = vunpack.c.l.b16 %v209
      %v760 = vunpack.c.h.b16 %v209
      %v761 = vunpack.c.l.b16 %v210
      %v762 = vunpack.c.h.b16 %v210
      %v763 = vunpack.c.l.b16 %v211
      %v764 = vunpack.c.h.b16 %v211
      %v765 = vunpack.c.l.b16 %v212
      %v766 = vunpack.c.h.b16 %v212
      %v767 = vunpack.c.l.b16 %v213
      %v768 = vunpack.c.h.b16 %v213
      %v769 = vunpack.c.l.b16 %v214
      %v770 = vunpack.c.h.b16 %v214
      %v771 = vunpack.c.l.b16 %v215
      %v772 = vunpack.c.h.b16 %v215
      %v773 = vunpack.c.l.b16 %v216
      %v774 = vunpack.c.h.b16 %v216
      %v775 = vunpack.c.l.b16 %v217
      %v776 = vunpack.c.h.b16 %v217
      %v777 = vunpack.c.l.b16 %v218
      %v778 = vunpack.c.h.b16 %v218
      %v779 = vunpack.c.l.b16 %v219
      %v780 = vunpack.c.h.b16 %v219
      %v781 = vunpack.c.l.b16 %v220
      %v782 = vunpack.c.h.b16 %v220
      %v783 = vunpack.c.l.b16 %v221
      %v784 = vunpack.c.h.b16 %v221
      %v785 = vunpack.c.l.b16 %v222
      %v786 = vunpack.c.h.b16 %v222
      %v787 = vunpack.c.l.b16 %v223
      %v788 = vunpack.c.h.b16 %v223
      %v789 = vunpack.c.l.b16 %v224
      %v790 = vunpack.c.h.b16 %v224
      %v791 = vunpack.c.l.b16 %v225
      %v792 = vunpack.c.h.b16 %v225
      %v793 = vunpack.c.l.b16 %v226
      %v794 = vunpack.c.h.b16 %v226
      %v795 = vunpack.c.l.b16 %v227
      %v796 = vunpack.c.h.b16 %v227
      %v797 = vunpack.c.l.b16 %v228
      %v798 = vunpack.c.h.b16 %v228
      %v799 = vunpack.c.l.b16 %v229
      %v800 = vunpack.c.h.b16 %v229
      %v801 = vunpack.c.l.b16 %v230
      %v802 = vunpack.c.h.b16 %v230
      %v803 = vunpack.c.l.b16 %v231
      %v804 = vunpack.c.h.b16 %v231
      %v805 = vunpack.c.l.b16 %v232
      %v806 = vunpack.c.h.b16 %v232
      %v807 = vunpack.c.l.b16 %v233
      %v808 = vunpack.c.h.b16 %v233
      %v809 = vunpack.c.l.b16 %v234
      %v810 = vunpack.c.h.b16 %v234
      %v811 = vunpack.c.l.b16 %v235
      %v812 = vunpack.c.h.b16 %v235
      %v813 = vunpack.c.l.b16 %v236
      %v814 = vunpack.c.h.b16 %v236
      %v815 = vunpack.c.l.b16 %v237
      %v816 = vunpack.c.h.b16 %v237
      %v817 = vunpack.c.l.b16 %v238
      %v818 = vunpack.c.h.b16 %v238
      %v819 = vunpack.c.l.b16 %v239
      %v820 = vunpack.c.h.b16 %v239
      %v821 = vunpack.c.l.b16 %v240
      %v822 = vunpack.c.h.b16 %v240
      %v823 = vunpack.c.l.b16 %v241
      %v824 = vunpack.c.h.b16 %v241
      %v825 = vunpack.c.l.b16 %v242
      %v826 = vunpack.c.h.b16 %v242
      %v827 = vunpack.c.l.b16 %v243
      %v828 = vunpack.c.h.b16 %v243
      %v829 = vunpack.c.l.b16 %v244
      %v830 = vunpack.c.h.b16 %v244
      %v831 = vunpack.c.l.b16 %v245
      %v832 = vunpack.c.h.b16 %v245
      %v833 = vunpack.c.l.b16 %v246
      %v834 = vunpack.c.h.b16 %v246
      %v835 = vunpack.c.l.b16 %v247
      %v836 = vunpack.c.h.b16 %v247
      %v837 = vunpack.c.l.b16 %v248
      %v838 = vunpack.c.h.b16 %v248
      %v839 = vunpack.c.l.b16 %v249
      %v840 = vunpack.c.h.b16 %v249
      %v841 = vunpack.c.l.b16 %v250
      %v842 = vunpack.c.h.b16 %v250
      %v843 = vunpack.c.l.b16 %v251
      %v844 = vunpack.c.h.b16 %v251
      %v845 = vunpack.c.l.b16 %v252
      %v846 = vunpack.c.h.b16 %v252
      %v847 = vunpack.c.l.b16 %v253
      %v848 = vunpack.c.h.b16 %v253
      %v849 = vunpack.c.l.b16 %v254
      %v850 = vunpack.c.h.b16 %v254
      %v851 = vunpack.c.l.b16 %v255
      %v852 = vunpack.c.h.b16 %v255
      %v853 = vunpack.c.l.b16 %v256
      %v854 = vunpack.c.h.b16 %v256
      %v855 = vunpack.c.l.b16 %v257
      %v856 = vunpack.c.h.b16 %v257
      %v857 = vunpack.c.l.b16 %v258
      %v858 = vunpack.c.h.b16 %v258
      %v859 = vunpack.c.l.b16 %v259
      %v860 = vunpack.c.h.b16 %v259
      %v861 = vunpack.c.l.b16 %v260
      %v862 = vunpack.c.h.b16 %v260
      %v863 = vunpack.c.l.b16 %v261
      %v864 = vunpack.c.h.b16 %v261
      %v865 = vunpack.c.l.b16 %v262
      %v866 = vunpack.c.h.b16 %v262
      %v867 = vunpack.c.l.b16 %v263
      %v868 = vunpack.c.h.b16 %v263
      %v869 = vunpack.c.l.b16 %v264
      %v870 = vunpack.c.h.b16 %v264
      %v871 = vunpack.c.l.b16 %v265
      %v872 = vunpack.c.h.b16 %v265
      %v873 = vunpack.c.l.b16 %v266
      %v874 = vunpack.c.h.b16 %v266
      %v875 = vpack.c.b16 %v749, %v747
      %v876 = vpack.c.b16 %v750, %v748
      %v877 = vpack.c.b16 %v753, %v751
      %v878 = vpack.c.b16 %v754, %v752
      %v879 = vpack.c.b16 %v757, %v755
      %v880 = vpack.c.b16 %v758, %v756
      %v881 = vpack.c.b16 %v761, %v759
      %v882 = vpack.c.b16 %v762, %v760
      %v883 = vpack.c.b16 %v765, %v763
      %v884 = vpack.c.b16 %v766, %v764
      %v885 = vpack.c.b16 %v769, %v767
      %v886 = vpack.c.b16 %v770, %v768
      %v887 = vpack.c.b16 %v773, %v771
      %v888 = vpack.c.b16 %v774, %v772
      %v889 = vpack.c.b16 %v777, %v775
      %v890 = vpack.c.b16 %v778, %v776
      %v891 = vpack.c.b16 %v781, %v779
      %v892 = vpack.c.b16 %v782, %v780
      %v893 = vpack.c.b16 %v785, %v783
      %v894 = vpack.c.b16 %v786, %v784
      %v895 = vpack.c.b16 %v789, %v787
      %v896 = vpack.c.b16 %v790, %v788
      %v897 = vpack.c.b16 %v793, %v791
      %v898 = vpack.c.b16 %v794, %v792
      %v899 = vpack.c.b16 %v797, %v795
      %v900 = vpack.c.b16 %v798, %v796
      %v901 = vpack.c.b16 %v801, %v799
      %v902 = vpack.c.b16 %v802, %v800
      %v903 = vpack.c.b16 %v805, %v803
      %v904 = vpack.c.b16 %v806, %v804
      %v905 = vpack.c.b16 %v809, %v807
      %v906 = vpack.c.b16 %v810, %v808
      %v907 = vpack.c.b16 %v813, %v811
      %v908 = vpack.c.b16 %v814, %v812
      %v909 = vpack.c.b16 %v817, %v815
      %v910 = vpack.c.b16 %v818, %v816
      %v911 = vpack.c.b16 %v821, %v819
      %v912 = vpack.c.b16 %v822, %v820
      %v913 = vpack.c.b16 %v825, %v823
      %v914 = vpack.c.b16 %v826, %v824
      %v915 = vpack.c.b16 %v829, %v827
      %v916 = vpack.c.b16 %v830, %v828
      %v917 = vpack.c.b16 %v833, %v831
      %v918 = vpack.c.b16 %v834, %v832
      %v919 = vpack.c.b16 %v837, %v835
      %v920 = vpack.c.b16 %v838, %v836
      %v921 = vpack.c.b16 %v841, %v839
      %v922 = vpack.c.b16 %v842, %v840
      %v923 = vpack.c.b16 %v845, %v843
      %v924 = vpack.c.b16 %v846, %v844
      %v925 = vpack.c.b16 %v849, %v847
      %v926 = vpack.c.b16 %v850, %v848
      %v927 = vpack.c.b16 %v853, %v851
      %v928 = vpack.c.b16 %v854, %v852
      %v929 = vpack.c.b16 %v857, %v855
      %v930 = vpack.c.b16 %v858, %v856
      %v931 = vpack.c.b16 %v861, %v859
      %v932 = vpack.c.b16 %v862, %v860
      %v933 = vpack.c.b16 %v865, %v863
      %v934 = vpack.c.b16 %v866, %v864
      %v935 = vpack.c.b16 %v869, %v867
      %v936 = vpack.c.b16 %v870, %v868
      %v937 = vpack.c.b16 %v873, %v871
      %v938 = vpack.c.b16 %v874, %v872
      %v1035 = vunpack.c.l.b16 %v267
      %v1036 = vunpack.c.l.b16 %v268
      %v1037 = vunpack.c.l.b16 %v269
      %v1038 = vunpack.c.l.b16 %v270
      %v1039 = vunpack.c.l.b16 %v271
      %v1040 = vunpack.c.l.b16 %v272
      %v1041 = vunpack.c.l.b16 %v273
      %v1042 = vunpack.c.l.b16 %v274
      %v1043 = vunpack.c.l.b16 %v275
      %v1044 = vunpack.c.l.b16 %v276
      %v1045 = vunpack.c.l.b16 %v277
      %v1046 = vunpack.c.l.b16 %v278
      %v1047 = vunpack.c.l.b16 %v279
      %v1048 = vunpack.c.l.b16 %v280
      %v1049 = vunpack.c.l.b16 %v281
      %v1050 = vunpack.c.l.b16 %v282
      %v1051 = vunpack.c.l.b16 %v283
      %v1052 = vunpack.c.l.b16 %v284
      %v1053 = vunpack.c.l.b16 %v285
      %v1054 = vunpack.c.l.b16 %v286
      %v1055 = vunpack.c.l.b16 %v287
      %v1056 = vunpack.c.l.b16 %v288
      %v1057 = vunpack.c.l.b16 %v289
      %v1058 = vunpack.c.l.b16 %v290
      %v1059 = vunpack.c.l.b16 %v291
      %v1060 = vunpack.c.l.b16 %v292
      %v1061 = vunpack.c.l.b16 %v293
      %v1062 = vunpack.c.l.b16 %v294
      %v1063 = vunpack.c.l.b16 %v295
      %v1064 = vunpack.c.l.b16 %v296
      %v1065 = vunpack.c.l.b16 %v297
      %v1066 = vunpack.c.l.b16 %v298
      %v1067 = vpack.c.b16 %v1036, %v1035
      %v1068 = vpack.c.b16 %v1038, %v1037
      %v1069 = vpack.c.b16 %v1040, %v1039
      %v1070 = vpack.c.b16 %v1042, %v1041
      %v1071 = vpack.c.b16 %v1044, %v1043
      %v1072 = vpack.c.b16 %v1046, %v1045
      %v1073 = vpack.c.b16 %v1048, %v1047
      %v1074 = vpack.c.b16 %v1050, %v1049
      %v1075 = vpack.c.b16 %v1052, %v1051
      %v1076 = vpack.c.b16 %v1054, %v1053
      %v1077 = vpack.c.b16 %v1056, %v1055
      %v1078 = vpack.c.b16 %v1058, %v1057
      %v1079 = vpack.c.b16 %v1060, %v1059
      %v1080 = vpack.c.b16 %v1062, %v1061
      %v1081 = vpack.c.b16 %v1064, %v1063
      %v1082 = vpack.c.b16 %v1066, %v1065
      %1099 = vmatprep.subr.bf16.mxu0 0
      %1100 = vmatpush1.bf16.msra.mxu0 %v1074
      %1101 = vmatprep.subr.bf16.mxu0 0
      %1102 = vmatpush1.bf16.msra.mxu0 %v1073
      %1103 = vmatprep.subr.bf16.mxu0 0
      %1104 = vmatpush1.bf16.msra.mxu0 %v1072
      %1105 = vmatprep.subr.bf16.mxu0 0
      %1106 = vmatpush1.bf16.msra.mxu0 %v1071
      %1107 = vmatprep.subr.bf16.mxu0 0
      %1108 = vmatpush1.bf16.msra.mxu0 %v1070
      %1109 = vmatprep.subr.bf16.mxu0 0
      %1110 = vmatpush1.bf16.msra.mxu0 %v1069
      %1111 = vmatprep.subr.bf16.mxu0 0
      %1112 = vmatpush1.bf16.msra.mxu0 %v1068
      %1113 = vmatprep.subr.bf16.mxu0 0
      %1114 = vmatpush1.bf16.msra.mxu0 %v1067
      %1115 = vmatprep.subr.bf16.mxu0 0
      %1116 = vmatpush2.bf16.msra.mxu0 %v1082
      %1117 = vmatprep.subr.bf16.mxu0 0
      %1118 = vmatpush2.bf16.msra.mxu0 %v1081
      %1119 = vmatprep.subr.bf16.mxu0 0
      %1120 = vmatpush2.bf16.msra.mxu0 %v1080
      %1121 = vmatprep.subr.bf16.mxu0 0
      %1122 = vmatpush2.bf16.msra.mxu0 %v1079
      %1123 = vmatprep.subr.bf16.mxu0 0
      %1124 = vmatpush2.bf16.msra.mxu0 %v1078
      %1125 = vmatprep.subr.bf16.mxu0 0
      %1126 = vmatpush2.bf16.msra.mxu0 %v1077
      %1127 = vmatprep.subr.bf16.mxu0 0
      %1128 = vmatpush2.bf16.msra.mxu0 %v1076
      %1129 = vmatprep.subr.bf16.mxu0 0
      %1130 = vmatpush2.bf16.msra.mxu0 %v1075
      %1131 = vmatprep.mubr.bf16.mxu0 %v876
      %1132 = vmatmul.mubr.bf16.gmra.mxu0 %v875
      %v1133 = vpop.f32.mrf.mxu0
      %v1134 = vadd.f32 %v366, %v1133
      %v1135 = vpop.f32.mrf.mxu0
      %v1136 = vpop.f32.mrf.mxu0
      %v1137 = vadd.f32 %v371, %v1136
      %v1138 = vpop.f32.mrf.mxu0
      %1139 = vmatprep.mubr.bf16.mxu0 %v878
      %1140 = vmatmul.mubr.bf16.gmra.mxu0 %v877
      %v1141 = vpop.f32.mrf.mxu0
      %v1142 = vadd.f32 %v376, %v1141
      %v1143 = vpop.f32.mrf.mxu0
      %v1144 = vpop.f32.mrf.mxu0
      %v1145 = vadd.f32 %v381, %v1144
      %v1146 = vpop.f32.mrf.mxu0
      %1147 = vmatprep.mubr.bf16.mxu0 %v880
      %1148 = vmatmul.mubr.bf16.gmra.mxu0 %v879
      %v1149 = vpop.f32.mrf.mxu0
      %v1150 = vadd.f32 %v386, %v1149
      %v1151 = vpop.f32.mrf.mxu0
      %v1152 = vpop.f32.mrf.mxu0
      %v1153 = vadd.f32 %v391, %v1152
      %v1154 = vpop.f32.mrf.mxu0
      %1155 = vmatprep.mubr.bf16.mxu0 %v882
      %1156 = vmatmul.mubr.bf16.gmra.mxu0 %v881
      %v1157 = vpop.f32.mrf.mxu0
      %v1158 = vadd.f32 %v396, %v1157
      %v1159 = vpop.f32.mrf.mxu0
      %v1160 = vpop.f32.mrf.mxu0
      %v1161 = vadd.f32 %v401, %v1160
      %v1162 = vpop.f32.mrf.mxu0
      %1163 = vmatprep.mubr.bf16.mxu0 %v884
      %1164 = vmatmul.mubr.bf16.gmra.mxu0 %v883
      %v1165 = vpop.f32.mrf.mxu0
      %v1166 = vadd.f32 %v406, %v1165
      %v1167 = vpop.f32.mrf.mxu0
      %v1168 = vpop.f32.mrf.mxu0
      %v1169 = vadd.f32 %v411, %v1168
      %v1170 = vpop.f32.mrf.mxu0
      %1171 = vmatprep.mubr.bf16.mxu0 %v886
      %1172 = vmatmul.mubr.bf16.gmra.mxu0 %v885
      %v1173 = vpop.f32.mrf.mxu0
      %v1174 = vadd.f32 %v416, %v1173
      %v1175 = vpop.f32.mrf.mxu0
      %v1176 = vpop.f32.mrf.mxu0
      %v1177 = vadd.f32 %v421, %v1176
      %v1178 = vpop.f32.mrf.mxu0
      %1179 = vmatprep.mubr.bf16.mxu0 %v888
      %1180 = vmatmul.mubr.bf16.gmra.mxu0 %v887
      %v1181 = vpop.f32.mrf.mxu0
      %v1182 = vadd.f32 %v426, %v1181
      %v1183 = vpop.f32.mrf.mxu0
      %v1184 = vpop.f32.mrf.mxu0
      %v1185 = vadd.f32 %v431, %v1184
      %v1186 = vpop.f32.mrf.mxu0
      %1187 = vmatprep.mubr.bf16.mxu0 %v890
      %1188 = vmatmul.mubr.bf16.gmra.mxu0 %v889
      %v1189 = vpop.f32.mrf.mxu0
      %v1190 = vadd.f32 %v436, %v1189
      %v1191 = vpop.f32.mrf.mxu0
      %v1192 = vpop.f32.mrf.mxu0
      %v1193 = vadd.f32 %v441, %v1192
      %v1194 = vpop.f32.mrf.mxu0
      %1195 = vmatprep.mubr.bf16.mxu0 %v892
      %1196 = vmatmul.mubr.bf16.gmra.mxu0 %v891
      %v1197 = vpop.f32.mrf.mxu0
      %v1198 = vadd.f32 %v446, %v1197
      %v1199 = vpop.f32.mrf.mxu0
      %v1200 = vpop.f32.mrf.mxu0
      %v1201 = vadd.f32 %v451, %v1200
      %v1202 = vpop.f32.mrf.mxu0
      %1203 = vmatprep.mubr.bf16.mxu0 %v894
      %1204 = vmatmul.mubr.bf16.gmra.mxu0 %v893
      %v1205 = vpop.f32.mrf.mxu0
      %v1206 = vadd.f32 %v456, %v1205
      %v1207 = vpop.f32.mrf.mxu0
      %v1208 = vpop.f32.mrf.mxu0
      %v1209 = vadd.f32 %v461, %v1208
      %v1210 = vpop.f32.mrf.mxu0
      %1211 = vmatprep.mubr.bf16.mxu0 %v896
      %1212 = vmatmul.mubr.bf16.gmra.mxu0 %v895
      %v1213 = vpop.f32.mrf.mxu0
      %v1214 = vadd.f32 %v466, %v1213
      %v1215 = vpop.f32.mrf.mxu0
      %v1216 = vpop.f32.mrf.mxu0
      %v1217 = vadd.f32 %v471, %v1216
      %v1218 = vpop.f32.mrf.mxu0
      %1219 = vmatprep.mubr.bf16.mxu0 %v898
      %1220 = vmatmul.mubr.bf16.gmra.mxu0 %v897
      %v1221 = vpop.f32.mrf.mxu0
      %v1222 = vadd.f32 %v476, %v1221
      %v1223 = vpop.f32.mrf.mxu0
      %v1224 = vpop.f32.mrf.mxu0
      %v1225 = vadd.f32 %v481, %v1224
      %v1226 = vpop.f32.mrf.mxu0
      %1227 = vmatprep.mubr.bf16.mxu0 %v900
      %1228 = vmatmul.mubr.bf16.gmra.mxu0 %v899
      %v1229 = vpop.f32.mrf.mxu0
      %v1230 = vadd.f32 %v486, %v1229
      %v1231 = vpop.f32.mrf.mxu0
      %v1232 = vpop.f32.mrf.mxu0
      %v1233 = vadd.f32 %v491, %v1232
      %v1234 = vpop.f32.mrf.mxu0
      %1235 = vmatprep.mubr.bf16.mxu0 %v902
      %1236 = vmatmul.mubr.bf16.gmra.mxu0 %v901
      %v1237 = vpop.f32.mrf.mxu0
      %v1238 = vadd.f32 %v496, %v1237
      %v1239 = vpop.f32.mrf.mxu0
      %v1240 = vpop.f32.mrf.mxu0
      %v1241 = vadd.f32 %v501, %v1240
      %v1242 = vpop.f32.mrf.mxu0
      %1243 = vmatprep.mubr.bf16.mxu0 %v904
      %1244 = vmatmul.mubr.bf16.gmra.mxu0 %v903
      %v1245 = vpop.f32.mrf.mxu0
      %v1246 = vadd.f32 %v506, %v1245
      %v1247 = vpop.f32.mrf.mxu0
      %v1248 = vpop.f32.mrf.mxu0
      %v1249 = vadd.f32 %v511, %v1248
      %v1250 = vpop.f32.mrf.mxu0
      %1251 = vmatprep.mubr.bf16.mxu0 %v906
      %1252 = vmatmul.mubr.bf16.gmra.mxu0 %v905
      %v1253 = vpop.f32.mrf.mxu0
      %v1254 = vadd.f32 %v516, %v1253
      %v1255 = vpop.f32.mrf.mxu0
      %v1256 = vpop.f32.mrf.mxu0
      %v1257 = vadd.f32 %v521, %v1256
      %v1258 = vpop.f32.mrf.mxu0
      %1259 = vmatprep.mubr.bf16.mxu0 %v908
      %1260 = vmatmul.mubr.bf16.gmra.mxu0 %v907
      %v1261 = vpop.f32.mrf.mxu0
      %v1262 = vadd.f32 %v526, %v1261
      %v1263 = vpop.f32.mrf.mxu0
      %v1264 = vpop.f32.mrf.mxu0
      %v1265 = vadd.f32 %v531, %v1264
      %v1266 = vpop.f32.mrf.mxu0
      %1267 = vmatprep.mubr.bf16.mxu0 %v910
      %1268 = vmatmul.mubr.bf16.gmra.mxu0 %v909
      %v1269 = vpop.f32.mrf.mxu0
      %v1270 = vadd.f32 %v536, %v1269
      %v1271 = vpop.f32.mrf.mxu0
      %v1272 = vpop.f32.mrf.mxu0
      %v1273 = vadd.f32 %v541, %v1272
      %v1274 = vpop.f32.mrf.mxu0
      %1275 = vmatprep.mubr.bf16.mxu0 %v912
      %1276 = vmatmul.mubr.bf16.gmra.mxu0 %v911
      %v1277 = vpop.f32.mrf.mxu0
      %v1278 = vadd.f32 %v546, %v1277
      %v1279 = vpop.f32.mrf.mxu0
      %v1280 = vpop.f32.mrf.mxu0
      %v1281 = vadd.f32 %v551, %v1280
      %v1282 = vpop.f32.mrf.mxu0
      %1283 = vmatprep.mubr.bf16.mxu0 %v914
      %1284 = vmatmul.mubr.bf16.gmra.mxu0 %v913
      %v1285 = vpop.f32.mrf.mxu0
      %v1286 = vadd.f32 %v556, %v1285
      %v1287 = vpop.f32.mrf.mxu0
      %v1288 = vpop.f32.mrf.mxu0
      %v1289 = vadd.f32 %v561, %v1288
      %v1290 = vpop.f32.mrf.mxu0
      %1291 = vmatprep.mubr.bf16.mxu0 %v916
      %1292 = vmatmul.mubr.bf16.gmra.mxu0 %v915
      %v1293 = vpop.f32.mrf.mxu0
      %v1294 = vadd.f32 %v566, %v1293
      %v1295 = vpop.f32.mrf.mxu0
      %v1296 = vpop.f32.mrf.mxu0
      %v1297 = vadd.f32 %v571, %v1296
      %v1298 = vpop.f32.mrf.mxu0
      %1299 = vmatprep.mubr.bf16.mxu0 %v918
      %1300 = vmatmul.mubr.bf16.gmra.mxu0 %v917
      %v1301 = vpop.f32.mrf.mxu0
      %v1302 = vadd.f32 %v576, %v1301
      %v1303 = vpop.f32.mrf.mxu0
      %v1304 = vpop.f32.mrf.mxu0
      %v1305 = vadd.f32 %v581, %v1304
      %v1306 = vpop.f32.mrf.mxu0
      %1307 = vmatprep.mubr.bf16.mxu0 %v920
      %1308 = vmatmul.mubr.bf16.gmra.mxu0 %v919
      %v1309 = vpop.f32.mrf.mxu0
      %v1310 = vadd.f32 %v586, %v1309
      %v1311 = vpop.f32.mrf.mxu0
      %v1312 = vpop.f32.mrf.mxu0
      %v1313 = vadd.f32 %v591, %v1312
      %v1314 = vpop.f32.mrf.mxu0
      %1315 = vmatprep.mubr.bf16.mxu0 %v922
      %1316 = vmatmul.mubr.bf16.gmra.mxu0 %v921
      %v1317 = vpop.f32.mrf.mxu0
      %v1318 = vadd.f32 %v596, %v1317
      %v1319 = vpop.f32.mrf.mxu0
      %v1320 = vpop.f32.mrf.mxu0
      %v1321 = vadd.f32 %v601, %v1320
      %v1322 = vpop.f32.mrf.mxu0
      %1323 = vmatprep.mubr.bf16.mxu0 %v924
      %1324 = vmatmul.mubr.bf16.gmra.mxu0 %v923
      %v1325 = vpop.f32.mrf.mxu0
      %v1326 = vadd.f32 %v606, %v1325
      %v1327 = vpop.f32.mrf.mxu0
      %v1328 = vpop.f32.mrf.mxu0
      %v1329 = vadd.f32 %v611, %v1328
      %v1330 = vpop.f32.mrf.mxu0
      %1331 = vmatprep.mubr.bf16.mxu0 %v926
      %1332 = vmatmul.mubr.bf16.gmra.mxu0 %v925
      %v1333 = vpop.f32.mrf.mxu0
      %v1334 = vadd.f32 %v616, %v1333
      %v1335 = vpop.f32.mrf.mxu0
      %v1336 = vpop.f32.mrf.mxu0
      %v1337 = vadd.f32 %v621, %v1336
      %v1338 = vpop.f32.mrf.mxu0
      %1339 = vmatprep.mubr.bf16.mxu0 %v928
      %1340 = vmatmul.mubr.bf16.gmra.mxu0 %v927
      %v1341 = vpop.f32.mrf.mxu0
      %v1342 = vadd.f32 %v626, %v1341
      %v1343 = vpop.f32.mrf.mxu0
      %v1344 = vpop.f32.mrf.mxu0
      %v1345 = vadd.f32 %v631, %v1344
      %v1346 = vpop.f32.mrf.mxu0
      %1347 = vmatprep.mubr.bf16.mxu0 %v930
      %1348 = vmatmul.mubr.bf16.gmra.mxu0 %v929
      %v1349 = vpop.f32.mrf.mxu0
      %v1350 = vadd.f32 %v636, %v1349
      %v1351 = vpop.f32.mrf.mxu0
      %v1352 = vpop.f32.mrf.mxu0
      %v1353 = vadd.f32 %v641, %v1352
      %v1354 = vpop.f32.mrf.mxu0
      %1355 = vmatprep.mubr.bf16.mxu0 %v932
      %1356 = vmatmul.mubr.bf16.gmra.mxu0 %v931
      %v1357 = vpop.f32.mrf.mxu0
      %v1358 = vadd.f32 %v646, %v1357
      %v1359 = vpop.f32.mrf.mxu0
      %v1360 = vpop.f32.mrf.mxu0
      %v1361 = vadd.f32 %v651, %v1360
      %v1362 = vpop.f32.mrf.mxu0
      %1363 = vmatprep.mubr.bf16.mxu0 %v934
      %1364 = vmatmul.mubr.bf16.gmra.mxu0 %v933
      %v1365 = vpop.f32.mrf.mxu0
      %v1366 = vadd.f32 %v656, %v1365
      %v1367 = vpop.f32.mrf.mxu0
      %v1368 = vpop.f32.mrf.mxu0
      %v1369 = vadd.f32 %v661, %v1368
      %v1370 = vpop.f32.mrf.mxu0
      %1371 = vmatprep.mubr.bf16.mxu0 %v936
      %1372 = vmatmul.mubr.bf16.gmra.mxu0 %v935
      %v1373 = vpop.f32.mrf.mxu0
      %v1374 = vadd.f32 %v666, %v1373
      %v1375 = vpop.f32.mrf.mxu0
      %v1376 = vpop.f32.mrf.mxu0
      %v1377 = vadd.f32 %v671, %v1376
      %v1378 = vpop.f32.mrf.mxu0
      %1379 = vmatprep.mubr.bf16.mxu0 %v938
      %1380 = vmatmul.mubr.bf16.gmra.mxu0 %v937
      %v1381 = vpop.f32.mrf.mxu0
      %v1382 = vadd.f32 %v676, %v1381
      %v1383 = vpop.f32.mrf.mxu0
      %v1384 = vpop.f32.mrf.mxu0
      %v1385 = vadd.f32 %v681, %v1384
      %v1386 = vpop.f32.mrf.mxu0
      %1387 = vdwg.mxu0
      %v1388 = vmax.f32 %v1134, 0.0
      %v1389 = vmax.f32 %v1137, 0.0
      %v1390 = vmax.f32 %v1142, 0.0
      %v1391 = vmax.f32 %v1145, 0.0
      %v1392 = vmax.f32 %v1150, 0.0
      %v1393 = vmax.f32 %v1153, 0.0
      %v1394 = vmax.f32 %v1158, 0.0
      %v1395 = vmax.f32 %v1161, 0.0
      %v1396 = vmax.f32 %v1166, 0.0
      %v1397 = vmax.f32 %v1169, 0.0
      %v1398 = vmax.f32 %v1174, 0.0
      %v1399 = vmax.f32 %v1177, 0.0
      %v1400 = vmax.f32 %v1182, 0.0
      %v1401 = vmax.f32 %v1185, 0.0
      %v1402 = vmax.f32 %v1190, 0.0
      %v1403 = vmax.f32 %v1193, 0.0
      %v1404 = vmax.f32 %v1198, 0.0
      %v1405 = vmax.f32 %v1201, 0.0
      %v1406 = vmax.f32 %v1206, 0.0
      %v1407 = vmax.f32 %v1209, 0.0
      %v1408 = vmax.f32 %v1214, 0.0
      %v1409 = vmax.f32 %v1217, 0.0
      %v1410 = vmax.f32 %v1222, 0.0
      %v1411 = vmax.f32 %v1225, 0.0
      %v1412 = vmax.f32 %v1230, 0.0
      %v1413 = vmax.f32 %v1233, 0.0
      %v1414 = vmax.f32 %v1238, 0.0
      %v1415 = vmax.f32 %v1241, 0.0
      %v1416 = vmax.f32 %v1246, 0.0
      %v1417 = vmax.f32 %v1249, 0.0
      %v1418 = vmax.f32 %v1254, 0.0
      %v1419 = vmax.f32 %v1257, 0.0
      %v1420 = vmax.f32 %v1262, 0.0
      %v1421 = vmax.f32 %v1265, 0.0
      %v1422 = vmax.f32 %v1270, 0.0
      %v1423 = vmax.f32 %v1273, 0.0
      %v1424 = vmax.f32 %v1278, 0.0
      %v1425 = vmax.f32 %v1281, 0.0
      %v1426 = vmax.f32 %v1286, 0.0
      %v1427 = vmax.f32 %v1289, 0.0
      %v1428 = vmax.f32 %v1294, 0.0
      %v1429 = vmax.f32 %v1297, 0.0
      %v1430 = vmax.f32 %v1302, 0.0
      %v1431 = vmax.f32 %v1305, 0.0
      %v1432 = vmax.f32 %v1310, 0.0
      %v1433 = vmax.f32 %v1313, 0.0
      %v1434 = vmax.f32 %v1318, 0.0
      %v1435 = vmax.f32 %v1321, 0.0
      %v1436 = vmax.f32 %v1326, 0.0
      %v1437 = vmax.f32 %v1329, 0.0
      %v1438 = vmax.f32 %v1334, 0.0
      %v1439 = vmax.f32 %v1337, 0.0
      %v1440 = vmax.f32 %v1342, 0.0
      %v1441 = vmax.f32 %v1345, 0.0
      %v1442 = vmax.f32 %v1350, 0.0
      %v1443 = vmax.f32 %v1353, 0.0
      %v1444 = vmax.f32 %v1358, 0.0
      %v1445 = vmax.f32 %v1361, 0.0
      %v1446 = vmax.f32 %v1366, 0.0
      %v1447 = vmax.f32 %v1369, 0.0
      %v1448 = vmax.f32 %v1374, 0.0
      %v1449 = vmax.f32 %v1377, 0.0
      %v1450 = vmax.f32 %v1382, 0.0
      %v1451 = vmax.f32 %v1385, 0.0
      %v1452 = vpack.c.bf16 %v1389, %v1388
      %v1453 = vpack.c.bf16 %v1391, %v1390
      %v1454 = vpack.c.bf16 %v1393, %v1392
      %v1455 = vpack.c.bf16 %v1395, %v1394
      %v1456 = vpack.c.bf16 %v1397, %v1396
      %v1457 = vpack.c.bf16 %v1399, %v1398
      %v1458 = vpack.c.bf16 %v1401, %v1400
      %v1459 = vpack.c.bf16 %v1403, %v1402
      %v1460 = vpack.c.bf16 %v1405, %v1404
      %v1461 = vpack.c.bf16 %v1407, %v1406
      %v1462 = vpack.c.bf16 %v1409, %v1408
      %v1463 = vpack.c.bf16 %v1411, %v1410
      %v1464 = vpack.c.bf16 %v1413, %v1412
      %v1465 = vpack.c.bf16 %v1415, %v1414
      %v1466 = vpack.c.bf16 %v1417, %v1416
      %v1467 = vpack.c.bf16 %v1419, %v1418
      %v1468 = vpack.c.bf16 %v1421, %v1420
      %v1469 = vpack.c.bf16 %v1423, %v1422
      %v1470 = vpack.c.bf16 %v1425, %v1424
      %v1471 = vpack.c.bf16 %v1427, %v1426
      %v1472 = vpack.c.bf16 %v1429, %v1428
      %v1473 = vpack.c.bf16 %v1431, %v1430
      %v1474 = vpack.c.bf16 %v1433, %v1432
      %v1475 = vpack.c.bf16 %v1435, %v1434
      %v1476 = vpack.c.bf16 %v1437, %v1436
      %v1477 = vpack.c.bf16 %v1439, %v1438
      %v1478 = vpack.c.bf16 %v1441, %v1440
      %v1479 = vpack.c.bf16 %v1443, %v1442
      %v1480 = vpack.c.bf16 %v1445, %v1444
      %v1481 = vpack.c.bf16 %v1447, %v1446
      %v1482 = vpack.c.bf16 %v1449, %v1448
      %v1483 = vpack.c.bf16 %v1451, %v1450
      %v1516 = vunpack.c.l.b16 %v1452
      %v1517 = vunpack.c.h.b16 %v1452
      %v1518 = vunpack.c.l.b16 %v1453
      %v1519 = vunpack.c.h.b16 %v1453
      %v1520 = vunpack.c.l.b16 %v1454
      %v1521 = vunpack.c.h.b16 %v1454
      %v1522 = vunpack.c.l.b16 %v1455
      %v1523 = vunpack.c.h.b16 %v1455
      %v1524 = vunpack.c.l.b16 %v1456
      %v1525 = vunpack.c.h.b16 %v1456
      %v1526 = vunpack.c.l.b16 %v1457
      %v1527 = vunpack.c.h.b16 %v1457
      %v1528 = vunpack.c.l.b16 %v1458
      %v1529 = vunpack.c.h.b16 %v1458
      %v1530 = vunpack.c.l.b16 %v1459
      %v1531 = vunpack.c.h.b16 %v1459
      %v1532 = vunpack.c.l.b16 %v1460
      %v1533 = vunpack.c.h.b16 %v1460
      %v1534 = vunpack.c.l.b16 %v1461
      %v1535 = vunpack.c.h.b16 %v1461
      %v1536 = vunpack.c.l.b16 %v1462
      %v1537 = vunpack.c.h.b16 %v1462
      %v1538 = vunpack.c.l.b16 %v1463
      %v1539 = vunpack.c.h.b16 %v1463
      %v1540 = vunpack.c.l.b16 %v1464
      %v1541 = vunpack.c.h.b16 %v1464
      %v1542 = vunpack.c.l.b16 %v1465
      %v1543 = vunpack.c.h.b16 %v1465
      %v1544 = vunpack.c.l.b16 %v1466
      %v1545 = vunpack.c.h.b16 %v1466
      %v1546 = vunpack.c.l.b16 %v1467
      %v1547 = vunpack.c.h.b16 %v1467
      %v1548 = vunpack.c.l.b16 %v1468
      %v1549 = vunpack.c.h.b16 %v1468
      %v1550 = vunpack.c.l.b16 %v1469
      %v1551 = vunpack.c.h.b16 %v1469
      %v1552 = vunpack.c.l.b16 %v1470
      %v1553 = vunpack.c.h.b16 %v1470
      %v1554 = vunpack.c.l.b16 %v1471
      %v1555 = vunpack.c.h.b16 %v1471
      %v1556 = vunpack.c.l.b16 %v1472
      %v1557 = vunpack.c.h.b16 %v1472
      %v1558 = vunpack.c.l.b16 %v1473
      %v1559 = vunpack.c.h.b16 %v1473
      %v1560 = vunpack.c.l.b16 %v1474
      %v1561 = vunpack.c.h.b16 %v1474
      %v1562 = vunpack.c.l.b16 %v1475
      %v1563 = vunpack.c.h.b16 %v1475
      %v1564 = vunpack.c.l.b16 %v1476
      %v1565 = vunpack.c.h.b16 %v1476
      %v1566 = vunpack.c.l.b16 %v1477
      %v1567 = vunpack.c.h.b16 %v1477
      %v1568 = vunpack.c.l.b16 %v1478
      %v1569 = vunpack.c.h.b16 %v1478
      %v1570 = vunpack.c.l.b16 %v1479
      %v1571 = vunpack.c.h.b16 %v1479
      %v1572 = vunpack.c.l.b16 %v1480
      %v1573 = vunpack.c.h.b16 %v1480
      %v1574 = vunpack.c.l.b16 %v1481
      %v1575 = vunpack.c.h.b16 %v1481
      %v1576 = vunpack.c.l.b16 %v1482
      %v1577 = vunpack.c.h.b16 %v1482
      %v1578 = vunpack.c.l.b16 %v1483
      %v1579 = vunpack.c.h.b16 %v1483
      %v1580 = vpack.c.b16 %v1516, %v1516
      %v1581 = vpack.c.b16 %v1517, %v1517
      %v1582 = vpack.c.b16 %v1518, %v1518
      %v1583 = vpack.c.b16 %v1519, %v1519
      %v1584 = vpack.c.b16 %v1520, %v1520
      %v1585 = vpack.c.b16 %v1521, %v1521
      %v1586 = vpack.c.b16 %v1522, %v1522
      %v1587 = vpack.c.b16 %v1523, %v1523
      %v1588 = vpack.c.b16 %v1524, %v1524
      %v1589 = vpack.c.b16 %v1525, %v1525
      %v1590 = vpack.c.b16 %v1526, %v1526
      %v1591 = vpack.c.b16 %v1527, %v1527
      %v1592 = vpack.c.b16 %v1528, %v1528
      %v1593 = vpack.c.b16 %v1529, %v1529
      %v1594 = vpack.c.b16 %v1530, %v1530
      %v1595 = vpack.c.b16 %v1531, %v1531
      %v1596 = vpack.c.b16 %v1532, %v1532
      %v1597 = vpack.c.b16 %v1533, %v1533
      %v1598 = vpack.c.b16 %v1534, %v1534
      %v1599 = vpack.c.b16 %v1535, %v1535
      %v1600 = vpack.c.b16 %v1536, %v1536
      %v1601 = vpack.c.b16 %v1537, %v1537
      %v1602 = vpack.c.b16 %v1538, %v1538
      %v1603 = vpack.c.b16 %v1539, %v1539
      %v1604 = vpack.c.b16 %v1540, %v1540
      %v1605 = vpack.c.b16 %v1541, %v1541
      %v1606 = vpack.c.b16 %v1542, %v1542
      %v1607 = vpack.c.b16 %v1543, %v1543
      %v1608 = vpack.c.b16 %v1544, %v1544
      %v1609 = vpack.c.b16 %v1545, %v1545
      %v1610 = vpack.c.b16 %v1546, %v1546
      %v1611 = vpack.c.b16 %v1547, %v1547
      %v1612 = vpack.c.b16 %v1548, %v1548
      %v1613 = vpack.c.b16 %v1549, %v1549
      %v1614 = vpack.c.b16 %v1550, %v1550
      %v1615 = vpack.c.b16 %v1551, %v1551
      %v1616 = vpack.c.b16 %v1552, %v1552
      %v1617 = vpack.c.b16 %v1553, %v1553
      %v1618 = vpack.c.b16 %v1554, %v1554
      %v1619 = vpack.c.b16 %v1555, %v1555
      %v1620 = vpack.c.b16 %v1556, %v1556
      %v1621 = vpack.c.b16 %v1557, %v1557
      %v1622 = vpack.c.b16 %v1558, %v1558
      %v1623 = vpack.c.b16 %v1559, %v1559
      %v1624 = vpack.c.b16 %v1560, %v1560
      %v1625 = vpack.c.b16 %v1561, %v1561
      %v1626 = vpack.c.b16 %v1562, %v1562
      %v1627 = vpack.c.b16 %v1563, %v1563
      %v1628 = vpack.c.b16 %v1564, %v1564
      %v1629 = vpack.c.b16 %v1565, %v1565
      %v1630 = vpack.c.b16 %v1566, %v1566
      %v1631 = vpack.c.b16 %v1567, %v1567
      %v1632 = vpack.c.b16 %v1568, %v1568
      %v1633 = vpack.c.b16 %v1569, %v1569
      %v1634 = vpack.c.b16 %v1570, %v1570
      %v1635 = vpack.c.b16 %v1571, %v1571
      %v1636 = vpack.c.b16 %v1572, %v1572
      %v1637 = vpack.c.b16 %v1573, %v1573
      %v1638 = vpack.c.b16 %v1574, %v1574
      %v1639 = vpack.c.b16 %v1575, %v1575
      %v1640 = vpack.c.b16 %v1576, %v1576
      %v1641 = vpack.c.b16 %v1577, %v1577
      %v1642 = vpack.c.b16 %v1578, %v1578
      %v1643 = vpack.c.b16 %v1579, %v1579
      %vm1708 = vcmask 27648
      %1709 = vst.msk [vmem:[%s201] sm:$0xf] %vm1708, %v1580
      %1710 = vst.msk [vmem:[%s201 + $0x4] sm:$0xf] %vm1708, %v1581
      %1711 = vst.msk [vmem:[%s201 + $0x8] sm:$0xf] %vm1708, %v1582
      %1712 = vst.msk [vmem:[%s201 + $0xc] sm:$0xf] %vm1708, %v1583
      %1713 = vst.msk [vmem:[%s201 + $0x10] sm:$0xf] %vm1708, %v1584
      %1714 = vst.msk [vmem:[%s201 + $0x14] sm:$0xf] %vm1708, %v1585
      %1715 = vst.msk [vmem:[%s201 + $0x18] sm:$0xf] %vm1708, %v1586
      %1716 = vst.msk [vmem:[%s201 + $0x1c] sm:$0xf] %vm1708, %v1587
      %1717 = vst.msk [vmem:[%s201 + $0x20] sm:$0xf] %vm1708, %v1588
      %1718 = vst.msk [vmem:[%s201 + $0x24] sm:$0xf] %vm1708, %v1589
      %1719 = vst.msk [vmem:[%s201 + $0x28] sm:$0xf] %vm1708, %v1590
      %1720 = vst.msk [vmem:[%s201 + $0x2c] sm:$0xf] %vm1708, %v1591
      %1721 = vst.msk [vmem:[%s201 + $0x30] sm:$0xf] %vm1708, %v1592
      %1722 = vst.msk [vmem:[%s201 + $0x34] sm:$0xf] %vm1708, %v1593
      %1723 = vst.msk [vmem:[%s201 + $0x38] sm:$0xf] %vm1708, %v1594
      %1724 = vst.msk [vmem:[%s201 + $0x3c] sm:$0xf] %vm1708, %v1595
      %1725 = vst.msk [vmem:[%s201 + $0x40] sm:$0xf] %vm1708, %v1596
      %1726 = vst.msk [vmem:[%s201 + $0x44] sm:$0xf] %vm1708, %v1597
      %1727 = vst.msk [vmem:[%s201 + $0x48] sm:$0xf] %vm1708, %v1598
      %1728 = vst.msk [vmem:[%s201 + $0x4c] sm:$0xf] %vm1708, %v1599
      %1729 = vst.msk [vmem:[%s201 + $0x50] sm:$0xf] %vm1708, %v1600
      %1730 = vst.msk [vmem:[%s201 + $0x54] sm:$0xf] %vm1708, %v1601
      %1731 = vst.msk [vmem:[%s201 + $0x58] sm:$0xf] %vm1708, %v1602
      %1732 = vst.msk [vmem:[%s201 + $0x5c] sm:$0xf] %vm1708, %v1603
      %1733 = vst.msk [vmem:[%s201 + $0x60] sm:$0xf] %vm1708, %v1604
      %1734 = vst.msk [vmem:[%s201 + $0x64] sm:$0xf] %vm1708, %v1605
      %1735 = vst.msk [vmem:[%s201 + $0x68] sm:$0xf] %vm1708, %v1606
      %1736 = vst.msk [vmem:[%s201 + $0x6c] sm:$0xf] %vm1708, %v1607
      %1737 = vst.msk [vmem:[%s201 + $0x70] sm:$0xf] %vm1708, %v1608
      %1738 = vst.msk [vmem:[%s201 + $0x74] sm:$0xf] %vm1708, %v1609
      %1739 = vst.msk [vmem:[%s201 + $0x78] sm:$0xf] %vm1708, %v1610
      %1740 = vst.msk [vmem:[%s201 + $0x7c] sm:$0xf] %vm1708, %v1611
      %1741 = vst.msk [vmem:[%s201 + $0x80] sm:$0xf] %vm1708, %v1612
      %1742 = vst.msk [vmem:[%s201 + $0x84] sm:$0xf] %vm1708, %v1613
      %1743 = vst.msk [vmem:[%s201 + $0x88] sm:$0xf] %vm1708, %v1614
      %1744 = vst.msk [vmem:[%s201 + $0x8c] sm:$0xf] %vm1708, %v1615
      %1745 = vst.msk [vmem:[%s201 + $0x90] sm:$0xf] %vm1708, %v1616
      %1746 = vst.msk [vmem:[%s201 + $0x94] sm:$0xf] %vm1708, %v1617
      %1747 = vst.msk [vmem:[%s201 + $0x98] sm:$0xf] %vm1708, %v1618
      %1748 = vst.msk [vmem:[%s201 + $0x9c] sm:$0xf] %vm1708, %v1619
      %1749 = vst.msk [vmem:[%s201 + $0xa0] sm:$0xf] %vm1708, %v1620
      %1750 = vst.msk [vmem:[%s201 + $0xa4] sm:$0xf] %vm1708, %v1621
      %1751 = vst.msk [vmem:[%s201 + $0xa8] sm:$0xf] %vm1708, %v1622
      %1752 = vst.msk [vmem:[%s201 + $0xac] sm:$0xf] %vm1708, %v1623
      %1753 = vst.msk [vmem:[%s201 + $0xb0] sm:$0xf] %vm1708, %v1624
      %1754 = vst.msk [vmem:[%s201 + $0xb4] sm:$0xf] %vm1708, %v1625
      %1755 = vst.msk [vmem:[%s201 + $0xb8] sm:$0xf] %vm1708, %v1626
      %1756 = vst.msk [vmem:[%s201 + $0xbc] sm:$0xf] %vm1708, %v1627
      %1757 = vst.msk [vmem:[%s201 + $0xc0] sm:$0xf] %vm1708, %v1628
      %1758 = vst.msk [vmem:[%s201 + $0xc4] sm:$0xf] %vm1708, %v1629
      %1759 = vst.msk [vmem:[%s201 + $0xc8] sm:$0xf] %vm1708, %v1630
      %1760 = vst.msk [vmem:[%s201 + $0xcc] sm:$0xf] %vm1708, %v1631
      %1761 = vst.msk [vmem:[%s201 + $0xd0] sm:$0xf] %vm1708, %v1632
      %1762 = vst.msk [vmem:[%s201 + $0xd4] sm:$0xf] %vm1708, %v1633
      %1763 = vst.msk [vmem:[%s201 + $0xd8] sm:$0xf] %vm1708, %v1634
      %1764 = vst.msk [vmem:[%s201 + $0xdc] sm:$0xf] %vm1708, %v1635
      %1765 = vst.msk [vmem:[%s201 + $0xe0] sm:$0xf] %vm1708, %v1636
      %1766 = vst.msk [vmem:[%s201 + $0xe4] sm:$0xf] %vm1708, %v1637
      %1767 = vst.msk [vmem:[%s201 + $0xe8] sm:$0xf] %vm1708, %v1638
      %1768 = vst.msk [vmem:[%s201 + $0xec] sm:$0xf] %vm1708, %v1639
      %1769 = vst.msk [vmem:[%s201 + $0xf0] sm:$0xf] %vm1708, %v1640
      %1770 = vst.msk [vmem:[%s201 + $0xf4] sm:$0xf] %vm1708, %v1641
      %1771 = vst.msk [vmem:[%s201 + $0xf8] sm:$0xf] %vm1708, %v1642
      %1772 = vst.msk [vmem:[%s201 + $0xfc] sm:$0xf] %vm1708, %v1643
      %p1773 = scmp.lt.s32.totalorder %s18, 1
      %s1774 = scalar_select %p1773, %s18, 1
      %p1775 = scmp.lt.s32.totalorder %s19, 0
      %s1776 = scalar_select %p1775, %s19, 0
      %s1777 = smul.addr %s1774, 64
      %s1778 = sadd.s32 %s1776, %s1777
      %s1779 = smul.addr %s1778, 4
      %s1780 = scalar_lea.vmem %s3, %s1779
      // Predicated region
      $region33: #{fcn_forward.9} parent=31 // pred_check
        %p1781 = pneg %p116
      $region34: #{fcn_forward.9} parent=31 // pred_check_branch
        %1783 = sbr.rel (%p1781) target = $region36
      $region35: #{fcn_forward.9} parent=31 // pred_region
        _
      $region36: #{fcn_forward.9} parent=31 // pred_fallthru
        _
    $region32: #{fcn_forward.9} parent=5 // pred_fallthru
      _
    %p1784 = scmp.le.s32.totalorder 2, %s9
    // Predicated region
    $region37: #{fcn_forward.9} parent=5 // pred_check
      %p1785 = pneg %p1784
    $region38: #{fcn_forward.9} parent=5 // pred_check_branch
      %1787 = sbr.rel (%p1785) target = $region40
    $region39: #{fcn_forward.9} parent=5 // pred_region
      %s1788 = ssub.s32 %s9, 2
      // Predicated region
      $region41: #{fcn_forward.9} parent=39 // pred_check
        %p1789 = pneg %p122
      $region42: #{fcn_forward.9} parent=39 // pred_check_branch
        %1791 = sbr.rel (%p1789) target = $region44
      $region43: #{fcn_forward.9} parent=39 // pred_region
        %p1792 = scmp.lt.s32.totalorder %s20, 1
        %s1793 = scalar_select %p1792, %s20, 1
        %p1794 = scmp.lt.s32.totalorder %s21, 0
        %s1795 = scalar_select %p1794, %s21, 0
        %s1796 = smul.addr %s1793, 64
        %s1797 = sadd.s32 %s1795, %s1796
        %s1798 = smul.addr %s1797, 4
        %s1799 = scalar_lea.vmem %s3, %s1798
      $region44: #{fcn_forward.9} parent=39 // pred_fallthru
        _
    $region40: #{fcn_forward.9} parent=5 // pred_fallthru
      _
  $region6: #{fcn_forward.9} parent=0 // loop_footer
    %s13 = sadd.s32 1, %s9
  $region7: #{fcn_forward.9} parent=0 // loop_footer_branch
    %8 = sbr.rel target = $region3
  $region8: #{fcn_forward.9} parent=0 // loop_exit
    _

// kernel: fcn_forward.13
$region0: #{fcn_forward.13}
  #allocation0 [shape = 'u32[]', space=smem, size = 0x4, offset = 0x4, fixed_abs, tag = 'smem constant byte address 0x4 - core index']
  #allocation1 [shape = 'u32[144,128]{1,0:T(1,128)}', space=vmem, size = 0x12000, scoped, tag = 'internal scratch']
  %s0 = inlined_call_operand.vmem [shape: bf16[2,8,8,8], index: 0, kind: input, shape index: {}]
  %s1 = inlined_call_operand.vmem [shape: bf16[2,8,4,4], index: 1, kind: input, shape index: {}]
  %s2 = inlined_call_operand.vmem [shape: bf16[2,8,2,2], index: 2, kind: input, shape index: {}]
  %s3 = inlined_call_operand.vmem [shape: bf16[4,2], index: 3, kind: input, shape index: {}]
  %s4 = inlined_call_operand.vmem [shape: bf16[2,4], index: 4, kind: input, shape index: {}]
  %s5 = inlined_call_operand.vmem [shape: bf16[8,4], index: 5, kind: input, shape index: {}]
  %s6 = inlined_call_operand.vmem [shape: bf16[4,8], index: 6, kind: input, shape index: {}]
  %s7 = inlined_call_operand.vmem [shape: bf16[64,8], index: 7, kind: input, shape index: {}]
  %s8 = inlined_call_operand.vmem [shape: bf16[8,64], index: 8, kind: input, shape index: {}]
  %s9 = inlined_call_operand.vmem [shape: f32[2,8,64,64], index: 9, kind: output, shape index: {}]
  %s10 = sld [smem:[#allocation0]]
  $region69: #{fcn_forward.13} parent=0
    _
  %s12 = ssub.s32 1, %s10
  %s13 = scalar_select 0, %s12, %s10
  loop: start=0, step=1, limit=4
  $region2: #{fcn_forward.13} parent=0 // loop_pre_header
    _
  $region3: #{fcn_forward.13} parent=0 // loop_header
    %s15 = sphi 0, %s19
    %p16 = scmp.ge.s32.totalorder %s15, 4
    %s22 = sphi 0, %s34
    %s23 = sphi 0, %s30
    %s24 = sphi 0, %s22
    %s25 = sphi 0, %s23
    %s26 = sphi 0, %s24
    %s27 = sphi 0, %s25
    %s37 = sphi 0, %s39
    %s40 = sphi 0, %s37
    %s41 = sphi 0, %s40
    %s57 = sphi 0, %s41
    %s63 = sphi 0, %s65
    %s66 = sphi 0, %s63
    %s67 = sphi 0, %s66
    %s83 = sphi 0, %s67
    %s89 = sphi 0, %s91
    %s92 = sphi 0, %s89
    %s93 = sphi 0, %s92
    %s109 = sphi 0, %s93
    %s113 = sphi 0, %s113
    %s115 = sphi 0, %s113
    %s116 = sphi 0, %s115
    %s130 = sphi 0, %s116
    %s134 = sphi 0, %s134
    %s136 = sphi 0, %s134
    %s137 = sphi 0, %s136
    %s151 = sphi 0, %s137
    %s155 = sphi 0, %s155
    %s157 = sphi 0, %s155
    %s158 = sphi 0, %s157
    %s172 = sphi 0, %s158
    %s176 = sphi 0, %s176
    %s178 = sphi 0, %s176
    %s179 = sphi 0, %s178
    %s193 = sphi 0, %s179
    %s199 = sphi 0, %s201
    %s202 = sphi 0, %s199
    %s203 = sphi 0, %s202
    %s219 = sphi 0, %s203
    %s223 = sphi 0, %s223
    %s225 = sphi 0, %s223
    %s226 = sphi 0, %s225
    %s240 = sphi 0, %s226
    %s248 = sphi 0, %s250
    %s251 = sphi 0, %s248
    %s252 = sphi 0, %s251
    %s268 = sphi 0, %s252
  $region4: #{fcn_forward.13} parent=0 // loop_header_branch
    %18 = sbr.rel (%p16) target = $region8
  $region5: #{fcn_forward.13} parent=0 // loop_body
    %s20 = ssub.s32 %s15, 1
    %s21 = ssub.s32 %s15, 2
    %s28 = sadd.s32 1, %s23
    %p29 = scmp.ge.s32.totalorder %s28, 1
    %s30 = scalar_select %p29, 0, %s28
    %s31 = sadd.s32 1, %s22
    %s32 = scalar_select %p29, %s31, %s22
    %p33 = scmp.ge.s32.totalorder %s32, 2
    %s34 = scalar_select %p33, 0, %s32
    %s35 = ssub.s32 %s22, %s34
    %p36 = scmp.eq.s32.totalorder %s35, 0
    %s38 = sadd.s32 %s37, 1
    %s39 = scalar_select %p36, %s37, %s38
    %p42 = pneg %p36
    %p43 = scmp.eq.s32.totalorder %s15, 1
    %p44 = por %p42, %p43
    %p45 = scmp.ne.s32.totalorder %s37, %s40
    %p46 = scmp.eq.s32.totalorder %s15, 0
    %p47 = por %p45, %p46
    %p48 = scmp.ne.s32.totalorder %s37, %s40
    %p49 = scmp.eq.s32.totalorder %s20, 1
    %p50 = por %p48, %p49
    %p51 = scmp.ne.s32.totalorder %s40, %s41
    %p52 = scmp.eq.s32.totalorder %s20, 0
    %p53 = por %p51, %p52
    %p54 = scmp.ne.s32.totalorder %s40, %s41
    %p55 = scmp.eq.s32.totalorder %s21, 1
    %p56 = por %p54, %p55
    %p58 = scmp.ne.s32.totalorder %s41, %s57
    %p59 = scmp.eq.s32.totalorder %s21, 0
    %p60 = por %p58, %p59
    %s61 = ssub.s32 %s22, %s34
    %p62 = scmp.eq.s32.totalorder %s61, 0
    %s64 = sadd.s32 %s63, 1
    %s65 = scalar_select %p62, %s63, %s64
    %p68 = pneg %p62
    %p69 = scmp.eq.s32.totalorder %s15, 1
    %p70 = por %p68, %p69
    %p71 = scmp.ne.s32.totalorder %s63, %s66
    %p72 = scmp.eq.s32.totalorder %s15, 0
    %p73 = por %p71, %p72
    %p74 = scmp.ne.s32.totalorder %s63, %s66
    %p75 = scmp.eq.s32.totalorder %s20, 1
    %p76 = por %p74, %p75
    %p77 = scmp.ne.s32.totalorder %s66, %s67
    %p78 = scmp.eq.s32.totalorder %s20, 0
    %p79 = por %p77, %p78
    %p80 = scmp.ne.s32.totalorder %s66, %s67
    %p81 = scmp.eq.s32.totalorder %s21, 1
    %p82 = por %p80, %p81
    %p84 = scmp.ne.s32.totalorder %s67, %s83
    %p85 = scmp.eq.s32.totalorder %s21, 0
    %p86 = por %p84, %p85
    %s87 = ssub.s32 %s22, %s34
    %p88 = scmp.eq.s32.totalorder %s87, 0
    %s90 = sadd.s32 %s89, 1
    %s91 = scalar_select %p88, %s89, %s90
    %p94 = pneg %p88
    %p95 = scmp.eq.s32.totalorder %s15, 1
    %p96 = por %p94, %p95
    %p97 = scmp.ne.s32.totalorder %s89, %s92
    %p98 = scmp.eq.s32.totalorder %s15, 0
    %p99 = por %p97, %p98
    %p100 = scmp.ne.s32.totalorder %s89, %s92
    %p101 = scmp.eq.s32.totalorder %s20, 1
    %p102 = por %p100, %p101
    %p103 = scmp.ne.s32.totalorder %s92, %s93
    %p104 = scmp.eq.s32.totalorder %s20, 0
    %p105 = por %p103, %p104
    %p106 = scmp.ne.s32.totalorder %s92, %s93
    %p107 = scmp.eq.s32.totalorder %s21, 1
    %p108 = por %p106, %p107
    %p110 = scmp.ne.s32.totalorder %s93, %s109
    %p111 = scmp.eq.s32.totalorder %s21, 0
    %p112 = por %p110, %p111
    %s114 = sadd.s32 %s113, 1
    %p117 = scmp.eq.s32.totalorder %s15, 1
    %p118 = scmp.ne.s32.totalorder %s113, %s115
    %p119 = scmp.eq.s32.totalorder %s15, 0
    %p120 = por %p118, %p119
    %p121 = scmp.ne.s32.totalorder %s113, %s115
    %p122 = scmp.eq.s32.totalorder %s20, 1
    %p123 = por %p121, %p122
    %p124 = scmp.ne.s32.totalorder %s115, %s116
    %p125 = scmp.eq.s32.totalorder %s20, 0
    %p126 = por %p124, %p125
    %p127 = scmp.ne.s32.totalorder %s115, %s116
    %p128 = scmp.eq.s32.totalorder %s21, 1
    %p129 = por %p127, %p128
    %p131 = scmp.ne.s32.totalorder %s116, %s130
    %p132 = scmp.eq.s32.totalorder %s21, 0
    %p133 = por %p131, %p132
    %s135 = sadd.s32 %s134, 1
    %p138 = scmp.eq.s32.totalorder %s15, 1
    %p139 = scmp.ne.s32.totalorder %s134, %s136
    %p140 = scmp.eq.s32.totalorder %s15, 0
    %p141 = por %p139, %p140
    %p142 = scmp.ne.s32.totalorder %s134, %s136
    %p143 = scmp.eq.s32.totalorder %s20, 1
    %p144 = por %p142, %p143
    %p145 = scmp.ne.s32.totalorder %s136, %s137
    %p146 = scmp.eq.s32.totalorder %s20, 0
    %p147 = por %p145, %p146
    %p148 = scmp.ne.s32.totalorder %s136, %s137
    %p149 = scmp.eq.s32.totalorder %s21, 1
    %p150 = por %p148, %p149
    %p152 = scmp.ne.s32.totalorder %s137, %s151
    %p153 = scmp.eq.s32.totalorder %s21, 0
    %p154 = por %p152, %p153
    %s156 = sadd.s32 %s155, 1
    %p159 = scmp.eq.s32.totalorder %s15, 1
    %p160 = scmp.ne.s32.totalorder %s155, %s157
    %p161 = scmp.eq.s32.totalorder %s15, 0
    %p162 = por %p160, %p161
    %p163 = scmp.ne.s32.totalorder %s155, %s157
    %p164 = scmp.eq.s32.totalorder %s20, 1
    %p165 = por %p163, %p164
    %p166 = scmp.ne.s32.totalorder %s157, %s158
    %p167 = scmp.eq.s32.totalorder %s20, 0
    %p168 = por %p166, %p167
    %p169 = scmp.ne.s32.totalorder %s157, %s158
    %p170 = scmp.eq.s32.totalorder %s21, 1
    %p171 = por %p169, %p170
    %p173 = scmp.ne.s32.totalorder %s158, %s172
    %p174 = scmp.eq.s32.totalorder %s21, 0
    %p175 = por %p173, %p174
    %s177 = sadd.s32 %s176, 1
    %p180 = scmp.eq.s32.totalorder %s15, 1
    %p181 = scmp.ne.s32.totalorder %s176, %s178
    %p182 = scmp.eq.s32.totalorder %s15, 0
    %p183 = por %p181, %p182
    %p184 = scmp.ne.s32.totalorder %s176, %s178
    %p185 = scmp.eq.s32.totalorder %s20, 1
    %p186 = por %p184, %p185
    %p187 = scmp.ne.s32.totalorder %s178, %s179
    %p188 = scmp.eq.s32.totalorder %s20, 0
    %p189 = por %p187, %p188
    %p190 = scmp.ne.s32.totalorder %s178, %s179
    %p191 = scmp.eq.s32.totalorder %s21, 1
    %p192 = por %p190, %p191
    %p194 = scmp.ne.s32.totalorder %s179, %s193
    %p195 = scmp.eq.s32.totalorder %s21, 0
    %p196 = por %p194, %p195
    %s197 = ssub.s32 %s23, %s30
    %p198 = scmp.eq.s32.totalorder %s197, 0
    %s200 = sadd.s32 %s199, 1
    %s201 = scalar_select %p198, %s199, %s200
    %p204 = pneg %p198
    %p205 = scmp.eq.s32.totalorder %s15, 1
    %p206 = por %p204, %p205
    %p207 = scmp.ne.s32.totalorder %s199, %s202
    %p208 = scmp.eq.s32.totalorder %s15, 0
    %p209 = por %p207, %p208
    %p210 = scmp.ne.s32.totalorder %s199, %s202
    %p211 = scmp.eq.s32.totalorder %s20, 1
    %p212 = por %p210, %p211
    %p213 = scmp.ne.s32.totalorder %s202, %s203
    %p214 = scmp.eq.s32.totalorder %s20, 0
    %p215 = por %p213, %p214
    %p216 = scmp.ne.s32.totalorder %s202, %s203
    %p217 = scmp.eq.s32.totalorder %s21, 1
    %p218 = por %p216, %p217
    %p220 = scmp.ne.s32.totalorder %s203, %s219
    %p221 = scmp.eq.s32.totalorder %s21, 0
    %p222 = por %p220, %p221
    %s224 = sadd.s32 %s223, 1
    %p227 = scmp.eq.s32.totalorder %s15, 1
    %p228 = scmp.ne.s32.totalorder %s223, %s225
    %p229 = scmp.eq.s32.totalorder %s15, 0
    %p230 = por %p228, %p229
    %p231 = scmp.ne.s32.totalorder %s223, %s225
    %p232 = scmp.eq.s32.totalorder %s20, 1
    %p233 = por %p231, %p232
    %p234 = scmp.ne.s32.totalorder %s225, %s226
    %p235 = scmp.eq.s32.totalorder %s20, 0
    %p236 = por %p234, %p235
    %p237 = scmp.ne.s32.totalorder %s225, %s226
    %p238 = scmp.eq.s32.totalorder %s21, 1
    %p239 = por %p237, %p238
    %p241 = scmp.ne.s32.totalorder %s226, %s240
    %p242 = scmp.eq.s32.totalorder %s21, 0
    %p243 = por %p241, %p242
    %s244 = ssub.s32 %s22, %s34
    %s245 = ssub.s32 %s23, %s30
    %s246 = sor.u32 %s244, %s245
    %p247 = scmp.eq.s32.totalorder %s246, 0
    %s249 = sadd.s32 %s248, 1
    %s250 = scalar_select %p247, %s248, %s249
    %p253 = pneg %p247
    %p254 = scmp.eq.s32.totalorder %s15, 1
    %p255 = por %p253, %p254
    %p256 = scmp.ne.s32.totalorder %s248, %s251
    %p257 = scmp.eq.s32.totalorder %s15, 0
    %p258 = por %p256, %p257
    %p259 = scmp.ne.s32.totalorder %s248, %s251
    %p260 = scmp.eq.s32.totalorder %s20, 1
    %p261 = por %p259, %p260
    %p262 = scmp.ne.s32.totalorder %s251, %s252
    %p263 = scmp.eq.s32.totalorder %s20, 0
    %p264 = por %p262, %p263
    %p265 = scmp.ne.s32.totalorder %s251, %s252
    %p266 = scmp.eq.s32.totalorder %s21, 1
    %p267 = por %p265, %p266
    %p269 = scmp.ne.s32.totalorder %s252, %s268
    %p270 = scmp.eq.s32.totalorder %s21, 0
    %p271 = por %p269, %p270
    %p272 = scmp.le.s32.totalorder 1, %s15
    %p273 = scmp.lt.s32.totalorder %s15, 3
    %p274 = pnand %p272, %p273
    %p275 = pneg %p274
    // Predicated region
    $region9: #{fcn_forward.13} parent=5 // pred_check
      _
    $region10: #{fcn_forward.13} parent=5 // pred_check_branch
      %277 = sbr.rel (%p274) target = $region12
    $region11: #{fcn_forward.13} parent=5 // pred_region
      %s278 = ssub.s32 %s15, 1
      // Predicated region
      $region13: #{fcn_forward.13} parent=11 // pred_check
        %p279 = pneg %p126
      $region14: #{fcn_forward.13} parent=11 // pred_check_branch
        %281 = sbr.rel (%p279) target = $region16
      $region15: #{fcn_forward.13} parent=11 // pred_region
        _
      $region16: #{fcn_forward.13} parent=11 // pred_fallthru
        _
      // Predicated region
      $region17: #{fcn_forward.13} parent=11 // pred_check
        %p282 = pneg %p147
      $region18: #{fcn_forward.13} parent=11 // pred_check_branch
        %284 = sbr.rel (%p282) target = $region20
      $region19: #{fcn_forward.13} parent=11 // pred_region
        _
      $region20: #{fcn_forward.13} parent=11 // pred_fallthru
        _
      // Predicated region
      $region21: #{fcn_forward.13} parent=11 // pred_check
        %p285 = pneg %p168
      $region22: #{fcn_forward.13} parent=11 // pred_check_branch
        %287 = sbr.rel (%p285) target = $region24
      $region23: #{fcn_forward.13} parent=11 // pred_region
        _
      $region24: #{fcn_forward.13} parent=11 // pred_fallthru
        _
      // Predicated region
      $region25: #{fcn_forward.13} parent=11 // pred_check
        %p288 = pneg %p189
      $region26: #{fcn_forward.13} parent=11 // pred_check_branch
        %290 = sbr.rel (%p288) target = $region28
      $region27: #{fcn_forward.13} parent=11 // pred_region
        _
      $region28: #{fcn_forward.13} parent=11 // pred_fallthru
        _
      // Predicated region
      $region29: #{fcn_forward.13} parent=11 // pred_check
        %p291 = pneg %p215
      $region30: #{fcn_forward.13} parent=11 // pred_check_branch
        %293 = sbr.rel (%p291) target = $region32
      $region31: #{fcn_forward.13} parent=11 // pred_region
        %s294 = smul.u32 8, %s25
        %p295 = scmp.lt.s32.totalorder %s294, 7
        %s296 = scalar_select %p295, %s294, 7
        %s297 = smul.addr %s296, 4
        %s298 = scalar_lea.vmem %s7, %s297
        %s299 = smul.u32 8, %s25
      $region32: #{fcn_forward.13} parent=11 // pred_fallthru
        _
      // Predicated region
      $region33: #{fcn_forward.13} parent=11 // pred_check
        %p300 = pneg %p236
      $region34: #{fcn_forward.13} parent=11 // pred_check_branch
        %302 = sbr.rel (%p300) target = $region36
      $region35: #{fcn_forward.13} parent=11 // pred_region
        _
      $region36: #{fcn_forward.13} parent=11 // pred_fallthru
        _
    $region12: #{fcn_forward.13} parent=5 // pred_fallthru
      _
    %p303 = scmp.lt.s32.totalorder %s15, 2
    // Predicated region
    $region37: #{fcn_forward.13} parent=5 // pred_check
      %p304 = pneg %p303
    $region38: #{fcn_forward.13} parent=5 // pred_check_branch
      %306 = sbr.rel (%p304) target = $region40
    $region39: #{fcn_forward.13} parent=5 // pred_region
      // Predicated region
      $region41: #{fcn_forward.13} parent=39 // pred_check
        %p307 = pneg %p47
      $region42: #{fcn_forward.13} parent=39 // pred_check_branch
        %309 = sbr.rel (%p307) target = $region44
      $region43: #{fcn_forward.13} parent=39 // pred_region
        %p310 = scmp.lt.s32.totalorder %s22, 1
        %s311 = scalar_select %p310, %s22, 1
        %s312 = smul.addr %s311, 8
        %s313 = smul.addr %s312, 4
        %s314 = scalar_lea.vmem %s0, %s313
      $region44: #{fcn_forward.13} parent=39 // pred_fallthru
        _
      // Predicated region
      $region45: #{fcn_forward.13} parent=39 // pred_check
        %p315 = pneg %p73
      $region46: #{fcn_forward.13} parent=39 // pred_check_branch
        %317 = sbr.rel (%p315) target = $region48
      $region47: #{fcn_forward.13} parent=39 // pred_region
        %p318 = scmp.lt.s32.totalorder %s22, 1
        %s319 = scalar_select %p318, %s22, 1
        %s320 = smul.addr %s319, 8
        %s321 = smul.addr %s320, 2
        %s322 = scalar_lea.vmem %s1, %s321
      $region48: #{fcn_forward.13} parent=39 // pred_fallthru
        _
      // Predicated region
      $region49: #{fcn_forward.13} parent=39 // pred_check
        %p323 = pneg %p99
      $region50: #{fcn_forward.13} parent=39 // pred_check_branch
        %325 = sbr.rel (%p323) target = $region52
      $region51: #{fcn_forward.13} parent=39 // pred_region
        %p326 = scmp.lt.s32.totalorder %s22, 1
        %s327 = scalar_select %p326, %s22, 1
        %s328 = smul.addr %s327, 8
        %s329 = scalar_lea.vmem %s2, %s328
      $region52: #{fcn_forward.13} parent=39 // pred_fallthru
        _
    $region40: #{fcn_forward.13} parent=5 // pred_fallthru
      _
    %p330 = scmp.le.s32.totalorder 1, %s15
    %p331 = scmp.lt.s32.totalorder %s15, 3
    %p332 = pnand %p330, %p331
    %p333 = pneg %p332
    // Predicated region
    $region53: #{fcn_forward.13} parent=5 // pred_check
      _
    $region54: #{fcn_forward.13} parent=5 // pred_check_branch
      %335 = sbr.rel (%p332) target = $region56
    $region55: #{fcn_forward.13} parent=5 // pred_region
      %s336 = ssub.s32 %s15, 1
      %p337 = scmp.lt.s32.totalorder %s24, 1
      %s338 = scalar_select %p337, %s24, 1
      %s339 = smul.addr %s338, 8
      %s340 = smul.addr %s339, 4
      %s341 = scalar_lea.vmem %s0, %s340
      %p342 = pneg %p53
      %p343 = pneg %p50
      %p344 = scmp.lt.s32.totalorder %s24, 1
      %s345 = scalar_select %p344, %s24, 1
      %s346 = smul.addr %s345, 8
      %s347 = smul.addr %s346, 2
      %s348 = scalar_lea.vmem %s1, %s347
      %p349 = pneg %p79
      %p350 = pneg %p76
      %p351 = scmp.lt.s32.totalorder %s24, 1
      %s352 = scalar_select %p351, %s24, 1
      %s353 = smul.addr %s352, 8
      %s354 = scalar_lea.vmem %s2, %s353
      %p355 = pneg %p105
      %p356 = pneg %p102
      %p357 = pneg %p126
      %p358 = pneg %p123
      %p359 = pneg %p147
      %p360 = pneg %p144
      %p361 = pneg %p168
      %p362 = pneg %p165
      %p363 = pneg %p189
      %p364 = pneg %p186
      %s365 = smul.u32 8, %s25
      %p366 = scmp.lt.s32.totalorder %s365, 7
      %s367 = scalar_select %p366, %s365, 7
      %s368 = smul.addr %s367, 4
      %s369 = scalar_lea.vmem %s7, %s368
      %p370 = pneg %p215
      %p371 = pneg %p212
      %p372 = pneg %p236
      %p373 = pneg %p233
      %p374 = pneg %p264
      %p375 = pneg %p261
      %s376 = smul.u32 8, %s25
      %p377 = scmp.lt.s32.totalorder %s24, 1
      %s378 = scalar_select %p377, %s24, 1
      %p379 = scmp.lt.s32.totalorder %s376, 7
      %s380 = scalar_select %p379, %s376, 7
      %s381 = smul.addr %s378, 64
      %s382 = sadd.s32 %s380, %s381
      %s383 = smul.addr %s382, 8
      %s384 = scalar_lea.vmem %s9, %s383
      %p385 = scmp.lt.s32.totalorder %s24, 1
      %s386 = scalar_select %p385, %s24, 1
      %s387 = smul.addr %s386, 8
      %s388 = smul.addr %s387, 4
      %s389 = scalar_lea.vmem %s0, %s388
      %p390 = scmp.lt.s32.totalorder %s24, 1
      %s391 = scalar_select %p390, %s24, 1
      %s392 = smul.addr %s391, 8
      %s393 = smul.addr %s392, 2
      %s394 = scalar_lea.vmem %s1, %s393
      %p395 = scmp.lt.s32.totalorder %s24, 1
      %s396 = scalar_select %p395, %s24, 1
      %s397 = smul.addr %s396, 8
      %s398 = scalar_lea.vmem %s2, %s397
      %s399 = smul.u32 8, %s25
      %p400 = scmp.lt.s32.totalorder %s399, 7
      %s401 = scalar_select %p400, %s399, 7
      %s402 = smul.addr %s401, 4
      %s403 = scalar_lea.vmem %s7, %s402
      %s404 = smul.u32 8, %s25
      %s405 = smul.u32 8, %s25
      %p406 = scmp.lt.s32.totalorder %s24, 1
      %s407 = scalar_select %p406, %s24, 1
      %p408 = scmp.lt.s32.totalorder %s405, 7
      %s409 = scalar_select %p408, %s405, 7
      %s410 = smul.addr %s407, 64
      %s411 = sadd.s32 %s409, %s410
      %s412 = smul.addr %s411, 8
      %s413 = scalar_lea.vmem %s9, %s412
      %s414 = smul.u32 8, %s25
      %v416 = vld [vmem:[%s3] sm:$0x3]
      %v417 = vld [vmem:[%s398] sm:$0x1]
      %vm418 = vcmask 15360
      %v420 = vsel %vm418, %v416, 0
      %vm422 = vcmask 1040384
      %v424 = vsel %vm422, %v417, 0
      %426 = vmatprep.subr.bf16.mxu0 0
      %427 = vmatpush1.bf16.msra.mxu0 0
      %428 = vmatprep.subr.bf16.mxu0 0
      %429 = vmatpush1.bf16.msra.mxu0 0
      %430 = vmatprep.subr.bf16.mxu0 0
      %431 = vmatpush1.bf16.msra.mxu0 0
      %432 = vmatprep.subr.bf16.mxu0 0
      %433 = vmatpush1.bf16.msra.mxu0 0
      %434 = vmatprep.subr.bf16.mxu0 0
      %435 = vmatpush1.bf16.msra.mxu0 0
      %436 = vmatprep.subr.bf16.mxu0 0
      %437 = vmatpush1.bf16.msra.mxu0 0
      %438 = vmatprep.subr.bf16.mxu0 0
      %439 = vmatpush1.bf16.msra.mxu0 0
      %440 = vmatprep.subr.bf16.mxu0 0
      %441 = vmatpush1.bf16.msra.mxu0 %v424
      %442 = vmatprep.subr.bf16.mxu0 0
      %443 = vmatpush2.bf16.msra.mxu0 0
      %444 = vmatprep.subr.bf16.mxu0 0
      %445 = vmatpush2.bf16.msra.mxu0 0
      %446 = vmatprep.subr.bf16.mxu0 0
      %447 = vmatpush2.bf16.msra.mxu0 0
      %448 = vmatprep.subr.bf16.mxu0 0
      %449 = vmatpush2.bf16.msra.mxu0 0
      %450 = vmatprep.subr.bf16.mxu0 0
      %451 = vmatpush2.bf16.msra.mxu0 0
      %452 = vmatprep.subr.bf16.mxu0 0
      %453 = vmatpush2.bf16.msra.mxu0 0
      %454 = vmatprep.subr.bf16.mxu0 0
      %455 = vmatpush2.bf16.msra.mxu0 0
      %456 = vmatprep.subr.bf16.mxu0 0
      %457 = vmatpush2.bf16.msra.mxu0 0
      %458 = vmatprep.mubr.bf16.mxu0 0
      %459 = vmatmul.mubr.bf16.gmra.mxu0 %v420
      %v460 = vpop.f32.mrf.mxu0
      %v461 = vadd.f32 0.0, %v460
      %v462 = vpop.f32.mrf.mxu0
      %v463 = vpop.f32.mrf.mxu0
      %v464 = vpop.f32.mrf.mxu0
      %465 = vdwg.mxu0
      %v466 = vpack.c.bf16 %v461, %v461
      %v467 = vld [vmem:[%s4] sm:$0x1]
      %v468 = vld [vmem:[%s394] sm:$0x3]
      %v469 = vunpack.c.l.bf16 %v468
      %v471 = vsel %vm418, %v466, 0
      %v474 = vsel %vm422, %v467, 0
      %476 = vmatprep.subr.bf16.mxu0 0
      %477 = vmatpush1.bf16.msra.mxu0 0
      %478 = vmatprep.subr.bf16.mxu0 0
      %479 = vmatpush1.bf16.msra.mxu0 0
      %480 = vmatprep.subr.bf16.mxu0 0
      %481 = vmatpush1.bf16.msra.mxu0 0
      %482 = vmatprep.subr.bf16.mxu0 0
      %483 = vmatpush1.bf16.msra.mxu0 0
      %484 = vmatprep.subr.bf16.mxu0 0
      %485 = vmatpush1.bf16.msra.mxu0 0
      %486 = vmatprep.subr.bf16.mxu0 0
      %487 = vmatpush1.bf16.msra.mxu0 0
      %488 = vmatprep.subr.bf16.mxu0 0
      %489 = vmatpush1.bf16.msra.mxu0 0
      %490 = vmatprep.subr.bf16.mxu0 0
      %491 = vmatpush1.bf16.msra.mxu0 %v474
      %492 = vmatprep.subr.bf16.mxu0 0
      %493 = vmatpush2.bf16.msra.mxu0 0
      %494 = vmatprep.subr.bf16.mxu0 0
      %495 = vmatpush2.bf16.msra.mxu0 0
      %496 = vmatprep.subr.bf16.mxu0 0
      %497 = vmatpush2.bf16.msra.mxu0 0
      %498 = vmatprep.subr.bf16.mxu0 0
      %499 = vmatpush2.bf16.msra.mxu0 0
      %500 = vmatprep.subr.bf16.mxu0 0
      %501 = vmatpush2.bf16.msra.mxu0 0
      %502 = vmatprep.subr.bf16.mxu0 0
      %503 = vmatpush2.bf16.msra.mxu0 0
      %504 = vmatprep.subr.bf16.mxu0 0
      %505 = vmatpush2.bf16.msra.mxu0 0
      %506 = vmatprep.subr.bf16.mxu0 0
      %507 = vmatpush2.bf16.msra.mxu0 0
      %508 = vmatprep.mubr.bf16.mxu0 0
      %509 = vmatmul.mubr.bf16.gmra.mxu0 %v471
      %v510 = vpop.f32.mrf.mxu0
      %v511 = vadd.f32 %v469, %v510
      %v512 = vpop.f32.mrf.mxu0
      %v513 = vpop.f32.mrf.mxu0
      %v514 = vpop.f32.mrf.mxu0
      %515 = vdwg.mxu0
      %v516 = vld [vmem:[%s5] sm:$0xf]
      %v517 = vpack.c.bf16 %v511, %v511
      %vm518 = vcmask 31744
      %v520 = vsel %vm518, %v516, 0
      %vm522 = vcmask 1041408
      %v524 = vsel %vm522, %v517, 0
      %526 = vmatprep.subr.bf16.mxu0 0
      %527 = vmatpush1.bf16.msra.mxu0 0
      %528 = vmatprep.subr.bf16.mxu0 0
      %529 = vmatpush1.bf16.msra.mxu0 0
      %530 = vmatprep.subr.bf16.mxu0 0
      %531 = vmatpush1.bf16.msra.mxu0 0
      %532 = vmatprep.subr.bf16.mxu0 0
      %533 = vmatpush1.bf16.msra.mxu0 0
      %534 = vmatprep.subr.bf16.mxu0 0
      %535 = vmatpush1.bf16.msra.mxu0 0
      %536 = vmatprep.subr.bf16.mxu0 0
      %537 = vmatpush1.bf16.msra.mxu0 0
      %538 = vmatprep.subr.bf16.mxu0 0
      %539 = vmatpush1.bf16.msra.mxu0 0
      %540 = vmatprep.subr.bf16.mxu0 0
      %541 = vmatpush1.bf16.msra.mxu0 %v524
      %542 = vmatprep.subr.bf16.mxu0 0
      %543 = vmatpush2.bf16.msra.mxu0 0
      %544 = vmatprep.subr.bf16.mxu0 0
      %545 = vmatpush2.bf16.msra.mxu0 0
      %546 = vmatprep.subr.bf16.mxu0 0
      %547 = vmatpush2.bf16.msra.mxu0 0
      %548 = vmatprep.subr.bf16.mxu0 0
      %549 = vmatpush2.bf16.msra.mxu0 0
      %550 = vmatprep.subr.bf16.mxu0 0
      %551 = vmatpush2.bf16.msra.mxu0 0
      %552 = vmatprep.subr.bf16.mxu0 0
      %553 = vmatpush2.bf16.msra.mxu0 0
      %554 = vmatprep.subr.bf16.mxu0 0
      %555 = vmatpush2.bf16.msra.mxu0 0
      %556 = vmatprep.subr.bf16.mxu0 0
      %557 = vmatpush2.bf16.msra.mxu0 0
      %558 = vmatprep.mubr.bf16.mxu0 0
      %559 = vmatmul.mubr.bf16.gmra.mxu0 %v520
      %v560 = vpop.f32.mrf.mxu0
      %v561 = vadd.f32 0.0, %v560
      %v562 = vpop.f32.mrf.mxu0
      %v563 = vpop.f32.mrf.mxu0
      %v564 = vpop.f32.mrf.mxu0
      %565 = vdwg.mxu0
      %v566 = vpack.c.bf16 %v561, %v561
      %v567 = vld [vmem:[%s6] sm:$0x3]
      %v568 = vld [vmem:[%s389] sm:$0xf]
      %v569 = vunpack.c.l.bf16 %v568
      %v571 = vsel %vm518, %v566, 0
      %v574 = vsel %vm522, %v567, 0
      %576 = vmatprep.subr.bf16.mxu0 0
      %577 = vmatpush1.bf16.msra.mxu0 0
      %578 = vmatprep.subr.bf16.mxu0 0
      %579 = vmatpush1.bf16.msra.mxu0 0
      %580 = vmatprep.subr.bf16.mxu0 0
      %581 = vmatpush1.bf16.msra.mxu0 0
      %582 = vmatprep.subr.bf16.mxu0 0
      %583 = vmatpush1.bf16.msra.mxu0 0
      %584 = vmatprep.subr.bf16.mxu0 0
      %585 = vmatpush1.bf16.msra.mxu0 0
      %586 = vmatprep.subr.bf16.mxu0 0
      %587 = vmatpush1.bf16.msra.mxu0 0
      %588 = vmatprep.subr.bf16.mxu0 0
      %589 = vmatpush1.bf16.msra.mxu0 0
      %590 = vmatprep.subr.bf16.mxu0 0
      %591 = vmatpush1.bf16.msra.mxu0 %v574
      %592 = vmatprep.subr.bf16.mxu0 0
      %593 = vmatpush2.bf16.msra.mxu0 0
      %594 = vmatprep.subr.bf16.mxu0 0
      %595 = vmatpush2.bf16.msra.mxu0 0
      %596 = vmatprep.subr.bf16.mxu0 0
      %597 = vmatpush2.bf16.msra.mxu0 0
      %598 = vmatprep.subr.bf16.mxu0 0
      %599 = vmatpush2.bf16.msra.mxu0 0
      %600 = vmatprep.subr.bf16.mxu0 0
      %601 = vmatpush2.bf16.msra.mxu0 0
      %602 = vmatprep.subr.bf16.mxu0 0
      %603 = vmatpush2.bf16.msra.mxu0 0
      %604 = vmatprep.subr.bf16.mxu0 0
      %605 = vmatpush2.bf16.msra.mxu0 0
      %606 = vmatprep.subr.bf16.mxu0 0
      %607 = vmatpush2.bf16.msra.mxu0 0
      %608 = vmatprep.mubr.bf16.mxu0 0
      %609 = vmatmul.mubr.bf16.gmra.mxu0 %v571
      %v610 = vpop.f32.mrf.mxu0
      %v611 = vadd.f32 %v569, %v610
      %v612 = vpop.f32.mrf.mxu0
      %v613 = vpop.f32.mrf.mxu0
      %v614 = vpop.f32.mrf.mxu0
      %615 = vdwg.mxu0
      %v616 = vld [vmem:[%s403] sm:$0xf]
      %v617 = vld [vmem:[%s403 + $0x4] sm:$0xf]
      %v618 = vld [vmem:[%s403 + $0x8] sm:$0xf]
      %v619 = vld [vmem:[%s403 + $0xc] sm:$0xf]
      %v620 = vld [vmem:[%s403 + $0x10] sm:$0xf]
      %v621 = vld [vmem:[%s403 + $0x14] sm:$0xf]
      %v622 = vld [vmem:[%s403 + $0x18] sm:$0xf]
      %v623 = vld [vmem:[%s403 + $0x1c] sm:$0xf]
      %v624 = vpack.c.bf16 %v611, %v611
      %v633 = vunpack.c.l.b16 %v616
      %v634 = vunpack.c.l.b16 %v617
      %v635 = vunpack.c.l.b16 %v618
      %v636 = vunpack.c.l.b16 %v619
      %v637 = vunpack.c.l.b16 %v620
      %v638 = vunpack.c.l.b16 %v621
      %v639 = vunpack.c.l.b16 %v622
      %v640 = vunpack.c.l.b16 %v623
      %v641 = vpack.c.b16 %v634, %v633
      %v642 = vpack.c.b16 %v636, %v635
      %v643 = vpack.c.b16 %v638, %v637
      %v644 = vpack.c.b16 %v640, %v639
      %vm645 = vcmask 64512
      %v647 = vsel %vm645, %v641, 0
      %v650 = vsel %vm645, %v642, 0
      %v653 = vsel %vm645, %v643, 0
      %v656 = vsel %vm645, %v644, 0
      %vm658 = vcmask 1043456
      %v660 = vsel %vm658, %v624, 0
      %662 = vmatprep.subr.bf16.mxu0 0
      %663 = vmatpush1.bf16.msra.mxu0 0
      %664 = vmatprep.subr.bf16.mxu0 0
      %665 = vmatpush1.bf16.msra.mxu0 0
      %666 = vmatprep.subr.bf16.mxu0 0
      %667 = vmatpush1.bf16.msra.mxu0 0
      %668 = vmatprep.subr.bf16.mxu0 0
      %669 = vmatpush1.bf16.msra.mxu0 0
      %670 = vmatprep.subr.bf16.mxu0 0
      %671 = vmatpush1.bf16.msra.mxu0 0
      %672 = vmatprep.subr.bf16.mxu0 0
      %673 = vmatpush1.bf16.msra.mxu0 0
      %674 = vmatprep.subr.bf16.mxu0 0
      %675 = vmatpush1.bf16.msra.mxu0 0
      %676 = vmatprep.subr.bf16.mxu0 0
      %677 = vmatpush1.bf16.msra.mxu0 %v660
      %678 = vmatprep.subr.bf16.mxu0 0
      %679 = vmatpush2.bf16.msra.mxu0 0
      %680 = vmatprep.subr.bf16.mxu0 0
      %681 = vmatpush2.bf16.msra.mxu0 0
      %682 = vmatprep.subr.bf16.mxu0 0
      %683 = vmatpush2.bf16.msra.mxu0 0
      %684 = vmatprep.subr.bf16.mxu0 0
      %685 = vmatpush2.bf16.msra.mxu0 0
      %686 = vmatprep.subr.bf16.mxu0 0
      %687 = vmatpush2.bf16.msra.mxu0 0
      %688 = vmatprep.subr.bf16.mxu0 0
      %689 = vmatpush2.bf16.msra.mxu0 0
      %690 = vmatprep.subr.bf16.mxu0 0
      %691 = vmatpush2.bf16.msra.mxu0 0
      %692 = vmatprep.subr.bf16.mxu0 0
      %693 = vmatpush2.bf16.msra.mxu0 0
      %694 = vmatprep.mubr.bf16.mxu0 0
      %695 = vmatmul.mubr.bf16.gmra.mxu0 %v647
      %v696 = vpop.f32.mrf.mxu0
      %v697 = vadd.f32 0.0, %v696
      %v698 = vpop.f32.mrf.mxu0
      %v699 = vpop.f32.mrf.mxu0
      %v700 = vadd.f32 0.0, %v699
      %v701 = vpop.f32.mrf.mxu0
      %702 = vmatprep.mubr.bf16.mxu0 0
      %703 = vmatmul.mubr.bf16.gmra.mxu0 %v650
      %v704 = vpop.f32.mrf.mxu0
      %v705 = vadd.f32 0.0, %v704
      %v706 = vpop.f32.mrf.mxu0
      %v707 = vpop.f32.mrf.mxu0
      %v708 = vadd.f32 0.0, %v707
      %v709 = vpop.f32.mrf.mxu0
      %710 = vmatprep.mubr.bf16.mxu0 0
      %711 = vmatmul.mubr.bf16.gmra.mxu0 %v653
      %v712 = vpop.f32.mrf.mxu0
      %v713 = vadd.f32 0.0, %v712
      %v714 = vpop.f32.mrf.mxu0
      %v715 = vpop.f32.mrf.mxu0
      %v716 = vadd.f32 0.0, %v715
      %v717 = vpop.f32.mrf.mxu0
      %718 = vmatprep.mubr.bf16.mxu0 0
      %719 = vmatmul.mubr.bf16.gmra.mxu0 %v656
      %v720 = vpop.f32.mrf.mxu0
      %v721 = vadd.f32 0.0, %v720
      %v722 = vpop.f32.mrf.mxu0
      %v723 = vpop.f32.mrf.mxu0
      %v724 = vadd.f32 0.0, %v723
      %v725 = vpop.f32.mrf.mxu0
      %726 = vdwg.mxu0
      %v727 = vpack.c.bf16 %v700, %v697
      %v728 = vpack.c.bf16 %v708, %v705
      %v729 = vpack.c.bf16 %v716, %v713
      %v730 = vpack.c.bf16 %v724, %v721
      %v731 = vld [vmem:[%s8] sm:$0xf]
      %v733 = vsel %vm645, %v727, 0
      %v736 = vsel %vm645, %v728, 0
      %v739 = vsel %vm645, %v729, 0
      %v742 = vsel %vm645, %v730, 0
      %v745 = vsel %vm658, %v731, 0
      %747 = vmatprep.subr.bf16.mxu0 0
      %748 = vmatpush1.bf16.msra.mxu0 0
      %749 = vmatprep.subr.bf16.mxu0 0
      %750 = vmatpush1.bf16.msra.mxu0 0
      %751 = vmatprep.subr.bf16.mxu0 0
      %752 = vmatpush1.bf16.msra.mxu0 0
      %753 = vmatprep.subr.bf16.mxu0 0
      %754 = vmatpush1.bf16.msra.mxu0 0
      %755 = vmatprep.subr.bf16.mxu0 0
      %756 = vmatpush1.bf16.msra.mxu0 0
      %757 = vmatprep.subr.bf16.mxu0 0
      %758 = vmatpush1.bf16.msra.mxu0 0
      %759 = vmatprep.subr.bf16.mxu0 0
      %760 = vmatpush1.bf16.msra.mxu0 0
      %761 = vmatprep.subr.bf16.mxu0 0
      %762 = vmatpush1.bf16.msra.mxu0 %v745
      %763 = vmatprep.subr.bf16.mxu0 0
      %764 = vmatpush2.bf16.msra.mxu0 0
      %765 = vmatprep.subr.bf16.mxu0 0
      %766 = vmatpush2.bf16.msra.mxu0 0
      %767 = vmatprep.subr.bf16.mxu0 0
      %768 = vmatpush2.bf16.msra.mxu0 0
      %769 = vmatprep.subr.bf16.mxu0 0
      %770 = vmatpush2.bf16.msra.mxu0 0
      %771 = vmatprep.subr.bf16.mxu0 0
      %772 = vmatpush2.bf16.msra.mxu0 0
      %773 = vmatprep.subr.bf16.mxu0 0
      %774 = vmatpush2.bf16.msra.mxu0 0
      %775 = vmatprep.subr.bf16.mxu0 0
      %776 = vmatpush2.bf16.msra.mxu0 0
      %777 = vmatprep.subr.bf16.mxu0 0
      %778 = vmatpush2.bf16.msra.mxu0 0
      %779 = vmatprep.mubr.bf16.mxu0 0
      %780 = vmatmul.mubr.bf16.gmra.mxu0 %v733
      %v781 = vpop.f32.mrf.mxu0
      %v782 = vadd.f32 0.0, %v781
      %v783 = vpop.f32.mrf.mxu0
      %v784 = vpop.f32.mrf.mxu0
      %v785 = vadd.f32 0.0, %v784
      %v786 = vpop.f32.mrf.mxu0
      %787 = vmatprep.mubr.bf16.mxu0 0
      %788 = vmatmul.mubr.bf16.gmra.mxu0 %v736
      %v789 = vpop.f32.mrf.mxu0
      %v790 = vadd.f32 0.0, %v789
      %v791 = vpop.f32.mrf.mxu0
      %v792 = vpop.f32.mrf.mxu0
      %v793 = vadd.f32 0.0, %v792
      %v794 = vpop.f32.mrf.mxu0
      %795 = vmatprep.mubr.bf16.mxu0 0
      %796 = vmatmul.mubr.bf16.gmra.mxu0 %v739
      %v797 = vpop.f32.mrf.mxu0
      %v798 = vadd.f32 0.0, %v797
      %v799 = vpop.f32.mrf.mxu0
      %v800 = vpop.f32.mrf.mxu0
      %v801 = vadd.f32 0.0, %v800
      %v802 = vpop.f32.mrf.mxu0
      %803 = vmatprep.mubr.bf16.mxu0 0
      %804 = vmatmul.mubr.bf16.gmra.mxu0 %v742
      %v805 = vpop.f32.mrf.mxu0
      %v806 = vadd.f32 0.0, %v805
      %v807 = vpop.f32.mrf.mxu0
      %v808 = vpop.f32.mrf.mxu0
      %v809 = vadd.f32 0.0, %v808
      %v810 = vpop.f32.mrf.mxu0
      %811 = vdwg.mxu0
      %vm812 = vcmask 523264
      %813 = vst.msk [vmem:[%s413] sm:$0xff] %vm812, %v782
      %814 = vst.msk [vmem:[%s413 + $0x8] sm:$0xff] %vm812, %v785
      %815 = vst.msk [vmem:[%s413 + $0x10] sm:$0xff] %vm812, %v790
      %816 = vst.msk [vmem:[%s413 + $0x18] sm:$0xff] %vm812, %v793
      %817 = vst.msk [vmem:[%s413 + $0x20] sm:$0xff] %vm812, %v798
      %818 = vst.msk [vmem:[%s413 + $0x28] sm:$0xff] %vm812, %v801
      %819 = vst.msk [vmem:[%s413 + $0x30] sm:$0xff] %vm812, %v806
      %820 = vst.msk [vmem:[%s413 + $0x38] sm:$0xff] %vm812, %v809
      %v821 = vld [vmem:[%s3] sm:$0x3]
      %s822 = scalar_lea.vmem %s398, 1
      %v823 = vld [vmem:[%s822] sm:$0x1]
      %v825 = vsel %vm418, %v821, 0
      %v828 = vsel %vm422, %v823, 0
      %830 = vmatprep.subr.bf16.mxu0 0
      %831 = vmatpush1.bf16.msra.mxu0 0
      %832 = vmatprep.subr.bf16.mxu0 0
      %833 = vmatpush1.bf16.msra.mxu0 0
      %834 = vmatprep.subr.bf16.mxu0 0
      %835 = vmatpush1.bf16.msra.mxu0 0
      %836 = vmatprep.subr.bf16.mxu0 0
      %837 = vmatpush1.bf16.msra.mxu0 0
      %838 = vmatprep.subr.bf16.mxu0 0
      %839 = vmatpush1.bf16.msra.mxu0 0
      %840 = vmatprep.subr.bf16.mxu0 0
      %841 = vmatpush1.bf16.msra.mxu0 0
      %842 = vmatprep.subr.bf16.mxu0 0
      %843 = vmatpush1.bf16.msra.mxu0 0
      %844 = vmatprep.subr.bf16.mxu0 0
      %845 = vmatpush1.bf16.msra.mxu0 %v828
      %846 = vmatprep.subr.bf16.mxu0 0
      %847 = vmatpush2.bf16.msra.mxu0 0
      %848 = vmatprep.subr.bf16.mxu0 0
      %849 = vmatpush2.bf16.msra.mxu0 0
      %850 = vmatprep.subr.bf16.mxu0 0
      %851 = vmatpush2.bf16.msra.mxu0 0
      %852 = vmatprep.subr.bf16.mxu0 0
      %853 = vmatpush2.bf16.msra.mxu0 0
      %854 = vmatprep.subr.bf16.mxu0 0
      %855 = vmatpush2.bf16.msra.mxu0 0
      %856 = vmatprep.subr.bf16.mxu0 0
      %857 = vmatpush2.bf16.msra.mxu0 0
      %858 = vmatprep.subr.bf16.mxu0 0
      %859 = vmatpush2.bf16.msra.mxu0 0
      %860 = vmatprep.subr.bf16.mxu0 0
      %861 = vmatpush2.bf16.msra.mxu0 0
      %862 = vmatprep.mubr.bf16.mxu0 0
      %863 = vmatmul.mubr.bf16.gmra.mxu0 %v825
      %v864 = vpop.f32.mrf.mxu0
      %v865 = vadd.f32 0.0, %v864
      %v866 = vpop.f32.mrf.mxu0
      %v867 = vpop.f32.mrf.mxu0
      %v868 = vpop.f32.mrf.mxu0
      %869 = vdwg.mxu0
      %v870 = vpack.c.bf16 %v865, %v865
      %v871 = vld [vmem:[%s4] sm:$0x1]
      %s872 = scalar_lea.vmem %s394, 2
      %v873 = vld [vmem:[%s872] sm:$0x3]
      %v874 = vunpack.c.l.bf16 %v873
      %v876 = vsel %vm418, %v870, 0
      %v879 = vsel %vm422, %v871, 0
      %881 = vmatprep.subr.bf16.mxu0 0
      %882 = vmatpush1.bf16.msra.mxu0 0
      %883 = vmatprep.subr.bf16.mxu0 0
      %884 = vmatpush1.bf16.msra.mxu0 0
      %885 = vmatprep.subr.bf16.mxu0 0
      %886 = vmatpush1.bf16.msra.mxu0 0
      %887 = vmatprep.subr.bf16.mxu0 0
      %888 = vmatpush1.bf16.msra.mxu0 0
      %889 = vmatprep.subr.bf16.mxu0 0
      %890 = vmatpush1.bf16.msra.mxu0 0
      %891 = vmatprep.subr.bf16.mxu0 0
      %892 = vmatpush1.bf16.msra.mxu0 0
      %893 = vmatprep.subr.bf16.mxu0 0
      %894 = vmatpush1.bf16.msra.mxu0 0
      %895 = vmatprep.subr.bf16.mxu0 0
      %896 = vmatpush1.bf16.msra.mxu0 %v879
      %897 = vmatprep.subr.bf16.mxu0 0
      %898 = vmatpush2.bf16.msra.mxu0 0
      %899 = vmatprep.subr.bf16.mxu0 0
      %900 = vmatpush2.bf16.msra.mxu0 0
      %901 = vmatprep.subr.bf16.mxu0 0
      %902 = vmatpush2.bf16.msra.mxu0 0
      %903 = vmatprep.subr.bf16.mxu0 0
      %904 = vmatpush2.bf16.msra.mxu0 0
      %905 = vmatprep.subr.bf16.mxu0 0
      %906 = vmatpush2.bf16.msra.mxu0 0
      %907 = vmatprep.subr.bf16.mxu0 0
      %908 = vmatpush2.bf16.msra.mxu0 0
      %909 = vmatprep.subr.bf16.mxu0 0
      %910 = vmatpush2.bf16.msra.mxu0 0
      %911 = vmatprep.subr.bf16.mxu0 0
      %912 = vmatpush2.bf16.msra.mxu0 0
      %913 = vmatprep.mubr.bf16.mxu0 0
      %914 = vmatmul.mubr.bf16.gmra.mxu0 %v876
      %v915 = vpop.f32.mrf.mxu0
      %v916 = vadd.f32 %v874, %v915
      %v917 = vpop.f32.mrf.mxu0
      %v918 = vpop.f32.mrf.mxu0
      %v919 = vpop.f32.mrf.mxu0
      %920 = vdwg.mxu0
      %v921 = vld [vmem:[%s5] sm:$0xf]
      %v922 = vpack.c.bf16 %v916, %v916
      %v924 = vsel %vm518, %v921, 0
      %v927 = vsel %vm522, %v922, 0
      %929 = vmatprep.subr.bf16.mxu0 0
      %930 = vmatpush1.bf16.msra.mxu0 0
      %931 = vmatprep.subr.bf16.mxu0 0
      %932 = vmatpush1.bf16.msra.mxu0 0
      %933 = vmatprep.subr.bf16.mxu0 0
      %934 = vmatpush1.bf16.msra.mxu0 0
      %935 = vmatprep.subr.bf16.mxu0 0
      %936 = vmatpush1.bf16.msra.mxu0 0
      %937 = vmatprep.subr.bf16.mxu0 0
      %938 = vmatpush1.bf16.msra.mxu0 0
      %939 = vmatprep.subr.bf16.mxu0 0
      %940 = vmatpush1.bf16.msra.mxu0 0
      %941 = vmatprep.subr.bf16.mxu0 0
      %942 = vmatpush1.bf16.msra.mxu0 0
      %943 = vmatprep.subr.bf16.mxu0 0
      %944 = vmatpush1.bf16.msra.mxu0 %v927
      %945 = vmatprep.subr.bf16.mxu0 0
      %946 = vmatpush2.bf16.msra.mxu0 0
      %947 = vmatprep.subr.bf16.mxu0 0
      %948 = vmatpush2.bf16.msra.mxu0 0
      %949 = vmatprep.subr.bf16.mxu0 0
      %950 = vmatpush2.bf16.msra.mxu0 0
      %951 = vmatprep.subr.bf16.mxu0 0
      %952 = vmatpush2.bf16.msra.mxu0 0
      %953 = vmatprep.subr.bf16.mxu0 0
      %954 = vmatpush2.bf16.msra.mxu0 0
      %955 = vmatprep.subr.bf16.mxu0 0
      %956 = vmatpush2.bf16.msra.mxu0 0
      %957 = vmatprep.subr.bf16.mxu0 0
      %958 = vmatpush2.bf16.msra.mxu0 0
      %959 = vmatprep.subr.bf16.mxu0 0
      %960 = vmatpush2.bf16.msra.mxu0 0
      %961 = vmatprep.mubr.bf16.mxu0 0
      %962 = vmatmul.mubr.bf16.gmra.mxu0 %v924
      %v963 = vpop.f32.mrf.mxu0
      %v964 = vadd.f32 0.0, %v963
      %v965 = vpop.f32.mrf.mxu0
      %v966 = vpop.f32.mrf.mxu0
      %v967 = vpop.f32.mrf.mxu0
      %968 = vdwg.mxu0
      %v969 = vpack.c.bf16 %v964, %v964
      %v970 = vld [vmem:[%s6] sm:$0x3]
      %s971 = scalar_lea.vmem %s389, 4
      %v972 = vld [vmem:[%s971] sm:$0xf]
      %v973 = vunpack.c.l.bf16 %v972
      %v975 = vsel %vm518, %v969, 0
      %v978 = vsel %vm522, %v970, 0
      %980 = vmatprep.subr.bf16.mxu0 0
      %981 = vmatpush1.bf16.msra.mxu0 0
      %982 = vmatprep.subr.bf16.mxu0 0
      %983 = vmatpush1.bf16.msra.mxu0 0
      %984 = vmatprep.subr.bf16.mxu0 0
      %985 = vmatpush1.bf16.msra.mxu0 0
      %986 = vmatprep.subr.bf16.mxu0 0
      %987 = vmatpush1.bf16.msra.mxu0 0
      %988 = vmatprep.subr.bf16.mxu0 0
      %989 = vmatpush1.bf16.msra.mxu0 0
      %990 = vmatprep.subr.bf16.mxu0 0
      %991 = vmatpush1.bf16.msra.mxu0 0
      %992 = vmatprep.subr.bf16.mxu0 0
      %993 = vmatpush1.bf16.msra.mxu0 0
      %994 = vmatprep.subr.bf16.mxu0 0
      %995 = vmatpush1.bf16.msra.mxu0 %v978
      %996 = vmatprep.subr.bf16.mxu0 0
      %997 = vmatpush2.bf16.msra.mxu0 0
      %998 = vmatprep.subr.bf16.mxu0 0
      %999 = vmatpush2.bf16.msra.mxu0 0
      %1000 = vmatprep.subr.bf16.mxu0 0
      %1001 = vmatpush2.bf16.msra.mxu0 0
      %1002 = vmatprep.subr.bf16.mxu0 0
      %1003 = vmatpush2.bf16.msra.mxu0 0
      %1004 = vmatprep.subr.bf16.mxu0 0
      %1005 = vmatpush2.bf16.msra.mxu0 0
      %1006 = vmatprep.subr.bf16.mxu0 0
      %1007 = vmatpush2.bf16.msra.mxu0 0
      %1008 = vmatprep.subr.bf16.mxu0 0
      %1009 = vmatpush2.bf16.msra.mxu0 0
      %1010 = vmatprep.subr.bf16.mxu0 0
      %1011 = vmatpush2.bf16.msra.mxu0 0
      %1012 = vmatprep.mubr.bf16.mxu0 0
      %1013 = vmatmul.mubr.bf16.gmra.mxu0 %v975
      %v1014 = vpop.f32.mrf.mxu0
      %v1015 = vadd.f32 %v973, %v1014
      %v1016 = vpop.f32.mrf.mxu0
      %v1017 = vpop.f32.mrf.mxu0
      %v1018 = vpop.f32.mrf.mxu0
      %1019 = vdwg.mxu0
      %v1020 = vld [vmem:[%s403] sm:$0xf]
      %v1021 = vld [vmem:[%s403 + $0x4] sm:$0xf]
      %v1022 = vld [vmem:[%s403 + $0x8] sm:$0xf]
      %v1023 = vld [vmem:[%s403 + $0xc] sm:$0xf]
      %v1024 = vld [vmem:[%s403 + $0x10] sm:$0xf]
      %v1025 = vld [vmem:[%s403 + $0x14] sm:$0xf]
      %v1026 = vld [vmem:[%s403 + $0x18] sm:$0xf]
      %v1027 = vld [vmem:[%s403 + $0x1c] sm:$0xf]
      %v1028 = vpack.c.bf16 %v1015, %v1015
      %v1037 = vunpack.c.l.b16 %v1020
      %v1038 = vunpack.c.l.b16 %v1021
      %v1039 = vunpack.c.l.b16 %v1022
      %v1040 = vunpack.c.l.b16 %v1023
      %v1041 = vunpack.c.l.b16 %v1024
      %v1042 = vunpack.c.l.b16 %v1025
      %v1043 = vunpack.c.l.b16 %v1026
      %v1044 = vunpack.c.l.b16 %v1027
      %v1045 = vpack.c.b16 %v1038, %v1037
      %v1046 = vpack.c.b16 %v1040, %v1039
      %v1047 = vpack.c.b16 %v1042, %v1041
      %v1048 = vpack.c.b16 %v1044, %v1043
      %v1050 = vsel %vm645, %v1045, 0
      %v1053 = vsel %vm645, %v1046, 0
      %v1056 = vsel %vm645, %v1047, 0
      %v1059 = vsel %vm645, %v1048, 0
      %v1062 = vsel %vm658, %v1028, 0
      %1064 = vmatprep.subr.bf16.mxu0 0
      %1065 = vmatpush1.bf16.msra.mxu0 0
      %1066 = vmatprep.subr.bf16.mxu0 0
      %1067 = vmatpush1.bf16.msra.mxu0 0
      %1068 = vmatprep.subr.bf16.mxu0 0
      %1069 = vmatpush1.bf16.msra.mxu0 0
      %1070 = vmatprep.subr.bf16.mxu0 0
      %1071 = vmatpush1.bf16.msra.mxu0 0
      %1072 = vmatprep.subr.bf16.mxu0 0
      %1073 = vmatpush1.bf16.msra.mxu0 0
      %1074 = vmatprep.subr.bf16.mxu0 0
      %1075 = vmatpush1.bf16.msra.mxu0 0
      %1076 = vmatprep.subr.bf16.mxu0 0
      %1077 = vmatpush1.bf16.msra.mxu0 0
      %1078 = vmatprep.subr.bf16.mxu0 0
      %1079 = vmatpush1.bf16.msra.mxu0 %v1062
      %1080 = vmatprep.subr.bf16.mxu0 0
      %1081 = vmatpush2.bf16.msra.mxu0 0
      %1082 = vmatprep.subr.bf16.mxu0 0
      %1083 = vmatpush2.bf16.msra.mxu0 0
      %1084 = vmatprep.subr.bf16.mxu0 0
      %1085 = vmatpush2.bf16.msra.mxu0 0
      %1086 = vmatprep.subr.bf16.mxu0 0
      %1087 = vmatpush2.bf16.msra.mxu0 0
      %1088 = vmatprep.subr.bf16.mxu0 0
      %1089 = vmatpush2.bf16.msra.mxu0 0
      %1090 = vmatprep.subr.bf16.mxu0 0
      %1091 = vmatpush2.bf16.msra.mxu0 0
      %1092 = vmatprep.subr.bf16.mxu0 0
      %1093 = vmatpush2.bf16.msra.mxu0 0
      %1094 = vmatprep.subr.bf16.mxu0 0
      %1095 = vmatpush2.bf16.msra.mxu0 0
      %1096 = vmatprep.mubr.bf16.mxu0 0
      %1097 = vmatmul.mubr.bf16.gmra.mxu0 %v1050
      %v1098 = vpop.f32.mrf.mxu0
      %v1099 = vadd.f32 0.0, %v1098
      %v1100 = vpop.f32.mrf.mxu0
      %v1101 = vpop.f32.mrf.mxu0
      %v1102 = vadd.f32 0.0, %v1101
      %v1103 = vpop.f32.mrf.mxu0
      %1104 = vmatprep.mubr.bf16.mxu0 0
      %1105 = vmatmul.mubr.bf16.gmra.mxu0 %v1053
      %v1106 = vpop.f32.mrf.mxu0
      %v1107 = vadd.f32 0.0, %v1106
      %v1108 = vpop.f32.mrf.mxu0
      %v1109 = vpop.f32.mrf.mxu0
      %v1110 = vadd.f32 0.0, %v1109
      %v1111 = vpop.f32.mrf.mxu0
      %1112 = vmatprep.mubr.bf16.mxu0 0
      %1113 = vmatmul.mubr.bf16.gmra.mxu0 %v1056
      %v1114 = vpop.f32.mrf.mxu0
      %v1115 = vadd.f32 0.0, %v1114
      %v1116 = vpop.f32.mrf.mxu0
      %v1117 = vpop.f32.mrf.mxu0
      %v1118 = vadd.f32 0.0, %v1117
      %v1119 = vpop.f32.mrf.mxu0
      %1120 = vmatprep.mubr.bf16.mxu0 0
      %1121 = vmatmul.mubr.bf16.gmra.mxu0 %v1059
      %v1122 = vpop.f32.mrf.mxu0
      %v1123 = vadd.f32 0.0, %v1122
      %v1124 = vpop.f32.mrf.mxu0
      %v1125 = vpop.f32.mrf.mxu0
      %v1126 = vadd.f32 0.0, %v1125
      %v1127 = vpop.f32.mrf.mxu0
      %1128 = vdwg.mxu0
      %v1129 = vpack.c.bf16 %v1102, %v1099
      %v1130 = vpack.c.bf16 %v1110, %v1107
      %v1131 = vpack.c.bf16 %v1118, %v1115
      %v1132 = vpack.c.bf16 %v1126, %v1123
      %v1133 = vld [vmem:[%s8] sm:$0xf]
      %v1135 = vsel %vm645, %v1129, 0
      %v1138 = vsel %vm645, %v1130, 0
      %v1141 = vsel %vm645, %v1131, 0
      %v1144 = vsel %vm645, %v1132, 0
      %v1147 = vsel %vm658, %v1133, 0
      %1149 = vmatprep.subr.bf16.mxu0 0
      %1150 = vmatpush1.bf16.msra.mxu0 0
      %1151 = vmatprep.subr.bf16.mxu0 0
      %1152 = vmatpush1.bf16.msra.mxu0 0
      %1153 = vmatprep.subr.bf16.mxu0 0
      %1154 = vmatpush1.bf16.msra.mxu0 0
      %1155 = vmatprep.subr.bf16.mxu0 0
      %1156 = vmatpush1.bf16.msra.mxu0 0
      %1157 = vmatprep.subr.bf16.mxu0 0
      %1158 = vmatpush1.bf16.msra.mxu0 0
      %1159 = vmatprep.subr.bf16.mxu0 0
      %1160 = vmatpush1.bf16.msra.mxu0 0
      %1161 = vmatprep.subr.bf16.mxu0 0
      %1162 = vmatpush1.bf16.msra.mxu0 0
      %1163 = vmatprep.subr.bf16.mxu0 0
      %1164 = vmatpush1.bf16.msra.mxu0 %v1147
      %1165 = vmatprep.subr.bf16.mxu0 0
      %1166 = vmatpush2.bf16.msra.mxu0 0
      %1167 = vmatprep.subr.bf16.mxu0 0
      %1168 = vmatpush2.bf16.msra.mxu0 0
      %1169 = vmatprep.subr.bf16.mxu0 0
      %1170 = vmatpush2.bf16.msra.mxu0 0
      %1171 = vmatprep.subr.bf16.mxu0 0
      %1172 = vmatpush2.bf16.msra.mxu0 0
      %1173 = vmatprep.subr.bf16.mxu0 0
      %1174 = vmatpush2.bf16.msra.mxu0 0
      %1175 = vmatprep.subr.bf16.mxu0 0
      %1176 = vmatpush2.bf16.msra.mxu0 0
      %1177 = vmatprep.subr.bf16.mxu0 0
      %1178 = vmatpush2.bf16.msra.mxu0 0
      %1179 = vmatprep.subr.bf16.mxu0 0
      %1180 = vmatpush2.bf16.msra.mxu0 0
      %1181 = vmatprep.mubr.bf16.mxu0 0
      %1182 = vmatmul.mubr.bf16.gmra.mxu0 %v1135
      %v1183 = vpop.f32.mrf.mxu0
      %v1184 = vadd.f32 0.0, %v1183
      %v1185 = vpop.f32.mrf.mxu0
      %v1186 = vpop.f32.mrf.mxu0
      %v1187 = vadd.f32 0.0, %v1186
      %v1188 = vpop.f32.mrf.mxu0
      %1189 = vmatprep.mubr.bf16.mxu0 0
      %1190 = vmatmul.mubr.bf16.gmra.mxu0 %v1138
      %v1191 = vpop.f32.mrf.mxu0
      %v1192 = vadd.f32 0.0, %v1191
      %v1193 = vpop.f32.mrf.mxu0
      %v1194 = vpop.f32.mrf.mxu0
      %v1195 = vadd.f32 0.0, %v1194
      %v1196 = vpop.f32.mrf.mxu0
      %1197 = vmatprep.mubr.bf16.mxu0 0
      %1198 = vmatmul.mubr.bf16.gmra.mxu0 %v1141
      %v1199 = vpop.f32.mrf.mxu0
      %v1200 = vadd.f32 0.0, %v1199
      %v1201 = vpop.f32.mrf.mxu0
      %v1202 = vpop.f32.mrf.mxu0
      %v1203 = vadd.f32 0.0, %v1202
      %v1204 = vpop.f32.mrf.mxu0
      %1205 = vmatprep.mubr.bf16.mxu0 0
      %1206 = vmatmul.mubr.bf16.gmra.mxu0 %v1144
      %v1207 = vpop.f32.mrf.mxu0
      %v1208 = vadd.f32 0.0, %v1207
      %v1209 = vpop.f32.mrf.mxu0
      %v1210 = vpop.f32.mrf.mxu0
      %v1211 = vadd.f32 0.0, %v1210
      %v1212 = vpop.f32.mrf.mxu0
      %1213 = vdwg.mxu0
      %s1214 = scalar_lea.vmem %s413, 64
      %1215 = vst.msk [vmem:[%s1214] sm:$0xff] %vm812, %v1184
      %1216 = vst.msk [vmem:[%s1214 + $0x8] sm:$0xff] %vm812, %v1187
      %1217 = vst.msk [vmem:[%s1214 + $0x10] sm:$0xff] %vm812, %v1192
      %1218 = vst.msk [vmem:[%s1214 + $0x18] sm:$0xff] %vm812, %v1195
      %1219 = vst.msk [vmem:[%s1214 + $0x20] sm:$0xff] %vm812, %v1200
      %1220 = vst.msk [vmem:[%s1214 + $0x28] sm:$0xff] %vm812, %v1203
      %1221 = vst.msk [vmem:[%s1214 + $0x30] sm:$0xff] %vm812, %v1208
      %1222 = vst.msk [vmem:[%s1214 + $0x38] sm:$0xff] %vm812, %v1211
      %v1223 = vld [vmem:[%s3] sm:$0x3]
      %s1224 = scalar_lea.vmem %s398, 2
      %v1225 = vld [vmem:[%s1224] sm:$0x1]
      %v1227 = vsel %vm418, %v1223, 0
      %v1230 = vsel %vm422, %v1225, 0
      %1232 = vmatprep.subr.bf16.mxu0 0
      %1233 = vmatpush1.bf16.msra.mxu0 0
      %1234 = vmatprep.subr.bf16.mxu0 0
      %1235 = vmatpush1.bf16.msra.mxu0 0
      %1236 = vmatprep.subr.bf16.mxu0 0
      %1237 = vmatpush1.bf16.msra.mxu0 0
      %1238 = vmatprep.subr.bf16.mxu0 0
      %1239 = vmatpush1.bf16.msra.mxu0 0
      %1240 = vmatprep.subr.bf16.mxu0 0
      %1241 = vmatpush1.bf16.msra.mxu0 0
      %1242 = vmatprep.subr.bf16.mxu0 0
      %1243 = vmatpush1.bf16.msra.mxu0 0
      %1244 = vmatprep.subr.bf16.mxu0 0
      %1245 = vmatpush1.bf16.msra.mxu0 0
      %1246 = vmatprep.subr.bf16.mxu0 0
      %1247 = vmatpush1.bf16.msra.mxu0 %v1230
      %1248 = vmatprep.subr.bf16.mxu0 0
      %1249 = vmatpush2.bf16.msra.mxu0 0
      %1250 = vmatprep.subr.bf16.mxu0 0
      %1251 = vmatpush2.bf16.msra.mxu0 0
      %1252 = vmatprep.subr.bf16.mxu0 0
      %1253 = vmatpush2.bf16.msra.mxu0 0
      %1254 = vmatprep.subr.bf16.mxu0 0
      %1255 = vmatpush2.bf16.msra.mxu0 0
      %1256 = vmatprep.subr.bf16.mxu0 0
      %1257 = vmatpush2.bf16.msra.mxu0 0
      %1258 = vmatprep.subr.bf16.mxu0 0
      %1259 = vmatpush2.bf16.msra.mxu0 0
      %1260 = vmatprep.subr.bf16.mxu0 0
      %1261 = vmatpush2.bf16.msra.mxu0 0
      %1262 = vmatprep.subr.bf16.mxu0 0
      %1263 = vmatpush2.bf16.msra.mxu0 0
      %1264 = vmatprep.mubr.bf16.mxu0 0
      %1265 = vmatmul.mubr.bf16.gmra.mxu0 %v1227
      %v1266 = vpop.f32.mrf.mxu0
      %v1267 = vadd.f32 0.0, %v1266
      %v1268 = vpop.f32.mrf.mxu0
      %v1269 = vpop.f32.mrf.mxu0
      %v1270 = vpop.f32.mrf.mxu0
      %1271 = vdwg.mxu0
      %v1272 = vpack.c.bf16 %v1267, %v1267
      %v1273 = vld [vmem:[%s4] sm:$0x1]
      %s1274 = scalar_lea.vmem %s394, 4
      %v1275 = vld [vmem:[%s1274] sm:$0x3]
      %v1276 = vunpack.c.l.bf16 %v1275
      %v1278 = vsel %vm418, %v1272, 0
      %v1281 = vsel %vm422, %v1273, 0
      %1283 = vmatprep.subr.bf16.mxu0 0
      %1284 = vmatpush1.bf16.msra.mxu0 0
      %1285 = vmatprep.subr.bf16.mxu0 0
      %1286 = vmatpush1.bf16.msra.mxu0 0
      %1287 = vmatprep.subr.bf16.mxu0 0
      %1288 = vmatpush1.bf16.msra.mxu0 0
      %1289 = vmatprep.subr.bf16.mxu0 0
      %1290 = vmatpush1.bf16.msra.mxu0 0
      %1291 = vmatprep.subr.bf16.mxu0 0
      %1292 = vmatpush1.bf16.msra.mxu0 0
      %1293 = vmatprep.subr.bf16.mxu0 0
      %1294 = vmatpush1.bf16.msra.mxu0 0
      %1295 = vmatprep.subr.bf16.mxu0 0
      %1296 = vmatpush1.bf16.msra.mxu0 0
      %1297 = vmatprep.subr.bf16.mxu0 0
      %1298 = vmatpush1.bf16.msra.mxu0 %v1281
      %1299 = vmatprep.subr.bf16.mxu0 0
      %1300 = vmatpush2.bf16.msra.mxu0 0
      %1301 = vmatprep.subr.bf16.mxu0 0
      %1302 = vmatpush2.bf16.msra.mxu0 0
      %1303 = vmatprep.subr.bf16.mxu0 0
      %1304 = vmatpush2.bf16.msra.mxu0 0
      %1305 = vmatprep.subr.bf16.mxu0 0
      %1306 = vmatpush2.bf16.msra.mxu0 0
      %1307 = vmatprep.subr.bf16.mxu0 0
      %1308 = vmatpush2.bf16.msra.mxu0 0
      %1309 = vmatprep.subr.bf16.mxu0 0
      %1310 = vmatpush2.bf16.msra.mxu0 0
      %1311 = vmatprep.subr.bf16.mxu0 0
      %1312 = vmatpush2.bf16.msra.mxu0 0
      %1313 = vmatprep.subr.bf16.mxu0 0
      %1314 = vmatpush2.bf16.msra.mxu0 0
      %1315 = vmatprep.mubr.bf16.mxu0 0
      %1316 = vmatmul.mubr.bf16.gmra.mxu0 %v1278
      %v1317 = vpop.f32.mrf.mxu0
      %v1318 = vadd.f32 %v1276, %v1317
      %v1319 = vpop.f32.mrf.mxu0
      %v1320 = vpop.f32.mrf.mxu0
      %v1321 = vpop.f32.mrf.mxu0
      %1322 = vdwg.mxu0
      %v1323 = vld [vmem:[%s5] sm:$0xf]
      %v1324 = vpack.c.bf16 %v1318, %v1318
      %v1326 = vsel %vm518, %v1323, 0
      %v1329 = vsel %vm522, %v1324, 0
      %1331 = vmatprep.subr.bf16.mxu0 0
      %1332 = vmatpush1.bf16.msra.mxu0 0
      %1333 = vmatprep.subr.bf16.mxu0 0
      %1334 = vmatpush1.bf16.msra.mxu0 0
      %1335 = vmatprep.subr.bf16.mxu0 0
      %1336 = vmatpush1.bf16.msra.mxu0 0
      %1337 = vmatprep.subr.bf16.mxu0 0
      %1338 = vmatpush1.bf16.msra.mxu0 0
      %1339 = vmatprep.subr.bf16.mxu0 0
      %1340 = vmatpush1.bf16.msra.mxu0 0
      %1341 = vmatprep.subr.bf16.mxu0 0
      %1342 = vmatpush1.bf16.msra.mxu0 0
      %1343 = vmatprep.subr.bf16.mxu0 0
      %1344 = vmatpush1.bf16.msra.mxu0 0
      %1345 = vmatprep.subr.bf16.mxu0 0
      %1346 = vmatpush1.bf16.msra.mxu0 %v1329
      %1347 = vmatprep.subr.bf16.mxu0 0
      %1348 = vmatpush2.bf16.msra.mxu0 0
      %1349 = vmatprep.subr.bf16.mxu0 0
      %1350 = vmatpush2.bf16.msra.mxu0 0
      %1351 = vmatprep.subr.bf16.mxu0 0
      %1352 = vmatpush2.bf16.msra.mxu0 0
      %1353 = vmatprep.subr.bf16.mxu0 0
      %1354 = vmatpush2.bf16.msra.mxu0 0
      %1355 = vmatprep.subr.bf16.mxu0 0
      %1356 = vmatpush2.bf16.msra.mxu0 0
      %1357 = vmatprep.subr.bf16.mxu0 0
      %1358 = vmatpush2.bf16.msra.mxu0 0
      %1359 = vmatprep.subr.bf16.mxu0 0
      %1360 = vmatpush2.bf16.msra.mxu0 0
      %1361 = vmatprep.subr.bf16.mxu0 0
      %1362 = vmatpush2.bf16.msra.mxu0 0
      %1363 = vmatprep.mubr.bf16.mxu0 0
      %1364 = vmatmul.mubr.bf16.gmra.mxu0 %v1326
      %v1365 = vpop.f32.mrf.mxu0
      %v1366 = vadd.f32 0.0, %v1365
      %v1367 = vpop.f32.mrf.mxu0
      %v1368 = vpop.f32.mrf.mxu0
      %v1369 = vpop.f32.mrf.mxu0
      %1370 = vdwg.mxu0
      %v1371 = vpack.c.bf16 %v1366, %v1366
      %v1372 = vld [vmem:[%s6] sm:$0x3]
      %s1373 = scalar_lea.vmem %s389, 8
      %v1374 = vld [vmem:[%s1373] sm:$0xf]
      %v1375 = vunpack.c.l.bf16 %v1374
      %v1377 = vsel %vm518, %v1371, 0
      %v1380 = vsel %vm522, %v1372, 0
      %1382 = vmatprep.subr.bf16.mxu0 0
      %1383 = vmatpush1.bf16.msra.mxu0 0
      %1384 = vmatprep.subr.bf16.mxu0 0
      %1385 = vmatpush1.bf16.msra.mxu0 0
      %1386 = vmatprep.subr.bf16.mxu0 0
      %1387 = vmatpush1.bf16.msra.mxu0 0
      %1388 = vmatprep.subr.bf16.mxu0 0
      %1389 = vmatpush1.bf16.msra.mxu0 0
      %1390 = vmatprep.subr.bf16.mxu0 0
      %1391 = vmatpush1.bf16.msra.mxu0 0
      %1392 = vmatprep.subr.bf16.mxu0 0
      %1393 = vmatpush1.bf16.msra.mxu0 0
      %1394 = vmatprep.subr.bf16.mxu0 0
      %1395 = vmatpush1.bf16.msra.mxu0 0
      %1396 = vmatprep.subr.bf16.mxu0 0
      %1397 = vmatpush1.bf16.msra.mxu0 %v1380
      %1398 = vmatprep.subr.bf16.mxu0 0
      %1399 = vmatpush2.bf16.msra.mxu0 0
      %1400 = vmatprep.subr.bf16.mxu0 0
      %1401 = vmatpush2.bf16.msra.mxu0 0
      %1402 = vmatprep.subr.bf16.mxu0 0
      %1403 = vmatpush2.bf16.msra.mxu0 0
      %1404 = vmatprep.subr.bf16.mxu0 0
      %1405 = vmatpush2.bf16.msra.mxu0 0
      %1406 = vmatprep.subr.bf16.mxu0 0
      %1407 = vmatpush2.bf16.msra.mxu0 0
      %1408 = vmatprep.subr.bf16.mxu0 0
      %1409 = vmatpush2.bf16.msra.mxu0 0
      %1410 = vmatprep.subr.bf16.mxu0 0
      %1411 = vmatpush2.bf16.msra.mxu0 0
      %1412 = vmatprep.subr.bf16.mxu0 0
      %1413 = vmatpush2.bf16.msra.mxu0 0
      %1414 = vmatprep.mubr.bf16.mxu0 0
      %1415 = vmatmul.mubr.bf16.gmra.mxu0 %v1377
      %v1416 = vpop.f32.mrf.mxu0
      %v1417 = vadd.f32 %v1375, %v1416
      %v1418 = vpop.f32.mrf.mxu0
      %v1419 = vpop.f32.mrf.mxu0
      %v1420 = vpop.f32.mrf.mxu0
      %1421 = vdwg.mxu0
      %v1422 = vld [vmem:[%s403] sm:$0xf]
      %v1423 = vld [vmem:[%s403 + $0x4] sm:$0xf]
      %v1424 = vld [vmem:[%s403 + $0x8] sm:$0xf]
      %v1425 = vld [vmem:[%s403 + $0xc] sm:$0xf]
      %v1426 = vld [vmem:[%s403 + $0x10] sm:$0xf]
      %v1427 = vld [vmem:[%s403 + $0x14] sm:$0xf]
      %v1428 = vld [vmem:[%s403 + $0x18] sm:$0xf]
      %v1429 = vld [vmem:[%s403 + $0x1c] sm:$0xf]
      %v1430 = vpack.c.bf16 %v1417, %v1417
      %v1439 = vunpack.c.l.b16 %v1422
      %v1440 = vunpack.c.l.b16 %v1423
      %v1441 = vunpack.c.l.b16 %v1424
      %v1442 = vunpack.c.l.b16 %v1425
      %v1443 = vunpack.c.l.b16 %v1426
      %v1444 = vunpack.c.l.b16 %v1427
      %v1445 = vunpack.c.l.b16 %v1428
      %v1446 = vunpack.c.l.b16 %v1429
      %v1447 = vpack.c.b16 %v1440, %v1439
      %v1448 = vpack.c.b16 %v1442, %v1441
      %v1449 = vpack.c.b16 %v1444, %v1443
      %v1450 = vpack.c.b16 %v1446, %v1445
      %v1452 = vsel %vm645, %v1447, 0
      %v1455 = vsel %vm645, %v1448, 0
      %v1458 = vsel %vm645, %v1449, 0
      %v1461 = vsel %vm645, %v1450, 0
      %v1464 = vsel %vm658, %v1430, 0
      %1466 = vmatprep.subr.bf16.mxu0 0
      %1467 = vmatpush1.bf16.msra.mxu0 0
      %1468 = vmatprep.subr.bf16.mxu0 0
      %1469 = vmatpush1.bf16.msra.mxu0 0
      %1470 = vmatprep.subr.bf16.mxu0 0
      %1471 = vmatpush1.bf16.msra.mxu0 0
      %1472 = vmatprep.subr.bf16.mxu0 0
      %1473 = vmatpush1.bf16.msra.mxu0 0
      %1474 = vmatprep.subr.bf16.mxu0 0
      %1475 = vmatpush1.bf16.msra.mxu0 0
      %1476 = vmatprep.subr.bf16.mxu0 0
      %1477 = vmatpush1.bf16.msra.mxu0 0
      %1478 = vmatprep.subr.bf16.mxu0 0
      %1479 = vmatpush1.bf16.msra.mxu0 0
      %1480 = vmatprep.subr.bf16.mxu0 0
      %1481 = vmatpush1.bf16.msra.mxu0 %v1464
      %1482 = vmatprep.subr.bf16.mxu0 0
      %1483 = vmatpush2.bf16.msra.mxu0 0
      %1484 = vmatprep.subr.bf16.mxu0 0
      %1485 = vmatpush2.bf16.msra.mxu0 0
      %1486 = vmatprep.subr.bf16.mxu0 0
      %1487 = vmatpush2.bf16.msra.mxu0 0
      %1488 = vmatprep.subr.bf16.mxu0 0
      %1489 = vmatpush2.bf16.msra.mxu0 0
      %1490 = vmatprep.subr.bf16.mxu0 0
      %1491 = vmatpush2.bf16.msra.mxu0 0
      %1492 = vmatprep.subr.bf16.mxu0 0
      %1493 = vmatpush2.bf16.msra.mxu0 0
      %1494 = vmatprep.subr.bf16.mxu0 0
      %1495 = vmatpush2.bf16.msra.mxu0 0
      %1496 = vmatprep.subr.bf16.mxu0 0
      %1497 = vmatpush2.bf16.msra.mxu0 0
      %1498 = vmatprep.mubr.bf16.mxu0 0
      %1499 = vmatmul.mubr.bf16.gmra.mxu0 %v1452
      %v1500 = vpop.f32.mrf.mxu0
      %v1501 = vadd.f32 0.0, %v1500
      %v1502 = vpop.f32.mrf.mxu0
      %v1503 = vpop.f32.mrf.mxu0
      %v1504 = vadd.f32 0.0, %v1503
      %v1505 = vpop.f32.mrf.mxu0
      %1506 = vmatprep.mubr.bf16.mxu0 0
      %1507 = vmatmul.mubr.bf16.gmra.mxu0 %v1455
      %v1508 = vpop.f32.mrf.mxu0
      %v1509 = vadd.f32 0.0, %v1508
      %v1510 = vpop.f32.mrf.mxu0
      %v1511 = vpop.f32.mrf.mxu0
      %v1512 = vadd.f32 0.0, %v1511
      %v1513 = vpop.f32.mrf.mxu0
      %1514 = vmatprep.mubr.bf16.mxu0 0
      %1515 = vmatmul.mubr.bf16.gmra.mxu0 %v1458
      %v1516 = vpop.f32.mrf.mxu0
      %v1517 = vadd.f32 0.0, %v1516
      %v1518 = vpop.f32.mrf.mxu0
      %v1519 = vpop.f32.mrf.mxu0
      %v1520 = vadd.f32 0.0, %v1519
      %v1521 = vpop.f32.mrf.mxu0
      %1522 = vmatprep.mubr.bf16.mxu0 0
      %1523 = vmatmul.mubr.bf16.gmra.mxu0 %v1461
      %v1524 = vpop.f32.mrf.mxu0
      %v1525 = vadd.f32 0.0, %v1524
      %v1526 = vpop.f32.mrf.mxu0
      %v1527 = vpop.f32.mrf.mxu0
      %v1528 = vadd.f32 0.0, %v1527
      %v1529 = vpop.f32.mrf.mxu0
      %1530 = vdwg.mxu0
      %v1531 = vpack.c.bf16 %v1504, %v1501
      %v1532 = vpack.c.bf16 %v1512, %v1509
      %v1533 = vpack.c.bf16 %v1520, %v1517
      %v1534 = vpack.c.bf16 %v1528, %v1525
      %v1535 = vld [vmem:[%s8] sm:$0xf]
      %v1537 = vsel %vm645, %v1531, 0
      %v1540 = vsel %vm645, %v1532, 0
      %v1543 = vsel %vm645, %v1533, 0
      %v1546 = vsel %vm645, %v1534, 0
      %v1549 = vsel %vm658, %v1535, 0
      %1551 = vmatprep.subr.bf16.mxu0 0
      %1552 = vmatpush1.bf16.msra.mxu0 0
      %1553 = vmatprep.subr.bf16.mxu0 0
      %1554 = vmatpush1.bf16.msra.mxu0 0
      %1555 = vmatprep.subr.bf16.mxu0 0
      %1556 = vmatpush1.bf16.msra.mxu0 0
      %1557 = vmatprep.subr.bf16.mxu0 0
      %1558 = vmatpush1.bf16.msra.mxu0 0
      %1559 = vmatprep.subr.bf16.mxu0 0
      %1560 = vmatpush1.bf16.msra.mxu0 0
      %1561 = vmatprep.subr.bf16.mxu0 0
      %1562 = vmatpush1.bf16.msra.mxu0 0
      %1563 = vmatprep.subr.bf16.mxu0 0
      %1564 = vmatpush1.bf16.msra.mxu0 0
      %1565 = vmatprep.subr.bf16.mxu0 0
      %1566 = vmatpush1.bf16.msra.mxu0 %v1549
      %1567 = vmatprep.subr.bf16.mxu0 0
      %1568 = vmatpush2.bf16.msra.mxu0 0
      %1569 = vmatprep.subr.bf16.mxu0 0
      %1570 = vmatpush2.bf16.msra.mxu0 0
      %1571 = vmatprep.subr.bf16.mxu0 0
      %1572 = vmatpush2.bf16.msra.mxu0 0
      %1573 = vmatprep.subr.bf16.mxu0 0
      %1574 = vmatpush2.bf16.msra.mxu0 0
      %1575 = vmatprep.subr.bf16.mxu0 0
      %1576 = vmatpush2.bf16.msra.mxu0 0
      %1577 = vmatprep.subr.bf16.mxu0 0
      %1578 = vmatpush2.bf16.msra.mxu0 0
      %1579 = vmatprep.subr.bf16.mxu0 0
      %1580 = vmatpush2.bf16.msra.mxu0 0
      %1581 = vmatprep.subr.bf16.mxu0 0
      %1582 = vmatpush2.bf16.msra.mxu0 0
      %1583 = vmatprep.mubr.bf16.mxu0 0
      %1584 = vmatmul.mubr.bf16.gmra.mxu0 %v1537
      %v1585 = vpop.f32.mrf.mxu0
      %v1586 = vadd.f32 0.0, %v1585
      %v1587 = vpop.f32.mrf.mxu0
      %v1588 = vpop.f32.mrf.mxu0
      %v1589 = vadd.f32 0.0, %v1588
      %v1590 = vpop.f32.mrf.mxu0
      %1591 = vmatprep.mubr.bf16.mxu0 0
      %1592 = vmatmul.mubr.bf16.gmra.mxu0 %v1540
      %v1593 = vpop.f32.mrf.mxu0
      %v1594 = vadd.f32 0.0, %v1593
      %v1595 = vpop.f32.mrf.mxu0
      %v1596 = vpop.f32.mrf.mxu0
      %v1597 = vadd.f32 0.0, %v1596
      %v1598 = vpop.f32.mrf.mxu0
      %1599 = vmatprep.mubr.bf16.mxu0 0
      %1600 = vmatmul.mubr.bf16.gmra.mxu0 %v1543
      %v1601 = vpop.f32.mrf.mxu0
      %v1602 = vadd.f32 0.0, %v1601
      %v1603 = vpop.f32.mrf.mxu0
      %v1604 = vpop.f32.mrf.mxu0
      %v1605 = vadd.f32 0.0, %v1604
      %v1606 = vpop.f32.mrf.mxu0
      %1607 = vmatprep.mubr.bf16.mxu0 0
      %1608 = vmatmul.mubr.bf16.gmra.mxu0 %v1546
      %v1609 = vpop.f32.mrf.mxu0
      %v1610 = vadd.f32 0.0, %v1609
      %v1611 = vpop.f32.mrf.mxu0
      %v1612 = vpop.f32.mrf.mxu0
      %v1613 = vadd.f32 0.0, %v1612
      %v1614 = vpop.f32.mrf.mxu0
      %1615 = vdwg.mxu0
      %s1616 = scalar_lea.vmem %s413, 128
      %1617 = vst.msk [vmem:[%s1616] sm:$0xff] %vm812, %v1586
      %1618 = vst.msk [vmem:[%s1616 + $0x8] sm:$0xff] %vm812, %v1589
      %1619 = vst.msk [vmem:[%s1616 + $0x10] sm:$0xff] %vm812, %v1594
      %1620 = vst.msk [vmem:[%s1616 + $0x18] sm:$0xff] %vm812, %v1597
      %1621 = vst.msk [vmem:[%s1616 + $0x20] sm:$0xff] %vm812, %v1602
      %1622 = vst.msk [vmem:[%s1616 + $0x28] sm:$0xff] %vm812, %v1605
      %1623 = vst.msk [vmem:[%s1616 + $0x30] sm:$0xff] %vm812, %v1610
      %1624 = vst.msk [vmem:[%s1616 + $0x38] sm:$0xff] %vm812, %v1613
      %v1625 = vld [vmem:[%s3] sm:$0x3]
      %s1626 = scalar_lea.vmem %s398, 3
      %v1627 = vld [vmem:[%s1626] sm:$0x1]
      %v1629 = vsel %vm418, %v1625, 0
      %v1632 = vsel %vm422, %v1627, 0
      %1634 = vmatprep.subr.bf16.mxu0 0
      %1635 = vmatpush1.bf16.msra.mxu0 0
      %1636 = vmatprep.subr.bf16.mxu0 0
      %1637 = vmatpush1.bf16.msra.mxu0 0
      %1638 = vmatprep.subr.bf16.mxu0 0
      %1639 = vmatpush1.bf16.msra.mxu0 0
      %1640 = vmatprep.subr.bf16.mxu0 0
      %1641 = vmatpush1.bf16.msra.mxu0 0
      %1642 = vmatprep.subr.bf16.mxu0 0
      %1643 = vmatpush1.bf16.msra.mxu0 0
      %1644 = vmatprep.subr.bf16.mxu0 0
      %1645 = vmatpush1.bf16.msra.mxu0 0
      %1646 = vmatprep.subr.bf16.mxu0 0
      %1647 = vmatpush1.bf16.msra.mxu0 0
      %1648 = vmatprep.subr.bf16.mxu0 0
      %1649 = vmatpush1.bf16.msra.mxu0 %v1632
      %1650 = vmatprep.subr.bf16.mxu0 0
      %1651 = vmatpush2.bf16.msra.mxu0 0
      %1652 = vmatprep.subr.bf16.mxu0 0
      %1653 = vmatpush2.bf16.msra.mxu0 0
      %1654 = vmatprep.subr.bf16.mxu0 0
      %1655 = vmatpush2.bf16.msra.mxu0 0
      %1656 = vmatprep.subr.bf16.mxu0 0
      %1657 = vmatpush2.bf16.msra.mxu0 0
      %1658 = vmatprep.subr.bf16.mxu0 0
      %1659 = vmatpush2.bf16.msra.mxu0 0
      %1660 = vmatprep.subr.bf16.mxu0 0
      %1661 = vmatpush2.bf16.msra.mxu0 0
      %1662 = vmatprep.subr.bf16.mxu0 0
      %1663 = vmatpush2.bf16.msra.mxu0 0
      %1664 = vmatprep.subr.bf16.mxu0 0
      %1665 = vmatpush2.bf16.msra.mxu0 0
      %1666 = vmatprep.mubr.bf16.mxu0 0
      %1667 = vmatmul.mubr.bf16.gmra.mxu0 %v1629
      %v1668 = vpop.f32.mrf.mxu0
      %v1669 = vadd.f32 0.0, %v1668
      %v1670 = vpop.f32.mrf.mxu0
      %v1671 = vpop.f32.mrf.mxu0
      %v1672 = vpop.f32.mrf.mxu0
      %1673 = vdwg.mxu0
      %v1674 = vpack.c.bf16 %v1669, %v1669
      %v1675 = vld [vmem:[%s4] sm:$0x1]
      %s1676 = scalar_lea.vmem %s394, 6
      %v1677 = vld [vmem:[%s1676] sm:$0x3]
      %v1678 = vunpack.c.l.bf16 %v1677
      %v1680 = vsel %vm418, %v1674, 0
      %v1683 = vsel %vm422, %v1675, 0
      %1685 = vmatprep.subr.bf16.mxu0 0
      %1686 = vmatpush1.bf16.msra.mxu0 0
      %1687 = vmatprep.subr.bf16.mxu0 0
      %1688 = vmatpush1.bf16.msra.mxu0 0
      %1689 = vmatprep.subr.bf16.mxu0 0
      %1690 = vmatpush1.bf16.msra.mxu0 0
      %1691 = vmatprep.subr.bf16.mxu0 0
      %1692 = vmatpush1.bf16.msra.mxu0 0
      %1693 = vmatprep.subr.bf16.mxu0 0
      %1694 = vmatpush1.bf16.msra.mxu0 0
      %1695 = vmatprep.subr.bf16.mxu0 0
      %1696 = vmatpush1.bf16.msra.mxu0 0
      %1697 = vmatprep.subr.bf16.mxu0 0
      %1698 = vmatpush1.bf16.msra.mxu0 0
      %1699 = vmatprep.subr.bf16.mxu0 0
      %1700 = vmatpush1.bf16.msra.mxu0 %v1683
      %1701 = vmatprep.subr.bf16.mxu0 0
      %1702 = vmatpush2.bf16.msra.mxu0 0
      %1703 = vmatprep.subr.bf16.mxu0 0
      %1704 = vmatpush2.bf16.msra.mxu0 0
      %1705 = vmatprep.subr.bf16.mxu0 0
      %1706 = vmatpush2.bf16.msra.mxu0 0
      %1707 = vmatprep.subr.bf16.mxu0 0
      %1708 = vmatpush2.bf16.msra.mxu0 0
      %1709 = vmatprep.subr.bf16.mxu0 0
      %1710 = vmatpush2.bf16.msra.mxu0 0
      %1711 = vmatprep.subr.bf16.mxu0 0
      %1712 = vmatpush2.bf16.msra.mxu0 0
      %1713 = vmatprep.subr.bf16.mxu0 0
      %1714 = vmatpush2.bf16.msra.mxu0 0
      %1715 = vmatprep.subr.bf16.mxu0 0
      %1716 = vmatpush2.bf16.msra.mxu0 0
      %1717 = vmatprep.mubr.bf16.mxu0 0
      %1718 = vmatmul.mubr.bf16.gmra.mxu0 %v1680
      %v1719 = vpop.f32.mrf.mxu0
      %v1720 = vadd.f32 %v1678, %v1719
      %v1721 = vpop.f32.mrf.mxu0
      %v1722 = vpop.f32.mrf.mxu0
      %v1723 = vpop.f32.mrf.mxu0
      %1724 = vdwg.mxu0
      %v1725 = vld [vmem:[%s5] sm:$0xf]
      %v1726 = vpack.c.bf16 %v1720, %v1720
      %v1728 = vsel %vm518, %v1725, 0
      %v1731 = vsel %vm522, %v1726, 0
      %1733 = vmatprep.subr.bf16.mxu0 0
      %1734 = vmatpush1.bf16.msra.mxu0 0
      %1735 = vmatprep.subr.bf16.mxu0 0
      %1736 = vmatpush1.bf16.msra.mxu0 0
      %1737 = vmatprep.subr.bf16.mxu0 0
      %1738 = vmatpush1.bf16.msra.mxu0 0
      %1739 = vmatprep.subr.bf16.mxu0 0
      %1740 = vmatpush1.bf16.msra.mxu0 0
      %1741 = vmatprep.subr.bf16.mxu0 0
      %1742 = vmatpush1.bf16.msra.mxu0 0
      %1743 = vmatprep.subr.bf16.mxu0 0
      %1744 = vmatpush1.bf16.msra.mxu0 0
      %1745 = vmatprep.subr.bf16.mxu0 0
      %1746 = vmatpush1.bf16.msra.mxu0 0
      %1747 = vmatprep.subr.bf16.mxu0 0
      %1748 = vmatpush1.bf16.msra.mxu0 %v1731
      %1749 = vmatprep.subr.bf16.mxu0 0
      %1750 = vmatpush2.bf16.msra.mxu0 0
      %1751 = vmatprep.subr.bf16.mxu0 0
      %1752 = vmatpush2.bf16.msra.mxu0 0
      %1753 = vmatprep.subr.bf16.mxu0 0
      %1754 = vmatpush2.bf16.msra.mxu0 0
      %1755 = vmatprep.subr.bf16.mxu0 0
      %1756 = vmatpush2.bf16.msra.mxu0 0
      %1757 = vmatprep.subr.bf16.mxu0 0
      %1758 = vmatpush2.bf16.msra.mxu0 0
      %1759 = vmatprep.subr.bf16.mxu0 0
      %1760 = vmatpush2.bf16.msra.mxu0 0
      %1761 = vmatprep.subr.bf16.mxu0 0
      %1762 = vmatpush2.bf16.msra.mxu0 0
      %1763 = vmatprep.subr.bf16.mxu0 0
      %1764 = vmatpush2.bf16.msra.mxu0 0
      %1765 = vmatprep.mubr.bf16.mxu0 0
      %1766 = vmatmul.mubr.bf16.gmra.mxu0 %v1728
      %v1767 = vpop.f32.mrf.mxu0
      %v1768 = vadd.f32 0.0, %v1767
      %v1769 = vpop.f32.mrf.mxu0
      %v1770 = vpop.f32.mrf.mxu0
      %v1771 = vpop.f32.mrf.mxu0
      %1772 = vdwg.mxu0
      %v1773 = vpack.c.bf16 %v1768, %v1768
      %v1774 = vld [vmem:[%s6] sm:$0x3]
      %s1775 = scalar_lea.vmem %s389, 12
      %v1776 = vld [vmem:[%s1775] sm:$0xf]
      %v1777 = vunpack.c.l.bf16 %v1776
      %v1779 = vsel %vm518, %v1773, 0
      %v1782 = vsel %vm522, %v1774, 0
      %1784 = vmatprep.subr.bf16.mxu0 0
      %1785 = vmatpush1.bf16.msra.mxu0 0
      %1786 = vmatprep.subr.bf16.mxu0 0
      %1787 = vmatpush1.bf16.msra.mxu0 0
      %1788 = vmatprep.subr.bf16.mxu0 0
      %1789 = vmatpush1.bf16.msra.mxu0 0
      %1790 = vmatprep.subr.bf16.mxu0 0
      %1791 = vmatpush1.bf16.msra.mxu0 0
      %1792 = vmatprep.subr.bf16.mxu0 0
      %1793 = vmatpush1.bf16.msra.mxu0 0
      %1794 = vmatprep.subr.bf16.mxu0 0
      %1795 = vmatpush1.bf16.msra.mxu0 0
      %1796 = vmatprep.subr.bf16.mxu0 0
      %1797 = vmatpush1.bf16.msra.mxu0 0
      %1798 = vmatprep.subr.bf16.mxu0 0
      %1799 = vmatpush1.bf16.msra.mxu0 %v1782
      %1800 = vmatprep.subr.bf16.mxu0 0
      %1801 = vmatpush2.bf16.msra.mxu0 0
      %1802 = vmatprep.subr.bf16.mxu0 0
      %1803 = vmatpush2.bf16.msra.mxu0 0
      %1804 = vmatprep.subr.bf16.mxu0 0
      %1805 = vmatpush2.bf16.msra.mxu0 0
      %1806 = vmatprep.subr.bf16.mxu0 0
      %1807 = vmatpush2.bf16.msra.mxu0 0
      %1808 = vmatprep.subr.bf16.mxu0 0
      %1809 = vmatpush2.bf16.msra.mxu0 0
      %1810 = vmatprep.subr.bf16.mxu0 0
      %1811 = vmatpush2.bf16.msra.mxu0 0
      %1812 = vmatprep.subr.bf16.mxu0 0
      %1813 = vmatpush2.bf16.msra.mxu0 0
      %1814 = vmatprep.subr.bf16.mxu0 0
      %1815 = vmatpush2.bf16.msra.mxu0 0
      %1816 = vmatprep.mubr.bf16.mxu0 0
      %1817 = vmatmul.mubr.bf16.gmra.mxu0 %v1779
      %v1818 = vpop.f32.mrf.mxu0
      %v1819 = vadd.f32 %v1777, %v1818
      %v1820 = vpop.f32.mrf.mxu0
      %v1821 = vpop.f32.mrf.mxu0
      %v1822 = vpop.f32.mrf.mxu0
      %1823 = vdwg.mxu0
      %v1824 = vld [vmem:[%s403] sm:$0xf]
      %v1825 = vld [vmem:[%s403 + $0x4] sm:$0xf]
      %v1826 = vld [vmem:[%s403 + $0x8] sm:$0xf]
      %v1827 = vld [vmem:[%s403 + $0xc] sm:$0xf]
      %v1828 = vld [vmem:[%s403 + $0x10] sm:$0xf]
      %v1829 = vld [vmem:[%s403 + $0x14] sm:$0xf]
      %v1830 = vld [vmem:[%s403 + $0x18] sm:$0xf]
      %v1831 = vld [vmem:[%s403 + $0x1c] sm:$0xf]
      %v1832 = vpack.c.bf16 %v1819, %v1819
      %v1841 = vunpack.c.l.b16 %v1824
      %v1842 = vunpack.c.l.b16 %v1825
      %v1843 = vunpack.c.l.b16 %v1826
      %v1844 = vunpack.c.l.b16 %v1827
      %v1845 = vunpack.c.l.b16 %v1828
      %v1846 = vunpack.c.l.b16 %v1829
      %v1847 = vunpack.c.l.b16 %v1830
      %v1848 = vunpack.c.l.b16 %v1831
      %v1849 = vpack.c.b16 %v1842, %v1841
      %v1850 = vpack.c.b16 %v1844, %v1843
      %v1851 = vpack.c.b16 %v1846, %v1845
      %v1852 = vpack.c.b16 %v1848, %v1847
      %v1854 = vsel %vm645, %v1849, 0
      %v1857 = vsel %vm645, %v1850, 0
      %v1860 = vsel %vm645, %v1851, 0
      %v1863 = vsel %vm645, %v1852, 0
      %v1866 = vsel %vm658, %v1832, 0
      %1868 = vmatprep.subr.bf16.mxu0 0
      %1869 = vmatpush1.bf16.msra.mxu0 0
      %1870 = vmatprep.subr.bf16.mxu0 0
      %1871 = vmatpush1.bf16.msra.mxu0 0
      %1872 = vmatprep.subr.bf16.mxu0 0
      %1873 = vmatpush1.bf16.msra.mxu0 0
      %1874 = vmatprep.subr.bf16.mxu0 0
      %1875 = vmatpush1.bf16.msra.mxu0 0
      %1876 = vmatprep.subr.bf16.mxu0 0
      %1877 = vmatpush1.bf16.msra.mxu0 0
      %1878 = vmatprep.subr.bf16.mxu0 0
      %1879 = vmatpush1.bf16.msra.mxu0 0
      %1880 = vmatprep.subr.bf16.mxu0 0
      %1881 = vmatpush1.bf16.msra.mxu0 0
      %1882 = vmatprep.subr.bf16.mxu0 0
      %1883 = vmatpush1.bf16.msra.mxu0 %v1866
      %1884 = vmatprep.subr.bf16.mxu0 0
      %1885 = vmatpush2.bf16.msra.mxu0 0
      %1886 = vmatprep.subr.bf16.mxu0 0
      %1887 = vmatpush2.bf16.msra.mxu0 0
      %1888 = vmatprep.subr.bf16.mxu0 0
      %1889 = vmatpush2.bf16.msra.mxu0 0
      %1890 = vmatprep.subr.bf16.mxu0 0
      %1891 = vmatpush2.bf16.msra.mxu0 0
      %1892 = vmatprep.subr.bf16.mxu0 0
      %1893 = vmatpush2.bf16.msra.mxu0 0
      %1894 = vmatprep.subr.bf16.mxu0 0
      %1895 = vmatpush2.bf16.msra.mxu0 0
      %1896 = vmatprep.subr.bf16.mxu0 0
      %1897 = vmatpush2.bf16.msra.mxu0 0
      %1898 = vmatprep.subr.bf16.mxu0 0
      %1899 = vmatpush2.bf16.msra.mxu0 0
      %1900 = vmatprep.mubr.bf16.mxu0 0
      %1901 = vmatmul.mubr.bf16.gmra.mxu0 %v1854
      %v1902 = vpop.f32.mrf.mxu0
      %v1903 = vadd.f32 0.0, %v1902
      %v1904 = vpop.f32.mrf.mxu0
      %v1905 = vpop.f32.mrf.mxu0
      %v1906 = vadd.f32 0.0, %v1905
      %v1907 = vpop.f32.mrf.mxu0
      %1908 = vmatprep.mubr.bf16.mxu0 0
      %1909 = vmatmul.mubr.bf16.gmra.mxu0 %v1857
      %v1910 = vpop.f32.mrf.mxu0
      %v1911 = vadd.f32 0.0, %v1910
      %v1912 = vpop.f32.mrf.mxu0
      %v1913 = vpop.f32.mrf.mxu0
      %v1914 = vadd.f32 0.0, %v1913
      %v1915 = vpop.f32.mrf.mxu0
      %1916 = vmatprep.mubr.bf16.mxu0 0
      %1917 = vmatmul.mubr.bf16.gmra.mxu0 %v1860
      %v1918 = vpop.f32.mrf.mxu0
      %v1919 = vadd.f32 0.0, %v1918
      %v1920 = vpop.f32.mrf.mxu0
      %v1921 = vpop.f32.mrf.mxu0
      %v1922 = vadd.f32 0.0, %v1921
      %v1923 = vpop.f32.mrf.mxu0
      %1924 = vmatprep.mubr.bf16.mxu0 0
      %1925 = vmatmul.mubr.bf16.gmra.mxu0 %v1863
      %v1926 = vpop.f32.mrf.mxu0
      %v1927 = vadd.f32 0.0, %v1926
      %v1928 = vpop.f32.mrf.mxu0
      %v1929 = vpop.f32.mrf.mxu0
      %v1930 = vadd.f32 0.0, %v1929
      %v1931 = vpop.f32.mrf.mxu0
      %1932 = vdwg.mxu0
      %v1933 = vpack.c.bf16 %v1906, %v1903
      %v1934 = vpack.c.bf16 %v1914, %v1911
      %v1935 = vpack.c.bf16 %v1922, %v1919
      %v1936 = vpack.c.bf16 %v1930, %v1927
      %v1937 = vld [vmem:[%s8] sm:$0xf]
      %v1939 = vsel %vm645, %v1933, 0
      %v1942 = vsel %vm645, %v1934, 0
      %v1945 = vsel %vm645, %v1935, 0
      %v1948 = vsel %vm645, %v1936, 0
      %v1951 = vsel %vm658, %v1937, 0
      %1953 = vmatprep.subr.bf16.mxu0 0
      %1954 = vmatpush1.bf16.msra.mxu0 0
      %1955 = vmatprep.subr.bf16.mxu0 0
      %1956 = vmatpush1.bf16.msra.mxu0 0
      %1957 = vmatprep.subr.bf16.mxu0 0
      %1958 = vmatpush1.bf16.msra.mxu0 0
      %1959 = vmatprep.subr.bf16.mxu0 0
      %1960 = vmatpush1.bf16.msra.mxu0 0
      %1961 = vmatprep.subr.bf16.mxu0 0
      %1962 = vmatpush1.bf16.msra.mxu0 0
      %1963 = vmatprep.subr.bf16.mxu0 0
      %1964 = vmatpush1.bf16.msra.mxu0 0
      %1965 = vmatprep.subr.bf16.mxu0 0
      %1966 = vmatpush1.bf16.msra.mxu0 0
      %1967 = vmatprep.subr.bf16.mxu0 0
      %1968 = vmatpush1.bf16.msra.mxu0 %v1951
      %1969 = vmatprep.subr.bf16.mxu0 0
      %1970 = vmatpush2.bf16.msra.mxu0 0
      %1971 = vmatprep.subr.bf16.mxu0 0
      %1972 = vmatpush2.bf16.msra.mxu0 0
      %1973 = vmatprep.subr.bf16.mxu0 0
      %1974 = vmatpush2.bf16.msra.mxu0 0
      %1975 = vmatprep.subr.bf16.mxu0 0
      %1976 = vmatpush2.bf16.msra.mxu0 0
      %1977 = vmatprep.subr.bf16.mxu0 0
      %1978 = vmatpush2.bf16.msra.mxu0 0
      %1979 = vmatprep.subr.bf16.mxu0 0
      %1980 = vmatpush2.bf16.msra.mxu0 0
      %1981 = vmatprep.subr.bf16.mxu0 0
      %1982 = vmatpush2.bf16.msra.mxu0 0
      %1983 = vmatprep.subr.bf16.mxu0 0
      %1984 = vmatpush2.bf16.msra.mxu0 0
      %1985 = vmatprep.mubr.bf16.mxu0 0
      %1986 = vmatmul.mubr.bf16.gmra.mxu0 %v1939
      %v1987 = vpop.f32.mrf.mxu0
      %v1988 = vadd.f32 0.0, %v1987
      %v1989 = vpop.f32.mrf.mxu0
      %v1990 = vpop.f32.mrf.mxu0
      %v1991 = vadd.f32 0.0, %v1990
      %v1992 = vpop.f32.mrf.mxu0
      %1993 = vmatprep.mubr.bf16.mxu0 0
      %1994 = vmatmul.mubr.bf16.gmra.mxu0 %v1942
      %v1995 = vpop.f32.mrf.mxu0
      %v1996 = vadd.f32 0.0, %v1995
      %v1997 = vpop.f32.mrf.mxu0
      %v1998 = vpop.f32.mrf.mxu0
      %v1999 = vadd.f32 0.0, %v1998
      %v2000 = vpop.f32.mrf.mxu0
      %2001 = vmatprep.mubr.bf16.mxu0 0
      %2002 = vmatmul.mubr.bf16.gmra.mxu0 %v1945
      %v2003 = vpop.f32.mrf.mxu0
      %v2004 = vadd.f32 0.0, %v2003
      %v2005 = vpop.f32.mrf.mxu0
      %v2006 = vpop.f32.mrf.mxu0
      %v2007 = vadd.f32 0.0, %v2006
      %v2008 = vpop.f32.mrf.mxu0
      %2009 = vmatprep.mubr.bf16.mxu0 0
      %2010 = vmatmul.mubr.bf16.gmra.mxu0 %v1948
      %v2011 = vpop.f32.mrf.mxu0
      %v2012 = vadd.f32 0.0, %v2011
      %v2013 = vpop.f32.mrf.mxu0
      %v2014 = vpop.f32.mrf.mxu0
      %v2015 = vadd.f32 0.0, %v2014
      %v2016 = vpop.f32.mrf.mxu0
      %2017 = vdwg.mxu0
      %s2018 = scalar_lea.vmem %s413, 192
      %2019 = vst.msk [vmem:[%s2018] sm:$0xff] %vm812, %v1988
      %2020 = vst.msk [vmem:[%s2018 + $0x8] sm:$0xff] %vm812, %v1991
      %2021 = vst.msk [vmem:[%s2018 + $0x10] sm:$0xff] %vm812, %v1996
      %2022 = vst.msk [vmem:[%s2018 + $0x18] sm:$0xff] %vm812, %v1999
      %2023 = vst.msk [vmem:[%s2018 + $0x20] sm:$0xff] %vm812, %v2004
      %2024 = vst.msk [vmem:[%s2018 + $0x28] sm:$0xff] %vm812, %v2007
      %2025 = vst.msk [vmem:[%s2018 + $0x30] sm:$0xff] %vm812, %v2012
      %2026 = vst.msk [vmem:[%s2018 + $0x38] sm:$0xff] %vm812, %v2015
      %v2027 = vld [vmem:[%s3] sm:$0x3]
      %s2028 = scalar_lea.vmem %s398, 4
      %v2029 = vld [vmem:[%s2028] sm:$0x1]
      %v2031 = vsel %vm418, %v2027, 0
      %v2034 = vsel %vm422, %v2029, 0
      %2036 = vmatprep.subr.bf16.mxu0 0
      %2037 = vmatpush1.bf16.msra.mxu0 0
      %2038 = vmatprep.subr.bf16.mxu0 0
      %2039 = vmatpush1.bf16.msra.mxu0 0
      %2040 = vmatprep.subr.bf16.mxu0 0
      %2041 = vmatpush1.bf16.msra.mxu0 0
      %2042 = vmatprep.subr.bf16.mxu0 0
      %2043 = vmatpush1.bf16.msra.mxu0 0
      %2044 = vmatprep.subr.bf16.mxu0 0
      %2045 = vmatpush1.bf16.msra.mxu0 0
      %2046 = vmatprep.subr.bf16.mxu0 0
      %2047 = vmatpush1.bf16.msra.mxu0 0
      %2048 = vmatprep.subr.bf16.mxu0 0
      %2049 = vmatpush1.bf16.msra.mxu0 0
      %2050 = vmatprep.subr.bf16.mxu0 0
      %2051 = vmatpush1.bf16.msra.mxu0 %v2034
      %2052 = vmatprep.subr.bf16.mxu0 0
      %2053 = vmatpush2.bf16.msra.mxu0 0
      %2054 = vmatprep.subr.bf16.mxu0 0
      %2055 = vmatpush2.bf16.msra.mxu0 0
      %2056 = vmatprep.subr.bf16.mxu0 0
      %2057 = vmatpush2.bf16.msra.mxu0 0
      %2058 = vmatprep.subr.bf16.mxu0 0
      %2059 = vmatpush2.bf16.msra.mxu0 0
      %2060 = vmatprep.subr.bf16.mxu0 0
      %2061 = vmatpush2.bf16.msra.mxu0 0
      %2062 = vmatprep.subr.bf16.mxu0 0
      %2063 = vmatpush2.bf16.msra.mxu0 0
      %2064 = vmatprep.subr.bf16.mxu0 0
      %2065 = vmatpush2.bf16.msra.mxu0 0
      %2066 = vmatprep.subr.bf16.mxu0 0
      %2067 = vmatpush2.bf16.msra.mxu0 0
      %2068 = vmatprep.mubr.bf16.mxu0 0
      %2069 = vmatmul.mubr.bf16.gmra.mxu0 %v2031
      %v2070 = vpop.f32.mrf.mxu0
      %v2071 = vadd.f32 0.0, %v2070
      %v2072 = vpop.f32.mrf.mxu0
      %v2073 = vpop.f32.mrf.mxu0
      %v2074 = vpop.f32.mrf.mxu0
      %2075 = vdwg.mxu0
      %v2076 = vpack.c.bf16 %v2071, %v2071
      %v2077 = vld [vmem:[%s4] sm:$0x1]
      %s2078 = scalar_lea.vmem %s394, 8
      %v2079 = vld [vmem:[%s2078] sm:$0x3]
      %v2080 = vunpack.c.l.bf16 %v2079
      %v2082 = vsel %vm418, %v2076, 0
      %v2085 = vsel %vm422, %v2077, 0
      %2087 = vmatprep.subr.bf16.mxu0 0
      %2088 = vmatpush1.bf16.msra.mxu0 0
      %2089 = vmatprep.subr.bf16.mxu0 0
      %2090 = vmatpush1.bf16.msra.mxu0 0
      %2091 = vmatprep.subr.bf16.mxu0 0
      %2092 = vmatpush1.bf16.msra.mxu0 0
      %2093 = vmatprep.subr.bf16.mxu0 0
      %2094 = vmatpush1.bf16.msra.mxu0 0
      %2095 = vmatprep.subr.bf16.mxu0 0
      %2096 = vmatpush1.bf16.msra.mxu0 0
      %2097 = vmatprep.subr.bf16.mxu0 0
      %2098 = vmatpush1.bf16.msra.mxu0 0
      %2099 = vmatprep.subr.bf16.mxu0 0
      %2100 = vmatpush1.bf16.msra.mxu0 0
      %2101 = vmatprep.subr.bf16.mxu0 0
      %2102 = vmatpush1.bf16.msra.mxu0 %v2085
      %2103 = vmatprep.subr.bf16.mxu0 0
      %2104 = vmatpush2.bf16.msra.mxu0 0
      %2105 = vmatprep.subr.bf16.mxu0 0
      %2106 = vmatpush2.bf16.msra.mxu0 0
      %2107 = vmatprep.subr.bf16.mxu0 0
      %2108 = vmatpush2.bf16.msra.mxu0 0
      %2109 = vmatprep.subr.bf16.mxu0 0
      %2110 = vmatpush2.bf16.msra.mxu0 0
      %2111 = vmatprep.subr.bf16.mxu0 0
      %2112 = vmatpush2.bf16.msra.mxu0 0
      %2113 = vmatprep.subr.bf16.mxu0 0
      %2114 = vmatpush2.bf16.msra.mxu0 0
      %2115 = vmatprep.subr.bf16.mxu0 0
      %2116 = vmatpush2.bf16.msra.mxu0 0
      %2117 = vmatprep.subr.bf16.mxu0 0
      %2118 = vmatpush2.bf16.msra.mxu0 0
      %2119 = vmatprep.mubr.bf16.mxu0 0
      %2120 = vmatmul.mubr.bf16.gmra.mxu0 %v2082
      %v2121 = vpop.f32.mrf.mxu0
      %v2122 = vadd.f32 %v2080, %v2121
      %v2123 = vpop.f32.mrf.mxu0
      %v2124 = vpop.f32.mrf.mxu0
      %v2125 = vpop.f32.mrf.mxu0
      %2126 = vdwg.mxu0
      %v2127 = vld [vmem:[%s5] sm:$0xf]
      %v2128 = vpack.c.bf16 %v2122, %v2122
      %v2130 = vsel %vm518, %v2127, 0
      %v2133 = vsel %vm522, %v2128, 0
      %2135 = vmatprep.subr.bf16.mxu0 0
      %2136 = vmatpush1.bf16.msra.mxu0 0
      %2137 = vmatprep.subr.bf16.mxu0 0
      %2138 = vmatpush1.bf16.msra.mxu0 0
      %2139 = vmatprep.subr.bf16.mxu0 0
      %2140 = vmatpush1.bf16.msra.mxu0 0
      %2141 = vmatprep.subr.bf16.mxu0 0
      %2142 = vmatpush1.bf16.msra.mxu0 0
      %2143 = vmatprep.subr.bf16.mxu0 0
      %2144 = vmatpush1.bf16.msra.mxu0 0
      %2145 = vmatprep.subr.bf16.mxu0 0
      %2146 = vmatpush1.bf16.msra.mxu0 0
      %2147 = vmatprep.subr.bf16.mxu0 0
      %2148 = vmatpush1.bf16.msra.mxu0 0
      %2149 = vmatprep.subr.bf16.mxu0 0
      %2150 = vmatpush1.bf16.msra.mxu0 %v2133
      %2151 = vmatprep.subr.bf16.mxu0 0
      %2152 = vmatpush2.bf16.msra.mxu0 0
      %2153 = vmatprep.subr.bf16.mxu0 0
      %2154 = vmatpush2.bf16.msra.mxu0 0
      %2155 = vmatprep.subr.bf16.mxu0 0
      %2156 = vmatpush2.bf16.msra.mxu0 0
      %2157 = vmatprep.subr.bf16.mxu0 0
      %2158 = vmatpush2.bf16.msra.mxu0 0
      %2159 = vmatprep.subr.bf16.mxu0 0
      %2160 = vmatpush2.bf16.msra.mxu0 0
      %2161 = vmatprep.subr.bf16.mxu0 0
      %2162 = vmatpush2.bf16.msra.mxu0 0
      %2163 = vmatprep.subr.bf16.mxu0 0
      %2164 = vmatpush2.bf16.msra.mxu0 0
      %2165 = vmatprep.subr.bf16.mxu0 0
      %2166 = vmatpush2.bf16.msra.mxu0 0
      %2167 = vmatprep.mubr.bf16.mxu0 0
      %2168 = vmatmul.mubr.bf16.gmra.mxu0 %v2130
      %v2169 = vpop.f32.mrf.mxu0
      %v2170 = vadd.f32 0.0, %v2169
      %v2171 = vpop.f32.mrf.mxu0
      %v2172 = vpop.f32.mrf.mxu0
      %v2173 = vpop.f32.mrf.mxu0
      %2174 = vdwg.mxu0
      %v2175 = vpack.c.bf16 %v2170, %v2170
      %v2176 = vld [vmem:[%s6] sm:$0x3]
      %s2177 = scalar_lea.vmem %s389, 16
      %v2178 = vld [vmem:[%s2177] sm:$0xf]
      %v2179 = vunpack.c.l.bf16 %v2178
      %v2181 = vsel %vm518, %v2175, 0
      %v2184 = vsel %vm522, %v2176, 0
      %2186 = vmatprep.subr.bf16.mxu0 0
      %2187 = vmatpush1.bf16.msra.mxu0 0
      %2188 = vmatprep.subr.bf16.mxu0 0
      %2189 = vmatpush1.bf16.msra.mxu0 0
      %2190 = vmatprep.subr.bf16.mxu0 0
      %2191 = vmatpush1.bf16.msra.mxu0 0
      %2192 = vmatprep.subr.bf16.mxu0 0
      %2193 = vmatpush1.bf16.msra.mxu0 0
      %2194 = vmatprep.subr.bf16.mxu0 0
      %2195 = vmatpush1.bf16.msra.mxu0 0
      %2196 = vmatprep.subr.bf16.mxu0 0
      %2197 = vmatpush1.bf16.msra.mxu0 0
      %2198 = vmatprep.subr.bf16.mxu0 0
      %2199 = vmatpush1.bf16.msra.mxu0 0
      %2200 = vmatprep.subr.bf16.mxu0 0
      %2201 = vmatpush1.bf16.msra.mxu0 %v2184
      %2202 = vmatprep.subr.bf16.mxu0 0
      %2203 = vmatpush2.bf16.msra.mxu0 0
      %2204 = vmatprep.subr.bf16.mxu0 0
      %2205 = vmatpush2.bf16.msra.mxu0 0
      %2206 = vmatprep.subr.bf16.mxu0 0
      %2207 = vmatpush2.bf16.msra.mxu0 0
      %2208 = vmatprep.subr.bf16.mxu0 0
      %2209 = vmatpush2.bf16.msra.mxu0 0
      %2210 = vmatprep.subr.bf16.mxu0 0
      %2211 = vmatpush2.bf16.msra.mxu0 0
      %2212 = vmatprep.subr.bf16.mxu0 0
      %2213 = vmatpush2.bf16.msra.mxu0 0
      %2214 = vmatprep.subr.bf16.mxu0 0
      %2215 = vmatpush2.bf16.msra.mxu0 0
      %2216 = vmatprep.subr.bf16.mxu0 0
      %2217 = vmatpush2.bf16.msra.mxu0 0
      %2218 = vmatprep.mubr.bf16.mxu0 0
      %2219 = vmatmul.mubr.bf16.gmra.mxu0 %v2181
      %v2220 = vpop.f32.mrf.mxu0
      %v2221 = vadd.f32 %v2179, %v2220
      %v2222 = vpop.f32.mrf.mxu0
      %v2223 = vpop.f32.mrf.mxu0
      %v2224 = vpop.f32.mrf.mxu0
      %2225 = vdwg.mxu0
      %v2226 = vld [vmem:[%s403] sm:$0xf]
      %v2227 = vld [vmem:[%s403 + $0x4] sm:$0xf]
      %v2228 = vld [vmem:[%s403 + $0x8] sm:$0xf]
      %v2229 = vld [vmem:[%s403 + $0xc] sm:$0xf]
      %v2230 = vld [vmem:[%s403 + $0x10] sm:$0xf]
      %v2231 = vld [vmem:[%s403 + $0x14] sm:$0xf]
      %v2232 = vld [vmem:[%s403 + $0x18] sm:$0xf]
      %v2233 = vld [vmem:[%s403 + $0x1c] sm:$0xf]
      %v2234 = vpack.c.bf16 %v2221, %v2221
      %v2243 = vunpack.c.l.b16 %v2226
      %v2244 = vunpack.c.l.b16 %v2227
      %v2245 = vunpack.c.l.b16 %v2228
      %v2246 = vunpack.c.l.b16 %v2229
      %v2247 = vunpack.c.l.b16 %v2230
      %v2248 = vunpack.c.l.b16 %v2231
      %v2249 = vunpack.c.l.b16 %v2232
      %v2250 = vunpack.c.l.b16 %v2233
      %v2251 = vpack.c.b16 %v2244, %v2243
      %v2252 = vpack.c.b16 %v2246, %v2245
      %v2253 = vpack.c.b16 %v2248, %v2247
      %v2254 = vpack.c.b16 %v2250, %v2249
      %v2256 = vsel %vm645, %v2251, 0
      %v2259 = vsel %vm645, %v2252, 0
      %v2262 = vsel %vm645, %v2253, 0
      %v2265 = vsel %vm645, %v2254, 0
      %v2268 = vsel %vm658, %v2234, 0
      %2270 = vmatprep.subr.bf16.mxu0 0
      %2271 = vmatpush1.bf16.msra.mxu0 0
      %2272 = vmatprep.subr.bf16.mxu0 0
      %2273 = vmatpush1.bf16.msra.mxu0 0
      %2274 = vmatprep.subr.bf16.mxu0 0
      %2275 = vmatpush1.bf16.msra.mxu0 0
      %2276 = vmatprep.subr.bf16.mxu0 0
      %2277 = vmatpush1.bf16.msra.mxu0 0
      %2278 = vmatprep.subr.bf16.mxu0 0
      %2279 = vmatpush1.bf16.msra.mxu0 0
      %2280 = vmatprep.subr.bf16.mxu0 0
      %2281 = vmatpush1.bf16.msra.mxu0 0
      %2282 = vmatprep.subr.bf16.mxu0 0
      %2283 = vmatpush1.bf16.msra.mxu0 0
      %2284 = vmatprep.subr.bf16.mxu0 0
      %2285 = vmatpush1.bf16.msra.mxu0 %v2268
      %2286 = vmatprep.subr.bf16.mxu0 0
      %2287 = vmatpush2.bf16.msra.mxu0 0
      %2288 = vmatprep.subr.bf16.mxu0 0
      %2289 = vmatpush2.bf16.msra.mxu0 0
      %2290 = vmatprep.subr.bf16.mxu0 0
      %2291 = vmatpush2.bf16.msra.mxu0 0
      %2292 = vmatprep.subr.bf16.mxu0 0
      %2293 = vmatpush2.bf16.msra.mxu0 0
      %2294 = vmatprep.subr.bf16.mxu0 0
      %2295 = vmatpush2.bf16.msra.mxu0 0
      %2296 = vmatprep.subr.bf16.mxu0 0
      %2297 = vmatpush2.bf16.msra.mxu0 0
      %2298 = vmatprep.subr.bf16.mxu0 0
      %2299 = vmatpush2.bf16.msra.mxu0 0
      %2300 = vmatprep.subr.bf16.mxu0 0
      %2301 = vmatpush2.bf16.msra.mxu0 0
      %2302 = vmatprep.mubr.bf16.mxu0 0
      %2303 = vmatmul.mubr.bf16.gmra.mxu0 %v2256
      %v2304 = vpop.f32.mrf.mxu0
      %v2305 = vadd.f32 0.0, %v2304
      %v2306 = vpop.f32.mrf.mxu0
      %v2307 = vpop.f32.mrf.mxu0
      %v2308 = vadd.f32 0.0, %v2307
      %v2309 = vpop.f32.mrf.mxu0
      %2310 = vmatprep.mubr.bf16.mxu0 0
      %2311 = vmatmul.mubr.bf16.gmra.mxu0 %v2259
      %v2312 = vpop.f32.mrf.mxu0
      %v2313 = vadd.f32 0.0, %v2312
      %v2314 = vpop.f32.mrf.mxu0
      %v2315 = vpop.f32.mrf.mxu0
      %v2316 = vadd.f32 0.0, %v2315
      %v2317 = vpop.f32.mrf.mxu0
      %2318 = vmatprep.mubr.bf16.mxu0 0
      %2319 = vmatmul.mubr.bf16.gmra.mxu0 %v2262
      %v2320 = vpop.f32.mrf.mxu0
      %v2321 = vadd.f32 0.0, %v2320
      %v2322 = vpop.f32.mrf.mxu0
      %v2323 = vpop.f32.mrf.mxu0
      %v2324 = vadd.f32 0.0, %v2323
      %v2325 = vpop.f32.mrf.mxu0
      %2326 = vmatprep.mubr.bf16.mxu0 0
      %2327 = vmatmul.mubr.bf16.gmra.mxu0 %v2265
      %v2328 = vpop.f32.mrf.mxu0
      %v2329 = vadd.f32 0.0, %v2328
      %v2330 = vpop.f32.mrf.mxu0
      %v2331 = vpop.f32.mrf.mxu0
      %v2332 = vadd.f32 0.0, %v2331
      %v2333 = vpop.f32.mrf.mxu0
      %2334 = vdwg.mxu0
      %v2335 = vpack.c.bf16 %v2308, %v2305
      %v2336 = vpack.c.bf16 %v2316, %v2313
      %v2337 = vpack.c.bf16 %v2324, %v2321
      %v2338 = vpack.c.bf16 %v2332, %v2329
      %v2339 = vld [vmem:[%s8] sm:$0xf]
      %v2341 = vsel %vm645, %v2335, 0
      %v2344 = vsel %vm645, %v2336, 0
      %v2347 = vsel %vm645, %v2337, 0
      %v2350 = vsel %vm645, %v2338, 0
      %v2353 = vsel %vm658, %v2339, 0
      %2355 = vmatprep.subr.bf16.mxu0 0
      %2356 = vmatpush1.bf16.msra.mxu0 0
      %2357 = vmatprep.subr.bf16.mxu0 0
      %2358 = vmatpush1.bf16.msra.mxu0 0
      %2359 = vmatprep.subr.bf16.mxu0 0
      %2360 = vmatpush1.bf16.msra.mxu0 0
      %2361 = vmatprep.subr.bf16.mxu0 0
      %2362 = vmatpush1.bf16.msra.mxu0 0
      %2363 = vmatprep.subr.bf16.mxu0 0
      %2364 = vmatpush1.bf16.msra.mxu0 0
      %2365 = vmatprep.subr.bf16.mxu0 0
      %2366 = vmatpush1.bf16.msra.mxu0 0
      %2367 = vmatprep.subr.bf16.mxu0 0
      %2368 = vmatpush1.bf16.msra.mxu0 0
      %2369 = vmatprep.subr.bf16.mxu0 0
      %2370 = vmatpush1.bf16.msra.mxu0 %v2353
      %2371 = vmatprep.subr.bf16.mxu0 0
      %2372 = vmatpush2.bf16.msra.mxu0 0
      %2373 = vmatprep.subr.bf16.mxu0 0
      %2374 = vmatpush2.bf16.msra.mxu0 0
      %2375 = vmatprep.subr.bf16.mxu0 0
      %2376 = vmatpush2.bf16.msra.mxu0 0
      %2377 = vmatprep.subr.bf16.mxu0 0
      %2378 = vmatpush2.bf16.msra.mxu0 0
      %2379 = vmatprep.subr.bf16.mxu0 0
      %2380 = vmatpush2.bf16.msra.mxu0 0
      %2381 = vmatprep.subr.bf16.mxu0 0
      %2382 = vmatpush2.bf16.msra.mxu0 0
      %2383 = vmatprep.subr.bf16.mxu0 0
      %2384 = vmatpush2.bf16.msra.mxu0 0
      %2385 = vmatprep.subr.bf16.mxu0 0
      %2386 = vmatpush2.bf16.msra.mxu0 0
      %2387 = vmatprep.mubr.bf16.mxu0 0
      %2388 = vmatmul.mubr.bf16.gmra.mxu0 %v2341
      %v2389 = vpop.f32.mrf.mxu0
      %v2390 = vadd.f32 0.0, %v2389
      %v2391 = vpop.f32.mrf.mxu0
      %v2392 = vpop.f32.mrf.mxu0
      %v2393 = vadd.f32 0.0, %v2392
      %v2394 = vpop.f32.mrf.mxu0
      %2395 = vmatprep.mubr.bf16.mxu0 0
      %2396 = vmatmul.mubr.bf16.gmra.mxu0 %v2344
      %v2397 = vpop.f32.mrf.mxu0
      %v2398 = vadd.f32 0.0, %v2397
      %v2399 = vpop.f32.mrf.mxu0
      %v2400 = vpop.f32.mrf.mxu0
      %v2401 = vadd.f32 0.0, %v2400
      %v2402 = vpop.f32.mrf.mxu0
      %2403 = vmatprep.mubr.bf16.mxu0 0
      %2404 = vmatmul.mubr.bf16.gmra.mxu0 %v2347
      %v2405 = vpop.f32.mrf.mxu0
      %v2406 = vadd.f32 0.0, %v2405
      %v2407 = vpop.f32.mrf.mxu0
      %v2408 = vpop.f32.mrf.mxu0
      %v2409 = vadd.f32 0.0, %v2408
      %v2410 = vpop.f32.mrf.mxu0
      %2411 = vmatprep.mubr.bf16.mxu0 0
      %2412 = vmatmul.mubr.bf16.gmra.mxu0 %v2350
      %v2413 = vpop.f32.mrf.mxu0
      %v2414 = vadd.f32 0.0, %v2413
      %v2415 = vpop.f32.mrf.mxu0
      %v2416 = vpop.f32.mrf.mxu0
      %v2417 = vadd.f32 0.0, %v2416
      %v2418 = vpop.f32.mrf.mxu0
      %2419 = vdwg.mxu0
      %s2420 = scalar_lea.vmem %s413, 256
      %2421 = vst.msk [vmem:[%s2420] sm:$0xff] %vm812, %v2390
      %2422 = vst.msk [vmem:[%s2420 + $0x8] sm:$0xff] %vm812, %v2393
      %2423 = vst.msk [vmem:[%s2420 + $0x10] sm:$0xff] %vm812, %v2398
      %2424 = vst.msk [vmem:[%s2420 + $0x18] sm:$0xff] %vm812, %v2401
      %2425 = vst.msk [vmem:[%s2420 + $0x20] sm:$0xff] %vm812, %v2406
      %2426 = vst.msk [vmem:[%s2420 + $0x28] sm:$0xff] %vm812, %v2409
      %2427 = vst.msk [vmem:[%s2420 + $0x30] sm:$0xff] %vm812, %v2414
      %2428 = vst.msk [vmem:[%s2420 + $0x38] sm:$0xff] %vm812, %v2417
      %v2429 = vld [vmem:[%s3] sm:$0x3]
      %s2430 = scalar_lea.vmem %s398, 5
      %v2431 = vld [vmem:[%s2430] sm:$0x1]
      %v2433 = vsel %vm418, %v2429, 0
      %v2436 = vsel %vm422, %v2431, 0
      %2438 = vmatprep.subr.bf16.mxu0 0
      %2439 = vmatpush1.bf16.msra.mxu0 0
      %2440 = vmatprep.subr.bf16.mxu0 0
      %2441 = vmatpush1.bf16.msra.mxu0 0
      %2442 = vmatprep.subr.bf16.mxu0 0
      %2443 = vmatpush1.bf16.msra.mxu0 0
      %2444 = vmatprep.subr.bf16.mxu0 0
      %2445 = vmatpush1.bf16.msra.mxu0 0
      %2446 = vmatprep.subr.bf16.mxu0 0
      %2447 = vmatpush1.bf16.msra.mxu0 0
      %2448 = vmatprep.subr.bf16.mxu0 0
      %2449 = vmatpush1.bf16.msra.mxu0 0
      %2450 = vmatprep.subr.bf16.mxu0 0
      %2451 = vmatpush1.bf16.msra.mxu0 0
      %2452 = vmatprep.subr.bf16.mxu0 0
      %2453 = vmatpush1.bf16.msra.mxu0 %v2436
      %2454 = vmatprep.subr.bf16.mxu0 0
      %2455 = vmatpush2.bf16.msra.mxu0 0
      %2456 = vmatprep.subr.bf16.mxu0 0
      %2457 = vmatpush2.bf16.msra.mxu0 0
      %2458 = vmatprep.subr.bf16.mxu0 0
      %2459 = vmatpush2.bf16.msra.mxu0 0
      %2460 = vmatprep.subr.bf16.mxu0 0
      %2461 = vmatpush2.bf16.msra.mxu0 0
      %2462 = vmatprep.subr.bf16.mxu0 0
      %2463 = vmatpush2.bf16.msra.mxu0 0
      %2464 = vmatprep.subr.bf16.mxu0 0
      %2465 = vmatpush2.bf16.msra.mxu0 0
      %2466 = vmatprep.subr.bf16.mxu0 0
      %2467 = vmatpush2.bf16.msra.mxu0 0
      %2468 = vmatprep.subr.bf16.mxu0 0
      %2469 = vmatpush2.bf16.msra.mxu0 0
      %2470 = vmatprep.mubr.bf16.mxu0 0
      %2471 = vmatmul.mubr.bf16.gmra.mxu0 %v2433
      %v2472 = vpop.f32.mrf.mxu0
      %v2473 = vadd.f32 0.0, %v2472
      %v2474 = vpop.f32.mrf.mxu0
      %v2475 = vpop.f32.mrf.mxu0
      %v2476 = vpop.f32.mrf.mxu0
      %2477 = vdwg.mxu0
      %v2478 = vpack.c.bf16 %v2473, %v2473
      %v2479 = vld [vmem:[%s4] sm:$0x1]
      %s2480 = scalar_lea.vmem %s394, 10
      %v2481 = vld [vmem:[%s2480] sm:$0x3]
      %v2482 = vunpack.c.l.bf16 %v2481
      %v2484 = vsel %vm418, %v2478, 0
      %v2487 = vsel %vm422, %v2479, 0
      %2489 = vmatprep.subr.bf16.mxu0 0
      %2490 = vmatpush1.bf16.msra.mxu0 0
      %2491 = vmatprep.subr.bf16.mxu0 0
      %2492 = vmatpush1.bf16.msra.mxu0 0
      %2493 = vmatprep.subr.bf16.mxu0 0
      %2494 = vmatpush1.bf16.msra.mxu0 0
      %2495 = vmatprep.subr.bf16.mxu0 0
      %2496 = vmatpush1.bf16.msra.mxu0 0
      %2497 = vmatprep.subr.bf16.mxu0 0
      %2498 = vmatpush1.bf16.msra.mxu0 0
      %2499 = vmatprep.subr.bf16.mxu0 0
      %2500 = vmatpush1.bf16.msra.mxu0 0
      %2501 = vmatprep.subr.bf16.mxu0 0
      %2502 = vmatpush1.bf16.msra.mxu0 0
      %2503 = vmatprep.subr.bf16.mxu0 0
      %2504 = vmatpush1.bf16.msra.mxu0 %v2487
      %2505 = vmatprep.subr.bf16.mxu0 0
      %2506 = vmatpush2.bf16.msra.mxu0 0
      %2507 = vmatprep.subr.bf16.mxu0 0
      %2508 = vmatpush2.bf16.msra.mxu0 0
      %2509 = vmatprep.subr.bf16.mxu0 0
      %2510 = vmatpush2.bf16.msra.mxu0 0
      %2511 = vmatprep.subr.bf16.mxu0 0
      %2512 = vmatpush2.bf16.msra.mxu0 0
      %2513 = vmatprep.subr.bf16.mxu0 0
      %2514 = vmatpush2.bf16.msra.mxu0 0
      %2515 = vmatprep.subr.bf16.mxu0 0
      %2516 = vmatpush2.bf16.msra.mxu0 0
      %2517 = vmatprep.subr.bf16.mxu0 0
      %2518 = vmatpush2.bf16.msra.mxu0 0
      %2519 = vmatprep.subr.bf16.mxu0 0
      %2520 = vmatpush2.bf16.msra.mxu0 0
      %2521 = vmatprep.mubr.bf16.mxu0 0
      %2522 = vmatmul.mubr.bf16.gmra.mxu0 %v2484
      %v2523 = vpop.f32.mrf.mxu0
      %v2524 = vadd.f32 %v2482, %v2523
      %v2525 = vpop.f32.mrf.mxu0
      %v2526 = vpop.f32.mrf.mxu0
      %v2527 = vpop.f32.mrf.mxu0
      %2528 = vdwg.mxu0
      %v2529 = vld [vmem:[%s5] sm:$0xf]
      %v2530 = vpack.c.bf16 %v2524, %v2524
      %v2532 = vsel %vm518, %v2529, 0
      %v2535 = vsel %vm522, %v2530, 0
      %2537 = vmatprep.subr.bf16.mxu0 0
      %2538 = vmatpush1.bf16.msra.mxu0 0
      %2539 = vmatprep.subr.bf16.mxu0 0
      %2540 = vmatpush1.bf16.msra.mxu0 0
      %2541 = vmatprep.subr.bf16.mxu0 0
      %2542 = vmatpush1.bf16.msra.mxu0 0
      %2543 = vmatprep.subr.bf16.mxu0 0
      %2544 = vmatpush1.bf16.msra.mxu0 0
      %2545 = vmatprep.subr.bf16.mxu0 0
      %2546 = vmatpush1.bf16.msra.mxu0 0
      %2547 = vmatprep.subr.bf16.mxu0 0
      %2548 = vmatpush1.bf16.msra.mxu0 0
      %2549 = vmatprep.subr.bf16.mxu0 0
      %2550 = vmatpush1.bf16.msra.mxu0 0
      %2551 = vmatprep.subr.bf16.mxu0 0
      %2552 = vmatpush1.bf16.msra.mxu0 %v2535
      %2553 = vmatprep.subr.bf16.mxu0 0
      %2554 = vmatpush2.bf16.msra.mxu0 0
      %2555 = vmatprep.subr.bf16.mxu0 0
      %2556 = vmatpush2.bf16.msra.mxu0 0
      %2557 = vmatprep.subr.bf16.mxu0 0
      %2558 = vmatpush2.bf16.msra.mxu0 0
      %2559 = vmatprep.subr.bf16.mxu0 0
      %2560 = vmatpush2.bf16.msra.mxu0 0
      %2561 = vmatprep.subr.bf16.mxu0 0
      %2562 = vmatpush2.bf16.msra.mxu0 0
      %2563 = vmatprep.subr.bf16.mxu0 0
      %2564 = vmatpush2.bf16.msra.mxu0 0
      %2565 = vmatprep.subr.bf16.mxu0 0
      %2566 = vmatpush2.bf16.msra.mxu0 0
      %2567 = vmatprep.subr.bf16.mxu0 0
      %2568 = vmatpush2.bf16.msra.mxu0 0
      %2569 = vmatprep.mubr.bf16.mxu0 0
      %2570 = vmatmul.mubr.bf16.gmra.mxu0 %v2532
      %v2571 = vpop.f32.mrf.mxu0
      %v2572 = vadd.f32 0.0, %v2571
      %v2573 = vpop.f32.mrf.mxu0
      %v2574 = vpop.f32.mrf.mxu0
      %v2575 = vpop.f32.mrf.mxu0
      %2576 = vdwg.mxu0
      %v2577 = vpack.c.bf16 %v2572, %v2572
      %v2578 = vld [vmem:[%s6] sm:$0x3]
      %s2579 = scalar_lea.vmem %s389, 20
      %v2580 = vld [vmem:[%s2579] sm:$0xf]
      %v2581 = vunpack.c.l.bf16 %v2580
      %v2583 = vsel %vm518, %v2577, 0
      %v2586 = vsel %vm522, %v2578, 0
      %2588 = vmatprep.subr.bf16.mxu0 0
      %2589 = vmatpush1.bf16.msra.mxu0 0
      %2590 = vmatprep.subr.bf16.mxu0 0
      %2591 = vmatpush1.bf16.msra.mxu0 0
      %2592 = vmatprep.subr.bf16.mxu0 0
      %2593 = vmatpush1.bf16.msra.mxu0 0
      %2594 = vmatprep.subr.bf16.mxu0 0
      %2595 = vmatpush1.bf16.msra.mxu0 0
      %2596 = vmatprep.subr.bf16.mxu0 0
      %2597 = vmatpush1.bf16.msra.mxu0 0
      %2598 = vmatprep.subr.bf16.mxu0 0
      %2599 = vmatpush1.bf16.msra.mxu0 0
      %2600 = vmatprep.subr.bf16.mxu0 0
      %2601 = vmatpush1.bf16.msra.mxu0 0
      %2602 = vmatprep.subr.bf16.mxu0 0
      %2603 = vmatpush1.bf16.msra.mxu0 %v2586
      %2604 = vmatprep.subr.bf16.mxu0 0
      %2605 = vmatpush2.bf16.msra.mxu0 0
      %2606 = vmatprep.subr.bf16.mxu0 0
      %2607 = vmatpush2.bf16.msra.mxu0 0
      %2608 = vmatprep.subr.bf16.mxu0 0
      %2609 = vmatpush2.bf16.msra.mxu0 0
      %2610 = vmatprep.subr.bf16.mxu0 0
      %2611 = vmatpush2.bf16.msra.mxu0 0
      %2612 = vmatprep.subr.bf16.mxu0 0
      %2613 = vmatpush2.bf16.msra.mxu0 0
      %2614 = vmatprep.subr.bf16.mxu0 0
      %2615 = vmatpush2.bf16.msra.mxu0 0
      %2616 = vmatprep.subr.bf16.mxu0 0
      %2617 = vmatpush2.bf16.msra.mxu0 0
      %2618 = vmatprep.subr.bf16.mxu0 0
      %2619 = vmatpush2.bf16.msra.mxu0 0
      %2620 = vmatprep.mubr.bf16.mxu0 0
      %2621 = vmatmul.mubr.bf16.gmra.mxu0 %v2583
      %v2622 = vpop.f32.mrf.mxu0
      %v2623 = vadd.f32 %v2581, %v2622
      %v2624 = vpop.f32.mrf.mxu0
      %v2625 = vpop.f32.mrf.mxu0
      %v2626 = vpop.f32.mrf.mxu0
      %2627 = vdwg.mxu0
      %v2628 = vld [vmem:[%s403] sm:$0xf]
      %v2629 = vld [vmem:[%s403 + $0x4] sm:$0xf]
      %v2630 = vld [vmem:[%s403 + $0x8] sm:$0xf]
      %v2631 = vld [vmem:[%s403 + $0xc] sm:$0xf]
      %v2632 = vld [vmem:[%s403 + $0x10] sm:$0xf]
      %v2633 = vld [vmem:[%s403 + $0x14] sm:$0xf]
      %v2634 = vld [vmem:[%s403 + $0x18] sm:$0xf]
      %v2635 = vld [vmem:[%s403 + $0x1c] sm:$0xf]
      %v2636 = vpack.c.bf16 %v2623, %v2623
      %v2645 = vunpack.c.l.b16 %v2628
      %v2646 = vunpack.c.l.b16 %v2629
      %v2647 = vunpack.c.l.b16 %v2630
      %v2648 = vunpack.c.l.b16 %v2631
      %v2649 = vunpack.c.l.b16 %v2632
      %v2650 = vunpack.c.l.b16 %v2633
      %v2651 = vunpack.c.l.b16 %v2634
      %v2652 = vunpack.c.l.b16 %v2635
      %v2653 = vpack.c.b16 %v2646, %v2645
      %v2654 = vpack.c.b16 %v2648, %v2647
      %v2655 = vpack.c.b16 %v2650, %v2649
      %v2656 = vpack.c.b16 %v2652, %v2651
      %v2658 = vsel %vm645, %v2653, 0
      %v2661 = vsel %vm645, %v2654, 0
      %v2664 = vsel %vm645, %v2655, 0
      %v2667 = vsel %vm645, %v2656, 0
      %v2670 = vsel %vm658, %v2636, 0
      %2672 = vmatprep.subr.bf16.mxu0 0
      %2673 = vmatpush1.bf16.msra.mxu0 0
      %2674 = vmatprep.subr.bf16.mxu0 0
      %2675 = vmatpush1.bf16.msra.mxu0 0
      %2676 = vmatprep.subr.bf16.mxu0 0
      %2677 = vmatpush1.bf16.msra.mxu0 0
      %2678 = vmatprep.subr.bf16.mxu0 0
      %2679 = vmatpush1.bf16.msra.mxu0 0
      %2680 = vmatprep.subr.bf16.mxu0 0
      %2681 = vmatpush1.bf16.msra.mxu0 0
      %2682 = vmatprep.subr.bf16.mxu0 0
      %2683 = vmatpush1.bf16.msra.mxu0 0
      %2684 = vmatprep.subr.bf16.mxu0 0
      %2685 = vmatpush1.bf16.msra.mxu0 0
      %2686 = vmatprep.subr.bf16.mxu0 0
      %2687 = vmatpush1.bf16.msra.mxu0 %v2670
      %2688 = vmatprep.subr.bf16.mxu0 0
      %2689 = vmatpush2.bf16.msra.mxu0 0
      %2690 = vmatprep.subr.bf16.mxu0 0
      %2691 = vmatpush2.bf16.msra.mxu0 0
      %2692 = vmatprep.subr.bf16.mxu0 0
      %2693 = vmatpush2.bf16.msra.mxu0 0
      %2694 = vmatprep.subr.bf16.mxu0 0
      %2695 = vmatpush2.bf16.msra.mxu0 0
      %2696 = vmatprep.subr.bf16.mxu0 0
      %2697 = vmatpush2.bf16.msra.mxu0 0
      %2698 = vmatprep.subr.bf16.mxu0 0
      %2699 = vmatpush2.bf16.msra.mxu0 0
      %2700 = vmatprep.subr.bf16.mxu0 0
      %2701 = vmatpush2.bf16.msra.mxu0 0
      %2702 = vmatprep.subr.bf16.mxu0 0
      %2703 = vmatpush2.bf16.msra.mxu0 0
      %2704 = vmatprep.mubr.bf16.mxu0 0
      %2705 = vmatmul.mubr.bf16.gmra.mxu0 %v2658
      %v2706 = vpop.f32.mrf.mxu0
      %v2707 = vadd.f32 0.0, %v2706
      %v2708 = vpop.f32.mrf.mxu0
      %v2709 = vpop.f32.mrf.mxu0
      %v2710 = vadd.f32 0.0, %v2709
      %v2711 = vpop.f32.mrf.mxu0
      %2712 = vmatprep.mubr.bf16.mxu0 0
      %2713 = vmatmul.mubr.bf16.gmra.mxu0 %v2661
      %v2714 = vpop.f32.mrf.mxu0
      %v2715 = vadd.f32 0.0, %v2714
      %v2716 = vpop.f32.mrf.mxu0
      %v2717 = vpop.f32.mrf.mxu0
      %v2718 = vadd.f32 0.0, %v2717
      %v2719 = vpop.f32.mrf.mxu0
      %2720 = vmatprep.mubr.bf16.mxu0 0
      %2721 = vmatmul.mubr.bf16.gmra.mxu0 %v2664
      %v2722 = vpop.f32.mrf.mxu0
      %v2723 = vadd.f32 0.0, %v2722
      %v2724 = vpop.f32.mrf.mxu0
      %v2725 = vpop.f32.mrf.mxu0
      %v2726 = vadd.f32 0.0, %v2725
      %v2727 = vpop.f32.mrf.mxu0
      %2728 = vmatprep.mubr.bf16.mxu0 0
      %2729 = vmatmul.mubr.bf16.gmra.mxu0 %v2667
      %v2730 = vpop.f32.mrf.mxu0
      %v2731 = vadd.f32 0.0, %v2730
      %v2732 = vpop.f32.mrf.mxu0
      %v2733 = vpop.f32.mrf.mxu0
      %v2734 = vadd.f32 0.0, %v2733
      %v2735 = vpop.f32.mrf.mxu0
      %2736 = vdwg.mxu0
      %v2737 = vpack.c.bf16 %v2710, %v2707
      %v2738 = vpack.c.bf16 %v2718, %v2715
      %v2739 = vpack.c.bf16 %v2726, %v2723
      %v2740 = vpack.c.bf16 %v2734, %v2731
      %v2741 = vld [vmem:[%s8] sm:$0xf]
      %v2743 = vsel %vm645, %v2737, 0
      %v2746 = vsel %vm645, %v2738, 0
      %v2749 = vsel %vm645, %v2739, 0
      %v2752 = vsel %vm645, %v2740, 0
      %v2755 = vsel %vm658, %v2741, 0
      %2757 = vmatprep.subr.bf16.mxu0 0
      %2758 = vmatpush1.bf16.msra.mxu0 0
      %2759 = vmatprep.subr.bf16.mxu0 0
      %2760 = vmatpush1.bf16.msra.mxu0 0
      %2761 = vmatprep.subr.bf16.mxu0 0
      %2762 = vmatpush1.bf16.msra.mxu0 0
      %2763 = vmatprep.subr.bf16.mxu0 0
      %2764 = vmatpush1.bf16.msra.mxu0 0
      %2765 = vmatprep.subr.bf16.mxu0 0
      %2766 = vmatpush1.bf16.msra.mxu0 0
      %2767 = vmatprep.subr.bf16.mxu0 0
      %2768 = vmatpush1.bf16.msra.mxu0 0
      %2769 = vmatprep.subr.bf16.mxu0 0
      %2770 = vmatpush1.bf16.msra.mxu0 0
      %2771 = vmatprep.subr.bf16.mxu0 0
      %2772 = vmatpush1.bf16.msra.mxu0 %v2755
      %2773 = vmatprep.subr.bf16.mxu0 0
      %2774 = vmatpush2.bf16.msra.mxu0 0
      %2775 = vmatprep.subr.bf16.mxu0 0
      %2776 = vmatpush2.bf16.msra.mxu0 0
      %2777 = vmatprep.subr.bf16.mxu0 0
      %2778 = vmatpush2.bf16.msra.mxu0 0
      %2779 = vmatprep.subr.bf16.mxu0 0
      %2780 = vmatpush2.bf16.msra.mxu0 0
      %2781 = vmatprep.subr.bf16.mxu0 0
      %2782 = vmatpush2.bf16.msra.mxu0 0
      %2783 = vmatprep.subr.bf16.mxu0 0
      %2784 = vmatpush2.bf16.msra.mxu0 0
      %2785 = vmatprep.subr.bf16.mxu0 0
      %2786 = vmatpush2.bf16.msra.mxu0 0
      %2787 = vmatprep.subr.bf16.mxu0 0
      %2788 = vmatpush2.bf16.msra.mxu0 0
      %2789 = vmatprep.mubr.bf16.mxu0 0
      %2790 = vmatmul.mubr.bf16.gmra.mxu0 %v2743
      %v2791 = vpop.f32.mrf.mxu0
      %v2792 = vadd.f32 0.0, %v2791
      %v2793 = vpop.f32.mrf.mxu0
      %v2794 = vpop.f32.mrf.mxu0
      %v2795 = vadd.f32 0.0, %v2794
      %v2796 = vpop.f32.mrf.mxu0
      %2797 = vmatprep.mubr.bf16.mxu0 0
      %2798 = vmatmul.mubr.bf16.gmra.mxu0 %v2746
      %v2799 = vpop.f32.mrf.mxu0
      %v2800 = vadd.f32 0.0, %v2799
      %v2801 = vpop.f32.mrf.mxu0
      %v2802 = vpop.f32.mrf.mxu0
      %v2803 = vadd.f32 0.0, %v2802
      %v2804 = vpop.f32.mrf.mxu0
      %2805 = vmatprep.mubr.bf16.mxu0 0
      %2806 = vmatmul.mubr.bf16.gmra.mxu0 %v2749
      %v2807 = vpop.f32.mrf.mxu0
      %v2808 = vadd.f32 0.0, %v2807
      %v2809 = vpop.f32.mrf.mxu0
      %v2810 = vpop.f32.mrf.mxu0
      %v2811 = vadd.f32 0.0, %v2810
      %v2812 = vpop.f32.mrf.mxu0
      %2813 = vmatprep.mubr.bf16.mxu0 0
      %2814 = vmatmul.mubr.bf16.gmra.mxu0 %v2752
      %v2815 = vpop.f32.mrf.mxu0
      %v2816 = vadd.f32 0.0, %v2815
      %v2817 = vpop.f32.mrf.mxu0
      %v2818 = vpop.f32.mrf.mxu0
      %v2819 = vadd.f32 0.0, %v2818
      %v2820 = vpop.f32.mrf.mxu0
      %2821 = vdwg.mxu0
      %s2822 = scalar_lea.vmem %s413, 320
      %2823 = vst.msk [vmem:[%s2822] sm:$0xff] %vm812, %v2792
      %2824 = vst.msk [vmem:[%s2822 + $0x8] sm:$0xff] %vm812, %v2795
      %2825 = vst.msk [vmem:[%s2822 + $0x10] sm:$0xff] %vm812, %v2800
      %2826 = vst.msk [vmem:[%s2822 + $0x18] sm:$0xff] %vm812, %v2803
      %2827 = vst.msk [vmem:[%s2822 + $0x20] sm:$0xff] %vm812, %v2808
      %2828 = vst.msk [vmem:[%s2822 + $0x28] sm:$0xff] %vm812, %v2811
      %2829 = vst.msk [vmem:[%s2822 + $0x30] sm:$0xff] %vm812, %v2816
      %2830 = vst.msk [vmem:[%s2822 + $0x38] sm:$0xff] %vm812, %v2819
      %v2831 = vld [vmem:[%s3] sm:$0x3]
      %s2832 = scalar_lea.vmem %s398, 6
      %v2833 = vld [vmem:[%s2832] sm:$0x1]
      %v2835 = vsel %vm418, %v2831, 0
      %v2838 = vsel %vm422, %v2833, 0
      %2840 = vmatprep.subr.bf16.mxu0 0
      %2841 = vmatpush1.bf16.msra.mxu0 0
      %2842 = vmatprep.subr.bf16.mxu0 0
      %2843 = vmatpush1.bf16.msra.mxu0 0
      %2844 = vmatprep.subr.bf16.mxu0 0
      %2845 = vmatpush1.bf16.msra.mxu0 0
      %2846 = vmatprep.subr.bf16.mxu0 0
      %2847 = vmatpush1.bf16.msra.mxu0 0
      %2848 = vmatprep.subr.bf16.mxu0 0
      %2849 = vmatpush1.bf16.msra.mxu0 0
      %2850 = vmatprep.subr.bf16.mxu0 0
      %2851 = vmatpush1.bf16.msra.mxu0 0
      %2852 = vmatprep.subr.bf16.mxu0 0
      %2853 = vmatpush1.bf16.msra.mxu0 0
      %2854 = vmatprep.subr.bf16.mxu0 0
      %2855 = vmatpush1.bf16.msra.mxu0 %v2838
      %2856 = vmatprep.subr.bf16.mxu0 0
      %2857 = vmatpush2.bf16.msra.mxu0 0
      %2858 = vmatprep.subr.bf16.mxu0 0
      %2859 = vmatpush2.bf16.msra.mxu0 0
      %2860 = vmatprep.subr.bf16.mxu0 0
      %2861 = vmatpush2.bf16.msra.mxu0 0
      %2862 = vmatprep.subr.bf16.mxu0 0
      %2863 = vmatpush2.bf16.msra.mxu0 0
      %2864 = vmatprep.subr.bf16.mxu0 0
      %2865 = vmatpush2.bf16.msra.mxu0 0
      %2866 = vmatprep.subr.bf16.mxu0 0
      %2867 = vmatpush2.bf16.msra.mxu0 0
      %2868 = vmatprep.subr.bf16.mxu0 0
      %2869 = vmatpush2.bf16.msra.mxu0 0
      %2870 = vmatprep.subr.bf16.mxu0 0
      %2871 = vmatpush2.bf16.msra.mxu0 0
      %2872 = vmatprep.mubr.bf16.mxu0 0
      %2873 = vmatmul.mubr.bf16.gmra.mxu0 %v2835
      %v2874 = vpop.f32.mrf.mxu0
      %v2875 = vadd.f32 0.0, %v2874
      %v2876 = vpop.f32.mrf.mxu0
      %v2877 = vpop.f32.mrf.mxu0
      %v2878 = vpop.f32.mrf.mxu0
      %2879 = vdwg.mxu0
      %v2880 = vpack.c.bf16 %v2875, %v2875
      %v2881 = vld [vmem:[%s4] sm:$0x1]
      %s2882 = scalar_lea.vmem %s394, 12
      %v2883 = vld [vmem:[%s2882] sm:$0x3]
      %v2884 = vunpack.c.l.bf16 %v2883
      %v2886 = vsel %vm418, %v2880, 0
      %v2889 = vsel %vm422, %v2881, 0
      %2891 = vmatprep.subr.bf16.mxu0 0
      %2892 = vmatpush1.bf16.msra.mxu0 0
      %2893 = vmatprep.subr.bf16.mxu0 0
      %2894 = vmatpush1.bf16.msra.mxu0 0
      %2895 = vmatprep.subr.bf16.mxu0 0
      %2896 = vmatpush1.bf16.msra.mxu0 0
      %2897 = vmatprep.subr.bf16.mxu0 0
      %2898 = vmatpush1.bf16.msra.mxu0 0
      %2899 = vmatprep.subr.bf16.mxu0 0
      %2900 = vmatpush1.bf16.msra.mxu0 0
      %2901 = vmatprep.subr.bf16.mxu0 0
      %2902 = vmatpush1.bf16.msra.mxu0 0
      %2903 = vmatprep.subr.bf16.mxu0 0
      %2904 = vmatpush1.bf16.msra.mxu0 0
      %2905 = vmatprep.subr.bf16.mxu0 0
      %2906 = vmatpush1.bf16.msra.mxu0 %v2889
      %2907 = vmatprep.subr.bf16.mxu0 0
      %2908 = vmatpush2.bf16.msra.mxu0 0
      %2909 = vmatprep.subr.bf16.mxu0 0
      %2910 = vmatpush2.bf16.msra.mxu0 0
      %2911 = vmatprep.subr.bf16.mxu0 0
      %2912 = vmatpush2.bf16.msra.mxu0 0
      %2913 = vmatprep.subr.bf16.mxu0 0
      %2914 = vmatpush2.bf16.msra.mxu0 0
      %2915 = vmatprep.subr.bf16.mxu0 0
      %2916 = vmatpush2.bf16.msra.mxu0 0
      %2917 = vmatprep.subr.bf16.mxu0 0
      %2918 = vmatpush2.bf16.msra.mxu0 0
      %2919 = vmatprep.subr.bf16.mxu0 0
      %2920 = vmatpush2.bf16.msra.mxu0 0
      %2921 = vmatprep.subr.bf16.mxu0 0
      %2922 = vmatpush2.bf16.msra.mxu0 0
      %2923 = vmatprep.mubr.bf16.mxu0 0
      %2924 = vmatmul.mubr.bf16.gmra.mxu0 %v2886
      %v2925 = vpop.f32.mrf.mxu0
      %v2926 = vadd.f32 %v2884, %v2925
      %v2927 = vpop.f32.mrf.mxu0
      %v2928 = vpop.f32.mrf.mxu0
      %v2929 = vpop.f32.mrf.mxu0
      %2930 = vdwg.mxu0
      %v2931 = vld [vmem:[%s5] sm:$0xf]
      %v2932 = vpack.c.bf16 %v2926, %v2926
      %v2934 = vsel %vm518, %v2931, 0
      %v2937 = vsel %vm522, %v2932, 0
      %2939 = vmatprep.subr.bf16.mxu0 0
      %2940 = vmatpush1.bf16.msra.mxu0 0
      %2941 = vmatprep.subr.bf16.mxu0 0
      %2942 = vmatpush1.bf16.msra.mxu0 0
      %2943 = vmatprep.subr.bf16.mxu0 0
      %2944 = vmatpush1.bf16.msra.mxu0 0
      %2945 = vmatprep.subr.bf16.mxu0 0
      %2946 = vmatpush1.bf16.msra.mxu0 0
      %2947 = vmatprep.subr.bf16.mxu0 0
      %2948 = vmatpush1.bf16.msra.mxu0 0
      %2949 = vmatprep.subr.bf16.mxu0 0
      %2950 = vmatpush1.bf16.msra.mxu0 0
      %2951 = vmatprep.subr.bf16.mxu0 0
      %2952 = vmatpush1.bf16.msra.mxu0 0
      %2953 = vmatprep.subr.bf16.mxu0 0
      %2954 = vmatpush1.bf16.msra.mxu0 %v2937
      %2955 = vmatprep.subr.bf16.mxu0 0
      %2956 = vmatpush2.bf16.msra.mxu0 0
      %2957 = vmatprep.subr.bf16.mxu0 0
      %2958 = vmatpush2.bf16.msra.mxu0 0
      %2959 = vmatprep.subr.bf16.mxu0 0
      %2960 = vmatpush2.bf16.msra.mxu0 0
      %2961 = vmatprep.subr.bf16.mxu0 0
      %2962 = vmatpush2.bf16.msra.mxu0 0
      %2963 = vmatprep.subr.bf16.mxu0 0
      %2964 = vmatpush2.bf16.msra.mxu0 0
      %2965 = vmatprep.subr.bf16.mxu0 0
      %2966 = vmatpush2.bf16.msra.mxu0 0
      %2967 = vmatprep.subr.bf16.mxu0 0
      %2968 = vmatpush2.bf16.msra.mxu0 0
      %2969 = vmatprep.subr.bf16.mxu0 0
      %2970 = vmatpush2.bf16.msra.mxu0 0
      %2971 = vmatprep.mubr.bf16.mxu0 0
      %2972 = vmatmul.mubr.bf16.gmra.mxu0 %v2934
      %v2973 = vpop.f32.mrf.mxu0
      %v2974 = vadd.f32 0.0, %v2973
      %v2975 = vpop.f32.mrf.mxu0
      %v2976 = vpop.f32.mrf.mxu0
      %v2977 = vpop.f32.mrf.mxu0
      %2978 = vdwg.mxu0
      %v2979 = vpack.c.bf16 %v2974, %v2974
      %v2980 = vld [vmem:[%s6] sm:$0x3]
      %s2981 = scalar_lea.vmem %s389, 24
      %v2982 = vld [vmem:[%s2981] sm:$0xf]
      %v2983 = vunpack.c.l.bf16 %v2982
      %v2985 = vsel %vm518, %v2979, 0
      %v2988 = vsel %vm522, %v2980, 0
      %2990 = vmatprep.subr.bf16.mxu0 0
      %2991 = vmatpush1.bf16.msra.mxu0 0
      %2992 = vmatprep.subr.bf16.mxu0 0
      %2993 = vmatpush1.bf16.msra.mxu0 0
      %2994 = vmatprep.subr.bf16.mxu0 0
      %2995 = vmatpush1.bf16.msra.mxu0 0
      %2996 = vmatprep.subr.bf16.mxu0 0
      %2997 = vmatpush1.bf16.msra.mxu0 0
      %2998 = vmatprep.subr.bf16.mxu0 0
      %2999 = vmatpush1.bf16.msra.mxu0 0
      %3000 = vmatprep.subr.bf16.mxu0 0
      %3001 = vmatpush1.bf16.msra.mxu0 0
      %3002 = vmatprep.subr.bf16.mxu0 0
      %3003 = vmatpush1.bf16.msra.mxu0 0
      %3004 = vmatprep.subr.bf16.mxu0 0
      %3005 = vmatpush1.bf16.msra.mxu0 %v2988
      %3006 = vmatprep.subr.bf16.mxu0 0
      %3007 = vmatpush2.bf16.msra.mxu0 0
      %3008 = vmatprep.subr.bf16.mxu0 0
      %3009 = vmatpush2.bf16.msra.mxu0 0
      %3010 = vmatprep.subr.bf16.mxu0 0
      %3011 = vmatpush2.bf16.msra.mxu0 0
      %3012 = vmatprep.subr.bf16.mxu0 0
      %3013 = vmatpush2.bf16.msra.mxu0 0
      %3014 = vmatprep.subr.bf16.mxu0 0
      %3015 = vmatpush2.bf16.msra.mxu0 0
      %3016 = vmatprep.subr.bf16.mxu0 0
      %3017 = vmatpush2.bf16.msra.mxu0 0
      %3018 = vmatprep.subr.bf16.mxu0 0
      %3019 = vmatpush2.bf16.msra.mxu0 0
      %3020 = vmatprep.subr.bf16.mxu0 0
      %3021 = vmatpush2.bf16.msra.mxu0 0
      %3022 = vmatprep.mubr.bf16.mxu0 0
      %3023 = vmatmul.mubr.bf16.gmra.mxu0 %v2985
      %v3024 = vpop.f32.mrf.mxu0
      %v3025 = vadd.f32 %v2983, %v3024
      %v3026 = vpop.f32.mrf.mxu0
      %v3027 = vpop.f32.mrf.mxu0
      %v3028 = vpop.f32.mrf.mxu0
      %3029 = vdwg.mxu0
      %v3030 = vld [vmem:[%s403] sm:$0xf]
      %v3031 = vld [vmem:[%s403 + $0x4] sm:$0xf]
      %v3032 = vld [vmem:[%s403 + $0x8] sm:$0xf]
      %v3033 = vld [vmem:[%s403 + $0xc] sm:$0xf]
      %v3034 = vld [vmem:[%s403 + $0x10] sm:$0xf]
      %v3035 = vld [vmem:[%s403 + $0x14] sm:$0xf]
      %v3036 = vld [vmem:[%s403 + $0x18] sm:$0xf]
      %v3037 = vld [vmem:[%s403 + $0x1c] sm:$0xf]
      %v3038 = vpack.c.bf16 %v3025, %v3025
      %v3047 = vunpack.c.l.b16 %v3030
      %v3048 = vunpack.c.l.b16 %v3031
      %v3049 = vunpack.c.l.b16 %v3032
      %v3050 = vunpack.c.l.b16 %v3033
      %v3051 = vunpack.c.l.b16 %v3034
      %v3052 = vunpack.c.l.b16 %v3035
      %v3053 = vunpack.c.l.b16 %v3036
      %v3054 = vunpack.c.l.b16 %v3037
      %v3055 = vpack.c.b16 %v3048, %v3047
      %v3056 = vpack.c.b16 %v3050, %v3049
      %v3057 = vpack.c.b16 %v3052, %v3051
      %v3058 = vpack.c.b16 %v3054, %v3053
      %v3060 = vsel %vm645, %v3055, 0
      %v3063 = vsel %vm645, %v3056, 0
      %v3066 = vsel %vm645, %v3057, 0
      %v3069 = vsel %vm645, %v3058, 0
      %v3072 = vsel %vm658, %v3038, 0
      %3074 = vmatprep.subr.bf16.mxu0 0
      %3075 = vmatpush1.bf16.msra.mxu0 0
      %3076 = vmatprep.subr.bf16.mxu0 0
      %3077 = vmatpush1.bf16.msra.mxu0 0
      %3078 = vmatprep.subr.bf16.mxu0 0
      %3079 = vmatpush1.bf16.msra.mxu0 0
      %3080 = vmatprep.subr.bf16.mxu0 0
      %3081 = vmatpush1.bf16.msra.mxu0 0
      %3082 = vmatprep.subr.bf16.mxu0 0
      %3083 = vmatpush1.bf16.msra.mxu0 0
      %3084 = vmatprep.subr.bf16.mxu0 0
      %3085 = vmatpush1.bf16.msra.mxu0 0
      %3086 = vmatprep.subr.bf16.mxu0 0
      %3087 = vmatpush1.bf16.msra.mxu0 0
      %3088 = vmatprep.subr.bf16.mxu0 0
      %3089 = vmatpush1.bf16.msra.mxu0 %v3072
      %3090 = vmatprep.subr.bf16.mxu0 0
      %3091 = vmatpush2.bf16.msra.mxu0 0
      %3092 = vmatprep.subr.bf16.mxu0 0
      %3093 = vmatpush2.bf16.msra.mxu0 0
      %3094 = vmatprep.subr.bf16.mxu0 0
      %3095 = vmatpush2.bf16.msra.mxu0 0
      %3096 = vmatprep.subr.bf16.mxu0 0
      %3097 = vmatpush2.bf16.msra.mxu0 0
      %3098 = vmatprep.subr.bf16.mxu0 0
      %3099 = vmatpush2.bf16.msra.mxu0 0
      %3100 = vmatprep.subr.bf16.mxu0 0
      %3101 = vmatpush2.bf16.msra.mxu0 0
      %3102 = vmatprep.subr.bf16.mxu0 0
      %3103 = vmatpush2.bf16.msra.mxu0 0
      %3104 = vmatprep.subr.bf16.mxu0 0
      %3105 = vmatpush2.bf16.msra.mxu0 0
      %3106 = vmatprep.mubr.bf16.mxu0 0
      %3107 = vmatmul.mubr.bf16.gmra.mxu0 %v3060
      %v3108 = vpop.f32.mrf.mxu0
      %v3109 = vadd.f32 0.0, %v3108
      %v3110 = vpop.f32.mrf.mxu0
      %v3111 = vpop.f32.mrf.mxu0
      %v3112 = vadd.f32 0.0, %v3111
      %v3113 = vpop.f32.mrf.mxu0
      %3114 = vmatprep.mubr.bf16.mxu0 0
      %3115 = vmatmul.mubr.bf16.gmra.mxu0 %v3063
      %v3116 = vpop.f32.mrf.mxu0
      %v3117 = vadd.f32 0.0, %v3116
      %v3118 = vpop.f32.mrf.mxu0
      %v3119 = vpop.f32.mrf.mxu0
      %v3120 = vadd.f32 0.0, %v3119
      %v3121 = vpop.f32.mrf.mxu0
      %3122 = vmatprep.mubr.bf16.mxu0 0
      %3123 = vmatmul.mubr.bf16.gmra.mxu0 %v3066
      %v3124 = vpop.f32.mrf.mxu0
      %v3125 = vadd.f32 0.0, %v3124
      %v3126 = vpop.f32.mrf.mxu0
      %v3127 = vpop.f32.mrf.mxu0
      %v3128 = vadd.f32 0.0, %v3127
      %v3129 = vpop.f32.mrf.mxu0
      %3130 = vmatprep.mubr.bf16.mxu0 0
      %3131 = vmatmul.mubr.bf16.gmra.mxu0 %v3069
      %v3132 = vpop.f32.mrf.mxu0
      %v3133 = vadd.f32 0.0, %v3132
      %v3134 = vpop.f32.mrf.mxu0
      %v3135 = vpop.f32.mrf.mxu0
      %v3136 = vadd.f32 0.0, %v3135
      %v3137 = vpop.f32.mrf.mxu0
      %3138 = vdwg.mxu0
      %v3139 = vpack.c.bf16 %v3112, %v3109
      %v3140 = vpack.c.bf16 %v3120, %v3117
      %v3141 = vpack.c.bf16 %v3128, %v3125
      %v3142 = vpack.c.bf16 %v3136, %v3133
      %v3143 = vld [vmem:[%s8] sm:$0xf]
      %v3145 = vsel %vm645, %v3139, 0
      %v3148 = vsel %vm645, %v3140, 0
      %v3151 = vsel %vm645, %v3141, 0
      %v3154 = vsel %vm645, %v3142, 0
      %v3157 = vsel %vm658, %v3143, 0
      %3159 = vmatprep.subr.bf16.mxu0 0
      %3160 = vmatpush1.bf16.msra.mxu0 0
      %3161 = vmatprep.subr.bf16.mxu0 0
      %3162 = vmatpush1.bf16.msra.mxu0 0
      %3163 = vmatprep.subr.bf16.mxu0 0
      %3164 = vmatpush1.bf16.msra.mxu0 0
      %3165 = vmatprep.subr.bf16.mxu0 0
      %3166 = vmatpush1.bf16.msra.mxu0 0
      %3167 = vmatprep.subr.bf16.mxu0 0
      %3168 = vmatpush1.bf16.msra.mxu0 0
      %3169 = vmatprep.subr.bf16.mxu0 0
      %3170 = vmatpush1.bf16.msra.mxu0 0
      %3171 = vmatprep.subr.bf16.mxu0 0
      %3172 = vmatpush1.bf16.msra.mxu0 0
      %3173 = vmatprep.subr.bf16.mxu0 0
      %3174 = vmatpush1.bf16.msra.mxu0 %v3157
      %3175 = vmatprep.subr.bf16.mxu0 0
      %3176 = vmatpush2.bf16.msra.mxu0 0
      %3177 = vmatprep.subr.bf16.mxu0 0
      %3178 = vmatpush2.bf16.msra.mxu0 0
      %3179 = vmatprep.subr.bf16.mxu0 0
      %3180 = vmatpush2.bf16.msra.mxu0 0
      %3181 = vmatprep.subr.bf16.mxu0 0
      %3182 = vmatpush2.bf16.msra.mxu0 0
      %3183 = vmatprep.subr.bf16.mxu0 0
      %3184 = vmatpush2.bf16.msra.mxu0 0
      %3185 = vmatprep.subr.bf16.mxu0 0
      %3186 = vmatpush2.bf16.msra.mxu0 0
      %3187 = vmatprep.subr.bf16.mxu0 0
      %3188 = vmatpush2.bf16.msra.mxu0 0
      %3189 = vmatprep.subr.bf16.mxu0 0
      %3190 = vmatpush2.bf16.msra.mxu0 0
      %3191 = vmatprep.mubr.bf16.mxu0 0
      %3192 = vmatmul.mubr.bf16.gmra.mxu0 %v3145
      %v3193 = vpop.f32.mrf.mxu0
      %v3194 = vadd.f32 0.0, %v3193
      %v3195 = vpop.f32.mrf.mxu0
      %v3196 = vpop.f32.mrf.mxu0
      %v3197 = vadd.f32 0.0, %v3196
      %v3198 = vpop.f32.mrf.mxu0
      %3199 = vmatprep.mubr.bf16.mxu0 0
      %3200 = vmatmul.mubr.bf16.gmra.mxu0 %v3148
      %v3201 = vpop.f32.mrf.mxu0
      %v3202 = vadd.f32 0.0, %v3201
      %v3203 = vpop.f32.mrf.mxu0
      %v3204 = vpop.f32.mrf.mxu0
      %v3205 = vadd.f32 0.0, %v3204
      %v3206 = vpop.f32.mrf.mxu0
      %3207 = vmatprep.mubr.bf16.mxu0 0
      %3208 = vmatmul.mubr.bf16.gmra.mxu0 %v3151
      %v3209 = vpop.f32.mrf.mxu0
      %v3210 = vadd.f32 0.0, %v3209
      %v3211 = vpop.f32.mrf.mxu0
      %v3212 = vpop.f32.mrf.mxu0
      %v3213 = vadd.f32 0.0, %v3212
      %v3214 = vpop.f32.mrf.mxu0
      %3215 = vmatprep.mubr.bf16.mxu0 0
      %3216 = vmatmul.mubr.bf16.gmra.mxu0 %v3154
      %v3217 = vpop.f32.mrf.mxu0
      %v3218 = vadd.f32 0.0, %v3217
      %v3219 = vpop.f32.mrf.mxu0
      %v3220 = vpop.f32.mrf.mxu0
      %v3221 = vadd.f32 0.0, %v3220
      %v3222 = vpop.f32.mrf.mxu0
      %3223 = vdwg.mxu0
      %s3224 = scalar_lea.vmem %s413, 384
      %3225 = vst.msk [vmem:[%s3224] sm:$0xff] %vm812, %v3194
      %3226 = vst.msk [vmem:[%s3224 + $0x8] sm:$0xff] %vm812, %v3197
      %3227 = vst.msk [vmem:[%s3224 + $0x10] sm:$0xff] %vm812, %v3202
      %3228 = vst.msk [vmem:[%s3224 + $0x18] sm:$0xff] %vm812, %v3205
      %3229 = vst.msk [vmem:[%s3224 + $0x20] sm:$0xff] %vm812, %v3210
      %3230 = vst.msk [vmem:[%s3224 + $0x28] sm:$0xff] %vm812, %v3213
      %3231 = vst.msk [vmem:[%s3224 + $0x30] sm:$0xff] %vm812, %v3218
      %3232 = vst.msk [vmem:[%s3224 + $0x38] sm:$0xff] %vm812, %v3221
      %v3233 = vld [vmem:[%s3] sm:$0x3]
      %s3234 = scalar_lea.vmem %s398, 7
      %v3235 = vld [vmem:[%s3234] sm:$0x1]
      %v3237 = vsel %vm418, %v3233, 0
      %v3240 = vsel %vm422, %v3235, 0
      %3242 = vmatprep.subr.bf16.mxu0 0
      %3243 = vmatpush1.bf16.msra.mxu0 0
      %3244 = vmatprep.subr.bf16.mxu0 0
      %3245 = vmatpush1.bf16.msra.mxu0 0
      %3246 = vmatprep.subr.bf16.mxu0 0
      %3247 = vmatpush1.bf16.msra.mxu0 0
      %3248 = vmatprep.subr.bf16.mxu0 0
      %3249 = vmatpush1.bf16.msra.mxu0 0
      %3250 = vmatprep.subr.bf16.mxu0 0
      %3251 = vmatpush1.bf16.msra.mxu0 0
      %3252 = vmatprep.subr.bf16.mxu0 0
      %3253 = vmatpush1.bf16.msra.mxu0 0
      %3254 = vmatprep.subr.bf16.mxu0 0
      %3255 = vmatpush1.bf16.msra.mxu0 0
      %3256 = vmatprep.subr.bf16.mxu0 0
      %3257 = vmatpush1.bf16.msra.mxu0 %v3240
      %3258 = vmatprep.subr.bf16.mxu0 0
      %3259 = vmatpush2.bf16.msra.mxu0 0
      %3260 = vmatprep.subr.bf16.mxu0 0
      %3261 = vmatpush2.bf16.msra.mxu0 0
      %3262 = vmatprep.subr.bf16.mxu0 0
      %3263 = vmatpush2.bf16.msra.mxu0 0
      %3264 = vmatprep.subr.bf16.mxu0 0
      %3265 = vmatpush2.bf16.msra.mxu0 0
      %3266 = vmatprep.subr.bf16.mxu0 0
      %3267 = vmatpush2.bf16.msra.mxu0 0
      %3268 = vmatprep.subr.bf16.mxu0 0
      %3269 = vmatpush2.bf16.msra.mxu0 0
      %3270 = vmatprep.subr.bf16.mxu0 0
      %3271 = vmatpush2.bf16.msra.mxu0 0
      %3272 = vmatprep.subr.bf16.mxu0 0
      %3273 = vmatpush2.bf16.msra.mxu0 0
      %3274 = vmatprep.mubr.bf16.mxu0 0
      %3275 = vmatmul.mubr.bf16.gmra.mxu0 %v3237
      %v3276 = vpop.f32.mrf.mxu0
      %v3277 = vadd.f32 0.0, %v3276
      %v3278 = vpop.f32.mrf.mxu0
      %v3279 = vpop.f32.mrf.mxu0
      %v3280 = vpop.f32.mrf.mxu0
      %3281 = vdwg.mxu0
      %v3282 = vpack.c.bf16 %v3277, %v3277
      %v3283 = vld [vmem:[%s4] sm:$0x1]
      %s3284 = scalar_lea.vmem %s394, 14
      %v3285 = vld [vmem:[%s3284] sm:$0x3]
      %v3286 = vunpack.c.l.bf16 %v3285
      %v3288 = vsel %vm418, %v3282, 0
      %v3291 = vsel %vm422, %v3283, 0
      %3293 = vmatprep.subr.bf16.mxu0 0
      %3294 = vmatpush1.bf16.msra.mxu0 0
      %3295 = vmatprep.subr.bf16.mxu0 0
      %3296 = vmatpush1.bf16.msra.mxu0 0
      %3297 = vmatprep.subr.bf16.mxu0 0
      %3298 = vmatpush1.bf16.msra.mxu0 0
      %3299 = vmatprep.subr.bf16.mxu0 0
      %3300 = vmatpush1.bf16.msra.mxu0 0
      %3301 = vmatprep.subr.bf16.mxu0 0
      %3302 = vmatpush1.bf16.msra.mxu0 0
      %3303 = vmatprep.subr.bf16.mxu0 0
      %3304 = vmatpush1.bf16.msra.mxu0 0
      %3305 = vmatprep.subr.bf16.mxu0 0
      %3306 = vmatpush1.bf16.msra.mxu0 0
      %3307 = vmatprep.subr.bf16.mxu0 0
      %3308 = vmatpush1.bf16.msra.mxu0 %v3291
      %3309 = vmatprep.subr.bf16.mxu0 0
      %3310 = vmatpush2.bf16.msra.mxu0 0
      %3311 = vmatprep.subr.bf16.mxu0 0
      %3312 = vmatpush2.bf16.msra.mxu0 0
      %3313 = vmatprep.subr.bf16.mxu0 0
      %3314 = vmatpush2.bf16.msra.mxu0 0
      %3315 = vmatprep.subr.bf16.mxu0 0
      %3316 = vmatpush2.bf16.msra.mxu0 0
      %3317 = vmatprep.subr.bf16.mxu0 0
      %3318 = vmatpush2.bf16.msra.mxu0 0
      %3319 = vmatprep.subr.bf16.mxu0 0
      %3320 = vmatpush2.bf16.msra.mxu0 0
      %3321 = vmatprep.subr.bf16.mxu0 0
      %3322 = vmatpush2.bf16.msra.mxu0 0
      %3323 = vmatprep.subr.bf16.mxu0 0
      %3324 = vmatpush2.bf16.msra.mxu0 0
      %3325 = vmatprep.mubr.bf16.mxu0 0
      %3326 = vmatmul.mubr.bf16.gmra.mxu0 %v3288
      %v3327 = vpop.f32.mrf.mxu0
      %v3328 = vadd.f32 %v3286, %v3327
      %v3329 = vpop.f32.mrf.mxu0
      %v3330 = vpop.f32.mrf.mxu0
      %v3331 = vpop.f32.mrf.mxu0
      %3332 = vdwg.mxu0
      %v3333 = vld [vmem:[%s5] sm:$0xf]
      %v3334 = vpack.c.bf16 %v3328, %v3328
      %v3336 = vsel %vm518, %v3333, 0
      %v3339 = vsel %vm522, %v3334, 0
      %3341 = vmatprep.subr.bf16.mxu0 0
      %3342 = vmatpush1.bf16.msra.mxu0 0
      %3343 = vmatprep.subr.bf16.mxu0 0
      %3344 = vmatpush1.bf16.msra.mxu0 0
      %3345 = vmatprep.subr.bf16.mxu0 0
      %3346 = vmatpush1.bf16.msra.mxu0 0
      %3347 = vmatprep.subr.bf16.mxu0 0
      %3348 = vmatpush1.bf16.msra.mxu0 0
      %3349 = vmatprep.subr.bf16.mxu0 0
      %3350 = vmatpush1.bf16.msra.mxu0 0
      %3351 = vmatprep.subr.bf16.mxu0 0
      %3352 = vmatpush1.bf16.msra.mxu0 0
      %3353 = vmatprep.subr.bf16.mxu0 0
      %3354 = vmatpush1.bf16.msra.mxu0 0
      %3355 = vmatprep.subr.bf16.mxu0 0
      %3356 = vmatpush1.bf16.msra.mxu0 %v3339
      %3357 = vmatprep.subr.bf16.mxu0 0
      %3358 = vmatpush2.bf16.msra.mxu0 0
      %3359 = vmatprep.subr.bf16.mxu0 0
      %3360 = vmatpush2.bf16.msra.mxu0 0
      %3361 = vmatprep.subr.bf16.mxu0 0
      %3362 = vmatpush2.bf16.msra.mxu0 0
      %3363 = vmatprep.subr.bf16.mxu0 0
      %3364 = vmatpush2.bf16.msra.mxu0 0
      %3365 = vmatprep.subr.bf16.mxu0 0
      %3366 = vmatpush2.bf16.msra.mxu0 0
      %3367 = vmatprep.subr.bf16.mxu0 0
      %3368 = vmatpush2.bf16.msra.mxu0 0
      %3369 = vmatprep.subr.bf16.mxu0 0
      %3370 = vmatpush2.bf16.msra.mxu0 0
      %3371 = vmatprep.subr.bf16.mxu0 0
      %3372 = vmatpush2.bf16.msra.mxu0 0
      %3373 = vmatprep.mubr.bf16.mxu0 0
      %3374 = vmatmul.mubr.bf16.gmra.mxu0 %v3336
      %v3375 = vpop.f32.mrf.mxu0
      %v3376 = vadd.f32 0.0, %v3375
      %v3377 = vpop.f32.mrf.mxu0
      %v3378 = vpop.f32.mrf.mxu0
      %v3379 = vpop.f32.mrf.mxu0
      %3380 = vdwg.mxu0
      %v3381 = vpack.c.bf16 %v3376, %v3376
      %v3382 = vld [vmem:[%s6] sm:$0x3]
      %s3383 = scalar_lea.vmem %s389, 28
      %v3384 = vld [vmem:[%s3383] sm:$0xf]
      %v3385 = vunpack.c.l.bf16 %v3384
      %v3387 = vsel %vm518, %v3381, 0
      %v3390 = vsel %vm522, %v3382, 0
      %3392 = vmatprep.subr.bf16.mxu0 0
      %3393 = vmatpush1.bf16.msra.mxu0 0
      %3394 = vmatprep.subr.bf16.mxu0 0
      %3395 = vmatpush1.bf16.msra.mxu0 0
      %3396 = vmatprep.subr.bf16.mxu0 0
      %3397 = vmatpush1.bf16.msra.mxu0 0
      %3398 = vmatprep.subr.bf16.mxu0 0
      %3399 = vmatpush1.bf16.msra.mxu0 0
      %3400 = vmatprep.subr.bf16.mxu0 0
      %3401 = vmatpush1.bf16.msra.mxu0 0
      %3402 = vmatprep.subr.bf16.mxu0 0
      %3403 = vmatpush1.bf16.msra.mxu0 0
      %3404 = vmatprep.subr.bf16.mxu0 0
      %3405 = vmatpush1.bf16.msra.mxu0 0
      %3406 = vmatprep.subr.bf16.mxu0 0
      %3407 = vmatpush1.bf16.msra.mxu0 %v3390
      %3408 = vmatprep.subr.bf16.mxu0 0
      %3409 = vmatpush2.bf16.msra.mxu0 0
      %3410 = vmatprep.subr.bf16.mxu0 0
      %3411 = vmatpush2.bf16.msra.mxu0 0
      %3412 = vmatprep.subr.bf16.mxu0 0
      %3413 = vmatpush2.bf16.msra.mxu0 0
      %3414 = vmatprep.subr.bf16.mxu0 0
      %3415 = vmatpush2.bf16.msra.mxu0 0
      %3416 = vmatprep.subr.bf16.mxu0 0
      %3417 = vmatpush2.bf16.msra.mxu0 0
      %3418 = vmatprep.subr.bf16.mxu0 0
      %3419 = vmatpush2.bf16.msra.mxu0 0
      %3420 = vmatprep.subr.bf16.mxu0 0
      %3421 = vmatpush2.bf16.msra.mxu0 0
      %3422 = vmatprep.subr.bf16.mxu0 0
      %3423 = vmatpush2.bf16.msra.mxu0 0
      %3424 = vmatprep.mubr.bf16.mxu0 0
      %3425 = vmatmul.mubr.bf16.gmra.mxu0 %v3387
      %v3426 = vpop.f32.mrf.mxu0
      %v3427 = vadd.f32 %v3385, %v3426
      %v3428 = vpop.f32.mrf.mxu0
      %v3429 = vpop.f32.mrf.mxu0
      %v3430 = vpop.f32.mrf.mxu0
      %3431 = vdwg.mxu0
      %v3432 = vld [vmem:[%s403] sm:$0xf]
      %v3433 = vld [vmem:[%s403 + $0x4] sm:$0xf]
      %v3434 = vld [vmem:[%s403 + $0x8] sm:$0xf]
      %v3435 = vld [vmem:[%s403 + $0xc] sm:$0xf]
      %v3436 = vld [vmem:[%s403 + $0x10] sm:$0xf]
      %v3437 = vld [vmem:[%s403 + $0x14] sm:$0xf]
      %v3438 = vld [vmem:[%s403 + $0x18] sm:$0xf]
      %v3439 = vld [vmem:[%s403 + $0x1c] sm:$0xf]
      %v3440 = vpack.c.bf16 %v3427, %v3427
      %v3449 = vunpack.c.l.b16 %v3432
      %v3450 = vunpack.c.l.b16 %v3433
      %v3451 = vunpack.c.l.b16 %v3434
      %v3452 = vunpack.c.l.b16 %v3435
      %v3453 = vunpack.c.l.b16 %v3436
      %v3454 = vunpack.c.l.b16 %v3437
      %v3455 = vunpack.c.l.b16 %v3438
      %v3456 = vunpack.c.l.b16 %v3439
      %v3457 = vpack.c.b16 %v3450, %v3449
      %v3458 = vpack.c.b16 %v3452, %v3451
      %v3459 = vpack.c.b16 %v3454, %v3453
      %v3460 = vpack.c.b16 %v3456, %v3455
      %v3462 = vsel %vm645, %v3457, 0
      %v3465 = vsel %vm645, %v3458, 0
      %v3468 = vsel %vm645, %v3459, 0
      %v3471 = vsel %vm645, %v3460, 0
      %v3474 = vsel %vm658, %v3440, 0
      %3476 = vmatprep.subr.bf16.mxu0 0
      %3477 = vmatpush1.bf16.msra.mxu0 0
      %3478 = vmatprep.subr.bf16.mxu0 0
      %3479 = vmatpush1.bf16.msra.mxu0 0
      %3480 = vmatprep.subr.bf16.mxu0 0
      %3481 = vmatpush1.bf16.msra.mxu0 0
      %3482 = vmatprep.subr.bf16.mxu0 0
      %3483 = vmatpush1.bf16.msra.mxu0 0
      %3484 = vmatprep.subr.bf16.mxu0 0
      %3485 = vmatpush1.bf16.msra.mxu0 0
      %3486 = vmatprep.subr.bf16.mxu0 0
      %3487 = vmatpush1.bf16.msra.mxu0 0
      %3488 = vmatprep.subr.bf16.mxu0 0
      %3489 = vmatpush1.bf16.msra.mxu0 0
      %3490 = vmatprep.subr.bf16.mxu0 0
      %3491 = vmatpush1.bf16.msra.mxu0 %v3474
      %3492 = vmatprep.subr.bf16.mxu0 0
      %3493 = vmatpush2.bf16.msra.mxu0 0
      %3494 = vmatprep.subr.bf16.mxu0 0
      %3495 = vmatpush2.bf16.msra.mxu0 0
      %3496 = vmatprep.subr.bf16.mxu0 0
      %3497 = vmatpush2.bf16.msra.mxu0 0
      %3498 = vmatprep.subr.bf16.mxu0 0
      %3499 = vmatpush2.bf16.msra.mxu0 0
      %3500 = vmatprep.subr.bf16.mxu0 0
      %3501 = vmatpush2.bf16.msra.mxu0 0
      %3502 = vmatprep.subr.bf16.mxu0 0
      %3503 = vmatpush2.bf16.msra.mxu0 0
      %3504 = vmatprep.subr.bf16.mxu0 0
      %3505 = vmatpush2.bf16.msra.mxu0 0
      %3506 = vmatprep.subr.bf16.mxu0 0
      %3507 = vmatpush2.bf16.msra.mxu0 0
      %3508 = vmatprep.mubr.bf16.mxu0 0
      %3509 = vmatmul.mubr.bf16.gmra.mxu0 %v3462
      %v3510 = vpop.f32.mrf.mxu0
      %v3511 = vadd.f32 0.0, %v3510
      %v3512 = vpop.f32.mrf.mxu0
      %v3513 = vpop.f32.mrf.mxu0
      %v3514 = vadd.f32 0.0, %v3513
      %v3515 = vpop.f32.mrf.mxu0
      %3516 = vmatprep.mubr.bf16.mxu0 0
      %3517 = vmatmul.mubr.bf16.gmra.mxu0 %v3465
      %v3518 = vpop.f32.mrf.mxu0
      %v3519 = vadd.f32 0.0, %v3518
      %v3520 = vpop.f32.mrf.mxu0
      %v3521 = vpop.f32.mrf.mxu0
      %v3522 = vadd.f32 0.0, %v3521
      %v3523 = vpop.f32.mrf.mxu0
      %3524 = vmatprep.mubr.bf16.mxu0 0
      %3525 = vmatmul.mubr.bf16.gmra.mxu0 %v3468
      %v3526 = vpop.f32.mrf.mxu0
      %v3527 = vadd.f32 0.0, %v3526
      %v3528 = vpop.f32.mrf.mxu0
      %v3529 = vpop.f32.mrf.mxu0
      %v3530 = vadd.f32 0.0, %v3529
      %v3531 = vpop.f32.mrf.mxu0
      %3532 = vmatprep.mubr.bf16.mxu0 0
      %3533 = vmatmul.mubr.bf16.gmra.mxu0 %v3471
      %v3534 = vpop.f32.mrf.mxu0
      %v3535 = vadd.f32 0.0, %v3534
      %v3536 = vpop.f32.mrf.mxu0
      %v3537 = vpop.f32.mrf.mxu0
      %v3538 = vadd.f32 0.0, %v3537
      %v3539 = vpop.f32.mrf.mxu0
      %3540 = vdwg.mxu0
      %v3541 = vpack.c.bf16 %v3514, %v3511
      %v3542 = vpack.c.bf16 %v3522, %v3519
      %v3543 = vpack.c.bf16 %v3530, %v3527
      %v3544 = vpack.c.bf16 %v3538, %v3535
      %v3545 = vld [vmem:[%s8] sm:$0xf]
      %v3547 = vsel %vm645, %v3541, 0
      %v3550 = vsel %vm645, %v3542, 0
      %v3553 = vsel %vm645, %v3543, 0
      %v3556 = vsel %vm645, %v3544, 0
      %v3559 = vsel %vm658, %v3545, 0
      %3561 = vmatprep.subr.bf16.mxu0 0
      %3562 = vmatpush1.bf16.msra.mxu0 0
      %3563 = vmatprep.subr.bf16.mxu0 0
      %3564 = vmatpush1.bf16.msra.mxu0 0
      %3565 = vmatprep.subr.bf16.mxu0 0
      %3566 = vmatpush1.bf16.msra.mxu0 0
      %3567 = vmatprep.subr.bf16.mxu0 0
      %3568 = vmatpush1.bf16.msra.mxu0 0
      %3569 = vmatprep.subr.bf16.mxu0 0
      %3570 = vmatpush1.bf16.msra.mxu0 0
      %3571 = vmatprep.subr.bf16.mxu0 0
      %3572 = vmatpush1.bf16.msra.mxu0 0
      %3573 = vmatprep.subr.bf16.mxu0 0
      %3574 = vmatpush1.bf16.msra.mxu0 0
      %3575 = vmatprep.subr.bf16.mxu0 0
      %3576 = vmatpush1.bf16.msra.mxu0 %v3559
      %3577 = vmatprep.subr.bf16.mxu0 0
      %3578 = vmatpush2.bf16.msra.mxu0 0
      %3579 = vmatprep.subr.bf16.mxu0 0
      %3580 = vmatpush2.bf16.msra.mxu0 0
      %3581 = vmatprep.subr.bf16.mxu0 0
      %3582 = vmatpush2.bf16.msra.mxu0 0
      %3583 = vmatprep.subr.bf16.mxu0 0
      %3584 = vmatpush2.bf16.msra.mxu0 0
      %3585 = vmatprep.subr.bf16.mxu0 0
      %3586 = vmatpush2.bf16.msra.mxu0 0
      %3587 = vmatprep.subr.bf16.mxu0 0
      %3588 = vmatpush2.bf16.msra.mxu0 0
      %3589 = vmatprep.subr.bf16.mxu0 0
      %3590 = vmatpush2.bf16.msra.mxu0 0
      %3591 = vmatprep.subr.bf16.mxu0 0
      %3592 = vmatpush2.bf16.msra.mxu0 0
      %3593 = vmatprep.mubr.bf16.mxu0 0
      %3594 = vmatmul.mubr.bf16.gmra.mxu0 %v3547
      %v3595 = vpop.f32.mrf.mxu0
      %v3596 = vadd.f32 0.0, %v3595
      %v3597 = vpop.f32.mrf.mxu0
      %v3598 = vpop.f32.mrf.mxu0
      %v3599 = vadd.f32 0.0, %v3598
      %v3600 = vpop.f32.mrf.mxu0
      %3601 = vmatprep.mubr.bf16.mxu0 0
      %3602 = vmatmul.mubr.bf16.gmra.mxu0 %v3550
      %v3603 = vpop.f32.mrf.mxu0
      %v3604 = vadd.f32 0.0, %v3603
      %v3605 = vpop.f32.mrf.mxu0
      %v3606 = vpop.f32.mrf.mxu0
      %v3607 = vadd.f32 0.0, %v3606
      %v3608 = vpop.f32.mrf.mxu0
      %3609 = vmatprep.mubr.bf16.mxu0 0
      %3610 = vmatmul.mubr.bf16.gmra.mxu0 %v3553
      %v3611 = vpop.f32.mrf.mxu0
      %v3612 = vadd.f32 0.0, %v3611
      %v3613 = vpop.f32.mrf.mxu0
      %v3614 = vpop.f32.mrf.mxu0
      %v3615 = vadd.f32 0.0, %v3614
      %v3616 = vpop.f32.mrf.mxu0
      %3617 = vmatprep.mubr.bf16.mxu0 0
      %3618 = vmatmul.mubr.bf16.gmra.mxu0 %v3556
      %v3619 = vpop.f32.mrf.mxu0
      %v3620 = vadd.f32 0.0, %v3619
      %v3621 = vpop.f32.mrf.mxu0
      %v3622 = vpop.f32.mrf.mxu0
      %v3623 = vadd.f32 0.0, %v3622
      %v3624 = vpop.f32.mrf.mxu0
      %3625 = vdwg.mxu0
      %s3626 = scalar_lea.vmem %s413, 448
      %3627 = vst.msk [vmem:[%s3626] sm:$0xff] %vm812, %v3596
      %3628 = vst.msk [vmem:[%s3626 + $0x8] sm:$0xff] %vm812, %v3599
      %3629 = vst.msk [vmem:[%s3626 + $0x10] sm:$0xff] %vm812, %v3604
      %3630 = vst.msk [vmem:[%s3626 + $0x18] sm:$0xff] %vm812, %v3607
      %3631 = vst.msk [vmem:[%s3626 + $0x20] sm:$0xff] %vm812, %v3612
      %3632 = vst.msk [vmem:[%s3626 + $0x28] sm:$0xff] %vm812, %v3615
      %3633 = vst.msk [vmem:[%s3626 + $0x30] sm:$0xff] %vm812, %v3620
      %3634 = vst.msk [vmem:[%s3626 + $0x38] sm:$0xff] %vm812, %v3623
      %s3635 = smul.u32 8, %s25
      %p3636 = scmp.lt.s32.totalorder %s24, 1
      %s3637 = scalar_select %p3636, %s24, 1
      %p3638 = scmp.lt.s32.totalorder %s3635, 7
      %s3639 = scalar_select %p3638, %s3635, 7
      %s3640 = smul.addr %s3637, 64
      %s3641 = sadd.s32 %s3639, %s3640
      %s3642 = smul.addr %s3641, 8
      %s3643 = scalar_lea.vmem %s9, %s3642
      // Predicated region
      $region57: #{fcn_forward.13} parent=55 // pred_check
        %p3644 = pneg %p261
      $region58: #{fcn_forward.13} parent=55 // pred_check_branch
        %3646 = sbr.rel (%p3644) target = $region60
      $region59: #{fcn_forward.13} parent=55 // pred_region
        %s3647 = smul.u32 8, %s25
      $region60: #{fcn_forward.13} parent=55 // pred_fallthru
        _
    $region56: #{fcn_forward.13} parent=5 // pred_fallthru
      _
    %p3648 = scmp.le.s32.totalorder 2, %s15
    // Predicated region
    $region61: #{fcn_forward.13} parent=5 // pred_check
      %p3649 = pneg %p3648
    $region62: #{fcn_forward.13} parent=5 // pred_check_branch
      %3651 = sbr.rel (%p3649) target = $region64
    $region63: #{fcn_forward.13} parent=5 // pred_region
      %s3652 = ssub.s32 %s15, 2
      // Predicated region
      $region65: #{fcn_forward.13} parent=63 // pred_check
        %p3653 = pneg %p267
      $region66: #{fcn_forward.13} parent=63 // pred_check_branch
        %3655 = sbr.rel (%p3653) target = $region68
      $region67: #{fcn_forward.13} parent=63 // pred_region
        %s3656 = smul.u32 8, %s27
        %p3657 = scmp.lt.s32.totalorder %s26, 1
        %s3658 = scalar_select %p3657, %s26, 1
        %p3659 = scmp.lt.s32.totalorder %s3656, 7
        %s3660 = scalar_select %p3659, %s3656, 7
        %s3661 = smul.addr %s3658, 64
        %s3662 = sadd.s32 %s3660, %s3661
        %s3663 = smul.addr %s3662, 8
        %s3664 = scalar_lea.vmem %s9, %s3663
      $region68: #{fcn_forward.13} parent=63 // pred_fallthru
        _
    $region64: #{fcn_forward.13} parent=5 // pred_fallthru
      _
  $region6: #{fcn_forward.13} parent=0 // loop_footer
    %s19 = sadd.s32 1, %s15
  $region7: #{fcn_forward.13} parent=0 // loop_footer_branch
    %14 = sbr.rel target = $region3
  $region8: #{fcn_forward.13} parent=0 // loop_exit
    _

</llo_original>
